<compile_context>
chip_gen: v7x
topology: tpu7x:2x2x1
jax: 0.10.0
libtpu: 0.0.40
codegen_flags: <defaults>
</compile_context>

<pallas_src>
import jax
import jax.numpy as jnp
from jax import lax
from jax.experimental import pallas as pl
from jax.experimental.pallas import tpu as pltpu
import numpy as np

LANE = 128


def basic_block_kernel(xpad_ref, w1_ref, b1_ref, w2_ref, b2_ref, out_ref,
                       cols_ref, midpad_ref):
    # xpad_ref  : (H+2, W+2, Cp)   zero-padded bf16 NHWC input (one image)
    # w1_ref    : (9*Cp, Pp)       conv1 weights (BN1 scale folded in), bf16
    # b1_ref    : (1, Pp)          folded BN1 shift, f32
    # w2_ref    : (9*Pp, Pp)       conv2 weights (BN2 scale folded in), bf16
    # b2_ref    : (1, Pp)          folded BN2 shift, f32
    # out_ref   : (H, W, Pp)       f32 output (one image)
    # cols_ref  : (H*W, 9*Cp)      im2col scratch, bf16 (reused by both convs)
    # midpad_ref: (H+2, W+2, Pp)   re-padded intermediate, bf16
    Hp, Wp, Cp = xpad_ref.shape
    H, W = Hp - 2, Wp - 2
    Pp = w1_ref.shape[1]
    M = H * W
    f32 = jnp.float32

    # ---- conv1 im2col slab: tap t = ki*3+kj -> channel cols [t*Cp, (t+1)*Cp)
    for ki in range(3):
        for kj in range(3):
            t = ki * 3 + kj
            tap = xpad_ref[ki:ki + H, kj:kj + W, :]          # (H, W, Cp)
            cols_ref[:, t * Cp:(t + 1) * Cp] = tap.reshape(M, Cp)

    # Residual = center tap (ki=kj=1) = un-shifted input interior.
    # Lane-aligned contiguous read; taken before the slab is reused by conv2.
    residual = cols_ref[:, 4 * Cp:5 * Cp]

    # ---- conv1 (+ folded BN1 scale): ONE MXU matmul, bf16 operands, f32 acc
    h1 = jnp.dot(cols_ref[...], w1_ref[...], preferred_element_type=f32)
    mid = jnp.maximum(h1 + b1_ref[...], 0.0)                 # (M, Pp) f32

    # ---- re-pad the intermediate for conv2: zero only the 1-pixel halo ----
    zero_row = jnp.zeros((1, Wp, Pp), midpad_ref.dtype)
    zero_col = jnp.zeros((Hp, 1, Pp), midpad_ref.dtype)
    midpad_ref[0:1, :, :] = zero_row
    midpad_ref[Hp - 1:Hp, :, :] = zero_row
    midpad_ref[:, 0:1, :] = zero_col
    midpad_ref[:, Wp - 1:Wp, :] = zero_col
    midpad_ref[1:H + 1, 1:W + 1, :] = mid.reshape(H, W, Pp).astype(
        midpad_ref.dtype)

    # ---- conv2 im2col slab (reuses cols_ref; Cp == Pp) ----
    for ki in range(3):
        for kj in range(3):
            t = ki * 3 + kj
            tap = midpad_ref[ki:ki + H, kj:kj + W, :]        # (H, W, Pp)
            cols_ref[:, t * Pp:(t + 1) * Pp] = tap.reshape(M, Pp)

    # ---- conv2 (+ folded BN2 scale) -> + residual -> ReLU ----
    h2 = jnp.dot(cols_ref[...], w2_ref[...], preferred_element_type=f32)
    out = jnp.maximum(h2 + b2_ref[...] + residual.astype(f32), 0.0)
    out_ref[...] = out.reshape(H, W, Pp).astype(out_ref.dtype)


def basic_block_pallas(x_nchw, params, eps=1e-5, compute_dtype=jnp.bfloat16):
    """Fused BasicBlock forward.  x_nchw: (N, Cin, H, W) float32 (eval-mode BN)."""
    (w1, g1, be1, m1, v1, w2, g2, be2, m2, v2) = params
    N, Cin, H, W = x_nchw.shape
    P = w1.shape[-1]
    assert Cin == P, "no-downsample BasicBlock requires inplanes == planes"

    # Pad channels to a lane-dense multiple of 128.
    Cp = ((Cin + LANE - 1) // LANE) * LANE
    Pp = ((P + LANE - 1) // LANE) * LANE
    assert Cp == Pp

    # NCHW -> NHWC, zero-pad spatial by 1 (padding=1 of the 3x3 convs) and
    # channels up to Cp; cast activations to bf16 for the MXU.
    x_nhwc = jnp.transpose(x_nchw, (0, 2, 3, 1))
    xpad = jnp.pad(x_nhwc, ((0, 0), (1, 1), (1, 1), (0, Cp - Cin))
                   ).astype(compute_dtype)
    Hp, Wp = H + 2, W + 2

    # Fold eval-mode BatchNorm: scale into the conv weights, shift into a bias.
    s1 = g1 / jnp.sqrt(v1 + eps)
    b1 = be1 - m1 * s1
    s2 = g2 / jnp.sqrt(v2 + eps)
    b2 = be2 - m2 * s2
    w1f = (w1 * s1).astype(jnp.float32)            # (3,3,Cin,P) HWIO, per-out-ch scale
    w2f = (w2 * s2).astype(jnp.float32)

    # Pad channels, flatten taps: (3,3,Cp,Pp) -> (9*Cp, Pp); row = t*Cp + c,
    # matching the im2col column layout used in the kernel.
    w1p = jnp.zeros((3, 3, Cp, Pp), jnp.float32).at[:, :, :Cin, :P].set(w1f)
    w1r = w1p.reshape(9 * Cp, Pp).astype(compute_dtype)
    w2p = jnp.zeros((3, 3, Pp, Pp), jnp.float32).at[:, :, :P, :P].set(w2f)
    w2r = w2p.reshape(9 * Pp, Pp).astype(compute_dtype)
    b1p = jnp.zeros((1, Pp), jnp.float32).at[0, :P].set(b1)
    b2p = jnp.zeros((1, Pp), jnp.float32).at[0, :P].set(b2)

    out_nhwc = pl.pallas_call(
        basic_block_kernel,
        out_shape=jax.ShapeDtypeStruct((N, H, W, Pp), jnp.float32),
        grid_spec=pltpu.PrefetchScalarGridSpec(
            num_scalar_prefetch=0,
            grid=(N,),
            in_specs=[
                # one padded image per grid step (batch dim squeezed)
                pl.BlockSpec((None, Hp, Wp, Cp), lambda n: (n, 0, 0, 0)),
                # weights / biases: constant block index -> DMA'd once, resident
                pl.BlockSpec((9 * Cp, Pp), lambda n: (0, 0)),
                pl.BlockSpec((1, Pp), lambda n: (0, 0)),
                pl.BlockSpec((9 * Pp, Pp), lambda n: (0, 0)),
                pl.BlockSpec((1, Pp), lambda n: (0, 0)),
            ],
            out_specs=pl.BlockSpec((None, H, W, Pp), lambda n: (n, 0, 0, 0)),
            scratch_shapes=[
                pltpu.VMEM((H * W, 9 * Cp), compute_dtype),  # shared im2col slab
                pltpu.VMEM((Hp, Wp, Pp), compute_dtype),     # re-padded intermediate
            ],
        ),
        compiler_params=pltpu.CompilerParams(
            dimension_semantics=("parallel",),
            # explicit VMEM budget; well above the per-image working set even
            # at real ResNet block shapes, and safe on v7x's 64 MiB VMEM.
            vmem_limit_bytes=32 * 1024 * 1024,
        ),
    )(xpad, w1r, b1p, w2r, b2p)

    # drop channel padding, NHWC -> NCHW to match the PyTorch output convention
    return jnp.transpose(out_nhwc[..., :P], (0, 3, 1, 2))


def basic_block_reference(x_nchw, params, eps=1e-5):
    """Pure-JAX f32 reference (eval-mode BN), for correctness checking."""
    (w1, g1, be1, m1, v1, w2, g2, be2, m2, v2) = params
    x = jnp.transpose(x_nchw, (0, 2, 3, 1))
    dn = ('NHWC', 'HWIO', 'NHWC')
    y = lax.conv_general_dilated(x, w1, (1, 1), 'SAME', dimension_numbers=dn)
    y = (y - m1) / jnp.sqrt(v1 + eps) * g1 + be1
    y = jnp.maximum(y, 0.0)
    z = lax.conv_general_dilated(y, w2, (1, 1), 'SAME', dimension_numbers=dn)
    z = (z - m2) / jnp.sqrt(v2 + eps) * g2 + be2
    z = jnp.maximum(z + x, 0.0)
    return jnp.transpose(z, (0, 3, 1, 2))


if __name__ == "__main__":
    # Small shapes: N=2, inplanes=planes=8, H=W=16, stride=1, downsample=None.
    N, C, H, W = 2, 8, 16, 16
    key = jax.random.PRNGKey(0)
    keys = jax.random.split(key, 8)

    x = jax.random.normal(keys[0], (N, C, H, W), jnp.float32)

    # Synthetic parameters: conv weights in HWIO (a PyTorch OIHW weight would
    # be transposed to HWIO first), BN gamma/beta/running_mean/running_var.
    w1 = jax.random.normal(keys[1], (3, 3, C, C), jnp.float32) * 0.1
    w2 = jax.random.normal(keys[2], (3, 3, C, C), jnp.float32) * 0.1
    g1 = 1.0 + 0.1 * jax.random.normal(keys[3], (C,), jnp.float32)
    be1 = 0.1 * jax.random.normal(keys[4], (C,), jnp.float32)
    m1 = 0.1 * jax.random.normal(keys[5], (C,), jnp.float32)
    v1 = 1.0 + 0.1 * jnp.abs(jax.random.normal(keys[6], (C,), jnp.float32))
    g2 = jnp.ones((C,), jnp.float32)
    be2 = jnp.zeros((C,), jnp.float32)
    m2 = 0.05 * jax.random.normal(keys[7], (C,), jnp.float32)
    v2 = jnp.ones((C,), jnp.float32) * 1.2

    params = (w1, g1, be1, m1, v1, w2, g2, be2, m2, v2)

    out = jax.block_until_ready(basic_block_pallas(x, params))
    ref = jax.block_until_ready(basic_block_reference(x, params))

    # bf16 MXU operands (f32 accumulation) -> loosened tolerance vs f32 ref.
    np.testing.assert_allclose(np.asarray(out), np.asarray(ref),
                               rtol=5e-2, atol=5e-2)

    print("KERNEL_OK")
</pallas_src>

<mosaic_0001>
module attributes {stable_mosaic.version = 11 : i64} {
  func.func @basic_block_kernel(%arg0: i32, %arg1: memref<1x18x18x128xbf16, #tpu.memory_space<vmem>>, %arg2: memref<1152x128xbf16, #tpu.memory_space<vmem>>, %arg3: memref<1x128xf32, #tpu.memory_space<vmem>>, %arg4: memref<1152x128xbf16, #tpu.memory_space<vmem>>, %arg5: memref<1x128xf32, #tpu.memory_space<vmem>>, %arg6: memref<1x16x16x128xf32, #tpu.memory_space<vmem>>, %arg7: memref<256x1152xbf16, #tpu.memory_space<vmem>>, %arg8: memref<18x18x128xbf16, #tpu.memory_space<vmem>>) attributes {dimension_semantics = [#tpu.dimension_semantics<parallel>], iteration_bounds = array<i64: 2>, scalar_prefetch = 0 : i64, scratch_operands = 2 : i64, tpu.core_type = #tpu.core_type<tc>, window_params = [{transform_indices = @transform_0, window_bounds = array<i64: 1, 18, 18, 128>}, {pipeline_mode = #tpu.pipeline_mode<synchronous>, transform_indices = @transform_1, window_bounds = array<i64: 1152, 128>}, {pipeline_mode = #tpu.pipeline_mode<synchronous>, transform_indices = @transform_2, window_bounds = array<i64: 1, 128>}, {pipeline_mode = #tpu.pipeline_mode<synchronous>, transform_indices = @transform_3, window_bounds = array<i64: 1152, 128>}, {pipeline_mode = #tpu.pipeline_mode<synchronous>, transform_indices = @transform_4, window_bounds = array<i64: 1, 128>}, {transform_indices = @transform_5, window_bounds = array<i64: 1, 16, 16, 128>}]} {
    %c0 = arith.constant 0 : index
    %c0_0 = arith.constant 0 : index
    %c0_1 = arith.constant 0 : index
    %c0_2 = arith.constant 0 : index
    %0 = vector.load %arg1[%c0, %c0_0, %c0_1, %c0_2] : memref<1x18x18x128xbf16, #tpu.memory_space<vmem>>, vector<1x16x16x128xbf16>
    %1 = vector.shape_cast %0 : vector<1x16x16x128xbf16> to vector<16x16x128xbf16>
    %2 = vector.shape_cast %1 : vector<16x16x128xbf16> to vector<256x128xbf16>
    %c0_3 = arith.constant 0 : index
    %c0_4 = arith.constant 0 : index
    %3 = vector.load %arg7[%c0_3, %c0_4] : memref<256x1152xbf16, #tpu.memory_space<vmem>>, vector<256x128xbf16>
    tpu.vector_store %arg7[%c0_3, %c0_4], %2 {strides = array<i32>} : memref<256x1152xbf16, #tpu.memory_space<vmem>>, vector<256x128xbf16>,
    %c0_5 = arith.constant 0 : index
    %c0_6 = arith.constant 0 : index
    %c1 = arith.constant 1 : index
    %c0_7 = arith.constant 0 : index
    %4 = vector.load %arg1[%c0_5, %c0_6, %c1, %c0_7] : memref<1x18x18x128xbf16, #tpu.memory_space<vmem>>, vector<1x16x16x128xbf16>
    %5 = vector.shape_cast %4 : vector<1x16x16x128xbf16> to vector<16x16x128xbf16>
    %6 = vector.shape_cast %5 : vector<16x16x128xbf16> to vector<256x128xbf16>
    %c0_8 = arith.constant 0 : index
    %c128 = arith.constant 128 : index
    %7 = vector.load %arg7[%c0_8, %c128] : memref<256x1152xbf16, #tpu.memory_space<vmem>>, vector<256x128xbf16>
    tpu.vector_store %arg7[%c0_8, %c128], %6 {strides = array<i32>} : memref<256x1152xbf16, #tpu.memory_space<vmem>>, vector<256x128xbf16>,
    %c0_9 = arith.constant 0 : index
    %c0_10 = arith.constant 0 : index
    %c2 = arith.constant 2 : index
    %c0_11 = arith.constant 0 : index
    %8 = vector.load %arg1[%c0_9, %c0_10, %c2, %c0_11] : memref<1x18x18x128xbf16, #tpu.memory_space<vmem>>, vector<1x16x16x128xbf16>
    %9 = vector.shape_cast %8 : vector<1x16x16x128xbf16> to vector<16x16x128xbf16>
    %10 = vector.shape_cast %9 : vector<16x16x128xbf16> to vector<256x128xbf16>
    %c0_12 = arith.constant 0 : index
    %c256 = arith.constant 256 : index
    %11 = vector.load %arg7[%c0_12, %c256] : memref<256x1152xbf16, #tpu.memory_space<vmem>>, vector<256x128xbf16>
    tpu.vector_store %arg7[%c0_12, %c256], %10 {strides = array<i32>} : memref<256x1152xbf16, #tpu.memory_space<vmem>>, vector<256x128xbf16>,
    %c0_13 = arith.constant 0 : index
    %c1_14 = arith.constant 1 : index
    %c0_15 = arith.constant 0 : index
    %c0_16 = arith.constant 0 : index
    %12 = vector.load %arg1[%c0_13, %c1_14, %c0_15, %c0_16] : memref<1x18x18x128xbf16, #tpu.memory_space<vmem>>, vector<1x16x16x128xbf16>
    %13 = vector.shape_cast %12 : vector<1x16x16x128xbf16> to vector<16x16x128xbf16>
    %14 = vector.shape_cast %13 : vector<16x16x128xbf16> to vector<256x128xbf16>
    %c0_17 = arith.constant 0 : index
    %c384 = arith.constant 384 : index
    %15 = vector.load %arg7[%c0_17, %c384] : memref<256x1152xbf16, #tpu.memory_space<vmem>>, vector<256x128xbf16>
    tpu.vector_store %arg7[%c0_17, %c384], %14 {strides = array<i32>} : memref<256x1152xbf16, #tpu.memory_space<vmem>>, vector<256x128xbf16>,
    %c0_18 = arith.constant 0 : index
    %c1_19 = arith.constant 1 : index
    %c1_20 = arith.constant 1 : index
    %c0_21 = arith.constant 0 : index
    %16 = vector.load %arg1[%c0_18, %c1_19, %c1_20, %c0_21] : memref<1x18x18x128xbf16, #tpu.memory_space<vmem>>, vector<1x16x16x128xbf16>
    %17 = vector.shape_cast %16 : vector<1x16x16x128xbf16> to vector<16x16x128xbf16>
    %18 = vector.shape_cast %17 : vector<16x16x128xbf16> to vector<256x128xbf16>
    %c0_22 = arith.constant 0 : index
    %c512 = arith.constant 512 : index
    %19 = vector.load %arg7[%c0_22, %c512] : memref<256x1152xbf16, #tpu.memory_space<vmem>>, vector<256x128xbf16>
    tpu.vector_store %arg7[%c0_22, %c512], %18 {strides = array<i32>} : memref<256x1152xbf16, #tpu.memory_space<vmem>>, vector<256x128xbf16>,
    %c0_23 = arith.constant 0 : index
    %c1_24 = arith.constant 1 : index
    %c2_25 = arith.constant 2 : index
    %c0_26 = arith.constant 0 : index
    %20 = vector.load %arg1[%c0_23, %c1_24, %c2_25, %c0_26] : memref<1x18x18x128xbf16, #tpu.memory_space<vmem>>, vector<1x16x16x128xbf16>
    %21 = vector.shape_cast %20 : vector<1x16x16x128xbf16> to vector<16x16x128xbf16>
    %22 = vector.shape_cast %21 : vector<16x16x128xbf16> to vector<256x128xbf16>
    %c0_27 = arith.constant 0 : index
    %c640 = arith.constant 640 : index
    %23 = vector.load %arg7[%c0_27, %c640] : memref<256x1152xbf16, #tpu.memory_space<vmem>>, vector<256x128xbf16>
    tpu.vector_store %arg7[%c0_27, %c640], %22 {strides = array<i32>} : memref<256x1152xbf16, #tpu.memory_space<vmem>>, vector<256x128xbf16>,
    %c0_28 = arith.constant 0 : index
    %c2_29 = arith.constant 2 : index
    %c0_30 = arith.constant 0 : index
    %c0_31 = arith.constant 0 : index
    %24 = vector.load %arg1[%c0_28, %c2_29, %c0_30, %c0_31] : memref<1x18x18x128xbf16, #tpu.memory_space<vmem>>, vector<1x16x16x128xbf16>
    %25 = vector.shape_cast %24 : vector<1x16x16x128xbf16> to vector<16x16x128xbf16>
    %26 = vector.shape_cast %25 : vector<16x16x128xbf16> to vector<256x128xbf16>
    %c0_32 = arith.constant 0 : index
    %c768 = arith.constant 768 : index
    %27 = vector.load %arg7[%c0_32, %c768] : memref<256x1152xbf16, #tpu.memory_space<vmem>>, vector<256x128xbf16>
    tpu.vector_store %arg7[%c0_32, %c768], %26 {strides = array<i32>} : memref<256x1152xbf16, #tpu.memory_space<vmem>>, vector<256x128xbf16>,
    %c0_33 = arith.constant 0 : index
    %c2_34 = arith.constant 2 : index
    %c1_35 = arith.constant 1 : index
    %c0_36 = arith.constant 0 : index
    %28 = vector.load %arg1[%c0_33, %c2_34, %c1_35, %c0_36] : memref<1x18x18x128xbf16, #tpu.memory_space<vmem>>, vector<1x16x16x128xbf16>
    %29 = vector.shape_cast %28 : vector<1x16x16x128xbf16> to vector<16x16x128xbf16>
    %30 = vector.shape_cast %29 : vector<16x16x128xbf16> to vector<256x128xbf16>
    %c0_37 = arith.constant 0 : index
    %c896 = arith.constant 896 : index
    %31 = vector.load %arg7[%c0_37, %c896] : memref<256x1152xbf16, #tpu.memory_space<vmem>>, vector<256x128xbf16>
    tpu.vector_store %arg7[%c0_37, %c896], %30 {strides = array<i32>} : memref<256x1152xbf16, #tpu.memory_space<vmem>>, vector<256x128xbf16>,
    %c0_38 = arith.constant 0 : index
    %c2_39 = arith.constant 2 : index
    %c2_40 = arith.constant 2 : index
    %c0_41 = arith.constant 0 : index
    %32 = vector.load %arg1[%c0_38, %c2_39, %c2_40, %c0_41] : memref<1x18x18x128xbf16, #tpu.memory_space<vmem>>, vector<1x16x16x128xbf16>
    %33 = vector.shape_cast %32 : vector<1x16x16x128xbf16> to vector<16x16x128xbf16>
    %34 = vector.shape_cast %33 : vector<16x16x128xbf16> to vector<256x128xbf16>
    %c0_42 = arith.constant 0 : index
    %c1024 = arith.constant 1024 : index
    %35 = vector.load %arg7[%c0_42, %c1024] : memref<256x1152xbf16, #tpu.memory_space<vmem>>, vector<256x128xbf16>
    tpu.vector_store %arg7[%c0_42, %c1024], %34 {strides = array<i32>} : memref<256x1152xbf16, #tpu.memory_space<vmem>>, vector<256x128xbf16>,
    %c0_43 = arith.constant 0 : index
    %c512_44 = arith.constant 512 : index
    %36 = vector.load %arg7[%c0_43, %c512_44] : memref<256x1152xbf16, #tpu.memory_space<vmem>>, vector<256x128xbf16>
    %c0_45 = arith.constant 0 : index
    %c0_46 = arith.constant 0 : index
    %37 = vector.load %arg7[%c0_45, %c0_46] : memref<256x1152xbf16, #tpu.memory_space<vmem>>, vector<256x1152xbf16>
    %c0_47 = arith.constant 0 : index
    %c0_48 = arith.constant 0 : index
    %38 = vector.load %arg2[%c0_47, %c0_48] : memref<1152x128xbf16, #tpu.memory_space<vmem>>, vector<1152x128xbf16>
    %cst = arith.constant dense<0.000000e+00> : vector<256x128xf32>
    %39 = tpu.matmul %37, %38, %cst {dimension_numbers = #tpu.dot_dimension_numbers<[1], [0], [0], [1], [0, 0, 1, 1], [], []>} : vector<256x1152xbf16>, vector<1152x128xbf16>, vector<256x128xf32> -> vector<256x128xf32>
    %c0_49 = arith.constant 0 : index
    %c0_50 = arith.constant 0 : index
    %40 = vector.load %arg3[%c0_49, %c0_50] : memref<1x128xf32, #tpu.memory_space<vmem>>, vector<1x128xf32>
    %41 = vector.broadcast %40 : vector<1x128xf32> to vector<256x128xf32>
    %42 = arith.addf %39, %41 : vector<256x128xf32>
    %cst_51 = arith.constant 0.000000e+00 : f32
    %43 = vector.broadcast %cst_51 : f32 to vector<256x128xf32>
    %44 = arith.maximumf %42, %43 : vector<256x128xf32>
    %cst_52 = arith.constant 0.000000e+00 : bf16
    %45 = vector.broadcast %cst_52 : bf16 to vector<1x18x128xbf16>
    %cst_53 = arith.constant 0.000000e+00 : bf16
    %46 = vector.broadcast %cst_53 : bf16 to vector<18x1x128xbf16>
    %c0_54 = arith.constant 0 : index
    %c0_55 = arith.constant 0 : index
    %c0_56 = arith.constant 0 : index
    %47 = vector.load %arg8[%c0_54, %c0_55, %c0_56] : memref<18x18x128xbf16, #tpu.memory_space<vmem>>, vector<1x18x128xbf16>
    tpu.vector_store %arg8[%c0_54, %c0_55, %c0_56], %45 {strides = array<i32>} : memref<18x18x128xbf16, #tpu.memory_space<vmem>>, vector<1x18x128xbf16>,
    %c17 = arith.constant 17 : index
    %c0_57 = arith.constant 0 : index
    %c0_58 = arith.constant 0 : index
    %48 = vector.load %arg8[%c17, %c0_57, %c0_58] : memref<18x18x128xbf16, #tpu.memory_space<vmem>>, vector<1x18x128xbf16>
    tpu.vector_store %arg8[%c17, %c0_57, %c0_58], %45 {strides = array<i32>} : memref<18x18x128xbf16, #tpu.memory_space<vmem>>, vector<1x18x128xbf16>,
    %c0_59 = arith.constant 0 : index
    %c0_60 = arith.constant 0 : index
    %c0_61 = arith.constant 0 : index
    %49 = vector.load %arg8[%c0_59, %c0_60, %c0_61] : memref<18x18x128xbf16, #tpu.memory_space<vmem>>, vector<18x1x128xbf16>
    tpu.vector_store %arg8[%c0_59, %c0_60, %c0_61], %46 {strides = array<i32>} : memref<18x18x128xbf16, #tpu.memory_space<vmem>>, vector<18x1x128xbf16>,
    %c0_62 = arith.constant 0 : index
    %c17_63 = arith.constant 17 : index
    %c0_64 = arith.constant 0 : index
    %50 = vector.load %arg8[%c0_62, %c17_63, %c0_64] : memref<18x18x128xbf16, #tpu.memory_space<vmem>>, vector<18x1x128xbf16>
    tpu.vector_store %arg8[%c0_62, %c17_63, %c0_64], %46 {strides = array<i32>} : memref<18x18x128xbf16, #tpu.memory_space<vmem>>, vector<18x1x128xbf16>,
    %51 = vector.shape_cast %44 : vector<256x128xf32> to vector<16x16x128xf32>
    %52 = arith.truncf %51 : vector<16x16x128xf32> to vector<16x16x128xbf16>
    %c1_65 = arith.constant 1 : index
    %c1_66 = arith.constant 1 : index
    %c0_67 = arith.constant 0 : index
    %53 = vector.load %arg8[%c1_65, %c1_66, %c0_67] : memref<18x18x128xbf16, #tpu.memory_space<vmem>>, vector<16x16x128xbf16>
    tpu.vector_store %arg8[%c1_65, %c1_66, %c0_67], %52 {strides = array<i32>} : memref<18x18x128xbf16, #tpu.memory_space<vmem>>, vector<16x16x128xbf16>,
    %c0_68 = arith.constant 0 : index
    %c0_69 = arith.constant 0 : index
    %c0_70 = arith.constant 0 : index
    %54 = vector.load %arg8[%c0_68, %c0_69, %c0_70] : memref<18x18x128xbf16, #tpu.memory_space<vmem>>, vector<16x16x128xbf16>
    %55 = vector.shape_cast %54 : vector<16x16x128xbf16> to vector<256x128xbf16>
    %c0_71 = arith.constant 0 : index
    %c0_72 = arith.constant 0 : index
    %56 = vector.load %arg7[%c0_71, %c0_72] : memref<256x1152xbf16, #tpu.memory_space<vmem>>, vector<256x128xbf16>
    tpu.vector_store %arg7[%c0_71, %c0_72], %55 {strides = array<i32>} : memref<256x1152xbf16, #tpu.memory_space<vmem>>, vector<256x128xbf16>,
    %c0_73 = arith.constant 0 : index
    %c1_74 = arith.constant 1 : index
    %c0_75 = arith.constant 0 : index
    %57 = vector.load %arg8[%c0_73, %c1_74, %c0_75] : memref<18x18x128xbf16, #tpu.memory_space<vmem>>, vector<16x16x128xbf16>
    %58 = vector.shape_cast %57 : vector<16x16x128xbf16> to vector<256x128xbf16>
    %c0_76 = arith.constant 0 : index
    %c128_77 = arith.constant 128 : index
    %59 = vector.load %arg7[%c0_76, %c128_77] : memref<256x1152xbf16, #tpu.memory_space<vmem>>, vector<256x128xbf16>
    tpu.vector_store %arg7[%c0_76, %c128_77], %58 {strides = array<i32>} : memref<256x1152xbf16, #tpu.memory_space<vmem>>, vector<256x128xbf16>,
    %c0_78 = arith.constant 0 : index
    %c2_79 = arith.constant 2 : index
    %c0_80 = arith.constant 0 : index
    %60 = vector.load %arg8[%c0_78, %c2_79, %c0_80] : memref<18x18x128xbf16, #tpu.memory_space<vmem>>, vector<16x16x128xbf16>
    %61 = vector.shape_cast %60 : vector<16x16x128xbf16> to vector<256x128xbf16>
    %c0_81 = arith.constant 0 : index
    %c256_82 = arith.constant 256 : index
    %62 = vector.load %arg7[%c0_81, %c256_82] : memref<256x1152xbf16, #tpu.memory_space<vmem>>, vector<256x128xbf16>
    tpu.vector_store %arg7[%c0_81, %c256_82], %61 {strides = array<i32>} : memref<256x1152xbf16, #tpu.memory_space<vmem>>, vector<256x128xbf16>,
    %c1_83 = arith.constant 1 : index
    %c0_84 = arith.constant 0 : index
    %c0_85 = arith.constant 0 : index
    %63 = vector.load %arg8[%c1_83, %c0_84, %c0_85] : memref<18x18x128xbf16, #tpu.memory_space<vmem>>, vector<16x16x128xbf16>
    %64 = vector.shape_cast %63 : vector<16x16x128xbf16> to vector<256x128xbf16>
    %c0_86 = arith.constant 0 : index
    %c384_87 = arith.constant 384 : index
    %65 = vector.load %arg7[%c0_86, %c384_87] : memref<256x1152xbf16, #tpu.memory_space<vmem>>, vector<256x128xbf16>
    tpu.vector_store %arg7[%c0_86, %c384_87], %64 {strides = array<i32>} : memref<256x1152xbf16, #tpu.memory_space<vmem>>, vector<256x128xbf16>,
    %c1_88 = arith.constant 1 : index
    %c1_89 = arith.constant 1 : index
    %c0_90 = arith.constant 0 : index
    %66 = vector.load %arg8[%c1_88, %c1_89, %c0_90] : memref<18x18x128xbf16, #tpu.memory_space<vmem>>, vector<16x16x128xbf16>
    %67 = vector.shape_cast %66 : vector<16x16x128xbf16> to vector<256x128xbf16>
    %c0_91 = arith.constant 0 : index
    %c512_92 = arith.constant 512 : index
    %68 = vector.load %arg7[%c0_91, %c512_92] : memref<256x1152xbf16, #tpu.memory_space<vmem>>, vector<256x128xbf16>
    tpu.vector_store %arg7[%c0_91, %c512_92], %67 {strides = array<i32>} : memref<256x1152xbf16, #tpu.memory_space<vmem>>, vector<256x128xbf16>,
    %c1_93 = arith.constant 1 : index
    %c2_94 = arith.constant 2 : index
    %c0_95 = arith.constant 0 : index
    %69 = vector.load %arg8[%c1_93, %c2_94, %c0_95] : memref<18x18x128xbf16, #tpu.memory_space<vmem>>, vector<16x16x128xbf16>
    %70 = vector.shape_cast %69 : vector<16x16x128xbf16> to vector<256x128xbf16>
    %c0_96 = arith.constant 0 : index
    %c640_97 = arith.constant 640 : index
    %71 = vector.load %arg7[%c0_96, %c640_97] : memref<256x1152xbf16, #tpu.memory_space<vmem>>, vector<256x128xbf16>
    tpu.vector_store %arg7[%c0_96, %c640_97], %70 {strides = array<i32>} : memref<256x1152xbf16, #tpu.memory_space<vmem>>, vector<256x128xbf16>,
    %c2_98 = arith.constant 2 : index
    %c0_99 = arith.constant 0 : index
    %c0_100 = arith.constant 0 : index
    %72 = vector.load %arg8[%c2_98, %c0_99, %c0_100] : memref<18x18x128xbf16, #tpu.memory_space<vmem>>, vector<16x16x128xbf16>
    %73 = vector.shape_cast %72 : vector<16x16x128xbf16> to vector<256x128xbf16>
    %c0_101 = arith.constant 0 : index
    %c768_102 = arith.constant 768 : index
    %74 = vector.load %arg7[%c0_101, %c768_102] : memref<256x1152xbf16, #tpu.memory_space<vmem>>, vector<256x128xbf16>
    tpu.vector_store %arg7[%c0_101, %c768_102], %73 {strides = array<i32>} : memref<256x1152xbf16, #tpu.memory_space<vmem>>, vector<256x128xbf16>,
    %c2_103 = arith.constant 2 : index
    %c1_104 = arith.constant 1 : index
    %c0_105 = arith.constant 0 : index
    %75 = vector.load %arg8[%c2_103, %c1_104, %c0_105] : memref<18x18x128xbf16, #tpu.memory_space<vmem>>, vector<16x16x128xbf16>
    %76 = vector.shape_cast %75 : vector<16x16x128xbf16> to vector<256x128xbf16>
    %c0_106 = arith.constant 0 : index
    %c896_107 = arith.constant 896 : index
    %77 = vector.load %arg7[%c0_106, %c896_107] : memref<256x1152xbf16, #tpu.memory_space<vmem>>, vector<256x128xbf16>
    tpu.vector_store %arg7[%c0_106, %c896_107], %76 {strides = array<i32>} : memref<256x1152xbf16, #tpu.memory_space<vmem>>, vector<256x128xbf16>,
    %c2_108 = arith.constant 2 : index
    %c2_109 = arith.constant 2 : index
    %c0_110 = arith.constant 0 : index
    %78 = vector.load %arg8[%c2_108, %c2_109, %c0_110] : memref<18x18x128xbf16, #tpu.memory_space<vmem>>, vector<16x16x128xbf16>
    %79 = vector.shape_cast %78 : vector<16x16x128xbf16> to vector<256x128xbf16>
    %c0_111 = arith.constant 0 : index
    %c1024_112 = arith.constant 1024 : index
    %80 = vector.load %arg7[%c0_111, %c1024_112] : memref<256x1152xbf16, #tpu.memory_space<vmem>>, vector<256x128xbf16>
    tpu.vector_store %arg7[%c0_111, %c1024_112], %79 {strides = array<i32>} : memref<256x1152xbf16, #tpu.memory_space<vmem>>, vector<256x128xbf16>,
    %c0_113 = arith.constant 0 : index
    %c0_114 = arith.constant 0 : index
    %81 = vector.load %arg7[%c0_113, %c0_114] : memref<256x1152xbf16, #tpu.memory_space<vmem>>, vector<256x1152xbf16>
    %c0_115 = arith.constant 0 : index
    %c0_116 = arith.constant 0 : index
    %82 = vector.load %arg4[%c0_115, %c0_116] : memref<1152x128xbf16, #tpu.memory_space<vmem>>, vector<1152x128xbf16>
    %cst_117 = arith.constant dense<0.000000e+00> : vector<256x128xf32>
    %83 = tpu.matmul %81, %82, %cst_117 {dimension_numbers = #tpu.dot_dimension_numbers<[1], [0], [0], [1], [0, 0, 1, 1], [], []>} : vector<256x1152xbf16>, vector<1152x128xbf16>, vector<256x128xf32> -> vector<256x128xf32>
    %c0_118 = arith.constant 0 : index
    %c0_119 = arith.constant 0 : index
    %84 = vector.load %arg5[%c0_118, %c0_119] : memref<1x128xf32, #tpu.memory_space<vmem>>, vector<1x128xf32>
    %85 = vector.broadcast %84 : vector<1x128xf32> to vector<256x128xf32>
    %86 = arith.addf %83, %85 : vector<256x128xf32>
    %87 = arith.extf %36 : vector<256x128xbf16> to vector<256x128xf32>
    %88 = arith.addf %86, %87 : vector<256x128xf32>
    %cst_120 = arith.constant 0.000000e+00 : f32
    %89 = vector.broadcast %cst_120 : f32 to vector<256x128xf32>
    %90 = arith.maximumf %88, %89 : vector<256x128xf32>
    %91 = vector.shape_cast %90 : vector<256x128xf32> to vector<16x16x128xf32>
    %c0_121 = arith.constant 0 : index
    %c0_122 = arith.constant 0 : index
    %c0_123 = arith.constant 0 : index
    %c0_124 = arith.constant 0 : index
    %92 = vector.load %arg6[%c0_121, %c0_122, %c0_123, %c0_124] : memref<1x16x16x128xf32, #tpu.memory_space<vmem>>, vector<1x16x16x128xf32>
    %93 = vector.shape_cast %92 : vector<1x16x16x128xf32> to vector<16x16x128xf32>
    %94 = vector.shape_cast %91 : vector<16x16x128xf32> to vector<1x16x16x128xf32>
    tpu.vector_store %arg6[%c0_121, %c0_122, %c0_123, %c0_124], %94 {strides = array<i32>} : memref<1x16x16x128xf32, #tpu.memory_space<vmem>>, vector<1x16x16x128xf32>,
    return
  }
  func.func @transform_0(%arg0: i32) -> (i32, i32, i32, i32) {
    %c0_i32 = arith.constant 0 : i32
    %c0_i32_0 = arith.constant 0 : i32
    %c0_i32_1 = arith.constant 0 : i32
    %c0_i32_2 = arith.constant 0 : i32
    return %arg0, %c0_i32, %c0_i32_0, %c0_i32_1 : i32, i32, i32, i32
  }
  func.func @transform_1(%arg0: i32) -> (i32, i32) {
    %c0_i32 = arith.constant 0 : i32
    %c0_i32_0 = arith.constant 0 : i32
    %c0_i32_1 = arith.constant 0 : i32
    return %c0_i32, %c0_i32_0 : i32, i32
  }
  func.func @transform_2(%arg0: i32) -> (i32, i32) {
    %c0_i32 = arith.constant 0 : i32
    %c0_i32_0 = arith.constant 0 : i32
    %c0_i32_1 = arith.constant 0 : i32
    return %c0_i32, %c0_i32_0 : i32, i32
  }
  func.func @transform_3(%arg0: i32) -> (i32, i32) {
    %c0_i32 = arith.constant 0 : i32
    %c0_i32_0 = arith.constant 0 : i32
    %c0_i32_1 = arith.constant 0 : i32
    return %c0_i32, %c0_i32_0 : i32, i32
  }
  func.func @transform_4(%arg0: i32) -> (i32, i32) {
    %c0_i32 = arith.constant 0 : i32
    %c0_i32_0 = arith.constant 0 : i32
    %c0_i32_1 = arith.constant 0 : i32
    return %c0_i32, %c0_i32_0 : i32, i32
  }
  func.func @transform_5(%arg0: i32) -> (i32, i32, i32, i32) {
    %c0_i32 = arith.constant 0 : i32
    %c0_i32_0 = arith.constant 0 : i32
    %c0_i32_1 = arith.constant 0 : i32
    %c0_i32_2 = arith.constant 0 : i32
    return %arg0, %c0_i32, %c0_i32_0, %c0_i32_1 : i32, i32, i32, i32
  }
}

</mosaic_0001>

<llo_original>
// kernel: tpu_custom_call.1
$region0: #{tpu_custom_call.1}
  #allocation0 [shape = 'u32[]', space=smem, size = 0x4, offset = 0x4, fixed_abs, tag = 'smem constant byte address 0x4 - core index']
  #allocation1 [shape = 'u32[144,128]{1,0:T(1,128)}', space=vmem, size = 0x12000, scoped, tag = 'internal scratch']
  #allocation2 [shape = 'bf16[256,1152]{1,0:T(16,128)(2,1)}', space=vmem, size = 0x90000, scoped, tag = 'scratch operand']
  #allocation3 [shape = 'bf16[18,18,128]{2,1,0:T(8,128)(2,1)}', space=vmem, size = 0x1b000, scoped, tag = 'scratch operand']
  %s0 = inlined_call_operand.vmem [shape: bf16[2,18,18,128], index: 0, kind: input, shape index: {}]
  %s1 = inlined_call_operand.vmem [shape: bf16[1152,128], index: 1, kind: input, shape index: {}]
  %s2 = inlined_call_operand.vmem [shape: f32[1,128], index: 2, kind: input, shape index: {}]
  %s3 = inlined_call_operand.hbm [shape: bf16[1152,128], index: 3, kind: input, shape index: {}]
  %s4 = inlined_call_operand.vmem [shape: f32[1,128], index: 4, kind: input, shape index: {}]
  %s5 = inlined_call_operand.hbm [shape: f32[2,16,16,128], index: 5, kind: output, shape index: {}]
  %s6 = sld [smem:[#allocation0]]
  $region57: #{tpu_custom_call.1} parent=0
    _
  %s8 = ssub.s32 1, %s6
  %s9 = scalar_select 0, %s8, %s6
  $region1: #{tpu_custom_call.1} parent=0
    #allocation4 [shape = 'u8[294912]{0}', space=vmem, size = 0x48000, scoped, tag = 'input window, operand 3, single buffered']
    #allocation5 [shape = 's32[2]{0}', space=sflag, size = 0x8, scoped, tag = 'scoped memory for tpu_custom_call.1']
    #allocation6 [shape = 's32[2]{0}', space=sflag, size = 0x8, scoped, tag = 'scoped memory for tpu_custom_call.1']
    #allocation7 [shape = 'u8[262144]{0}', space=vmem, size = 0x40000, scoped, tag = 'output window, operand 0']
    %10 = vsyncpa [#allocation5], 0
    %11 = vsyncpa [#allocation6], 0
    %s12 = scalar_lea.sflag [#allocation6], 1
    %13 = vsyncpa %s12, 0
    loop: start=0, step=1, limit=4
    $region2: #{tpu_custom_call.1} parent=1 // loop_pre_header
      _
    $region3: #{tpu_custom_call.1} parent=1 // loop_header
      %s15 = sphi 0, %s19
      %p16 = scmp.ge.s32.totalorder %s15, 4
      %s25 = sphi 0, %s27
      %s28 = sphi 0, %s25
      %s29 = sphi 0, %s28
      %s45 = sphi 0, %s29
      %s49 = sphi 0, %s49
      %s51 = sphi 0, %s49
      %s52 = sphi 0, %s51
      %s66 = sphi 0, %s52
      %s70 = sphi 0, %s70
      %s72 = sphi 0, %s70
      %s73 = sphi 0, %s72
      %s87 = sphi 0, %s73
      %s91 = sphi 0, %s91
      %s93 = sphi 0, %s91
      %s94 = sphi 0, %s93
      %s108 = sphi 0, %s94
      %s112 = sphi 0, %s112
      %s114 = sphi 0, %s112
      %s115 = sphi 0, %s114
      %s129 = sphi 0, %s115
      %s135 = sphi 0, %s137
      %s138 = sphi 0, %s135
      %s139 = sphi 0, %s138
      %s155 = sphi 0, %s139
    $region4: #{tpu_custom_call.1} parent=1 // loop_header_branch
      %18 = sbr.rel (%p16) target = $region8
    $region5: #{tpu_custom_call.1} parent=1 // loop_body
      %s20 = ssub.s32 %s15, 1
      %s21 = ssub.s32 %s15, 2
      %s22 = sadd.s32 %s15, 1
      %s23 = ssub.s32 %s15, %s22
      %p24 = scmp.eq.s32.totalorder %s23, 0
      %s26 = sadd.s32 %s25, 1
      %s27 = scalar_select %p24, %s25, %s26
      %p30 = pneg %p24
      %p31 = scmp.eq.s32.totalorder %s15, 1
      %p32 = por %p30, %p31
      %p33 = scmp.ne.s32.totalorder %s25, %s28
      %p34 = scmp.eq.s32.totalorder %s15, 0
      %p35 = por %p33, %p34
      %p36 = scmp.ne.s32.totalorder %s25, %s28
      %p37 = scmp.eq.s32.totalorder %s20, 1
      %p38 = por %p36, %p37
      %p39 = scmp.ne.s32.totalorder %s28, %s29
      %p40 = scmp.eq.s32.totalorder %s20, 0
      %p41 = por %p39, %p40
      %p42 = scmp.ne.s32.totalorder %s28, %s29
      %p43 = scmp.eq.s32.totalorder %s21, 1
      %p44 = por %p42, %p43
      %p46 = scmp.ne.s32.totalorder %s29, %s45
      %p47 = scmp.eq.s32.totalorder %s21, 0
      %p48 = por %p46, %p47
      %s50 = sadd.s32 %s49, 1
      %p53 = scmp.eq.s32.totalorder %s15, 1
      %p54 = scmp.ne.s32.totalorder %s49, %s51
      %p55 = scmp.eq.s32.totalorder %s15, 0
      %p56 = por %p54, %p55
      %p57 = scmp.ne.s32.totalorder %s49, %s51
      %p58 = scmp.eq.s32.totalorder %s20, 1
      %p59 = por %p57, %p58
      %p60 = scmp.ne.s32.totalorder %s51, %s52
      %p61 = scmp.eq.s32.totalorder %s20, 0
      %p62 = por %p60, %p61
      %p63 = scmp.ne.s32.totalorder %s51, %s52
      %p64 = scmp.eq.s32.totalorder %s21, 1
      %p65 = por %p63, %p64
      %p67 = scmp.ne.s32.totalorder %s52, %s66
      %p68 = scmp.eq.s32.totalorder %s21, 0
      %p69 = por %p67, %p68
      %s71 = sadd.s32 %s70, 1
      %p74 = scmp.eq.s32.totalorder %s15, 1
      %p75 = scmp.ne.s32.totalorder %s70, %s72
      %p76 = scmp.eq.s32.totalorder %s15, 0
      %p77 = por %p75, %p76
      %p78 = scmp.ne.s32.totalorder %s70, %s72
      %p79 = scmp.eq.s32.totalorder %s20, 1
      %p80 = por %p78, %p79
      %p81 = scmp.ne.s32.totalorder %s72, %s73
      %p82 = scmp.eq.s32.totalorder %s20, 0
      %p83 = por %p81, %p82
      %p84 = scmp.ne.s32.totalorder %s72, %s73
      %p85 = scmp.eq.s32.totalorder %s21, 1
      %p86 = por %p84, %p85
      %p88 = scmp.ne.s32.totalorder %s73, %s87
      %p89 = scmp.eq.s32.totalorder %s21, 0
      %p90 = por %p88, %p89
      %s92 = sadd.s32 %s91, 1
      %p95 = scmp.eq.s32.totalorder %s15, 1
      %p96 = scmp.ne.s32.totalorder %s91, %s93
      %p97 = scmp.eq.s32.totalorder %s15, 0
      %p98 = por %p96, %p97
      %p99 = scmp.ne.s32.totalorder %s91, %s93
      %p100 = scmp.eq.s32.totalorder %s20, 1
      %p101 = por %p99, %p100
      %p102 = scmp.ne.s32.totalorder %s93, %s94
      %p103 = scmp.eq.s32.totalorder %s20, 0
      %p104 = por %p102, %p103
      %p105 = scmp.ne.s32.totalorder %s93, %s94
      %p106 = scmp.eq.s32.totalorder %s21, 1
      %p107 = por %p105, %p106
      %p109 = scmp.ne.s32.totalorder %s94, %s108
      %p110 = scmp.eq.s32.totalorder %s21, 0
      %p111 = por %p109, %p110
      %s113 = sadd.s32 %s112, 1
      %p116 = scmp.eq.s32.totalorder %s15, 1
      %p117 = scmp.ne.s32.totalorder %s112, %s114
      %p118 = scmp.eq.s32.totalorder %s15, 0
      %p119 = por %p117, %p118
      %p120 = scmp.ne.s32.totalorder %s112, %s114
      %p121 = scmp.eq.s32.totalorder %s20, 1
      %p122 = por %p120, %p121
      %p123 = scmp.ne.s32.totalorder %s114, %s115
      %p124 = scmp.eq.s32.totalorder %s20, 0
      %p125 = por %p123, %p124
      %p126 = scmp.ne.s32.totalorder %s114, %s115
      %p127 = scmp.eq.s32.totalorder %s21, 1
      %p128 = por %p126, %p127
      %p130 = scmp.ne.s32.totalorder %s115, %s129
      %p131 = scmp.eq.s32.totalorder %s21, 0
      %p132 = por %p130, %p131
      %s133 = ssub.s32 %s15, %s22
      %p134 = scmp.eq.s32.totalorder %s133, 0
      %s136 = sadd.s32 %s135, 1
      %s137 = scalar_select %p134, %s135, %s136
      %p140 = pneg %p134
      %p141 = scmp.eq.s32.totalorder %s15, 1
      %p142 = por %p140, %p141
      %p143 = scmp.ne.s32.totalorder %s135, %s138
      %p144 = scmp.eq.s32.totalorder %s15, 0
      %p145 = por %p143, %p144
      %p146 = scmp.ne.s32.totalorder %s135, %s138
      %p147 = scmp.eq.s32.totalorder %s20, 1
      %p148 = por %p146, %p147
      %p149 = scmp.ne.s32.totalorder %s138, %s139
      %p150 = scmp.eq.s32.totalorder %s20, 0
      %p151 = por %p149, %p150
      %p152 = scmp.ne.s32.totalorder %s138, %s139
      %p153 = scmp.eq.s32.totalorder %s21, 1
      %p154 = por %p152, %p153
      %p156 = scmp.ne.s32.totalorder %s139, %s155
      %p157 = scmp.eq.s32.totalorder %s21, 0
      %p158 = por %p156, %p157
      %p159 = scmp.le.s32.totalorder 1, %s15
      %p160 = scmp.lt.s32.totalorder %s15, 3
      %p161 = pnand %p159, %p160
      %p162 = pneg %p161
      // Predicated region
      $region9: #{tpu_custom_call.1} parent=5 // pred_check
        _
      $region10: #{tpu_custom_call.1} parent=5 // pred_check_branch
        %164 = sbr.rel (%p161) target = $region12
      $region11: #{tpu_custom_call.1} parent=5 // pred_region
        %s165 = ssub.s32 %s15, 1
        // Predicated region
        $region13: #{tpu_custom_call.1} parent=11 // pred_check
          %p166 = pneg %p62
        $region14: #{tpu_custom_call.1} parent=11 // pred_check_branch
          %168 = sbr.rel (%p166) target = $region16
        $region15: #{tpu_custom_call.1} parent=11 // pred_region
          _
        $region16: #{tpu_custom_call.1} parent=11 // pred_fallthru
          _
        // Predicated region
        $region17: #{tpu_custom_call.1} parent=11 // pred_check
          %p169 = pneg %p83
        $region18: #{tpu_custom_call.1} parent=11 // pred_check_branch
          %171 = sbr.rel (%p169) target = $region20
        $region19: #{tpu_custom_call.1} parent=11 // pred_region
          _
        $region20: #{tpu_custom_call.1} parent=11 // pred_fallthru
          _
        // Predicated region
        $region21: #{tpu_custom_call.1} parent=11 // pred_check
          %p172 = pneg %p104
        $region22: #{tpu_custom_call.1} parent=11 // pred_check_branch
          %174 = sbr.rel (%p172) target = $region24
        $region23: #{tpu_custom_call.1} parent=11 // pred_region
          %s176 = ssub.s32 9216, 9216
          %177 = vsyncadd [#allocation5], %s176
          %s178 = sshll.u32 [#allocation4], 4
          %s179 = int_to_ptr.vmem [resolvable:$true] %s178
          %184 = dma.hbm_to_vmem [thread:$0]  %s3, 9216, %s179, [#allocation5], 64, 64, 4
        $region24: #{tpu_custom_call.1} parent=11 // pred_fallthru
          _
        // Predicated region
        $region25: #{tpu_custom_call.1} parent=11 // pred_check
          %p185 = pneg %p125
        $region26: #{tpu_custom_call.1} parent=11 // pred_check_branch
          %187 = sbr.rel (%p185) target = $region28
        $region27: #{tpu_custom_call.1} parent=11 // pred_region
          _
        $region28: #{tpu_custom_call.1} parent=11 // pred_fallthru
          _
      $region12: #{tpu_custom_call.1} parent=5 // pred_fallthru
        _
      %p188 = scmp.lt.s32.totalorder %s15, 2
      // Predicated region
      $region29: #{tpu_custom_call.1} parent=5 // pred_check
        %p189 = pneg %p188
      $region30: #{tpu_custom_call.1} parent=5 // pred_check_branch
        %191 = sbr.rel (%p189) target = $region32
      $region31: #{tpu_custom_call.1} parent=5 // pred_region
        // Predicated region
        $region33: #{tpu_custom_call.1} parent=31 // pred_check
          %p192 = pneg %p35
        $region34: #{tpu_custom_call.1} parent=31 // pred_check_branch
          %194 = sbr.rel (%p192) target = $region36
        $region35: #{tpu_custom_call.1} parent=31 // pred_region
          %p195 = scmp.lt.s32.totalorder %s15, 1
          %s196 = scalar_select %p195, %s15, 1
          %s197 = smul.addr %s196, 54
          %s198 = smul.addr %s197, 4
          %s199 = scalar_lea.vmem %s0, %s198
        $region36: #{tpu_custom_call.1} parent=31 // pred_fallthru
          _
      $region32: #{tpu_custom_call.1} parent=5 // pred_fallthru
        _
      %p200 = scmp.le.s32.totalorder 1, %s15
      %p201 = scmp.lt.s32.totalorder %s15, 3
      %p202 = pnand %p200, %p201
      %p203 = pneg %p202
      // Predicated region
      $region37: #{tpu_custom_call.1} parent=5 // pred_check
        _
      $region38: #{tpu_custom_call.1} parent=5 // pred_check_branch
        %205 = sbr.rel (%p202) target = $region40
      $region39: #{tpu_custom_call.1} parent=5 // pred_region
        %s206 = ssub.s32 %s15, 1
        // Predicated region
        $region41: #{tpu_custom_call.1} parent=39 // pred_check
          %p207 = pneg %p104
        $region42: #{tpu_custom_call.1} parent=39 // pred_check_branch
          %209 = sbr.rel (%p207) target = $region44
        $region43: #{tpu_custom_call.1} parent=39 // pred_region
          %210 = dma.done [#allocation5], 9216
        $region44: #{tpu_custom_call.1} parent=39 // pred_fallthru
          _
        %p211 = scmp.lt.s32.totalorder %s20, 1
        %s212 = scalar_select %p211, %s20, 1
        %s213 = smul.addr %s212, 54
        %s214 = smul.addr %s213, 4
        %s215 = scalar_lea.vmem %s0, %s214
        %p216 = pneg %p41
        %p217 = pneg %p38
        %p218 = pneg %p62
        %p219 = pneg %p59
        %p220 = pneg %p83
        %p221 = pneg %p80
        %p222 = pneg %p104
        %p223 = pneg %p101
        %p224 = pneg %p125
        %p225 = pneg %p122
        %p226 = pneg %p151
        %p227 = pneg %p148
        %s228 = sand.u32 %s138, 1
        %s229 = scalar_lea.sflag [#allocation6], %s228
        %s230 = sand.u32 %s138, 1
        %s231 = smul.addr %s230, 256
        %s232 = scalar_lea.vmem [#allocation7], %s231
        %p233 = scmp.lt.s32.totalorder %s20, 1
        %s234 = scalar_select %p233, %s20, 1
        %s235 = smul.addr %s234, 54
        %s236 = smul.addr %s235, 4
        %s237 = scalar_lea.vmem %s0, %s236
        %v239 = vld [vmem:[%s237] sm:$0xf]
        %v240 = vld [vmem:[%s237 + $0x4] sm:$0xf]
        %v241 = vld [vmem:[%s237 + $0xc] sm:$0xf]
        %v242 = vld [vmem:[%s237 + $0x10] sm:$0xf]
        %v243 = vld [vmem:[%s237 + $0x18] sm:$0xf]
        %v244 = vld [vmem:[%s237 + $0x1c] sm:$0xf]
        %v245 = vld [vmem:[%s237 + $0x24] sm:$0xf]
        %v246 = vld [vmem:[%s237 + $0x28] sm:$0xf]
        %v247 = vld [vmem:[%s237 + $0x30] sm:$0xf]
        %v248 = vld [vmem:[%s237 + $0x34] sm:$0xf]
        %v249 = vld [vmem:[%s237 + $0x3c] sm:$0xf]
        %v250 = vld [vmem:[%s237 + $0x40] sm:$0xf]
        %v251 = vld [vmem:[%s237 + $0x48] sm:$0xf]
        %v252 = vld [vmem:[%s237 + $0x4c] sm:$0xf]
        %v253 = vld [vmem:[%s237 + $0x54] sm:$0xf]
        %v254 = vld [vmem:[%s237 + $0x58] sm:$0xf]
        %v255 = vld [vmem:[%s237 + $0x60] sm:$0xf]
        %v256 = vld [vmem:[%s237 + $0x64] sm:$0xf]
        %v257 = vld [vmem:[%s237 + $0x6c] sm:$0xf]
        %v258 = vld [vmem:[%s237 + $0x70] sm:$0xf]
        %v259 = vld [vmem:[%s237 + $0x78] sm:$0xf]
        %v260 = vld [vmem:[%s237 + $0x7c] sm:$0xf]
        %v261 = vld [vmem:[%s237 + $0x84] sm:$0xf]
        %v262 = vld [vmem:[%s237 + $0x88] sm:$0xf]
        %v263 = vld [vmem:[%s237 + $0x90] sm:$0xf]
        %v264 = vld [vmem:[%s237 + $0x94] sm:$0xf]
        %v265 = vld [vmem:[%s237 + $0x9c] sm:$0xf]
        %v266 = vld [vmem:[%s237 + $0xa0] sm:$0xf]
        %v267 = vld [vmem:[%s237 + $0xa8] sm:$0xf]
        %v268 = vld [vmem:[%s237 + $0xac] sm:$0xf]
        %v269 = vld [vmem:[%s237 + $0xb4] sm:$0xf]
        %v270 = vld [vmem:[%s237 + $0xb8] sm:$0xf]
        %v303 = vunpack.c.l.b16 %v239
        %v304 = vunpack.c.l.b16 %v240
        %v305 = vunpack.c.l.b16 %v241
        %v306 = vunpack.c.l.b16 %v242
        %v307 = vunpack.c.l.b16 %v243
        %v308 = vunpack.c.l.b16 %v244
        %v309 = vunpack.c.l.b16 %v245
        %v310 = vunpack.c.l.b16 %v246
        %v311 = vunpack.c.l.b16 %v247
        %v312 = vunpack.c.l.b16 %v248
        %v313 = vunpack.c.l.b16 %v249
        %v314 = vunpack.c.l.b16 %v250
        %v315 = vunpack.c.l.b16 %v251
        %v316 = vunpack.c.l.b16 %v252
        %v317 = vunpack.c.l.b16 %v253
        %v318 = vunpack.c.l.b16 %v254
        %v319 = vunpack.c.l.b16 %v255
        %v320 = vunpack.c.l.b16 %v256
        %v321 = vunpack.c.l.b16 %v257
        %v322 = vunpack.c.l.b16 %v258
        %v323 = vunpack.c.l.b16 %v259
        %v324 = vunpack.c.l.b16 %v260
        %v325 = vunpack.c.l.b16 %v261
        %v326 = vunpack.c.l.b16 %v262
        %v327 = vunpack.c.l.b16 %v263
        %v328 = vunpack.c.l.b16 %v264
        %v329 = vunpack.c.l.b16 %v265
        %v330 = vunpack.c.l.b16 %v266
        %v331 = vunpack.c.l.b16 %v267
        %v332 = vunpack.c.l.b16 %v268
        %v333 = vunpack.c.l.b16 %v269
        %v334 = vunpack.c.l.b16 %v270
        %v335 = vpack.c.b16 %v304, %v303
        %v336 = vpack.c.b16 %v306, %v305
        %v337 = vpack.c.b16 %v308, %v307
        %v338 = vpack.c.b16 %v310, %v309
        %v339 = vpack.c.b16 %v312, %v311
        %v340 = vpack.c.b16 %v314, %v313
        %v341 = vpack.c.b16 %v316, %v315
        %v342 = vpack.c.b16 %v318, %v317
        %v343 = vpack.c.b16 %v320, %v319
        %v344 = vpack.c.b16 %v322, %v321
        %v345 = vpack.c.b16 %v324, %v323
        %v346 = vpack.c.b16 %v326, %v325
        %v347 = vpack.c.b16 %v328, %v327
        %v348 = vpack.c.b16 %v330, %v329
        %v349 = vpack.c.b16 %v332, %v331
        %v350 = vpack.c.b16 %v334, %v333
        %367 = vst [vmem:[#allocation2] sm:$0xff] %v335
        %368 = vst [vmem:[#allocation2 + $0x48] sm:$0xff] %v336
        %369 = vst [vmem:[#allocation2 + $0x90] sm:$0xff] %v337
        %370 = vst [vmem:[#allocation2 + $0xd8] sm:$0xff] %v338
        %371 = vst [vmem:[#allocation2 + $0x120] sm:$0xff] %v339
        %372 = vst [vmem:[#allocation2 + $0x168] sm:$0xff] %v340
        %373 = vst [vmem:[#allocation2 + $0x1b0] sm:$0xff] %v341
        %374 = vst [vmem:[#allocation2 + $0x1f8] sm:$0xff] %v342
        %375 = vst [vmem:[#allocation2 + $0x240] sm:$0xff] %v343
        %376 = vst [vmem:[#allocation2 + $0x288] sm:$0xff] %v344
        %377 = vst [vmem:[#allocation2 + $0x2d0] sm:$0xff] %v345
        %378 = vst [vmem:[#allocation2 + $0x318] sm:$0xff] %v346
        %379 = vst [vmem:[#allocation2 + $0x360] sm:$0xff] %v347
        %380 = vst [vmem:[#allocation2 + $0x3a8] sm:$0xff] %v348
        %381 = vst [vmem:[#allocation2 + $0x3f0] sm:$0xff] %v349
        %382 = vst [vmem:[#allocation2 + $0x438] sm:$0xff] %v350
        %v383 = vld [vmem:[%s237] sm:$0xf]
        %v384 = vld [vmem:[%s237 + $0x4] sm:$0xf]
        %v385 = vld [vmem:[%s237 + $0x8] sm:$0x1]
        %v386 = vld [vmem:[%s237 + $0xc] sm:$0xf]
        %v387 = vld [vmem:[%s237 + $0x10] sm:$0xf]
        %v388 = vld [vmem:[%s237 + $0x14] sm:$0x1]
        %v389 = vld [vmem:[%s237 + $0x18] sm:$0xf]
        %v390 = vld [vmem:[%s237 + $0x1c] sm:$0xf]
        %v391 = vld [vmem:[%s237 + $0x20] sm:$0x1]
        %v392 = vld [vmem:[%s237 + $0x24] sm:$0xf]
        %v393 = vld [vmem:[%s237 + $0x28] sm:$0xf]
        %v394 = vld [vmem:[%s237 + $0x2c] sm:$0x1]
        %v395 = vld [vmem:[%s237 + $0x30] sm:$0xf]
        %v396 = vld [vmem:[%s237 + $0x34] sm:$0xf]
        %v397 = vld [vmem:[%s237 + $0x38] sm:$0x1]
        %v398 = vld [vmem:[%s237 + $0x3c] sm:$0xf]
        %v399 = vld [vmem:[%s237 + $0x40] sm:$0xf]
        %v400 = vld [vmem:[%s237 + $0x44] sm:$0x1]
        %v401 = vld [vmem:[%s237 + $0x48] sm:$0xf]
        %v402 = vld [vmem:[%s237 + $0x4c] sm:$0xf]
        %v403 = vld [vmem:[%s237 + $0x50] sm:$0x1]
        %v404 = vld [vmem:[%s237 + $0x54] sm:$0xf]
        %v405 = vld [vmem:[%s237 + $0x58] sm:$0xf]
        %v406 = vld [vmem:[%s237 + $0x5c] sm:$0x1]
        %v407 = vld [vmem:[%s237 + $0x60] sm:$0xf]
        %v408 = vld [vmem:[%s237 + $0x64] sm:$0xf]
        %v409 = vld [vmem:[%s237 + $0x68] sm:$0x1]
        %v410 = vld [vmem:[%s237 + $0x6c] sm:$0xf]
        %v411 = vld [vmem:[%s237 + $0x70] sm:$0xf]
        %v412 = vld [vmem:[%s237 + $0x74] sm:$0x1]
        %v413 = vld [vmem:[%s237 + $0x78] sm:$0xf]
        %v414 = vld [vmem:[%s237 + $0x7c] sm:$0xf]
        %v415 = vld [vmem:[%s237 + $0x80] sm:$0x1]
        %v416 = vld [vmem:[%s237 + $0x84] sm:$0xf]
        %v417 = vld [vmem:[%s237 + $0x88] sm:$0xf]
        %v418 = vld [vmem:[%s237 + $0x8c] sm:$0x1]
        %v419 = vld [vmem:[%s237 + $0x90] sm:$0xf]
        %v420 = vld [vmem:[%s237 + $0x94] sm:$0xf]
        %v421 = vld [vmem:[%s237 + $0x98] sm:$0x1]
        %v422 = vld [vmem:[%s237 + $0x9c] sm:$0xf]
        %v423 = vld [vmem:[%s237 + $0xa0] sm:$0xf]
        %v424 = vld [vmem:[%s237 + $0xa4] sm:$0x1]
        %v425 = vld [vmem:[%s237 + $0xa8] sm:$0xf]
        %v426 = vld [vmem:[%s237 + $0xac] sm:$0xf]
        %v427 = vld [vmem:[%s237 + $0xb0] sm:$0x1]
        %v428 = vld [vmem:[%s237 + $0xb4] sm:$0xf]
        %v429 = vld [vmem:[%s237 + $0xb8] sm:$0xf]
        %v430 = vld [vmem:[%s237 + $0xbc] sm:$0x1]
        %vm431 = vsmask.f32 3328
        %vm432 = vsmask.f32 7440
        %vm433 = vmor %vm431, %vm432
        %v435 = vshrl.u32 %v383, 16
        %v437 = vrot.slane %v435, 4
        %v438 = vshll.u32 %v383, 16
        %v440 = vrot.slane %v438, 5
        %v441 = vor.u32 %v437, %v440
        %v442 = vrot.slane %v441, 4
        %v444 = vshll.u32 %v384, 16
        %v446 = vrot.slane %v444, 5
        %v447 = vsel %vm433, %v442, %v446
        %v448 = vshrl.u32 %v384, 16
        %v450 = vrot.slane %v448, 4
        %v451 = vor.u32 %v450, %v446
        %v452 = vrot.slane %v451, 4
        %v454 = vshll.u32 %v385, 16
        %v456 = vrot.slane %v454, 5
        %v457 = vsel %vm433, %v452, %v456
        %v459 = vshrl.u32 %v386, 16
        %v461 = vrot.slane %v459, 4
        %v462 = vshll.u32 %v386, 16
        %v464 = vrot.slane %v462, 5
        %v465 = vor.u32 %v461, %v464
        %v466 = vrot.slane %v465, 4
        %v468 = vshll.u32 %v387, 16
        %v470 = vrot.slane %v468, 5
        %v471 = vsel %vm433, %v466, %v470
        %v472 = vshrl.u32 %v387, 16
        %v474 = vrot.slane %v472, 4
        %v475 = vor.u32 %v474, %v470
        %v476 = vrot.slane %v475, 4
        %v478 = vshll.u32 %v388, 16
        %v480 = vrot.slane %v478, 5
        %v481 = vsel %vm433, %v476, %v480
        %v483 = vshrl.u32 %v389, 16
        %v485 = vrot.slane %v483, 4
        %v486 = vshll.u32 %v389, 16
        %v488 = vrot.slane %v486, 5
        %v489 = vor.u32 %v485, %v488
        %v490 = vrot.slane %v489, 4
        %v492 = vshll.u32 %v390, 16
        %v494 = vrot.slane %v492, 5
        %v495 = vsel %vm433, %v490, %v494
        %v496 = vshrl.u32 %v390, 16
        %v498 = vrot.slane %v496, 4
        %v499 = vor.u32 %v498, %v494
        %v500 = vrot.slane %v499, 4
        %v502 = vshll.u32 %v391, 16
        %v504 = vrot.slane %v502, 5
        %v505 = vsel %vm433, %v500, %v504
        %v507 = vshrl.u32 %v392, 16
        %v509 = vrot.slane %v507, 4
        %v510 = vshll.u32 %v392, 16
        %v512 = vrot.slane %v510, 5
        %v513 = vor.u32 %v509, %v512
        %v514 = vrot.slane %v513, 4
        %v516 = vshll.u32 %v393, 16
        %v518 = vrot.slane %v516, 5
        %v519 = vsel %vm433, %v514, %v518
        %v520 = vshrl.u32 %v393, 16
        %v522 = vrot.slane %v520, 4
        %v523 = vor.u32 %v522, %v518
        %v524 = vrot.slane %v523, 4
        %v526 = vshll.u32 %v394, 16
        %v528 = vrot.slane %v526, 5
        %v529 = vsel %vm433, %v524, %v528
        %v531 = vshrl.u32 %v395, 16
        %v533 = vrot.slane %v531, 4
        %v534 = vshll.u32 %v395, 16
        %v536 = vrot.slane %v534, 5
        %v537 = vor.u32 %v533, %v536
        %v538 = vrot.slane %v537, 4
        %v540 = vshll.u32 %v396, 16
        %v542 = vrot.slane %v540, 5
        %v543 = vsel %vm433, %v538, %v542
        %v544 = vshrl.u32 %v396, 16
        %v546 = vrot.slane %v544, 4
        %v547 = vor.u32 %v546, %v542
        %v548 = vrot.slane %v547, 4
        %v550 = vshll.u32 %v397, 16
        %v552 = vrot.slane %v550, 5
        %v553 = vsel %vm433, %v548, %v552
        %v555 = vshrl.u32 %v398, 16
        %v557 = vrot.slane %v555, 4
        %v558 = vshll.u32 %v398, 16
        %v560 = vrot.slane %v558, 5
        %v561 = vor.u32 %v557, %v560
        %v562 = vrot.slane %v561, 4
        %v564 = vshll.u32 %v399, 16
        %v566 = vrot.slane %v564, 5
        %v567 = vsel %vm433, %v562, %v566
        %v568 = vshrl.u32 %v399, 16
        %v570 = vrot.slane %v568, 4
        %v571 = vor.u32 %v570, %v566
        %v572 = vrot.slane %v571, 4
        %v574 = vshll.u32 %v400, 16
        %v576 = vrot.slane %v574, 5
        %v577 = vsel %vm433, %v572, %v576
        %v579 = vshrl.u32 %v401, 16
        %v581 = vrot.slane %v579, 4
        %v582 = vshll.u32 %v401, 16
        %v584 = vrot.slane %v582, 5
        %v585 = vor.u32 %v581, %v584
        %v586 = vrot.slane %v585, 4
        %v588 = vshll.u32 %v402, 16
        %v590 = vrot.slane %v588, 5
        %v591 = vsel %vm433, %v586, %v590
        %v592 = vshrl.u32 %v402, 16
        %v594 = vrot.slane %v592, 4
        %v595 = vor.u32 %v594, %v590
        %v596 = vrot.slane %v595, 4
        %v598 = vshll.u32 %v403, 16
        %v600 = vrot.slane %v598, 5
        %v601 = vsel %vm433, %v596, %v600
        %v603 = vshrl.u32 %v404, 16
        %v605 = vrot.slane %v603, 4
        %v606 = vshll.u32 %v404, 16
        %v608 = vrot.slane %v606, 5
        %v609 = vor.u32 %v605, %v608
        %v610 = vrot.slane %v609, 4
        %v612 = vshll.u32 %v405, 16
        %v614 = vrot.slane %v612, 5
        %v615 = vsel %vm433, %v610, %v614
        %v616 = vshrl.u32 %v405, 16
        %v618 = vrot.slane %v616, 4
        %v619 = vor.u32 %v618, %v614
        %v620 = vrot.slane %v619, 4
        %v622 = vshll.u32 %v406, 16
        %v624 = vrot.slane %v622, 5
        %v625 = vsel %vm433, %v620, %v624
        %v627 = vshrl.u32 %v407, 16
        %v629 = vrot.slane %v627, 4
        %v630 = vshll.u32 %v407, 16
        %v632 = vrot.slane %v630, 5
        %v633 = vor.u32 %v629, %v632
        %v634 = vrot.slane %v633, 4
        %v636 = vshll.u32 %v408, 16
        %v638 = vrot.slane %v636, 5
        %v639 = vsel %vm433, %v634, %v638
        %v640 = vshrl.u32 %v408, 16
        %v642 = vrot.slane %v640, 4
        %v643 = vor.u32 %v642, %v638
        %v644 = vrot.slane %v643, 4
        %v646 = vshll.u32 %v409, 16
        %v648 = vrot.slane %v646, 5
        %v649 = vsel %vm433, %v644, %v648
        %v651 = vshrl.u32 %v410, 16
        %v653 = vrot.slane %v651, 4
        %v654 = vshll.u32 %v410, 16
        %v656 = vrot.slane %v654, 5
        %v657 = vor.u32 %v653, %v656
        %v658 = vrot.slane %v657, 4
        %v660 = vshll.u32 %v411, 16
        %v662 = vrot.slane %v660, 5
        %v663 = vsel %vm433, %v658, %v662
        %v664 = vshrl.u32 %v411, 16
        %v666 = vrot.slane %v664, 4
        %v667 = vor.u32 %v666, %v662
        %v668 = vrot.slane %v667, 4
        %v670 = vshll.u32 %v412, 16
        %v672 = vrot.slane %v670, 5
        %v673 = vsel %vm433, %v668, %v672
        %v675 = vshrl.u32 %v413, 16
        %v677 = vrot.slane %v675, 4
        %v678 = vshll.u32 %v413, 16
        %v680 = vrot.slane %v678, 5
        %v681 = vor.u32 %v677, %v680
        %v682 = vrot.slane %v681, 4
        %v684 = vshll.u32 %v414, 16
        %v686 = vrot.slane %v684, 5
        %v687 = vsel %vm433, %v682, %v686
        %v688 = vshrl.u32 %v414, 16
        %v690 = vrot.slane %v688, 4
        %v691 = vor.u32 %v690, %v686
        %v692 = vrot.slane %v691, 4
        %v694 = vshll.u32 %v415, 16
        %v696 = vrot.slane %v694, 5
        %v697 = vsel %vm433, %v692, %v696
        %v699 = vshrl.u32 %v416, 16
        %v701 = vrot.slane %v699, 4
        %v702 = vshll.u32 %v416, 16
        %v704 = vrot.slane %v702, 5
        %v705 = vor.u32 %v701, %v704
        %v706 = vrot.slane %v705, 4
        %v708 = vshll.u32 %v417, 16
        %v710 = vrot.slane %v708, 5
        %v711 = vsel %vm433, %v706, %v710
        %v712 = vshrl.u32 %v417, 16
        %v714 = vrot.slane %v712, 4
        %v715 = vor.u32 %v714, %v710
        %v716 = vrot.slane %v715, 4
        %v718 = vshll.u32 %v418, 16
        %v720 = vrot.slane %v718, 5
        %v721 = vsel %vm433, %v716, %v720
        %v723 = vshrl.u32 %v419, 16
        %v725 = vrot.slane %v723, 4
        %v726 = vshll.u32 %v419, 16
        %v728 = vrot.slane %v726, 5
        %v729 = vor.u32 %v725, %v728
        %v730 = vrot.slane %v729, 4
        %v732 = vshll.u32 %v420, 16
        %v734 = vrot.slane %v732, 5
        %v735 = vsel %vm433, %v730, %v734
        %v736 = vshrl.u32 %v420, 16
        %v738 = vrot.slane %v736, 4
        %v739 = vor.u32 %v738, %v734
        %v740 = vrot.slane %v739, 4
        %v742 = vshll.u32 %v421, 16
        %v744 = vrot.slane %v742, 5
        %v745 = vsel %vm433, %v740, %v744
        %v747 = vshrl.u32 %v422, 16
        %v749 = vrot.slane %v747, 4
        %v750 = vshll.u32 %v422, 16
        %v752 = vrot.slane %v750, 5
        %v753 = vor.u32 %v749, %v752
        %v754 = vrot.slane %v753, 4
        %v756 = vshll.u32 %v423, 16
        %v758 = vrot.slane %v756, 5
        %v759 = vsel %vm433, %v754, %v758
        %v760 = vshrl.u32 %v423, 16
        %v762 = vrot.slane %v760, 4
        %v763 = vor.u32 %v762, %v758
        %v764 = vrot.slane %v763, 4
        %v766 = vshll.u32 %v424, 16
        %v768 = vrot.slane %v766, 5
        %v769 = vsel %vm433, %v764, %v768
        %v771 = vshrl.u32 %v425, 16
        %v773 = vrot.slane %v771, 4
        %v774 = vshll.u32 %v425, 16
        %v776 = vrot.slane %v774, 5
        %v777 = vor.u32 %v773, %v776
        %v778 = vrot.slane %v777, 4
        %v780 = vshll.u32 %v426, 16
        %v782 = vrot.slane %v780, 5
        %v783 = vsel %vm433, %v778, %v782
        %v784 = vshrl.u32 %v426, 16
        %v786 = vrot.slane %v784, 4
        %v787 = vor.u32 %v786, %v782
        %v788 = vrot.slane %v787, 4
        %v790 = vshll.u32 %v427, 16
        %v792 = vrot.slane %v790, 5
        %v793 = vsel %vm433, %v788, %v792
        %v795 = vshrl.u32 %v428, 16
        %v797 = vrot.slane %v795, 4
        %v798 = vshll.u32 %v428, 16
        %v800 = vrot.slane %v798, 5
        %v801 = vor.u32 %v797, %v800
        %v802 = vrot.slane %v801, 4
        %v804 = vshll.u32 %v429, 16
        %v806 = vrot.slane %v804, 5
        %v807 = vsel %vm433, %v802, %v806
        %v808 = vshrl.u32 %v429, 16
        %v810 = vrot.slane %v808, 4
        %v811 = vor.u32 %v810, %v806
        %v812 = vrot.slane %v811, 4
        %v814 = vshll.u32 %v430, 16
        %v816 = vrot.slane %v814, 5
        %v817 = vsel %vm433, %v812, %v816
        %v818 = vunpack.c.l.b16 %v447
        %v819 = vunpack.c.l.b16 %v457
        %v820 = vunpack.c.l.b16 %v471
        %v821 = vunpack.c.l.b16 %v481
        %v822 = vunpack.c.l.b16 %v495
        %v823 = vunpack.c.l.b16 %v505
        %v824 = vunpack.c.l.b16 %v519
        %v825 = vunpack.c.l.b16 %v529
        %v826 = vunpack.c.l.b16 %v543
        %v827 = vunpack.c.l.b16 %v553
        %v828 = vunpack.c.l.b16 %v567
        %v829 = vunpack.c.l.b16 %v577
        %v830 = vunpack.c.l.b16 %v591
        %v831 = vunpack.c.l.b16 %v601
        %v832 = vunpack.c.l.b16 %v615
        %v833 = vunpack.c.l.b16 %v625
        %v834 = vunpack.c.l.b16 %v639
        %v835 = vunpack.c.l.b16 %v649
        %v836 = vunpack.c.l.b16 %v663
        %v837 = vunpack.c.l.b16 %v673
        %v838 = vunpack.c.l.b16 %v687
        %v839 = vunpack.c.l.b16 %v697
        %v840 = vunpack.c.l.b16 %v711
        %v841 = vunpack.c.l.b16 %v721
        %v842 = vunpack.c.l.b16 %v735
        %v843 = vunpack.c.l.b16 %v745
        %v844 = vunpack.c.l.b16 %v759
        %v845 = vunpack.c.l.b16 %v769
        %v846 = vunpack.c.l.b16 %v783
        %v847 = vunpack.c.l.b16 %v793
        %v848 = vunpack.c.l.b16 %v807
        %v849 = vunpack.c.l.b16 %v817
        %v850 = vpack.c.b16 %v819, %v818
        %v851 = vpack.c.b16 %v821, %v820
        %v852 = vpack.c.b16 %v823, %v822
        %v853 = vpack.c.b16 %v825, %v824
        %v854 = vpack.c.b16 %v827, %v826
        %v855 = vpack.c.b16 %v829, %v828
        %v856 = vpack.c.b16 %v831, %v830
        %v857 = vpack.c.b16 %v833, %v832
        %v858 = vpack.c.b16 %v835, %v834
        %v859 = vpack.c.b16 %v837, %v836
        %v860 = vpack.c.b16 %v839, %v838
        %v861 = vpack.c.b16 %v841, %v840
        %v862 = vpack.c.b16 %v843, %v842
        %v863 = vpack.c.b16 %v845, %v844
        %v864 = vpack.c.b16 %v847, %v846
        %v865 = vpack.c.b16 %v849, %v848
        %882 = vst [vmem:[#allocation2 + $0x8] sm:$0xff] %v850
        %883 = vst [vmem:[#allocation2 + $0x50] sm:$0xff] %v851
        %884 = vst [vmem:[#allocation2 + $0x98] sm:$0xff] %v852
        %885 = vst [vmem:[#allocation2 + $0xe0] sm:$0xff] %v853
        %886 = vst [vmem:[#allocation2 + $0x128] sm:$0xff] %v854
        %887 = vst [vmem:[#allocation2 + $0x170] sm:$0xff] %v855
        %888 = vst [vmem:[#allocation2 + $0x1b8] sm:$0xff] %v856
        %889 = vst [vmem:[#allocation2 + $0x200] sm:$0xff] %v857
        %890 = vst [vmem:[#allocation2 + $0x248] sm:$0xff] %v858
        %891 = vst [vmem:[#allocation2 + $0x290] sm:$0xff] %v859
        %892 = vst [vmem:[#allocation2 + $0x2d8] sm:$0xff] %v860
        %893 = vst [vmem:[#allocation2 + $0x320] sm:$0xff] %v861
        %894 = vst [vmem:[#allocation2 + $0x368] sm:$0xff] %v862
        %895 = vst [vmem:[#allocation2 + $0x3b0] sm:$0xff] %v863
        %896 = vst [vmem:[#allocation2 + $0x3f8] sm:$0xff] %v864
        %897 = vst [vmem:[#allocation2 + $0x440] sm:$0xff] %v865
        %v898 = vld [vmem:[%s237] sm:$0xe]
        %v899 = vld [vmem:[%s237 + $0x4] sm:$0xf]
        %v900 = vld [vmem:[%s237 + $0x8] sm:$0x1]
        %v901 = vld [vmem:[%s237 + $0xc] sm:$0xe]
        %v902 = vld [vmem:[%s237 + $0x10] sm:$0xf]
        %v903 = vld [vmem:[%s237 + $0x14] sm:$0x1]
        %v904 = vld [vmem:[%s237 + $0x18] sm:$0xe]
        %v905 = vld [vmem:[%s237 + $0x1c] sm:$0xf]
        %v906 = vld [vmem:[%s237 + $0x20] sm:$0x1]
        %v907 = vld [vmem:[%s237 + $0x24] sm:$0xe]
        %v908 = vld [vmem:[%s237 + $0x28] sm:$0xf]
        %v909 = vld [vmem:[%s237 + $0x2c] sm:$0x1]
        %v910 = vld [vmem:[%s237 + $0x30] sm:$0xe]
        %v911 = vld [vmem:[%s237 + $0x34] sm:$0xf]
        %v912 = vld [vmem:[%s237 + $0x38] sm:$0x1]
        %v913 = vld [vmem:[%s237 + $0x3c] sm:$0xe]
        %v914 = vld [vmem:[%s237 + $0x40] sm:$0xf]
        %v915 = vld [vmem:[%s237 + $0x44] sm:$0x1]
        %v916 = vld [vmem:[%s237 + $0x48] sm:$0xe]
        %v917 = vld [vmem:[%s237 + $0x4c] sm:$0xf]
        %v918 = vld [vmem:[%s237 + $0x50] sm:$0x1]
        %v919 = vld [vmem:[%s237 + $0x54] sm:$0xe]
        %v920 = vld [vmem:[%s237 + $0x58] sm:$0xf]
        %v921 = vld [vmem:[%s237 + $0x5c] sm:$0x1]
        %v922 = vld [vmem:[%s237 + $0x60] sm:$0xe]
        %v923 = vld [vmem:[%s237 + $0x64] sm:$0xf]
        %v924 = vld [vmem:[%s237 + $0x68] sm:$0x1]
        %v925 = vld [vmem:[%s237 + $0x6c] sm:$0xe]
        %v926 = vld [vmem:[%s237 + $0x70] sm:$0xf]
        %v927 = vld [vmem:[%s237 + $0x74] sm:$0x1]
        %v928 = vld [vmem:[%s237 + $0x78] sm:$0xe]
        %v929 = vld [vmem:[%s237 + $0x7c] sm:$0xf]
        %v930 = vld [vmem:[%s237 + $0x80] sm:$0x1]
        %v931 = vld [vmem:[%s237 + $0x84] sm:$0xe]
        %v932 = vld [vmem:[%s237 + $0x88] sm:$0xf]
        %v933 = vld [vmem:[%s237 + $0x8c] sm:$0x1]
        %v934 = vld [vmem:[%s237 + $0x90] sm:$0xe]
        %v935 = vld [vmem:[%s237 + $0x94] sm:$0xf]
        %v936 = vld [vmem:[%s237 + $0x98] sm:$0x1]
        %v937 = vld [vmem:[%s237 + $0x9c] sm:$0xe]
        %v938 = vld [vmem:[%s237 + $0xa0] sm:$0xf]
        %v939 = vld [vmem:[%s237 + $0xa4] sm:$0x1]
        %v940 = vld [vmem:[%s237 + $0xa8] sm:$0xe]
        %v941 = vld [vmem:[%s237 + $0xac] sm:$0xf]
        %v942 = vld [vmem:[%s237 + $0xb0] sm:$0x1]
        %v943 = vld [vmem:[%s237 + $0xb4] sm:$0xe]
        %v944 = vld [vmem:[%s237 + $0xb8] sm:$0xf]
        %v945 = vld [vmem:[%s237 + $0xbc] sm:$0x1]
        %vm994 = vcmask 1042432
        %vm995 = vcmask 1046532
        %vm996 = vmor %vm994, %vm995
        %v997 = vrot.slane %v898, 5
        %v998 = vrot.slane %v997, 4
        %v999 = vrot.slane %v899, 5
        %v1000 = vsel %vm996, %v998, %v999
        %v1001 = vrot.slane %v999, 4
        %v1002 = vrot.slane %v900, 5
        %v1003 = vsel %vm996, %v1001, %v1002
        %v1004 = vrot.slane %v901, 5
        %v1005 = vrot.slane %v1004, 4
        %v1006 = vrot.slane %v902, 5
        %v1007 = vsel %vm996, %v1005, %v1006
        %v1008 = vrot.slane %v1006, 4
        %v1009 = vrot.slane %v903, 5
        %v1010 = vsel %vm996, %v1008, %v1009
        %v1011 = vrot.slane %v904, 5
        %v1012 = vrot.slane %v1011, 4
        %v1013 = vrot.slane %v905, 5
        %v1014 = vsel %vm996, %v1012, %v1013
        %v1015 = vrot.slane %v1013, 4
        %v1016 = vrot.slane %v906, 5
        %v1017 = vsel %vm996, %v1015, %v1016
        %v1018 = vrot.slane %v907, 5
        %v1019 = vrot.slane %v1018, 4
        %v1020 = vrot.slane %v908, 5
        %v1021 = vsel %vm996, %v1019, %v1020
        %v1022 = vrot.slane %v1020, 4
        %v1023 = vrot.slane %v909, 5
        %v1024 = vsel %vm996, %v1022, %v1023
        %v1025 = vrot.slane %v910, 5
        %v1026 = vrot.slane %v1025, 4
        %v1027 = vrot.slane %v911, 5
        %v1028 = vsel %vm996, %v1026, %v1027
        %v1029 = vrot.slane %v1027, 4
        %v1030 = vrot.slane %v912, 5
        %v1031 = vsel %vm996, %v1029, %v1030
        %v1032 = vrot.slane %v913, 5
        %v1033 = vrot.slane %v1032, 4
        %v1034 = vrot.slane %v914, 5
        %v1035 = vsel %vm996, %v1033, %v1034
        %v1036 = vrot.slane %v1034, 4
        %v1037 = vrot.slane %v915, 5
        %v1038 = vsel %vm996, %v1036, %v1037
        %v1039 = vrot.slane %v916, 5
        %v1040 = vrot.slane %v1039, 4
        %v1041 = vrot.slane %v917, 5
        %v1042 = vsel %vm996, %v1040, %v1041
        %v1043 = vrot.slane %v1041, 4
        %v1044 = vrot.slane %v918, 5
        %v1045 = vsel %vm996, %v1043, %v1044
        %v1046 = vrot.slane %v919, 5
        %v1047 = vrot.slane %v1046, 4
        %v1048 = vrot.slane %v920, 5
        %v1049 = vsel %vm996, %v1047, %v1048
        %v1050 = vrot.slane %v1048, 4
        %v1051 = vrot.slane %v921, 5
        %v1052 = vsel %vm996, %v1050, %v1051
        %v1053 = vrot.slane %v922, 5
        %v1054 = vrot.slane %v1053, 4
        %v1055 = vrot.slane %v923, 5
        %v1056 = vsel %vm996, %v1054, %v1055
        %v1057 = vrot.slane %v1055, 4
        %v1058 = vrot.slane %v924, 5
        %v1059 = vsel %vm996, %v1057, %v1058
        %v1060 = vrot.slane %v925, 5
        %v1061 = vrot.slane %v1060, 4
        %v1062 = vrot.slane %v926, 5
        %v1063 = vsel %vm996, %v1061, %v1062
        %v1064 = vrot.slane %v1062, 4
        %v1065 = vrot.slane %v927, 5
        %v1066 = vsel %vm996, %v1064, %v1065
        %v1067 = vrot.slane %v928, 5
        %v1068 = vrot.slane %v1067, 4
        %v1069 = vrot.slane %v929, 5
        %v1070 = vsel %vm996, %v1068, %v1069
        %v1071 = vrot.slane %v1069, 4
        %v1072 = vrot.slane %v930, 5
        %v1073 = vsel %vm996, %v1071, %v1072
        %v1074 = vrot.slane %v931, 5
        %v1075 = vrot.slane %v1074, 4
        %v1076 = vrot.slane %v932, 5
        %v1077 = vsel %vm996, %v1075, %v1076
        %v1078 = vrot.slane %v1076, 4
        %v1079 = vrot.slane %v933, 5
        %v1080 = vsel %vm996, %v1078, %v1079
        %v1081 = vrot.slane %v934, 5
        %v1082 = vrot.slane %v1081, 4
        %v1083 = vrot.slane %v935, 5
        %v1084 = vsel %vm996, %v1082, %v1083
        %v1085 = vrot.slane %v1083, 4
        %v1086 = vrot.slane %v936, 5
        %v1087 = vsel %vm996, %v1085, %v1086
        %v1088 = vrot.slane %v937, 5
        %v1089 = vrot.slane %v1088, 4
        %v1090 = vrot.slane %v938, 5
        %v1091 = vsel %vm996, %v1089, %v1090
        %v1092 = vrot.slane %v1090, 4
        %v1093 = vrot.slane %v939, 5
        %v1094 = vsel %vm996, %v1092, %v1093
        %v1095 = vrot.slane %v940, 5
        %v1096 = vrot.slane %v1095, 4
        %v1097 = vrot.slane %v941, 5
        %v1098 = vsel %vm996, %v1096, %v1097
        %v1099 = vrot.slane %v1097, 4
        %v1100 = vrot.slane %v942, 5
        %v1101 = vsel %vm996, %v1099, %v1100
        %v1102 = vrot.slane %v943, 5
        %v1103 = vrot.slane %v1102, 4
        %v1104 = vrot.slane %v944, 5
        %v1105 = vsel %vm996, %v1103, %v1104
        %v1106 = vrot.slane %v1104, 4
        %v1107 = vrot.slane %v945, 5
        %v1108 = vsel %vm996, %v1106, %v1107
        %v1109 = vunpack.c.l.b16 %v1000
        %v1110 = vunpack.c.l.b16 %v1003
        %v1111 = vunpack.c.l.b16 %v1007
        %v1112 = vunpack.c.l.b16 %v1010
        %v1113 = vunpack.c.l.b16 %v1014
        %v1114 = vunpack.c.l.b16 %v1017
        %v1115 = vunpack.c.l.b16 %v1021
        %v1116 = vunpack.c.l.b16 %v1024
        %v1117 = vunpack.c.l.b16 %v1028
        %v1118 = vunpack.c.l.b16 %v1031
        %v1119 = vunpack.c.l.b16 %v1035
        %v1120 = vunpack.c.l.b16 %v1038
        %v1121 = vunpack.c.l.b16 %v1042
        %v1122 = vunpack.c.l.b16 %v1045
        %v1123 = vunpack.c.l.b16 %v1049
        %v1124 = vunpack.c.l.b16 %v1052
        %v1125 = vunpack.c.l.b16 %v1056
        %v1126 = vunpack.c.l.b16 %v1059
        %v1127 = vunpack.c.l.b16 %v1063
        %v1128 = vunpack.c.l.b16 %v1066
        %v1129 = vunpack.c.l.b16 %v1070
        %v1130 = vunpack.c.l.b16 %v1073
        %v1131 = vunpack.c.l.b16 %v1077
        %v1132 = vunpack.c.l.b16 %v1080
        %v1133 = vunpack.c.l.b16 %v1084
        %v1134 = vunpack.c.l.b16 %v1087
        %v1135 = vunpack.c.l.b16 %v1091
        %v1136 = vunpack.c.l.b16 %v1094
        %v1137 = vunpack.c.l.b16 %v1098
        %v1138 = vunpack.c.l.b16 %v1101
        %v1139 = vunpack.c.l.b16 %v1105
        %v1140 = vunpack.c.l.b16 %v1108
        %v1141 = vpack.c.b16 %v1110, %v1109
        %v1142 = vpack.c.b16 %v1112, %v1111
        %v1143 = vpack.c.b16 %v1114, %v1113
        %v1144 = vpack.c.b16 %v1116, %v1115
        %v1145 = vpack.c.b16 %v1118, %v1117
        %v1146 = vpack.c.b16 %v1120, %v1119
        %v1147 = vpack.c.b16 %v1122, %v1121
        %v1148 = vpack.c.b16 %v1124, %v1123
        %v1149 = vpack.c.b16 %v1126, %v1125
        %v1150 = vpack.c.b16 %v1128, %v1127
        %v1151 = vpack.c.b16 %v1130, %v1129
        %v1152 = vpack.c.b16 %v1132, %v1131
        %v1153 = vpack.c.b16 %v1134, %v1133
        %v1154 = vpack.c.b16 %v1136, %v1135
        %v1155 = vpack.c.b16 %v1138, %v1137
        %v1156 = vpack.c.b16 %v1140, %v1139
        %1173 = vst [vmem:[#allocation2 + $0x10] sm:$0xff] %v1141
        %1174 = vst [vmem:[#allocation2 + $0x58] sm:$0xff] %v1142
        %1175 = vst [vmem:[#allocation2 + $0xa0] sm:$0xff] %v1143
        %1176 = vst [vmem:[#allocation2 + $0xe8] sm:$0xff] %v1144
        %1177 = vst [vmem:[#allocation2 + $0x130] sm:$0xff] %v1145
        %1178 = vst [vmem:[#allocation2 + $0x178] sm:$0xff] %v1146
        %1179 = vst [vmem:[#allocation2 + $0x1c0] sm:$0xff] %v1147
        %1180 = vst [vmem:[#allocation2 + $0x208] sm:$0xff] %v1148
        %1181 = vst [vmem:[#allocation2 + $0x250] sm:$0xff] %v1149
        %1182 = vst [vmem:[#allocation2 + $0x298] sm:$0xff] %v1150
        %1183 = vst [vmem:[#allocation2 + $0x2e0] sm:$0xff] %v1151
        %1184 = vst [vmem:[#allocation2 + $0x328] sm:$0xff] %v1152
        %1185 = vst [vmem:[#allocation2 + $0x370] sm:$0xff] %v1153
        %1186 = vst [vmem:[#allocation2 + $0x3b8] sm:$0xff] %v1154
        %1187 = vst [vmem:[#allocation2 + $0x400] sm:$0xff] %v1155
        %1188 = vst [vmem:[#allocation2 + $0x448] sm:$0xff] %v1156
        %s1189 = scalar_lea.vmem %s237, 12
        %v1190 = vld [vmem:[%s1189] sm:$0xf]
        %v1191 = vld [vmem:[%s1189 + $0x4] sm:$0xf]
        %v1192 = vld [vmem:[%s1189 + $0xc] sm:$0xf]
        %v1193 = vld [vmem:[%s1189 + $0x10] sm:$0xf]
        %v1194 = vld [vmem:[%s1189 + $0x18] sm:$0xf]
        %v1195 = vld [vmem:[%s1189 + $0x1c] sm:$0xf]
        %v1196 = vld [vmem:[%s1189 + $0x24] sm:$0xf]
        %v1197 = vld [vmem:[%s1189 + $0x28] sm:$0xf]
        %v1198 = vld [vmem:[%s1189 + $0x30] sm:$0xf]
        %v1199 = vld [vmem:[%s1189 + $0x34] sm:$0xf]
        %v1200 = vld [vmem:[%s1189 + $0x3c] sm:$0xf]
        %v1201 = vld [vmem:[%s1189 + $0x40] sm:$0xf]
        %v1202 = vld [vmem:[%s1189 + $0x48] sm:$0xf]
        %v1203 = vld [vmem:[%s1189 + $0x4c] sm:$0xf]
        %v1204 = vld [vmem:[%s1189 + $0x54] sm:$0xf]
        %v1205 = vld [vmem:[%s1189 + $0x58] sm:$0xf]
        %v1206 = vld [vmem:[%s1189 + $0x60] sm:$0xf]
        %v1207 = vld [vmem:[%s1189 + $0x64] sm:$0xf]
        %v1208 = vld [vmem:[%s1189 + $0x6c] sm:$0xf]
        %v1209 = vld [vmem:[%s1189 + $0x70] sm:$0xf]
        %v1210 = vld [vmem:[%s1189 + $0x78] sm:$0xf]
        %v1211 = vld [vmem:[%s1189 + $0x7c] sm:$0xf]
        %v1212 = vld [vmem:[%s1189 + $0x84] sm:$0xf]
        %v1213 = vld [vmem:[%s1189 + $0x88] sm:$0xf]
        %v1214 = vld [vmem:[%s1189 + $0x90] sm:$0xf]
        %v1215 = vld [vmem:[%s1189 + $0x94] sm:$0xf]
        %v1216 = vld [vmem:[%s1189 + $0x9c] sm:$0xf]
        %v1217 = vld [vmem:[%s1189 + $0xa0] sm:$0xf]
        %v1218 = vld [vmem:[%s1189 + $0xa8] sm:$0xf]
        %v1219 = vld [vmem:[%s1189 + $0xac] sm:$0xf]
        %v1220 = vld [vmem:[%s1189 + $0xb4] sm:$0xf]
        %v1221 = vld [vmem:[%s1189 + $0xb8] sm:$0xf]
        %v1254 = vunpack.c.l.b16 %v1190
        %v1255 = vunpack.c.l.b16 %v1191
        %v1256 = vunpack.c.l.b16 %v1192
        %v1257 = vunpack.c.l.b16 %v1193
        %v1258 = vunpack.c.l.b16 %v1194
        %v1259 = vunpack.c.l.b16 %v1195
        %v1260 = vunpack.c.l.b16 %v1196
        %v1261 = vunpack.c.l.b16 %v1197
        %v1262 = vunpack.c.l.b16 %v1198
        %v1263 = vunpack.c.l.b16 %v1199
        %v1264 = vunpack.c.l.b16 %v1200
        %v1265 = vunpack.c.l.b16 %v1201
        %v1266 = vunpack.c.l.b16 %v1202
        %v1267 = vunpack.c.l.b16 %v1203
        %v1268 = vunpack.c.l.b16 %v1204
        %v1269 = vunpack.c.l.b16 %v1205
        %v1270 = vunpack.c.l.b16 %v1206
        %v1271 = vunpack.c.l.b16 %v1207
        %v1272 = vunpack.c.l.b16 %v1208
        %v1273 = vunpack.c.l.b16 %v1209
        %v1274 = vunpack.c.l.b16 %v1210
        %v1275 = vunpack.c.l.b16 %v1211
        %v1276 = vunpack.c.l.b16 %v1212
        %v1277 = vunpack.c.l.b16 %v1213
        %v1278 = vunpack.c.l.b16 %v1214
        %v1279 = vunpack.c.l.b16 %v1215
        %v1280 = vunpack.c.l.b16 %v1216
        %v1281 = vunpack.c.l.b16 %v1217
        %v1282 = vunpack.c.l.b16 %v1218
        %v1283 = vunpack.c.l.b16 %v1219
        %v1284 = vunpack.c.l.b16 %v1220
        %v1285 = vunpack.c.l.b16 %v1221
        %v1286 = vpack.c.b16 %v1255, %v1254
        %v1287 = vpack.c.b16 %v1257, %v1256
        %v1288 = vpack.c.b16 %v1259, %v1258
        %v1289 = vpack.c.b16 %v1261, %v1260
        %v1290 = vpack.c.b16 %v1263, %v1262
        %v1291 = vpack.c.b16 %v1265, %v1264
        %v1292 = vpack.c.b16 %v1267, %v1266
        %v1293 = vpack.c.b16 %v1269, %v1268
        %v1294 = vpack.c.b16 %v1271, %v1270
        %v1295 = vpack.c.b16 %v1273, %v1272
        %v1296 = vpack.c.b16 %v1275, %v1274
        %v1297 = vpack.c.b16 %v1277, %v1276
        %v1298 = vpack.c.b16 %v1279, %v1278
        %v1299 = vpack.c.b16 %v1281, %v1280
        %v1300 = vpack.c.b16 %v1283, %v1282
        %v1301 = vpack.c.b16 %v1285, %v1284
        %1318 = vst [vmem:[#allocation2 + $0x18] sm:$0xff] %v1286
        %1319 = vst [vmem:[#allocation2 + $0x60] sm:$0xff] %v1287
        %1320 = vst [vmem:[#allocation2 + $0xa8] sm:$0xff] %v1288
        %1321 = vst [vmem:[#allocation2 + $0xf0] sm:$0xff] %v1289
        %1322 = vst [vmem:[#allocation2 + $0x138] sm:$0xff] %v1290
        %1323 = vst [vmem:[#allocation2 + $0x180] sm:$0xff] %v1291
        %1324 = vst [vmem:[#allocation2 + $0x1c8] sm:$0xff] %v1292
        %1325 = vst [vmem:[#allocation2 + $0x210] sm:$0xff] %v1293
        %1326 = vst [vmem:[#allocation2 + $0x258] sm:$0xff] %v1294
        %1327 = vst [vmem:[#allocation2 + $0x2a0] sm:$0xff] %v1295
        %1328 = vst [vmem:[#allocation2 + $0x2e8] sm:$0xff] %v1296
        %1329 = vst [vmem:[#allocation2 + $0x330] sm:$0xff] %v1297
        %1330 = vst [vmem:[#allocation2 + $0x378] sm:$0xff] %v1298
        %1331 = vst [vmem:[#allocation2 + $0x3c0] sm:$0xff] %v1299
        %1332 = vst [vmem:[#allocation2 + $0x408] sm:$0xff] %v1300
        %1333 = vst [vmem:[#allocation2 + $0x450] sm:$0xff] %v1301
        %v1334 = vld [vmem:[%s1189] sm:$0xf]
        %v1335 = vld [vmem:[%s1189 + $0x4] sm:$0xf]
        %v1336 = vld [vmem:[%s1189 + $0x8] sm:$0x1]
        %v1337 = vld [vmem:[%s1189 + $0xc] sm:$0xf]
        %v1338 = vld [vmem:[%s1189 + $0x10] sm:$0xf]
        %v1339 = vld [vmem:[%s1189 + $0x14] sm:$0x1]
        %v1340 = vld [vmem:[%s1189 + $0x18] sm:$0xf]
        %v1341 = vld [vmem:[%s1189 + $0x1c] sm:$0xf]
        %v1342 = vld [vmem:[%s1189 + $0x20] sm:$0x1]
        %v1343 = vld [vmem:[%s1189 + $0x24] sm:$0xf]
        %v1344 = vld [vmem:[%s1189 + $0x28] sm:$0xf]
        %v1345 = vld [vmem:[%s1189 + $0x2c] sm:$0x1]
        %v1346 = vld [vmem:[%s1189 + $0x30] sm:$0xf]
        %v1347 = vld [vmem:[%s1189 + $0x34] sm:$0xf]
        %v1348 = vld [vmem:[%s1189 + $0x38] sm:$0x1]
        %v1349 = vld [vmem:[%s1189 + $0x3c] sm:$0xf]
        %v1350 = vld [vmem:[%s1189 + $0x40] sm:$0xf]
        %v1351 = vld [vmem:[%s1189 + $0x44] sm:$0x1]
        %v1352 = vld [vmem:[%s1189 + $0x48] sm:$0xf]
        %v1353 = vld [vmem:[%s1189 + $0x4c] sm:$0xf]
        %v1354 = vld [vmem:[%s1189 + $0x50] sm:$0x1]
        %v1355 = vld [vmem:[%s1189 + $0x54] sm:$0xf]
        %v1356 = vld [vmem:[%s1189 + $0x58] sm:$0xf]
        %v1357 = vld [vmem:[%s1189 + $0x5c] sm:$0x1]
        %v1358 = vld [vmem:[%s1189 + $0x60] sm:$0xf]
        %v1359 = vld [vmem:[%s1189 + $0x64] sm:$0xf]
        %v1360 = vld [vmem:[%s1189 + $0x68] sm:$0x1]
        %v1361 = vld [vmem:[%s1189 + $0x6c] sm:$0xf]
        %v1362 = vld [vmem:[%s1189 + $0x70] sm:$0xf]
        %v1363 = vld [vmem:[%s1189 + $0x74] sm:$0x1]
        %v1364 = vld [vmem:[%s1189 + $0x78] sm:$0xf]
        %v1365 = vld [vmem:[%s1189 + $0x7c] sm:$0xf]
        %v1366 = vld [vmem:[%s1189 + $0x80] sm:$0x1]
        %v1367 = vld [vmem:[%s1189 + $0x84] sm:$0xf]
        %v1368 = vld [vmem:[%s1189 + $0x88] sm:$0xf]
        %v1369 = vld [vmem:[%s1189 + $0x8c] sm:$0x1]
        %v1370 = vld [vmem:[%s1189 + $0x90] sm:$0xf]
        %v1371 = vld [vmem:[%s1189 + $0x94] sm:$0xf]
        %v1372 = vld [vmem:[%s1189 + $0x98] sm:$0x1]
        %v1373 = vld [vmem:[%s1189 + $0x9c] sm:$0xf]
        %v1374 = vld [vmem:[%s1189 + $0xa0] sm:$0xf]
        %v1375 = vld [vmem:[%s1189 + $0xa4] sm:$0x1]
        %v1376 = vld [vmem:[%s1189 + $0xa8] sm:$0xf]
        %v1377 = vld [vmem:[%s1189 + $0xac] sm:$0xf]
        %v1378 = vld [vmem:[%s1189 + $0xb0] sm:$0x1]
        %v1379 = vld [vmem:[%s1189 + $0xb4] sm:$0xf]
        %v1380 = vld [vmem:[%s1189 + $0xb8] sm:$0xf]
        %v1381 = vld [vmem:[%s1189 + $0xbc] sm:$0x1]
        %v1383 = vshrl.u32 %v1334, 16
        %v1385 = vrot.slane %v1383, 4
        %v1386 = vshll.u32 %v1334, 16
        %v1388 = vrot.slane %v1386, 5
        %v1389 = vor.u32 %v1385, %v1388
        %v1390 = vrot.slane %v1389, 4
        %v1392 = vshll.u32 %v1335, 16
        %v1394 = vrot.slane %v1392, 5
        %v1395 = vsel %vm433, %v1390, %v1394
        %v1396 = vshrl.u32 %v1335, 16
        %v1398 = vrot.slane %v1396, 4
        %v1399 = vor.u32 %v1398, %v1394
        %v1400 = vrot.slane %v1399, 4
        %v1402 = vshll.u32 %v1336, 16
        %v1404 = vrot.slane %v1402, 5
        %v1405 = vsel %vm433, %v1400, %v1404
        %v1407 = vshrl.u32 %v1337, 16
        %v1409 = vrot.slane %v1407, 4
        %v1410 = vshll.u32 %v1337, 16
        %v1412 = vrot.slane %v1410, 5
        %v1413 = vor.u32 %v1409, %v1412
        %v1414 = vrot.slane %v1413, 4
        %v1416 = vshll.u32 %v1338, 16
        %v1418 = vrot.slane %v1416, 5
        %v1419 = vsel %vm433, %v1414, %v1418
        %v1420 = vshrl.u32 %v1338, 16
        %v1422 = vrot.slane %v1420, 4
        %v1423 = vor.u32 %v1422, %v1418
        %v1424 = vrot.slane %v1423, 4
        %v1426 = vshll.u32 %v1339, 16
        %v1428 = vrot.slane %v1426, 5
        %v1429 = vsel %vm433, %v1424, %v1428
        %v1431 = vshrl.u32 %v1340, 16
        %v1433 = vrot.slane %v1431, 4
        %v1434 = vshll.u32 %v1340, 16
        %v1436 = vrot.slane %v1434, 5
        %v1437 = vor.u32 %v1433, %v1436
        %v1438 = vrot.slane %v1437, 4
        %v1440 = vshll.u32 %v1341, 16
        %v1442 = vrot.slane %v1440, 5
        %v1443 = vsel %vm433, %v1438, %v1442
        %v1444 = vshrl.u32 %v1341, 16
        %v1446 = vrot.slane %v1444, 4
        %v1447 = vor.u32 %v1446, %v1442
        %v1448 = vrot.slane %v1447, 4
        %v1450 = vshll.u32 %v1342, 16
        %v1452 = vrot.slane %v1450, 5
        %v1453 = vsel %vm433, %v1448, %v1452
        %v1455 = vshrl.u32 %v1343, 16
        %v1457 = vrot.slane %v1455, 4
        %v1458 = vshll.u32 %v1343, 16
        %v1460 = vrot.slane %v1458, 5
        %v1461 = vor.u32 %v1457, %v1460
        %v1462 = vrot.slane %v1461, 4
        %v1464 = vshll.u32 %v1344, 16
        %v1466 = vrot.slane %v1464, 5
        %v1467 = vsel %vm433, %v1462, %v1466
        %v1468 = vshrl.u32 %v1344, 16
        %v1470 = vrot.slane %v1468, 4
        %v1471 = vor.u32 %v1470, %v1466
        %v1472 = vrot.slane %v1471, 4
        %v1474 = vshll.u32 %v1345, 16
        %v1476 = vrot.slane %v1474, 5
        %v1477 = vsel %vm433, %v1472, %v1476
        %v1479 = vshrl.u32 %v1346, 16
        %v1481 = vrot.slane %v1479, 4
        %v1482 = vshll.u32 %v1346, 16
        %v1484 = vrot.slane %v1482, 5
        %v1485 = vor.u32 %v1481, %v1484
        %v1486 = vrot.slane %v1485, 4
        %v1488 = vshll.u32 %v1347, 16
        %v1490 = vrot.slane %v1488, 5
        %v1491 = vsel %vm433, %v1486, %v1490
        %v1492 = vshrl.u32 %v1347, 16
        %v1494 = vrot.slane %v1492, 4
        %v1495 = vor.u32 %v1494, %v1490
        %v1496 = vrot.slane %v1495, 4
        %v1498 = vshll.u32 %v1348, 16
        %v1500 = vrot.slane %v1498, 5
        %v1501 = vsel %vm433, %v1496, %v1500
        %v1503 = vshrl.u32 %v1349, 16
        %v1505 = vrot.slane %v1503, 4
        %v1506 = vshll.u32 %v1349, 16
        %v1508 = vrot.slane %v1506, 5
        %v1509 = vor.u32 %v1505, %v1508
        %v1510 = vrot.slane %v1509, 4
        %v1512 = vshll.u32 %v1350, 16
        %v1514 = vrot.slane %v1512, 5
        %v1515 = vsel %vm433, %v1510, %v1514
        %v1516 = vshrl.u32 %v1350, 16
        %v1518 = vrot.slane %v1516, 4
        %v1519 = vor.u32 %v1518, %v1514
        %v1520 = vrot.slane %v1519, 4
        %v1522 = vshll.u32 %v1351, 16
        %v1524 = vrot.slane %v1522, 5
        %v1525 = vsel %vm433, %v1520, %v1524
        %v1527 = vshrl.u32 %v1352, 16
        %v1529 = vrot.slane %v1527, 4
        %v1530 = vshll.u32 %v1352, 16
        %v1532 = vrot.slane %v1530, 5
        %v1533 = vor.u32 %v1529, %v1532
        %v1534 = vrot.slane %v1533, 4
        %v1536 = vshll.u32 %v1353, 16
        %v1538 = vrot.slane %v1536, 5
        %v1539 = vsel %vm433, %v1534, %v1538
        %v1540 = vshrl.u32 %v1353, 16
        %v1542 = vrot.slane %v1540, 4
        %v1543 = vor.u32 %v1542, %v1538
        %v1544 = vrot.slane %v1543, 4
        %v1546 = vshll.u32 %v1354, 16
        %v1548 = vrot.slane %v1546, 5
        %v1549 = vsel %vm433, %v1544, %v1548
        %v1551 = vshrl.u32 %v1355, 16
        %v1553 = vrot.slane %v1551, 4
        %v1554 = vshll.u32 %v1355, 16
        %v1556 = vrot.slane %v1554, 5
        %v1557 = vor.u32 %v1553, %v1556
        %v1558 = vrot.slane %v1557, 4
        %v1560 = vshll.u32 %v1356, 16
        %v1562 = vrot.slane %v1560, 5
        %v1563 = vsel %vm433, %v1558, %v1562
        %v1564 = vshrl.u32 %v1356, 16
        %v1566 = vrot.slane %v1564, 4
        %v1567 = vor.u32 %v1566, %v1562
        %v1568 = vrot.slane %v1567, 4
        %v1570 = vshll.u32 %v1357, 16
        %v1572 = vrot.slane %v1570, 5
        %v1573 = vsel %vm433, %v1568, %v1572
        %v1575 = vshrl.u32 %v1358, 16
        %v1577 = vrot.slane %v1575, 4
        %v1578 = vshll.u32 %v1358, 16
        %v1580 = vrot.slane %v1578, 5
        %v1581 = vor.u32 %v1577, %v1580
        %v1582 = vrot.slane %v1581, 4
        %v1584 = vshll.u32 %v1359, 16
        %v1586 = vrot.slane %v1584, 5
        %v1587 = vsel %vm433, %v1582, %v1586
        %v1588 = vshrl.u32 %v1359, 16
        %v1590 = vrot.slane %v1588, 4
        %v1591 = vor.u32 %v1590, %v1586
        %v1592 = vrot.slane %v1591, 4
        %v1594 = vshll.u32 %v1360, 16
        %v1596 = vrot.slane %v1594, 5
        %v1597 = vsel %vm433, %v1592, %v1596
        %v1599 = vshrl.u32 %v1361, 16
        %v1601 = vrot.slane %v1599, 4
        %v1602 = vshll.u32 %v1361, 16
        %v1604 = vrot.slane %v1602, 5
        %v1605 = vor.u32 %v1601, %v1604
        %v1606 = vrot.slane %v1605, 4
        %v1608 = vshll.u32 %v1362, 16
        %v1610 = vrot.slane %v1608, 5
        %v1611 = vsel %vm433, %v1606, %v1610
        %v1612 = vshrl.u32 %v1362, 16
        %v1614 = vrot.slane %v1612, 4
        %v1615 = vor.u32 %v1614, %v1610
        %v1616 = vrot.slane %v1615, 4
        %v1618 = vshll.u32 %v1363, 16
        %v1620 = vrot.slane %v1618, 5
        %v1621 = vsel %vm433, %v1616, %v1620
        %v1623 = vshrl.u32 %v1364, 16
        %v1625 = vrot.slane %v1623, 4
        %v1626 = vshll.u32 %v1364, 16
        %v1628 = vrot.slane %v1626, 5
        %v1629 = vor.u32 %v1625, %v1628
        %v1630 = vrot.slane %v1629, 4
        %v1632 = vshll.u32 %v1365, 16
        %v1634 = vrot.slane %v1632, 5
        %v1635 = vsel %vm433, %v1630, %v1634
        %v1636 = vshrl.u32 %v1365, 16
        %v1638 = vrot.slane %v1636, 4
        %v1639 = vor.u32 %v1638, %v1634
        %v1640 = vrot.slane %v1639, 4
        %v1642 = vshll.u32 %v1366, 16
        %v1644 = vrot.slane %v1642, 5
        %v1645 = vsel %vm433, %v1640, %v1644
        %v1647 = vshrl.u32 %v1367, 16
        %v1649 = vrot.slane %v1647, 4
        %v1650 = vshll.u32 %v1367, 16
        %v1652 = vrot.slane %v1650, 5
        %v1653 = vor.u32 %v1649, %v1652
        %v1654 = vrot.slane %v1653, 4
        %v1656 = vshll.u32 %v1368, 16
        %v1658 = vrot.slane %v1656, 5
        %v1659 = vsel %vm433, %v1654, %v1658
        %v1660 = vshrl.u32 %v1368, 16
        %v1662 = vrot.slane %v1660, 4
        %v1663 = vor.u32 %v1662, %v1658
        %v1664 = vrot.slane %v1663, 4
        %v1666 = vshll.u32 %v1369, 16
        %v1668 = vrot.slane %v1666, 5
        %v1669 = vsel %vm433, %v1664, %v1668
        %v1671 = vshrl.u32 %v1370, 16
        %v1673 = vrot.slane %v1671, 4
        %v1674 = vshll.u32 %v1370, 16
        %v1676 = vrot.slane %v1674, 5
        %v1677 = vor.u32 %v1673, %v1676
        %v1678 = vrot.slane %v1677, 4
        %v1680 = vshll.u32 %v1371, 16
        %v1682 = vrot.slane %v1680, 5
        %v1683 = vsel %vm433, %v1678, %v1682
        %v1684 = vshrl.u32 %v1371, 16
        %v1686 = vrot.slane %v1684, 4
        %v1687 = vor.u32 %v1686, %v1682
        %v1688 = vrot.slane %v1687, 4
        %v1690 = vshll.u32 %v1372, 16
        %v1692 = vrot.slane %v1690, 5
        %v1693 = vsel %vm433, %v1688, %v1692
        %v1695 = vshrl.u32 %v1373, 16
        %v1697 = vrot.slane %v1695, 4
        %v1698 = vshll.u32 %v1373, 16
        %v1700 = vrot.slane %v1698, 5
        %v1701 = vor.u32 %v1697, %v1700
        %v1702 = vrot.slane %v1701, 4
        %v1704 = vshll.u32 %v1374, 16
        %v1706 = vrot.slane %v1704, 5
        %v1707 = vsel %vm433, %v1702, %v1706
        %v1708 = vshrl.u32 %v1374, 16
        %v1710 = vrot.slane %v1708, 4
        %v1711 = vor.u32 %v1710, %v1706
        %v1712 = vrot.slane %v1711, 4
        %v1714 = vshll.u32 %v1375, 16
        %v1716 = vrot.slane %v1714, 5
        %v1717 = vsel %vm433, %v1712, %v1716
        %v1719 = vshrl.u32 %v1376, 16
        %v1721 = vrot.slane %v1719, 4
        %v1722 = vshll.u32 %v1376, 16
        %v1724 = vrot.slane %v1722, 5
        %v1725 = vor.u32 %v1721, %v1724
        %v1726 = vrot.slane %v1725, 4
        %v1728 = vshll.u32 %v1377, 16
        %v1730 = vrot.slane %v1728, 5
        %v1731 = vsel %vm433, %v1726, %v1730
        %v1732 = vshrl.u32 %v1377, 16
        %v1734 = vrot.slane %v1732, 4
        %v1735 = vor.u32 %v1734, %v1730
        %v1736 = vrot.slane %v1735, 4
        %v1738 = vshll.u32 %v1378, 16
        %v1740 = vrot.slane %v1738, 5
        %v1741 = vsel %vm433, %v1736, %v1740
        %v1743 = vshrl.u32 %v1379, 16
        %v1745 = vrot.slane %v1743, 4
        %v1746 = vshll.u32 %v1379, 16
        %v1748 = vrot.slane %v1746, 5
        %v1749 = vor.u32 %v1745, %v1748
        %v1750 = vrot.slane %v1749, 4
        %v1752 = vshll.u32 %v1380, 16
        %v1754 = vrot.slane %v1752, 5
        %v1755 = vsel %vm433, %v1750, %v1754
        %v1756 = vshrl.u32 %v1380, 16
        %v1758 = vrot.slane %v1756, 4
        %v1759 = vor.u32 %v1758, %v1754
        %v1760 = vrot.slane %v1759, 4
        %v1762 = vshll.u32 %v1381, 16
        %v1764 = vrot.slane %v1762, 5
        %v1765 = vsel %vm433, %v1760, %v1764
        %v1766 = vunpack.c.l.b16 %v1395
        %v1767 = vunpack.c.l.b16 %v1405
        %v1768 = vunpack.c.l.b16 %v1419
        %v1769 = vunpack.c.l.b16 %v1429
        %v1770 = vunpack.c.l.b16 %v1443
        %v1771 = vunpack.c.l.b16 %v1453
        %v1772 = vunpack.c.l.b16 %v1467
        %v1773 = vunpack.c.l.b16 %v1477
        %v1774 = vunpack.c.l.b16 %v1491
        %v1775 = vunpack.c.l.b16 %v1501
        %v1776 = vunpack.c.l.b16 %v1515
        %v1777 = vunpack.c.l.b16 %v1525
        %v1778 = vunpack.c.l.b16 %v1539
        %v1779 = vunpack.c.l.b16 %v1549
        %v1780 = vunpack.c.l.b16 %v1563
        %v1781 = vunpack.c.l.b16 %v1573
        %v1782 = vunpack.c.l.b16 %v1587
        %v1783 = vunpack.c.l.b16 %v1597
        %v1784 = vunpack.c.l.b16 %v1611
        %v1785 = vunpack.c.l.b16 %v1621
        %v1786 = vunpack.c.l.b16 %v1635
        %v1787 = vunpack.c.l.b16 %v1645
        %v1788 = vunpack.c.l.b16 %v1659
        %v1789 = vunpack.c.l.b16 %v1669
        %v1790 = vunpack.c.l.b16 %v1683
        %v1791 = vunpack.c.l.b16 %v1693
        %v1792 = vunpack.c.l.b16 %v1707
        %v1793 = vunpack.c.l.b16 %v1717
        %v1794 = vunpack.c.l.b16 %v1731
        %v1795 = vunpack.c.l.b16 %v1741
        %v1796 = vunpack.c.l.b16 %v1755
        %v1797 = vunpack.c.l.b16 %v1765
        %v1798 = vpack.c.b16 %v1767, %v1766
        %v1799 = vpack.c.b16 %v1769, %v1768
        %v1800 = vpack.c.b16 %v1771, %v1770
        %v1801 = vpack.c.b16 %v1773, %v1772
        %v1802 = vpack.c.b16 %v1775, %v1774
        %v1803 = vpack.c.b16 %v1777, %v1776
        %v1804 = vpack.c.b16 %v1779, %v1778
        %v1805 = vpack.c.b16 %v1781, %v1780
        %v1806 = vpack.c.b16 %v1783, %v1782
        %v1807 = vpack.c.b16 %v1785, %v1784
        %v1808 = vpack.c.b16 %v1787, %v1786
        %v1809 = vpack.c.b16 %v1789, %v1788
        %v1810 = vpack.c.b16 %v1791, %v1790
        %v1811 = vpack.c.b16 %v1793, %v1792
        %v1812 = vpack.c.b16 %v1795, %v1794
        %v1813 = vpack.c.b16 %v1797, %v1796
        %1830 = vst [vmem:[#allocation2 + $0x20] sm:$0xff] %v1798
        %1831 = vst [vmem:[#allocation2 + $0x68] sm:$0xff] %v1799
        %1832 = vst [vmem:[#allocation2 + $0xb0] sm:$0xff] %v1800
        %1833 = vst [vmem:[#allocation2 + $0xf8] sm:$0xff] %v1801
        %1834 = vst [vmem:[#allocation2 + $0x140] sm:$0xff] %v1802
        %1835 = vst [vmem:[#allocation2 + $0x188] sm:$0xff] %v1803
        %1836 = vst [vmem:[#allocation2 + $0x1d0] sm:$0xff] %v1804
        %1837 = vst [vmem:[#allocation2 + $0x218] sm:$0xff] %v1805
        %1838 = vst [vmem:[#allocation2 + $0x260] sm:$0xff] %v1806
        %1839 = vst [vmem:[#allocation2 + $0x2a8] sm:$0xff] %v1807
        %1840 = vst [vmem:[#allocation2 + $0x2f0] sm:$0xff] %v1808
        %1841 = vst [vmem:[#allocation2 + $0x338] sm:$0xff] %v1809
        %1842 = vst [vmem:[#allocation2 + $0x380] sm:$0xff] %v1810
        %1843 = vst [vmem:[#allocation2 + $0x3c8] sm:$0xff] %v1811
        %1844 = vst [vmem:[#allocation2 + $0x410] sm:$0xff] %v1812
        %1845 = vst [vmem:[#allocation2 + $0x458] sm:$0xff] %v1813
        %v1846 = vld [vmem:[%s1189] sm:$0xe]
        %v1847 = vld [vmem:[%s1189 + $0x4] sm:$0xf]
        %v1848 = vld [vmem:[%s1189 + $0x8] sm:$0x1]
        %v1849 = vld [vmem:[%s1189 + $0xc] sm:$0xe]
        %v1850 = vld [vmem:[%s1189 + $0x10] sm:$0xf]
        %v1851 = vld [vmem:[%s1189 + $0x14] sm:$0x1]
        %v1852 = vld [vmem:[%s1189 + $0x18] sm:$0xe]
        %v1853 = vld [vmem:[%s1189 + $0x1c] sm:$0xf]
        %v1854 = vld [vmem:[%s1189 + $0x20] sm:$0x1]
        %v1855 = vld [vmem:[%s1189 + $0x24] sm:$0xe]
        %v1856 = vld [vmem:[%s1189 + $0x28] sm:$0xf]
        %v1857 = vld [vmem:[%s1189 + $0x2c] sm:$0x1]
        %v1858 = vld [vmem:[%s1189 + $0x30] sm:$0xe]
        %v1859 = vld [vmem:[%s1189 + $0x34] sm:$0xf]
        %v1860 = vld [vmem:[%s1189 + $0x38] sm:$0x1]
        %v1861 = vld [vmem:[%s1189 + $0x3c] sm:$0xe]
        %v1862 = vld [vmem:[%s1189 + $0x40] sm:$0xf]
        %v1863 = vld [vmem:[%s1189 + $0x44] sm:$0x1]
        %v1864 = vld [vmem:[%s1189 + $0x48] sm:$0xe]
        %v1865 = vld [vmem:[%s1189 + $0x4c] sm:$0xf]
        %v1866 = vld [vmem:[%s1189 + $0x50] sm:$0x1]
        %v1867 = vld [vmem:[%s1189 + $0x54] sm:$0xe]
        %v1868 = vld [vmem:[%s1189 + $0x58] sm:$0xf]
        %v1869 = vld [vmem:[%s1189 + $0x5c] sm:$0x1]
        %v1870 = vld [vmem:[%s1189 + $0x60] sm:$0xe]
        %v1871 = vld [vmem:[%s1189 + $0x64] sm:$0xf]
        %v1872 = vld [vmem:[%s1189 + $0x68] sm:$0x1]
        %v1873 = vld [vmem:[%s1189 + $0x6c] sm:$0xe]
        %v1874 = vld [vmem:[%s1189 + $0x70] sm:$0xf]
        %v1875 = vld [vmem:[%s1189 + $0x74] sm:$0x1]
        %v1876 = vld [vmem:[%s1189 + $0x78] sm:$0xe]
        %v1877 = vld [vmem:[%s1189 + $0x7c] sm:$0xf]
        %v1878 = vld [vmem:[%s1189 + $0x80] sm:$0x1]
        %v1879 = vld [vmem:[%s1189 + $0x84] sm:$0xe]
        %v1880 = vld [vmem:[%s1189 + $0x88] sm:$0xf]
        %v1881 = vld [vmem:[%s1189 + $0x8c] sm:$0x1]
        %v1882 = vld [vmem:[%s1189 + $0x90] sm:$0xe]
        %v1883 = vld [vmem:[%s1189 + $0x94] sm:$0xf]
        %v1884 = vld [vmem:[%s1189 + $0x98] sm:$0x1]
        %v1885 = vld [vmem:[%s1189 + $0x9c] sm:$0xe]
        %v1886 = vld [vmem:[%s1189 + $0xa0] sm:$0xf]
        %v1887 = vld [vmem:[%s1189 + $0xa4] sm:$0x1]
        %v1888 = vld [vmem:[%s1189 + $0xa8] sm:$0xe]
        %v1889 = vld [vmem:[%s1189 + $0xac] sm:$0xf]
        %v1890 = vld [vmem:[%s1189 + $0xb0] sm:$0x1]
        %v1891 = vld [vmem:[%s1189 + $0xb4] sm:$0xe]
        %v1892 = vld [vmem:[%s1189 + $0xb8] sm:$0xf]
        %v1893 = vld [vmem:[%s1189 + $0xbc] sm:$0x1]
        %v1942 = vrot.slane %v1846, 5
        %v1943 = vrot.slane %v1942, 4
        %v1944 = vrot.slane %v1847, 5
        %v1945 = vsel %vm996, %v1943, %v1944
        %v1946 = vrot.slane %v1944, 4
        %v1947 = vrot.slane %v1848, 5
        %v1948 = vsel %vm996, %v1946, %v1947
        %v1949 = vrot.slane %v1849, 5
        %v1950 = vrot.slane %v1949, 4
        %v1951 = vrot.slane %v1850, 5
        %v1952 = vsel %vm996, %v1950, %v1951
        %v1953 = vrot.slane %v1951, 4
        %v1954 = vrot.slane %v1851, 5
        %v1955 = vsel %vm996, %v1953, %v1954
        %v1956 = vrot.slane %v1852, 5
        %v1957 = vrot.slane %v1956, 4
        %v1958 = vrot.slane %v1853, 5
        %v1959 = vsel %vm996, %v1957, %v1958
        %v1960 = vrot.slane %v1958, 4
        %v1961 = vrot.slane %v1854, 5
        %v1962 = vsel %vm996, %v1960, %v1961
        %v1963 = vrot.slane %v1855, 5
        %v1964 = vrot.slane %v1963, 4
        %v1965 = vrot.slane %v1856, 5
        %v1966 = vsel %vm996, %v1964, %v1965
        %v1967 = vrot.slane %v1965, 4
        %v1968 = vrot.slane %v1857, 5
        %v1969 = vsel %vm996, %v1967, %v1968
        %v1970 = vrot.slane %v1858, 5
        %v1971 = vrot.slane %v1970, 4
        %v1972 = vrot.slane %v1859, 5
        %v1973 = vsel %vm996, %v1971, %v1972
        %v1974 = vrot.slane %v1972, 4
        %v1975 = vrot.slane %v1860, 5
        %v1976 = vsel %vm996, %v1974, %v1975
        %v1977 = vrot.slane %v1861, 5
        %v1978 = vrot.slane %v1977, 4
        %v1979 = vrot.slane %v1862, 5
        %v1980 = vsel %vm996, %v1978, %v1979
        %v1981 = vrot.slane %v1979, 4
        %v1982 = vrot.slane %v1863, 5
        %v1983 = vsel %vm996, %v1981, %v1982
        %v1984 = vrot.slane %v1864, 5
        %v1985 = vrot.slane %v1984, 4
        %v1986 = vrot.slane %v1865, 5
        %v1987 = vsel %vm996, %v1985, %v1986
        %v1988 = vrot.slane %v1986, 4
        %v1989 = vrot.slane %v1866, 5
        %v1990 = vsel %vm996, %v1988, %v1989
        %v1991 = vrot.slane %v1867, 5
        %v1992 = vrot.slane %v1991, 4
        %v1993 = vrot.slane %v1868, 5
        %v1994 = vsel %vm996, %v1992, %v1993
        %v1995 = vrot.slane %v1993, 4
        %v1996 = vrot.slane %v1869, 5
        %v1997 = vsel %vm996, %v1995, %v1996
        %v1998 = vrot.slane %v1870, 5
        %v1999 = vrot.slane %v1998, 4
        %v2000 = vrot.slane %v1871, 5
        %v2001 = vsel %vm996, %v1999, %v2000
        %v2002 = vrot.slane %v2000, 4
        %v2003 = vrot.slane %v1872, 5
        %v2004 = vsel %vm996, %v2002, %v2003
        %v2005 = vrot.slane %v1873, 5
        %v2006 = vrot.slane %v2005, 4
        %v2007 = vrot.slane %v1874, 5
        %v2008 = vsel %vm996, %v2006, %v2007
        %v2009 = vrot.slane %v2007, 4
        %v2010 = vrot.slane %v1875, 5
        %v2011 = vsel %vm996, %v2009, %v2010
        %v2012 = vrot.slane %v1876, 5
        %v2013 = vrot.slane %v2012, 4
        %v2014 = vrot.slane %v1877, 5
        %v2015 = vsel %vm996, %v2013, %v2014
        %v2016 = vrot.slane %v2014, 4
        %v2017 = vrot.slane %v1878, 5
        %v2018 = vsel %vm996, %v2016, %v2017
        %v2019 = vrot.slane %v1879, 5
        %v2020 = vrot.slane %v2019, 4
        %v2021 = vrot.slane %v1880, 5
        %v2022 = vsel %vm996, %v2020, %v2021
        %v2023 = vrot.slane %v2021, 4
        %v2024 = vrot.slane %v1881, 5
        %v2025 = vsel %vm996, %v2023, %v2024
        %v2026 = vrot.slane %v1882, 5
        %v2027 = vrot.slane %v2026, 4
        %v2028 = vrot.slane %v1883, 5
        %v2029 = vsel %vm996, %v2027, %v2028
        %v2030 = vrot.slane %v2028, 4
        %v2031 = vrot.slane %v1884, 5
        %v2032 = vsel %vm996, %v2030, %v2031
        %v2033 = vrot.slane %v1885, 5
        %v2034 = vrot.slane %v2033, 4
        %v2035 = vrot.slane %v1886, 5
        %v2036 = vsel %vm996, %v2034, %v2035
        %v2037 = vrot.slane %v2035, 4
        %v2038 = vrot.slane %v1887, 5
        %v2039 = vsel %vm996, %v2037, %v2038
        %v2040 = vrot.slane %v1888, 5
        %v2041 = vrot.slane %v2040, 4
        %v2042 = vrot.slane %v1889, 5
        %v2043 = vsel %vm996, %v2041, %v2042
        %v2044 = vrot.slane %v2042, 4
        %v2045 = vrot.slane %v1890, 5
        %v2046 = vsel %vm996, %v2044, %v2045
        %v2047 = vrot.slane %v1891, 5
        %v2048 = vrot.slane %v2047, 4
        %v2049 = vrot.slane %v1892, 5
        %v2050 = vsel %vm996, %v2048, %v2049
        %v2051 = vrot.slane %v2049, 4
        %v2052 = vrot.slane %v1893, 5
        %v2053 = vsel %vm996, %v2051, %v2052
        %v2054 = vunpack.c.l.b16 %v1945
        %v2055 = vunpack.c.l.b16 %v1948
        %v2056 = vunpack.c.l.b16 %v1952
        %v2057 = vunpack.c.l.b16 %v1955
        %v2058 = vunpack.c.l.b16 %v1959
        %v2059 = vunpack.c.l.b16 %v1962
        %v2060 = vunpack.c.l.b16 %v1966
        %v2061 = vunpack.c.l.b16 %v1969
        %v2062 = vunpack.c.l.b16 %v1973
        %v2063 = vunpack.c.l.b16 %v1976
        %v2064 = vunpack.c.l.b16 %v1980
        %v2065 = vunpack.c.l.b16 %v1983
        %v2066 = vunpack.c.l.b16 %v1987
        %v2067 = vunpack.c.l.b16 %v1990
        %v2068 = vunpack.c.l.b16 %v1994
        %v2069 = vunpack.c.l.b16 %v1997
        %v2070 = vunpack.c.l.b16 %v2001
        %v2071 = vunpack.c.l.b16 %v2004
        %v2072 = vunpack.c.l.b16 %v2008
        %v2073 = vunpack.c.l.b16 %v2011
        %v2074 = vunpack.c.l.b16 %v2015
        %v2075 = vunpack.c.l.b16 %v2018
        %v2076 = vunpack.c.l.b16 %v2022
        %v2077 = vunpack.c.l.b16 %v2025
        %v2078 = vunpack.c.l.b16 %v2029
        %v2079 = vunpack.c.l.b16 %v2032
        %v2080 = vunpack.c.l.b16 %v2036
        %v2081 = vunpack.c.l.b16 %v2039
        %v2082 = vunpack.c.l.b16 %v2043
        %v2083 = vunpack.c.l.b16 %v2046
        %v2084 = vunpack.c.l.b16 %v2050
        %v2085 = vunpack.c.l.b16 %v2053
        %v2086 = vpack.c.b16 %v2055, %v2054
        %v2087 = vpack.c.b16 %v2057, %v2056
        %v2088 = vpack.c.b16 %v2059, %v2058
        %v2089 = vpack.c.b16 %v2061, %v2060
        %v2090 = vpack.c.b16 %v2063, %v2062
        %v2091 = vpack.c.b16 %v2065, %v2064
        %v2092 = vpack.c.b16 %v2067, %v2066
        %v2093 = vpack.c.b16 %v2069, %v2068
        %v2094 = vpack.c.b16 %v2071, %v2070
        %v2095 = vpack.c.b16 %v2073, %v2072
        %v2096 = vpack.c.b16 %v2075, %v2074
        %v2097 = vpack.c.b16 %v2077, %v2076
        %v2098 = vpack.c.b16 %v2079, %v2078
        %v2099 = vpack.c.b16 %v2081, %v2080
        %v2100 = vpack.c.b16 %v2083, %v2082
        %v2101 = vpack.c.b16 %v2085, %v2084
        %2118 = vst [vmem:[#allocation2 + $0x28] sm:$0xff] %v2086
        %2119 = vst [vmem:[#allocation2 + $0x70] sm:$0xff] %v2087
        %2120 = vst [vmem:[#allocation2 + $0xb8] sm:$0xff] %v2088
        %2121 = vst [vmem:[#allocation2 + $0x100] sm:$0xff] %v2089
        %2122 = vst [vmem:[#allocation2 + $0x148] sm:$0xff] %v2090
        %2123 = vst [vmem:[#allocation2 + $0x190] sm:$0xff] %v2091
        %2124 = vst [vmem:[#allocation2 + $0x1d8] sm:$0xff] %v2092
        %2125 = vst [vmem:[#allocation2 + $0x220] sm:$0xff] %v2093
        %2126 = vst [vmem:[#allocation2 + $0x268] sm:$0xff] %v2094
        %2127 = vst [vmem:[#allocation2 + $0x2b0] sm:$0xff] %v2095
        %2128 = vst [vmem:[#allocation2 + $0x2f8] sm:$0xff] %v2096
        %2129 = vst [vmem:[#allocation2 + $0x340] sm:$0xff] %v2097
        %2130 = vst [vmem:[#allocation2 + $0x388] sm:$0xff] %v2098
        %2131 = vst [vmem:[#allocation2 + $0x3d0] sm:$0xff] %v2099
        %2132 = vst [vmem:[#allocation2 + $0x418] sm:$0xff] %v2100
        %2133 = vst [vmem:[#allocation2 + $0x460] sm:$0xff] %v2101
        %s2134 = scalar_lea.vmem %s237, 24
        %v2135 = vld [vmem:[%s2134] sm:$0xf]
        %v2136 = vld [vmem:[%s2134 + $0x4] sm:$0xf]
        %v2137 = vld [vmem:[%s2134 + $0xc] sm:$0xf]
        %v2138 = vld [vmem:[%s2134 + $0x10] sm:$0xf]
        %v2139 = vld [vmem:[%s2134 + $0x18] sm:$0xf]
        %v2140 = vld [vmem:[%s2134 + $0x1c] sm:$0xf]
        %v2141 = vld [vmem:[%s2134 + $0x24] sm:$0xf]
        %v2142 = vld [vmem:[%s2134 + $0x28] sm:$0xf]
        %v2143 = vld [vmem:[%s2134 + $0x30] sm:$0xf]
        %v2144 = vld [vmem:[%s2134 + $0x34] sm:$0xf]
        %v2145 = vld [vmem:[%s2134 + $0x3c] sm:$0xf]
        %v2146 = vld [vmem:[%s2134 + $0x40] sm:$0xf]
        %v2147 = vld [vmem:[%s2134 + $0x48] sm:$0xf]
        %v2148 = vld [vmem:[%s2134 + $0x4c] sm:$0xf]
        %v2149 = vld [vmem:[%s2134 + $0x54] sm:$0xf]
        %v2150 = vld [vmem:[%s2134 + $0x58] sm:$0xf]
        %v2151 = vld [vmem:[%s2134 + $0x60] sm:$0xf]
        %v2152 = vld [vmem:[%s2134 + $0x64] sm:$0xf]
        %v2153 = vld [vmem:[%s2134 + $0x6c] sm:$0xf]
        %v2154 = vld [vmem:[%s2134 + $0x70] sm:$0xf]
        %v2155 = vld [vmem:[%s2134 + $0x78] sm:$0xf]
        %v2156 = vld [vmem:[%s2134 + $0x7c] sm:$0xf]
        %v2157 = vld [vmem:[%s2134 + $0x84] sm:$0xf]
        %v2158 = vld [vmem:[%s2134 + $0x88] sm:$0xf]
        %v2159 = vld [vmem:[%s2134 + $0x90] sm:$0xf]
        %v2160 = vld [vmem:[%s2134 + $0x94] sm:$0xf]
        %v2161 = vld [vmem:[%s2134 + $0x9c] sm:$0xf]
        %v2162 = vld [vmem:[%s2134 + $0xa0] sm:$0xf]
        %v2163 = vld [vmem:[%s2134 + $0xa8] sm:$0xf]
        %v2164 = vld [vmem:[%s2134 + $0xac] sm:$0xf]
        %v2165 = vld [vmem:[%s2134 + $0xb4] sm:$0xf]
        %v2166 = vld [vmem:[%s2134 + $0xb8] sm:$0xf]
        %v2199 = vunpack.c.l.b16 %v2135
        %v2200 = vunpack.c.l.b16 %v2136
        %v2201 = vunpack.c.l.b16 %v2137
        %v2202 = vunpack.c.l.b16 %v2138
        %v2203 = vunpack.c.l.b16 %v2139
        %v2204 = vunpack.c.l.b16 %v2140
        %v2205 = vunpack.c.l.b16 %v2141
        %v2206 = vunpack.c.l.b16 %v2142
        %v2207 = vunpack.c.l.b16 %v2143
        %v2208 = vunpack.c.l.b16 %v2144
        %v2209 = vunpack.c.l.b16 %v2145
        %v2210 = vunpack.c.l.b16 %v2146
        %v2211 = vunpack.c.l.b16 %v2147
        %v2212 = vunpack.c.l.b16 %v2148
        %v2213 = vunpack.c.l.b16 %v2149
        %v2214 = vunpack.c.l.b16 %v2150
        %v2215 = vunpack.c.l.b16 %v2151
        %v2216 = vunpack.c.l.b16 %v2152
        %v2217 = vunpack.c.l.b16 %v2153
        %v2218 = vunpack.c.l.b16 %v2154
        %v2219 = vunpack.c.l.b16 %v2155
        %v2220 = vunpack.c.l.b16 %v2156
        %v2221 = vunpack.c.l.b16 %v2157
        %v2222 = vunpack.c.l.b16 %v2158
        %v2223 = vunpack.c.l.b16 %v2159
        %v2224 = vunpack.c.l.b16 %v2160
        %v2225 = vunpack.c.l.b16 %v2161
        %v2226 = vunpack.c.l.b16 %v2162
        %v2227 = vunpack.c.l.b16 %v2163
        %v2228 = vunpack.c.l.b16 %v2164
        %v2229 = vunpack.c.l.b16 %v2165
        %v2230 = vunpack.c.l.b16 %v2166
        %v2231 = vpack.c.b16 %v2200, %v2199
        %v2232 = vpack.c.b16 %v2202, %v2201
        %v2233 = vpack.c.b16 %v2204, %v2203
        %v2234 = vpack.c.b16 %v2206, %v2205
        %v2235 = vpack.c.b16 %v2208, %v2207
        %v2236 = vpack.c.b16 %v2210, %v2209
        %v2237 = vpack.c.b16 %v2212, %v2211
        %v2238 = vpack.c.b16 %v2214, %v2213
        %v2239 = vpack.c.b16 %v2216, %v2215
        %v2240 = vpack.c.b16 %v2218, %v2217
        %v2241 = vpack.c.b16 %v2220, %v2219
        %v2242 = vpack.c.b16 %v2222, %v2221
        %v2243 = vpack.c.b16 %v2224, %v2223
        %v2244 = vpack.c.b16 %v2226, %v2225
        %v2245 = vpack.c.b16 %v2228, %v2227
        %v2246 = vpack.c.b16 %v2230, %v2229
        %2263 = vst [vmem:[#allocation2 + $0x30] sm:$0xff] %v2231
        %2264 = vst [vmem:[#allocation2 + $0x78] sm:$0xff] %v2232
        %2265 = vst [vmem:[#allocation2 + $0xc0] sm:$0xff] %v2233
        %2266 = vst [vmem:[#allocation2 + $0x108] sm:$0xff] %v2234
        %2267 = vst [vmem:[#allocation2 + $0x150] sm:$0xff] %v2235
        %2268 = vst [vmem:[#allocation2 + $0x198] sm:$0xff] %v2236
        %2269 = vst [vmem:[#allocation2 + $0x1e0] sm:$0xff] %v2237
        %2270 = vst [vmem:[#allocation2 + $0x228] sm:$0xff] %v2238
        %2271 = vst [vmem:[#allocation2 + $0x270] sm:$0xff] %v2239
        %2272 = vst [vmem:[#allocation2 + $0x2b8] sm:$0xff] %v2240
        %2273 = vst [vmem:[#allocation2 + $0x300] sm:$0xff] %v2241
        %2274 = vst [vmem:[#allocation2 + $0x348] sm:$0xff] %v2242
        %2275 = vst [vmem:[#allocation2 + $0x390] sm:$0xff] %v2243
        %2276 = vst [vmem:[#allocation2 + $0x3d8] sm:$0xff] %v2244
        %2277 = vst [vmem:[#allocation2 + $0x420] sm:$0xff] %v2245
        %2278 = vst [vmem:[#allocation2 + $0x468] sm:$0xff] %v2246
        %v2279 = vld [vmem:[%s2134] sm:$0xf]
        %v2280 = vld [vmem:[%s2134 + $0x4] sm:$0xf]
        %v2281 = vld [vmem:[%s2134 + $0x8] sm:$0x1]
        %v2282 = vld [vmem:[%s2134 + $0xc] sm:$0xf]
        %v2283 = vld [vmem:[%s2134 + $0x10] sm:$0xf]
        %v2284 = vld [vmem:[%s2134 + $0x14] sm:$0x1]
        %v2285 = vld [vmem:[%s2134 + $0x18] sm:$0xf]
        %v2286 = vld [vmem:[%s2134 + $0x1c] sm:$0xf]
        %v2287 = vld [vmem:[%s2134 + $0x20] sm:$0x1]
        %v2288 = vld [vmem:[%s2134 + $0x24] sm:$0xf]
        %v2289 = vld [vmem:[%s2134 + $0x28] sm:$0xf]
        %v2290 = vld [vmem:[%s2134 + $0x2c] sm:$0x1]
        %v2291 = vld [vmem:[%s2134 + $0x30] sm:$0xf]
        %v2292 = vld [vmem:[%s2134 + $0x34] sm:$0xf]
        %v2293 = vld [vmem:[%s2134 + $0x38] sm:$0x1]
        %v2294 = vld [vmem:[%s2134 + $0x3c] sm:$0xf]
        %v2295 = vld [vmem:[%s2134 + $0x40] sm:$0xf]
        %v2296 = vld [vmem:[%s2134 + $0x44] sm:$0x1]
        %v2297 = vld [vmem:[%s2134 + $0x48] sm:$0xf]
        %v2298 = vld [vmem:[%s2134 + $0x4c] sm:$0xf]
        %v2299 = vld [vmem:[%s2134 + $0x50] sm:$0x1]
        %v2300 = vld [vmem:[%s2134 + $0x54] sm:$0xf]
        %v2301 = vld [vmem:[%s2134 + $0x58] sm:$0xf]
        %v2302 = vld [vmem:[%s2134 + $0x5c] sm:$0x1]
        %v2303 = vld [vmem:[%s2134 + $0x60] sm:$0xf]
        %v2304 = vld [vmem:[%s2134 + $0x64] sm:$0xf]
        %v2305 = vld [vmem:[%s2134 + $0x68] sm:$0x1]
        %v2306 = vld [vmem:[%s2134 + $0x6c] sm:$0xf]
        %v2307 = vld [vmem:[%s2134 + $0x70] sm:$0xf]
        %v2308 = vld [vmem:[%s2134 + $0x74] sm:$0x1]
        %v2309 = vld [vmem:[%s2134 + $0x78] sm:$0xf]
        %v2310 = vld [vmem:[%s2134 + $0x7c] sm:$0xf]
        %v2311 = vld [vmem:[%s2134 + $0x80] sm:$0x1]
        %v2312 = vld [vmem:[%s2134 + $0x84] sm:$0xf]
        %v2313 = vld [vmem:[%s2134 + $0x88] sm:$0xf]
        %v2314 = vld [vmem:[%s2134 + $0x8c] sm:$0x1]
        %v2315 = vld [vmem:[%s2134 + $0x90] sm:$0xf]
        %v2316 = vld [vmem:[%s2134 + $0x94] sm:$0xf]
        %v2317 = vld [vmem:[%s2134 + $0x98] sm:$0x1]
        %v2318 = vld [vmem:[%s2134 + $0x9c] sm:$0xf]
        %v2319 = vld [vmem:[%s2134 + $0xa0] sm:$0xf]
        %v2320 = vld [vmem:[%s2134 + $0xa4] sm:$0x1]
        %v2321 = vld [vmem:[%s2134 + $0xa8] sm:$0xf]
        %v2322 = vld [vmem:[%s2134 + $0xac] sm:$0xf]
        %v2323 = vld [vmem:[%s2134 + $0xb0] sm:$0x1]
        %v2324 = vld [vmem:[%s2134 + $0xb4] sm:$0xf]
        %v2325 = vld [vmem:[%s2134 + $0xb8] sm:$0xf]
        %v2326 = vld [vmem:[%s2134 + $0xbc] sm:$0x1]
        %v2328 = vshrl.u32 %v2279, 16
        %v2330 = vrot.slane %v2328, 4
        %v2331 = vshll.u32 %v2279, 16
        %v2333 = vrot.slane %v2331, 5
        %v2334 = vor.u32 %v2330, %v2333
        %v2335 = vrot.slane %v2334, 4
        %v2337 = vshll.u32 %v2280, 16
        %v2339 = vrot.slane %v2337, 5
        %v2340 = vsel %vm433, %v2335, %v2339
        %v2341 = vshrl.u32 %v2280, 16
        %v2343 = vrot.slane %v2341, 4
        %v2344 = vor.u32 %v2343, %v2339
        %v2345 = vrot.slane %v2344, 4
        %v2347 = vshll.u32 %v2281, 16
        %v2349 = vrot.slane %v2347, 5
        %v2350 = vsel %vm433, %v2345, %v2349
        %v2352 = vshrl.u32 %v2282, 16
        %v2354 = vrot.slane %v2352, 4
        %v2355 = vshll.u32 %v2282, 16
        %v2357 = vrot.slane %v2355, 5
        %v2358 = vor.u32 %v2354, %v2357
        %v2359 = vrot.slane %v2358, 4
        %v2361 = vshll.u32 %v2283, 16
        %v2363 = vrot.slane %v2361, 5
        %v2364 = vsel %vm433, %v2359, %v2363
        %v2365 = vshrl.u32 %v2283, 16
        %v2367 = vrot.slane %v2365, 4
        %v2368 = vor.u32 %v2367, %v2363
        %v2369 = vrot.slane %v2368, 4
        %v2371 = vshll.u32 %v2284, 16
        %v2373 = vrot.slane %v2371, 5
        %v2374 = vsel %vm433, %v2369, %v2373
        %v2376 = vshrl.u32 %v2285, 16
        %v2378 = vrot.slane %v2376, 4
        %v2379 = vshll.u32 %v2285, 16
        %v2381 = vrot.slane %v2379, 5
        %v2382 = vor.u32 %v2378, %v2381
        %v2383 = vrot.slane %v2382, 4
        %v2385 = vshll.u32 %v2286, 16
        %v2387 = vrot.slane %v2385, 5
        %v2388 = vsel %vm433, %v2383, %v2387
        %v2389 = vshrl.u32 %v2286, 16
        %v2391 = vrot.slane %v2389, 4
        %v2392 = vor.u32 %v2391, %v2387
        %v2393 = vrot.slane %v2392, 4
        %v2395 = vshll.u32 %v2287, 16
        %v2397 = vrot.slane %v2395, 5
        %v2398 = vsel %vm433, %v2393, %v2397
        %v2400 = vshrl.u32 %v2288, 16
        %v2402 = vrot.slane %v2400, 4
        %v2403 = vshll.u32 %v2288, 16
        %v2405 = vrot.slane %v2403, 5
        %v2406 = vor.u32 %v2402, %v2405
        %v2407 = vrot.slane %v2406, 4
        %v2409 = vshll.u32 %v2289, 16
        %v2411 = vrot.slane %v2409, 5
        %v2412 = vsel %vm433, %v2407, %v2411
        %v2413 = vshrl.u32 %v2289, 16
        %v2415 = vrot.slane %v2413, 4
        %v2416 = vor.u32 %v2415, %v2411
        %v2417 = vrot.slane %v2416, 4
        %v2419 = vshll.u32 %v2290, 16
        %v2421 = vrot.slane %v2419, 5
        %v2422 = vsel %vm433, %v2417, %v2421
        %v2424 = vshrl.u32 %v2291, 16
        %v2426 = vrot.slane %v2424, 4
        %v2427 = vshll.u32 %v2291, 16
        %v2429 = vrot.slane %v2427, 5
        %v2430 = vor.u32 %v2426, %v2429
        %v2431 = vrot.slane %v2430, 4
        %v2433 = vshll.u32 %v2292, 16
        %v2435 = vrot.slane %v2433, 5
        %v2436 = vsel %vm433, %v2431, %v2435
        %v2437 = vshrl.u32 %v2292, 16
        %v2439 = vrot.slane %v2437, 4
        %v2440 = vor.u32 %v2439, %v2435
        %v2441 = vrot.slane %v2440, 4
        %v2443 = vshll.u32 %v2293, 16
        %v2445 = vrot.slane %v2443, 5
        %v2446 = vsel %vm433, %v2441, %v2445
        %v2448 = vshrl.u32 %v2294, 16
        %v2450 = vrot.slane %v2448, 4
        %v2451 = vshll.u32 %v2294, 16
        %v2453 = vrot.slane %v2451, 5
        %v2454 = vor.u32 %v2450, %v2453
        %v2455 = vrot.slane %v2454, 4
        %v2457 = vshll.u32 %v2295, 16
        %v2459 = vrot.slane %v2457, 5
        %v2460 = vsel %vm433, %v2455, %v2459
        %v2461 = vshrl.u32 %v2295, 16
        %v2463 = vrot.slane %v2461, 4
        %v2464 = vor.u32 %v2463, %v2459
        %v2465 = vrot.slane %v2464, 4
        %v2467 = vshll.u32 %v2296, 16
        %v2469 = vrot.slane %v2467, 5
        %v2470 = vsel %vm433, %v2465, %v2469
        %v2472 = vshrl.u32 %v2297, 16
        %v2474 = vrot.slane %v2472, 4
        %v2475 = vshll.u32 %v2297, 16
        %v2477 = vrot.slane %v2475, 5
        %v2478 = vor.u32 %v2474, %v2477
        %v2479 = vrot.slane %v2478, 4
        %v2481 = vshll.u32 %v2298, 16
        %v2483 = vrot.slane %v2481, 5
        %v2484 = vsel %vm433, %v2479, %v2483
        %v2485 = vshrl.u32 %v2298, 16
        %v2487 = vrot.slane %v2485, 4
        %v2488 = vor.u32 %v2487, %v2483
        %v2489 = vrot.slane %v2488, 4
        %v2491 = vshll.u32 %v2299, 16
        %v2493 = vrot.slane %v2491, 5
        %v2494 = vsel %vm433, %v2489, %v2493
        %v2496 = vshrl.u32 %v2300, 16
        %v2498 = vrot.slane %v2496, 4
        %v2499 = vshll.u32 %v2300, 16
        %v2501 = vrot.slane %v2499, 5
        %v2502 = vor.u32 %v2498, %v2501
        %v2503 = vrot.slane %v2502, 4
        %v2505 = vshll.u32 %v2301, 16
        %v2507 = vrot.slane %v2505, 5
        %v2508 = vsel %vm433, %v2503, %v2507
        %v2509 = vshrl.u32 %v2301, 16
        %v2511 = vrot.slane %v2509, 4
        %v2512 = vor.u32 %v2511, %v2507
        %v2513 = vrot.slane %v2512, 4
        %v2515 = vshll.u32 %v2302, 16
        %v2517 = vrot.slane %v2515, 5
        %v2518 = vsel %vm433, %v2513, %v2517
        %v2520 = vshrl.u32 %v2303, 16
        %v2522 = vrot.slane %v2520, 4
        %v2523 = vshll.u32 %v2303, 16
        %v2525 = vrot.slane %v2523, 5
        %v2526 = vor.u32 %v2522, %v2525
        %v2527 = vrot.slane %v2526, 4
        %v2529 = vshll.u32 %v2304, 16
        %v2531 = vrot.slane %v2529, 5
        %v2532 = vsel %vm433, %v2527, %v2531
        %v2533 = vshrl.u32 %v2304, 16
        %v2535 = vrot.slane %v2533, 4
        %v2536 = vor.u32 %v2535, %v2531
        %v2537 = vrot.slane %v2536, 4
        %v2539 = vshll.u32 %v2305, 16
        %v2541 = vrot.slane %v2539, 5
        %v2542 = vsel %vm433, %v2537, %v2541
        %v2544 = vshrl.u32 %v2306, 16
        %v2546 = vrot.slane %v2544, 4
        %v2547 = vshll.u32 %v2306, 16
        %v2549 = vrot.slane %v2547, 5
        %v2550 = vor.u32 %v2546, %v2549
        %v2551 = vrot.slane %v2550, 4
        %v2553 = vshll.u32 %v2307, 16
        %v2555 = vrot.slane %v2553, 5
        %v2556 = vsel %vm433, %v2551, %v2555
        %v2557 = vshrl.u32 %v2307, 16
        %v2559 = vrot.slane %v2557, 4
        %v2560 = vor.u32 %v2559, %v2555
        %v2561 = vrot.slane %v2560, 4
        %v2563 = vshll.u32 %v2308, 16
        %v2565 = vrot.slane %v2563, 5
        %v2566 = vsel %vm433, %v2561, %v2565
        %v2568 = vshrl.u32 %v2309, 16
        %v2570 = vrot.slane %v2568, 4
        %v2571 = vshll.u32 %v2309, 16
        %v2573 = vrot.slane %v2571, 5
        %v2574 = vor.u32 %v2570, %v2573
        %v2575 = vrot.slane %v2574, 4
        %v2577 = vshll.u32 %v2310, 16
        %v2579 = vrot.slane %v2577, 5
        %v2580 = vsel %vm433, %v2575, %v2579
        %v2581 = vshrl.u32 %v2310, 16
        %v2583 = vrot.slane %v2581, 4
        %v2584 = vor.u32 %v2583, %v2579
        %v2585 = vrot.slane %v2584, 4
        %v2587 = vshll.u32 %v2311, 16
        %v2589 = vrot.slane %v2587, 5
        %v2590 = vsel %vm433, %v2585, %v2589
        %v2592 = vshrl.u32 %v2312, 16
        %v2594 = vrot.slane %v2592, 4
        %v2595 = vshll.u32 %v2312, 16
        %v2597 = vrot.slane %v2595, 5
        %v2598 = vor.u32 %v2594, %v2597
        %v2599 = vrot.slane %v2598, 4
        %v2601 = vshll.u32 %v2313, 16
        %v2603 = vrot.slane %v2601, 5
        %v2604 = vsel %vm433, %v2599, %v2603
        %v2605 = vshrl.u32 %v2313, 16
        %v2607 = vrot.slane %v2605, 4
        %v2608 = vor.u32 %v2607, %v2603
        %v2609 = vrot.slane %v2608, 4
        %v2611 = vshll.u32 %v2314, 16
        %v2613 = vrot.slane %v2611, 5
        %v2614 = vsel %vm433, %v2609, %v2613
        %v2616 = vshrl.u32 %v2315, 16
        %v2618 = vrot.slane %v2616, 4
        %v2619 = vshll.u32 %v2315, 16
        %v2621 = vrot.slane %v2619, 5
        %v2622 = vor.u32 %v2618, %v2621
        %v2623 = vrot.slane %v2622, 4
        %v2625 = vshll.u32 %v2316, 16
        %v2627 = vrot.slane %v2625, 5
        %v2628 = vsel %vm433, %v2623, %v2627
        %v2629 = vshrl.u32 %v2316, 16
        %v2631 = vrot.slane %v2629, 4
        %v2632 = vor.u32 %v2631, %v2627
        %v2633 = vrot.slane %v2632, 4
        %v2635 = vshll.u32 %v2317, 16
        %v2637 = vrot.slane %v2635, 5
        %v2638 = vsel %vm433, %v2633, %v2637
        %v2640 = vshrl.u32 %v2318, 16
        %v2642 = vrot.slane %v2640, 4
        %v2643 = vshll.u32 %v2318, 16
        %v2645 = vrot.slane %v2643, 5
        %v2646 = vor.u32 %v2642, %v2645
        %v2647 = vrot.slane %v2646, 4
        %v2649 = vshll.u32 %v2319, 16
        %v2651 = vrot.slane %v2649, 5
        %v2652 = vsel %vm433, %v2647, %v2651
        %v2653 = vshrl.u32 %v2319, 16
        %v2655 = vrot.slane %v2653, 4
        %v2656 = vor.u32 %v2655, %v2651
        %v2657 = vrot.slane %v2656, 4
        %v2659 = vshll.u32 %v2320, 16
        %v2661 = vrot.slane %v2659, 5
        %v2662 = vsel %vm433, %v2657, %v2661
        %v2664 = vshrl.u32 %v2321, 16
        %v2666 = vrot.slane %v2664, 4
        %v2667 = vshll.u32 %v2321, 16
        %v2669 = vrot.slane %v2667, 5
        %v2670 = vor.u32 %v2666, %v2669
        %v2671 = vrot.slane %v2670, 4
        %v2673 = vshll.u32 %v2322, 16
        %v2675 = vrot.slane %v2673, 5
        %v2676 = vsel %vm433, %v2671, %v2675
        %v2677 = vshrl.u32 %v2322, 16
        %v2679 = vrot.slane %v2677, 4
        %v2680 = vor.u32 %v2679, %v2675
        %v2681 = vrot.slane %v2680, 4
        %v2683 = vshll.u32 %v2323, 16
        %v2685 = vrot.slane %v2683, 5
        %v2686 = vsel %vm433, %v2681, %v2685
        %v2688 = vshrl.u32 %v2324, 16
        %v2690 = vrot.slane %v2688, 4
        %v2691 = vshll.u32 %v2324, 16
        %v2693 = vrot.slane %v2691, 5
        %v2694 = vor.u32 %v2690, %v2693
        %v2695 = vrot.slane %v2694, 4
        %v2697 = vshll.u32 %v2325, 16
        %v2699 = vrot.slane %v2697, 5
        %v2700 = vsel %vm433, %v2695, %v2699
        %v2701 = vshrl.u32 %v2325, 16
        %v2703 = vrot.slane %v2701, 4
        %v2704 = vor.u32 %v2703, %v2699
        %v2705 = vrot.slane %v2704, 4
        %v2707 = vshll.u32 %v2326, 16
        %v2709 = vrot.slane %v2707, 5
        %v2710 = vsel %vm433, %v2705, %v2709
        %v2711 = vunpack.c.l.b16 %v2340
        %v2712 = vunpack.c.l.b16 %v2350
        %v2713 = vunpack.c.l.b16 %v2364
        %v2714 = vunpack.c.l.b16 %v2374
        %v2715 = vunpack.c.l.b16 %v2388
        %v2716 = vunpack.c.l.b16 %v2398
        %v2717 = vunpack.c.l.b16 %v2412
        %v2718 = vunpack.c.l.b16 %v2422
        %v2719 = vunpack.c.l.b16 %v2436
        %v2720 = vunpack.c.l.b16 %v2446
        %v2721 = vunpack.c.l.b16 %v2460
        %v2722 = vunpack.c.l.b16 %v2470
        %v2723 = vunpack.c.l.b16 %v2484
        %v2724 = vunpack.c.l.b16 %v2494
        %v2725 = vunpack.c.l.b16 %v2508
        %v2726 = vunpack.c.l.b16 %v2518
        %v2727 = vunpack.c.l.b16 %v2532
        %v2728 = vunpack.c.l.b16 %v2542
        %v2729 = vunpack.c.l.b16 %v2556
        %v2730 = vunpack.c.l.b16 %v2566
        %v2731 = vunpack.c.l.b16 %v2580
        %v2732 = vunpack.c.l.b16 %v2590
        %v2733 = vunpack.c.l.b16 %v2604
        %v2734 = vunpack.c.l.b16 %v2614
        %v2735 = vunpack.c.l.b16 %v2628
        %v2736 = vunpack.c.l.b16 %v2638
        %v2737 = vunpack.c.l.b16 %v2652
        %v2738 = vunpack.c.l.b16 %v2662
        %v2739 = vunpack.c.l.b16 %v2676
        %v2740 = vunpack.c.l.b16 %v2686
        %v2741 = vunpack.c.l.b16 %v2700
        %v2742 = vunpack.c.l.b16 %v2710
        %v2743 = vpack.c.b16 %v2712, %v2711
        %v2744 = vpack.c.b16 %v2714, %v2713
        %v2745 = vpack.c.b16 %v2716, %v2715
        %v2746 = vpack.c.b16 %v2718, %v2717
        %v2747 = vpack.c.b16 %v2720, %v2719
        %v2748 = vpack.c.b16 %v2722, %v2721
        %v2749 = vpack.c.b16 %v2724, %v2723
        %v2750 = vpack.c.b16 %v2726, %v2725
        %v2751 = vpack.c.b16 %v2728, %v2727
        %v2752 = vpack.c.b16 %v2730, %v2729
        %v2753 = vpack.c.b16 %v2732, %v2731
        %v2754 = vpack.c.b16 %v2734, %v2733
        %v2755 = vpack.c.b16 %v2736, %v2735
        %v2756 = vpack.c.b16 %v2738, %v2737
        %v2757 = vpack.c.b16 %v2740, %v2739
        %v2758 = vpack.c.b16 %v2742, %v2741
        %2775 = vst [vmem:[#allocation2 + $0x38] sm:$0xff] %v2743
        %2776 = vst [vmem:[#allocation2 + $0x80] sm:$0xff] %v2744
        %2777 = vst [vmem:[#allocation2 + $0xc8] sm:$0xff] %v2745
        %2778 = vst [vmem:[#allocation2 + $0x110] sm:$0xff] %v2746
        %2779 = vst [vmem:[#allocation2 + $0x158] sm:$0xff] %v2747
        %2780 = vst [vmem:[#allocation2 + $0x1a0] sm:$0xff] %v2748
        %2781 = vst [vmem:[#allocation2 + $0x1e8] sm:$0xff] %v2749
        %2782 = vst [vmem:[#allocation2 + $0x230] sm:$0xff] %v2750
        %2783 = vst [vmem:[#allocation2 + $0x278] sm:$0xff] %v2751
        %2784 = vst [vmem:[#allocation2 + $0x2c0] sm:$0xff] %v2752
        %2785 = vst [vmem:[#allocation2 + $0x308] sm:$0xff] %v2753
        %2786 = vst [vmem:[#allocation2 + $0x350] sm:$0xff] %v2754
        %2787 = vst [vmem:[#allocation2 + $0x398] sm:$0xff] %v2755
        %2788 = vst [vmem:[#allocation2 + $0x3e0] sm:$0xff] %v2756
        %2789 = vst [vmem:[#allocation2 + $0x428] sm:$0xff] %v2757
        %2790 = vst [vmem:[#allocation2 + $0x470] sm:$0xff] %v2758
        %v2791 = vld [vmem:[%s2134] sm:$0xe]
        %v2792 = vld [vmem:[%s2134 + $0x4] sm:$0xf]
        %v2793 = vld [vmem:[%s2134 + $0x8] sm:$0x1]
        %v2794 = vld [vmem:[%s2134 + $0xc] sm:$0xe]
        %v2795 = vld [vmem:[%s2134 + $0x10] sm:$0xf]
        %v2796 = vld [vmem:[%s2134 + $0x14] sm:$0x1]
        %v2797 = vld [vmem:[%s2134 + $0x18] sm:$0xe]
        %v2798 = vld [vmem:[%s2134 + $0x1c] sm:$0xf]
        %v2799 = vld [vmem:[%s2134 + $0x20] sm:$0x1]
        %v2800 = vld [vmem:[%s2134 + $0x24] sm:$0xe]
        %v2801 = vld [vmem:[%s2134 + $0x28] sm:$0xf]
        %v2802 = vld [vmem:[%s2134 + $0x2c] sm:$0x1]
        %v2803 = vld [vmem:[%s2134 + $0x30] sm:$0xe]
        %v2804 = vld [vmem:[%s2134 + $0x34] sm:$0xf]
        %v2805 = vld [vmem:[%s2134 + $0x38] sm:$0x1]
        %v2806 = vld [vmem:[%s2134 + $0x3c] sm:$0xe]
        %v2807 = vld [vmem:[%s2134 + $0x40] sm:$0xf]
        %v2808 = vld [vmem:[%s2134 + $0x44] sm:$0x1]
        %v2809 = vld [vmem:[%s2134 + $0x48] sm:$0xe]
        %v2810 = vld [vmem:[%s2134 + $0x4c] sm:$0xf]
        %v2811 = vld [vmem:[%s2134 + $0x50] sm:$0x1]
        %v2812 = vld [vmem:[%s2134 + $0x54] sm:$0xe]
        %v2813 = vld [vmem:[%s2134 + $0x58] sm:$0xf]
        %v2814 = vld [vmem:[%s2134 + $0x5c] sm:$0x1]
        %v2815 = vld [vmem:[%s2134 + $0x60] sm:$0xe]
        %v2816 = vld [vmem:[%s2134 + $0x64] sm:$0xf]
        %v2817 = vld [vmem:[%s2134 + $0x68] sm:$0x1]
        %v2818 = vld [vmem:[%s2134 + $0x6c] sm:$0xe]
        %v2819 = vld [vmem:[%s2134 + $0x70] sm:$0xf]
        %v2820 = vld [vmem:[%s2134 + $0x74] sm:$0x1]
        %v2821 = vld [vmem:[%s2134 + $0x78] sm:$0xe]
        %v2822 = vld [vmem:[%s2134 + $0x7c] sm:$0xf]
        %v2823 = vld [vmem:[%s2134 + $0x80] sm:$0x1]
        %v2824 = vld [vmem:[%s2134 + $0x84] sm:$0xe]
        %v2825 = vld [vmem:[%s2134 + $0x88] sm:$0xf]
        %v2826 = vld [vmem:[%s2134 + $0x8c] sm:$0x1]
        %v2827 = vld [vmem:[%s2134 + $0x90] sm:$0xe]
        %v2828 = vld [vmem:[%s2134 + $0x94] sm:$0xf]
        %v2829 = vld [vmem:[%s2134 + $0x98] sm:$0x1]
        %v2830 = vld [vmem:[%s2134 + $0x9c] sm:$0xe]
        %v2831 = vld [vmem:[%s2134 + $0xa0] sm:$0xf]
        %v2832 = vld [vmem:[%s2134 + $0xa4] sm:$0x1]
        %v2833 = vld [vmem:[%s2134 + $0xa8] sm:$0xe]
        %v2834 = vld [vmem:[%s2134 + $0xac] sm:$0xf]
        %v2835 = vld [vmem:[%s2134 + $0xb0] sm:$0x1]
        %v2836 = vld [vmem:[%s2134 + $0xb4] sm:$0xe]
        %v2837 = vld [vmem:[%s2134 + $0xb8] sm:$0xf]
        %v2838 = vld [vmem:[%s2134 + $0xbc] sm:$0x1]
        %v2887 = vrot.slane %v2791, 5
        %v2888 = vrot.slane %v2887, 4
        %v2889 = vrot.slane %v2792, 5
        %v2890 = vsel %vm996, %v2888, %v2889
        %v2891 = vrot.slane %v2889, 4
        %v2892 = vrot.slane %v2793, 5
        %v2893 = vsel %vm996, %v2891, %v2892
        %v2894 = vrot.slane %v2794, 5
        %v2895 = vrot.slane %v2894, 4
        %v2896 = vrot.slane %v2795, 5
        %v2897 = vsel %vm996, %v2895, %v2896
        %v2898 = vrot.slane %v2896, 4
        %v2899 = vrot.slane %v2796, 5
        %v2900 = vsel %vm996, %v2898, %v2899
        %v2901 = vrot.slane %v2797, 5
        %v2902 = vrot.slane %v2901, 4
        %v2903 = vrot.slane %v2798, 5
        %v2904 = vsel %vm996, %v2902, %v2903
        %v2905 = vrot.slane %v2903, 4
        %v2906 = vrot.slane %v2799, 5
        %v2907 = vsel %vm996, %v2905, %v2906
        %v2908 = vrot.slane %v2800, 5
        %v2909 = vrot.slane %v2908, 4
        %v2910 = vrot.slane %v2801, 5
        %v2911 = vsel %vm996, %v2909, %v2910
        %v2912 = vrot.slane %v2910, 4
        %v2913 = vrot.slane %v2802, 5
        %v2914 = vsel %vm996, %v2912, %v2913
        %v2915 = vrot.slane %v2803, 5
        %v2916 = vrot.slane %v2915, 4
        %v2917 = vrot.slane %v2804, 5
        %v2918 = vsel %vm996, %v2916, %v2917
        %v2919 = vrot.slane %v2917, 4
        %v2920 = vrot.slane %v2805, 5
        %v2921 = vsel %vm996, %v2919, %v2920
        %v2922 = vrot.slane %v2806, 5
        %v2923 = vrot.slane %v2922, 4
        %v2924 = vrot.slane %v2807, 5
        %v2925 = vsel %vm996, %v2923, %v2924
        %v2926 = vrot.slane %v2924, 4
        %v2927 = vrot.slane %v2808, 5
        %v2928 = vsel %vm996, %v2926, %v2927
        %v2929 = vrot.slane %v2809, 5
        %v2930 = vrot.slane %v2929, 4
        %v2931 = vrot.slane %v2810, 5
        %v2932 = vsel %vm996, %v2930, %v2931
        %v2933 = vrot.slane %v2931, 4
        %v2934 = vrot.slane %v2811, 5
        %v2935 = vsel %vm996, %v2933, %v2934
        %v2936 = vrot.slane %v2812, 5
        %v2937 = vrot.slane %v2936, 4
        %v2938 = vrot.slane %v2813, 5
        %v2939 = vsel %vm996, %v2937, %v2938
        %v2940 = vrot.slane %v2938, 4
        %v2941 = vrot.slane %v2814, 5
        %v2942 = vsel %vm996, %v2940, %v2941
        %v2943 = vrot.slane %v2815, 5
        %v2944 = vrot.slane %v2943, 4
        %v2945 = vrot.slane %v2816, 5
        %v2946 = vsel %vm996, %v2944, %v2945
        %v2947 = vrot.slane %v2945, 4
        %v2948 = vrot.slane %v2817, 5
        %v2949 = vsel %vm996, %v2947, %v2948
        %v2950 = vrot.slane %v2818, 5
        %v2951 = vrot.slane %v2950, 4
        %v2952 = vrot.slane %v2819, 5
        %v2953 = vsel %vm996, %v2951, %v2952
        %v2954 = vrot.slane %v2952, 4
        %v2955 = vrot.slane %v2820, 5
        %v2956 = vsel %vm996, %v2954, %v2955
        %v2957 = vrot.slane %v2821, 5
        %v2958 = vrot.slane %v2957, 4
        %v2959 = vrot.slane %v2822, 5
        %v2960 = vsel %vm996, %v2958, %v2959
        %v2961 = vrot.slane %v2959, 4
        %v2962 = vrot.slane %v2823, 5
        %v2963 = vsel %vm996, %v2961, %v2962
        %v2964 = vrot.slane %v2824, 5
        %v2965 = vrot.slane %v2964, 4
        %v2966 = vrot.slane %v2825, 5
        %v2967 = vsel %vm996, %v2965, %v2966
        %v2968 = vrot.slane %v2966, 4
        %v2969 = vrot.slane %v2826, 5
        %v2970 = vsel %vm996, %v2968, %v2969
        %v2971 = vrot.slane %v2827, 5
        %v2972 = vrot.slane %v2971, 4
        %v2973 = vrot.slane %v2828, 5
        %v2974 = vsel %vm996, %v2972, %v2973
        %v2975 = vrot.slane %v2973, 4
        %v2976 = vrot.slane %v2829, 5
        %v2977 = vsel %vm996, %v2975, %v2976
        %v2978 = vrot.slane %v2830, 5
        %v2979 = vrot.slane %v2978, 4
        %v2980 = vrot.slane %v2831, 5
        %v2981 = vsel %vm996, %v2979, %v2980
        %v2982 = vrot.slane %v2980, 4
        %v2983 = vrot.slane %v2832, 5
        %v2984 = vsel %vm996, %v2982, %v2983
        %v2985 = vrot.slane %v2833, 5
        %v2986 = vrot.slane %v2985, 4
        %v2987 = vrot.slane %v2834, 5
        %v2988 = vsel %vm996, %v2986, %v2987
        %v2989 = vrot.slane %v2987, 4
        %v2990 = vrot.slane %v2835, 5
        %v2991 = vsel %vm996, %v2989, %v2990
        %v2992 = vrot.slane %v2836, 5
        %v2993 = vrot.slane %v2992, 4
        %v2994 = vrot.slane %v2837, 5
        %v2995 = vsel %vm996, %v2993, %v2994
        %v2996 = vrot.slane %v2994, 4
        %v2997 = vrot.slane %v2838, 5
        %v2998 = vsel %vm996, %v2996, %v2997
        %v2999 = vunpack.c.l.b16 %v2890
        %v3000 = vunpack.c.l.b16 %v2893
        %v3001 = vunpack.c.l.b16 %v2897
        %v3002 = vunpack.c.l.b16 %v2900
        %v3003 = vunpack.c.l.b16 %v2904
        %v3004 = vunpack.c.l.b16 %v2907
        %v3005 = vunpack.c.l.b16 %v2911
        %v3006 = vunpack.c.l.b16 %v2914
        %v3007 = vunpack.c.l.b16 %v2918
        %v3008 = vunpack.c.l.b16 %v2921
        %v3009 = vunpack.c.l.b16 %v2925
        %v3010 = vunpack.c.l.b16 %v2928
        %v3011 = vunpack.c.l.b16 %v2932
        %v3012 = vunpack.c.l.b16 %v2935
        %v3013 = vunpack.c.l.b16 %v2939
        %v3014 = vunpack.c.l.b16 %v2942
        %v3015 = vunpack.c.l.b16 %v2946
        %v3016 = vunpack.c.l.b16 %v2949
        %v3017 = vunpack.c.l.b16 %v2953
        %v3018 = vunpack.c.l.b16 %v2956
        %v3019 = vunpack.c.l.b16 %v2960
        %v3020 = vunpack.c.l.b16 %v2963
        %v3021 = vunpack.c.l.b16 %v2967
        %v3022 = vunpack.c.l.b16 %v2970
        %v3023 = vunpack.c.l.b16 %v2974
        %v3024 = vunpack.c.l.b16 %v2977
        %v3025 = vunpack.c.l.b16 %v2981
        %v3026 = vunpack.c.l.b16 %v2984
        %v3027 = vunpack.c.l.b16 %v2988
        %v3028 = vunpack.c.l.b16 %v2991
        %v3029 = vunpack.c.l.b16 %v2995
        %v3030 = vunpack.c.l.b16 %v2998
        %v3031 = vpack.c.b16 %v3000, %v2999
        %v3032 = vpack.c.b16 %v3002, %v3001
        %v3033 = vpack.c.b16 %v3004, %v3003
        %v3034 = vpack.c.b16 %v3006, %v3005
        %v3035 = vpack.c.b16 %v3008, %v3007
        %v3036 = vpack.c.b16 %v3010, %v3009
        %v3037 = vpack.c.b16 %v3012, %v3011
        %v3038 = vpack.c.b16 %v3014, %v3013
        %v3039 = vpack.c.b16 %v3016, %v3015
        %v3040 = vpack.c.b16 %v3018, %v3017
        %v3041 = vpack.c.b16 %v3020, %v3019
        %v3042 = vpack.c.b16 %v3022, %v3021
        %v3043 = vpack.c.b16 %v3024, %v3023
        %v3044 = vpack.c.b16 %v3026, %v3025
        %v3045 = vpack.c.b16 %v3028, %v3027
        %v3046 = vpack.c.b16 %v3030, %v3029
        %3063 = vst [vmem:[#allocation2 + $0x40] sm:$0xff] %v3031
        %3064 = vst [vmem:[#allocation2 + $0x88] sm:$0xff] %v3032
        %3065 = vst [vmem:[#allocation2 + $0xd0] sm:$0xff] %v3033
        %3066 = vst [vmem:[#allocation2 + $0x118] sm:$0xff] %v3034
        %3067 = vst [vmem:[#allocation2 + $0x160] sm:$0xff] %v3035
        %3068 = vst [vmem:[#allocation2 + $0x1a8] sm:$0xff] %v3036
        %3069 = vst [vmem:[#allocation2 + $0x1f0] sm:$0xff] %v3037
        %3070 = vst [vmem:[#allocation2 + $0x238] sm:$0xff] %v3038
        %3071 = vst [vmem:[#allocation2 + $0x280] sm:$0xff] %v3039
        %3072 = vst [vmem:[#allocation2 + $0x2c8] sm:$0xff] %v3040
        %3073 = vst [vmem:[#allocation2 + $0x310] sm:$0xff] %v3041
        %3074 = vst [vmem:[#allocation2 + $0x358] sm:$0xff] %v3042
        %3075 = vst [vmem:[#allocation2 + $0x3a0] sm:$0xff] %v3043
        %3076 = vst [vmem:[#allocation2 + $0x3e8] sm:$0xff] %v3044
        %3077 = vst [vmem:[#allocation2 + $0x430] sm:$0xff] %v3045
        %3078 = vst [vmem:[#allocation2 + $0x478] sm:$0xff] %v3046
        %v3079 = vld [vmem:[#allocation2 + $0x20] sm:$0xff]
        %v3080 = vld [vmem:[#allocation2 + $0x68] sm:$0xff]
        %v3081 = vld [vmem:[#allocation2 + $0xb0] sm:$0xff]
        %v3082 = vld [vmem:[#allocation2 + $0xf8] sm:$0xff]
        %v3083 = vld [vmem:[#allocation2 + $0x140] sm:$0xff]
        %v3084 = vld [vmem:[#allocation2 + $0x188] sm:$0xff]
        %v3085 = vld [vmem:[#allocation2 + $0x1d0] sm:$0xff]
        %v3086 = vld [vmem:[#allocation2 + $0x218] sm:$0xff]
        %v3087 = vld [vmem:[#allocation2 + $0x260] sm:$0xff]
        %v3088 = vld [vmem:[#allocation2 + $0x2a8] sm:$0xff]
        %v3089 = vld [vmem:[#allocation2 + $0x2f0] sm:$0xff]
        %v3090 = vld [vmem:[#allocation2 + $0x338] sm:$0xff]
        %v3091 = vld [vmem:[#allocation2 + $0x380] sm:$0xff]
        %v3092 = vld [vmem:[#allocation2 + $0x3c8] sm:$0xff]
        %v3093 = vld [vmem:[#allocation2 + $0x410] sm:$0xff]
        %v3094 = vld [vmem:[#allocation2 + $0x458] sm:$0xff]
        %v3095 = vld [vmem:[#allocation2] sm:$0xff]
        %v3096 = vld [vmem:[#allocation2 + $0x8] sm:$0xff]
        %v3097 = vld [vmem:[#allocation2 + $0x10] sm:$0xff]
        %v3098 = vld [vmem:[#allocation2 + $0x18] sm:$0xff]
        %v3099 = vld [vmem:[#allocation2 + $0x20] sm:$0xff]
        %v3100 = vld [vmem:[#allocation2 + $0x28] sm:$0xff]
        %v3101 = vld [vmem:[#allocation2 + $0x30] sm:$0xff]
        %v3102 = vld [vmem:[#allocation2 + $0x38] sm:$0xff]
        %v3103 = vld [vmem:[#allocation2 + $0x40] sm:$0xff]
        %v3104 = vld [vmem:[#allocation2 + $0x48] sm:$0xff]
        %v3105 = vld [vmem:[#allocation2 + $0x50] sm:$0xff]
        %v3106 = vld [vmem:[#allocation2 + $0x58] sm:$0xff]
        %v3107 = vld [vmem:[#allocation2 + $0x60] sm:$0xff]
        %v3108 = vld [vmem:[#allocation2 + $0x68] sm:$0xff]
        %v3109 = vld [vmem:[#allocation2 + $0x70] sm:$0xff]
        %v3110 = vld [vmem:[#allocation2 + $0x78] sm:$0xff]
        %v3111 = vld [vmem:[#allocation2 + $0x80] sm:$0xff]
        %v3112 = vld [vmem:[#allocation2 + $0x88] sm:$0xff]
        %v3113 = vld [vmem:[#allocation2 + $0x90] sm:$0xff]
        %v3114 = vld [vmem:[#allocation2 + $0x98] sm:$0xff]
        %v3115 = vld [vmem:[#allocation2 + $0xa0] sm:$0xff]
        %v3116 = vld [vmem:[#allocation2 + $0xa8] sm:$0xff]
        %v3117 = vld [vmem:[#allocation2 + $0xb0] sm:$0xff]
        %v3118 = vld [vmem:[#allocation2 + $0xb8] sm:$0xff]
        %v3119 = vld [vmem:[#allocation2 + $0xc0] sm:$0xff]
        %v3120 = vld [vmem:[#allocation2 + $0xc8] sm:$0xff]
        %v3121 = vld [vmem:[#allocation2 + $0xd0] sm:$0xff]
        %v3122 = vld [vmem:[#allocation2 + $0xd8] sm:$0xff]
        %v3123 = vld [vmem:[#allocation2 + $0xe0] sm:$0xff]
        %v3124 = vld [vmem:[#allocation2 + $0xe8] sm:$0xff]
        %v3125 = vld [vmem:[#allocation2 + $0xf0] sm:$0xff]
        %v3126 = vld [vmem:[#allocation2 + $0xf8] sm:$0xff]
        %v3127 = vld [vmem:[#allocation2 + $0x100] sm:$0xff]
        %v3128 = vld [vmem:[#allocation2 + $0x108] sm:$0xff]
        %v3129 = vld [vmem:[#allocation2 + $0x110] sm:$0xff]
        %v3130 = vld [vmem:[#allocation2 + $0x118] sm:$0xff]
        %v3131 = vld [vmem:[#allocation2 + $0x120] sm:$0xff]
        %v3132 = vld [vmem:[#allocation2 + $0x128] sm:$0xff]
        %v3133 = vld [vmem:[#allocation2 + $0x130] sm:$0xff]
        %v3134 = vld [vmem:[#allocation2 + $0x138] sm:$0xff]
        %v3135 = vld [vmem:[#allocation2 + $0x140] sm:$0xff]
        %v3136 = vld [vmem:[#allocation2 + $0x148] sm:$0xff]
        %v3137 = vld [vmem:[#allocation2 + $0x150] sm:$0xff]
        %v3138 = vld [vmem:[#allocation2 + $0x158] sm:$0xff]
        %v3139 = vld [vmem:[#allocation2 + $0x160] sm:$0xff]
        %v3140 = vld [vmem:[#allocation2 + $0x168] sm:$0xff]
        %v3141 = vld [vmem:[#allocation2 + $0x170] sm:$0xff]
        %v3142 = vld [vmem:[#allocation2 + $0x178] sm:$0xff]
        %v3143 = vld [vmem:[#allocation2 + $0x180] sm:$0xff]
        %v3144 = vld [vmem:[#allocation2 + $0x188] sm:$0xff]
        %v3145 = vld [vmem:[#allocation2 + $0x190] sm:$0xff]
        %v3146 = vld [vmem:[#allocation2 + $0x198] sm:$0xff]
        %v3147 = vld [vmem:[#allocation2 + $0x1a0] sm:$0xff]
        %v3148 = vld [vmem:[#allocation2 + $0x1a8] sm:$0xff]
        %v3149 = vld [vmem:[#allocation2 + $0x1b0] sm:$0xff]
        %v3150 = vld [vmem:[#allocation2 + $0x1b8] sm:$0xff]
        %v3151 = vld [vmem:[#allocation2 + $0x1c0] sm:$0xff]
        %v3152 = vld [vmem:[#allocation2 + $0x1c8] sm:$0xff]
        %v3153 = vld [vmem:[#allocation2 + $0x1d0] sm:$0xff]
        %v3154 = vld [vmem:[#allocation2 + $0x1d8] sm:$0xff]
        %v3155 = vld [vmem:[#allocation2 + $0x1e0] sm:$0xff]
        %v3156 = vld [vmem:[#allocation2 + $0x1e8] sm:$0xff]
        %v3157 = vld [vmem:[#allocation2 + $0x1f0] sm:$0xff]
        %v3158 = vld [vmem:[#allocation2 + $0x1f8] sm:$0xff]
        %v3159 = vld [vmem:[#allocation2 + $0x200] sm:$0xff]
        %v3160 = vld [vmem:[#allocation2 + $0x208] sm:$0xff]
        %v3161 = vld [vmem:[#allocation2 + $0x210] sm:$0xff]
        %v3162 = vld [vmem:[#allocation2 + $0x218] sm:$0xff]
        %v3163 = vld [vmem:[#allocation2 + $0x220] sm:$0xff]
        %v3164 = vld [vmem:[#allocation2 + $0x228] sm:$0xff]
        %v3165 = vld [vmem:[#allocation2 + $0x230] sm:$0xff]
        %v3166 = vld [vmem:[#allocation2 + $0x238] sm:$0xff]
        %v3167 = vld [vmem:[#allocation2 + $0x240] sm:$0xff]
        %v3168 = vld [vmem:[#allocation2 + $0x248] sm:$0xff]
        %v3169 = vld [vmem:[#allocation2 + $0x250] sm:$0xff]
        %v3170 = vld [vmem:[#allocation2 + $0x258] sm:$0xff]
        %v3171 = vld [vmem:[#allocation2 + $0x260] sm:$0xff]
        %v3172 = vld [vmem:[#allocation2 + $0x268] sm:$0xff]
        %v3173 = vld [vmem:[#allocation2 + $0x270] sm:$0xff]
        %v3174 = vld [vmem:[#allocation2 + $0x278] sm:$0xff]
        %v3175 = vld [vmem:[#allocation2 + $0x280] sm:$0xff]
        %v3176 = vld [vmem:[#allocation2 + $0x288] sm:$0xff]
        %v3177 = vld [vmem:[#allocation2 + $0x290] sm:$0xff]
        %v3178 = vld [vmem:[#allocation2 + $0x298] sm:$0xff]
        %v3179 = vld [vmem:[#allocation2 + $0x2a0] sm:$0xff]
        %v3180 = vld [vmem:[#allocation2 + $0x2a8] sm:$0xff]
        %v3181 = vld [vmem:[#allocation2 + $0x2b0] sm:$0xff]
        %v3182 = vld [vmem:[#allocation2 + $0x2b8] sm:$0xff]
        %v3183 = vld [vmem:[#allocation2 + $0x2c0] sm:$0xff]
        %v3184 = vld [vmem:[#allocation2 + $0x2c8] sm:$0xff]
        %v3185 = vld [vmem:[#allocation2 + $0x2d0] sm:$0xff]
        %v3186 = vld [vmem:[#allocation2 + $0x2d8] sm:$0xff]
        %v3187 = vld [vmem:[#allocation2 + $0x2e0] sm:$0xff]
        %v3188 = vld [vmem:[#allocation2 + $0x2e8] sm:$0xff]
        %v3189 = vld [vmem:[#allocation2 + $0x2f0] sm:$0xff]
        %v3190 = vld [vmem:[#allocation2 + $0x2f8] sm:$0xff]
        %v3191 = vld [vmem:[#allocation2 + $0x300] sm:$0xff]
        %v3192 = vld [vmem:[#allocation2 + $0x308] sm:$0xff]
        %v3193 = vld [vmem:[#allocation2 + $0x310] sm:$0xff]
        %v3194 = vld [vmem:[#allocation2 + $0x318] sm:$0xff]
        %v3195 = vld [vmem:[#allocation2 + $0x320] sm:$0xff]
        %v3196 = vld [vmem:[#allocation2 + $0x328] sm:$0xff]
        %v3197 = vld [vmem:[#allocation2 + $0x330] sm:$0xff]
        %v3198 = vld [vmem:[#allocation2 + $0x338] sm:$0xff]
        %v3199 = vld [vmem:[#allocation2 + $0x340] sm:$0xff]
        %v3200 = vld [vmem:[#allocation2 + $0x348] sm:$0xff]
        %v3201 = vld [vmem:[#allocation2 + $0x350] sm:$0xff]
        %v3202 = vld [vmem:[#allocation2 + $0x358] sm:$0xff]
        %v3203 = vld [vmem:[#allocation2 + $0x360] sm:$0xff]
        %v3204 = vld [vmem:[#allocation2 + $0x368] sm:$0xff]
        %v3205 = vld [vmem:[#allocation2 + $0x370] sm:$0xff]
        %v3206 = vld [vmem:[#allocation2 + $0x378] sm:$0xff]
        %v3207 = vld [vmem:[#allocation2 + $0x380] sm:$0xff]
        %v3208 = vld [vmem:[#allocation2 + $0x388] sm:$0xff]
        %v3209 = vld [vmem:[#allocation2 + $0x390] sm:$0xff]
        %v3210 = vld [vmem:[#allocation2 + $0x398] sm:$0xff]
        %v3211 = vld [vmem:[#allocation2 + $0x3a0] sm:$0xff]
        %v3212 = vld [vmem:[#allocation2 + $0x3a8] sm:$0xff]
        %v3213 = vld [vmem:[#allocation2 + $0x3b0] sm:$0xff]
        %v3214 = vld [vmem:[#allocation2 + $0x3b8] sm:$0xff]
        %v3215 = vld [vmem:[#allocation2 + $0x3c0] sm:$0xff]
        %v3216 = vld [vmem:[#allocation2 + $0x3c8] sm:$0xff]
        %v3217 = vld [vmem:[#allocation2 + $0x3d0] sm:$0xff]
        %v3218 = vld [vmem:[#allocation2 + $0x3d8] sm:$0xff]
        %v3219 = vld [vmem:[#allocation2 + $0x3e0] sm:$0xff]
        %v3220 = vld [vmem:[#allocation2 + $0x3e8] sm:$0xff]
        %v3221 = vld [vmem:[#allocation2 + $0x3f0] sm:$0xff]
        %v3222 = vld [vmem:[#allocation2 + $0x3f8] sm:$0xff]
        %v3223 = vld [vmem:[#allocation2 + $0x400] sm:$0xff]
        %v3224 = vld [vmem:[#allocation2 + $0x408] sm:$0xff]
        %v3225 = vld [vmem:[#allocation2 + $0x410] sm:$0xff]
        %v3226 = vld [vmem:[#allocation2 + $0x418] sm:$0xff]
        %v3227 = vld [vmem:[#allocation2 + $0x420] sm:$0xff]
        %v3228 = vld [vmem:[#allocation2 + $0x428] sm:$0xff]
        %v3229 = vld [vmem:[#allocation2 + $0x430] sm:$0xff]
        %v3230 = vld [vmem:[#allocation2 + $0x438] sm:$0xff]
        %v3231 = vld [vmem:[#allocation2 + $0x440] sm:$0xff]
        %v3232 = vld [vmem:[#allocation2 + $0x448] sm:$0xff]
        %v3233 = vld [vmem:[#allocation2 + $0x450] sm:$0xff]
        %v3234 = vld [vmem:[#allocation2 + $0x458] sm:$0xff]
        %v3235 = vld [vmem:[#allocation2 + $0x460] sm:$0xff]
        %v3236 = vld [vmem:[#allocation2 + $0x468] sm:$0xff]
        %v3237 = vld [vmem:[#allocation2 + $0x470] sm:$0xff]
        %v3238 = vld [vmem:[#allocation2 + $0x478] sm:$0xff]
        %v3239 = vld [vmem:[%s1] sm:$0xf]
        %v3240 = vld [vmem:[%s1 + $0x4] sm:$0xf]
        %v3241 = vld [vmem:[%s1 + $0x8] sm:$0xf]
        %v3242 = vld [vmem:[%s1 + $0xc] sm:$0xf]
        %v3243 = vld [vmem:[%s1 + $0x10] sm:$0xf]
        %v3244 = vld [vmem:[%s1 + $0x14] sm:$0xf]
        %v3245 = vld [vmem:[%s1 + $0x18] sm:$0xf]
        %v3246 = vld [vmem:[%s1 + $0x1c] sm:$0xf]
        %v3247 = vld [vmem:[%s1 + $0x20] sm:$0xf]
        %v3248 = vld [vmem:[%s1 + $0x24] sm:$0xf]
        %v3249 = vld [vmem:[%s1 + $0x28] sm:$0xf]
        %v3250 = vld [vmem:[%s1 + $0x2c] sm:$0xf]
        %v3251 = vld [vmem:[%s1 + $0x30] sm:$0xf]
        %v3252 = vld [vmem:[%s1 + $0x34] sm:$0xf]
        %v3253 = vld [vmem:[%s1 + $0x38] sm:$0xf]
        %v3254 = vld [vmem:[%s1 + $0x3c] sm:$0xf]
        %v3255 = vld [vmem:[%s1 + $0x40] sm:$0xf]
        %v3256 = vld [vmem:[%s1 + $0x44] sm:$0xf]
        %v3257 = vld [vmem:[%s1 + $0x48] sm:$0xf]
        %v3258 = vld [vmem:[%s1 + $0x4c] sm:$0xf]
        %v3259 = vld [vmem:[%s1 + $0x50] sm:$0xf]
        %v3260 = vld [vmem:[%s1 + $0x54] sm:$0xf]
        %v3261 = vld [vmem:[%s1 + $0x58] sm:$0xf]
        %v3262 = vld [vmem:[%s1 + $0x5c] sm:$0xf]
        %v3263 = vld [vmem:[%s1 + $0x60] sm:$0xf]
        %v3264 = vld [vmem:[%s1 + $0x64] sm:$0xf]
        %v3265 = vld [vmem:[%s1 + $0x68] sm:$0xf]
        %v3266 = vld [vmem:[%s1 + $0x6c] sm:$0xf]
        %v3267 = vld [vmem:[%s1 + $0x70] sm:$0xf]
        %v3268 = vld [vmem:[%s1 + $0x74] sm:$0xf]
        %v3269 = vld [vmem:[%s1 + $0x78] sm:$0xf]
        %v3270 = vld [vmem:[%s1 + $0x7c] sm:$0xf]
        %v3271 = vld [vmem:[%s1 + $0x80] sm:$0xf]
        %v3272 = vld [vmem:[%s1 + $0x84] sm:$0xf]
        %v3273 = vld [vmem:[%s1 + $0x88] sm:$0xf]
        %v3274 = vld [vmem:[%s1 + $0x8c] sm:$0xf]
        %v3275 = vld [vmem:[%s1 + $0x90] sm:$0xf]
        %v3276 = vld [vmem:[%s1 + $0x94] sm:$0xf]
        %v3277 = vld [vmem:[%s1 + $0x98] sm:$0xf]
        %v3278 = vld [vmem:[%s1 + $0x9c] sm:$0xf]
        %v3279 = vld [vmem:[%s1 + $0xa0] sm:$0xf]
        %v3280 = vld [vmem:[%s1 + $0xa4] sm:$0xf]
        %v3281 = vld [vmem:[%s1 + $0xa8] sm:$0xf]
        %v3282 = vld [vmem:[%s1 + $0xac] sm:$0xf]
        %v3283 = vld [vmem:[%s1 + $0xb0] sm:$0xf]
        %v3284 = vld [vmem:[%s1 + $0xb4] sm:$0xf]
        %v3285 = vld [vmem:[%s1 + $0xb8] sm:$0xf]
        %v3286 = vld [vmem:[%s1 + $0xbc] sm:$0xf]
        %v3287 = vld [vmem:[%s1 + $0xc0] sm:$0xf]
        %v3288 = vld [vmem:[%s1 + $0xc4] sm:$0xf]
        %v3289 = vld [vmem:[%s1 + $0xc8] sm:$0xf]
        %v3290 = vld [vmem:[%s1 + $0xcc] sm:$0xf]
        %v3291 = vld [vmem:[%s1 + $0xd0] sm:$0xf]
        %v3292 = vld [vmem:[%s1 + $0xd4] sm:$0xf]
        %v3293 = vld [vmem:[%s1 + $0xd8] sm:$0xf]
        %v3294 = vld [vmem:[%s1 + $0xdc] sm:$0xf]
        %v3295 = vld [vmem:[%s1 + $0xe0] sm:$0xf]
        %v3296 = vld [vmem:[%s1 + $0xe4] sm:$0xf]
        %v3297 = vld [vmem:[%s1 + $0xe8] sm:$0xf]
        %v3298 = vld [vmem:[%s1 + $0xec] sm:$0xf]
        %v3299 = vld [vmem:[%s1 + $0xf0] sm:$0xf]
        %v3300 = vld [vmem:[%s1 + $0xf4] sm:$0xf]
        %v3301 = vld [vmem:[%s1 + $0xf8] sm:$0xf]
        %v3302 = vld [vmem:[%s1 + $0xfc] sm:$0xf]
        %v3303 = vld [vmem:[%s1 + $0x100] sm:$0xf]
        %v3304 = vld [vmem:[%s1 + $0x104] sm:$0xf]
        %v3305 = vld [vmem:[%s1 + $0x108] sm:$0xf]
        %v3306 = vld [vmem:[%s1 + $0x10c] sm:$0xf]
        %v3307 = vld [vmem:[%s1 + $0x110] sm:$0xf]
        %v3308 = vld [vmem:[%s1 + $0x114] sm:$0xf]
        %v3309 = vld [vmem:[%s1 + $0x118] sm:$0xf]
        %v3310 = vld [vmem:[%s1 + $0x11c] sm:$0xf]
        %v3311 = vld [vmem:[%s1 + $0x120] sm:$0xf]
        %v3312 = vld [vmem:[%s1 + $0x124] sm:$0xf]
        %v3313 = vld [vmem:[%s1 + $0x128] sm:$0xf]
        %v3314 = vld [vmem:[%s1 + $0x12c] sm:$0xf]
        %v3315 = vld [vmem:[%s1 + $0x130] sm:$0xf]
        %v3316 = vld [vmem:[%s1 + $0x134] sm:$0xf]
        %v3317 = vld [vmem:[%s1 + $0x138] sm:$0xf]
        %v3318 = vld [vmem:[%s1 + $0x13c] sm:$0xf]
        %v3319 = vld [vmem:[%s1 + $0x140] sm:$0xf]
        %v3320 = vld [vmem:[%s1 + $0x144] sm:$0xf]
        %v3321 = vld [vmem:[%s1 + $0x148] sm:$0xf]
        %v3322 = vld [vmem:[%s1 + $0x14c] sm:$0xf]
        %v3323 = vld [vmem:[%s1 + $0x150] sm:$0xf]
        %v3324 = vld [vmem:[%s1 + $0x154] sm:$0xf]
        %v3325 = vld [vmem:[%s1 + $0x158] sm:$0xf]
        %v3326 = vld [vmem:[%s1 + $0x15c] sm:$0xf]
        %v3327 = vld [vmem:[%s1 + $0x160] sm:$0xf]
        %v3328 = vld [vmem:[%s1 + $0x164] sm:$0xf]
        %v3329 = vld [vmem:[%s1 + $0x168] sm:$0xf]
        %v3330 = vld [vmem:[%s1 + $0x16c] sm:$0xf]
        %v3331 = vld [vmem:[%s1 + $0x170] sm:$0xf]
        %v3332 = vld [vmem:[%s1 + $0x174] sm:$0xf]
        %v3333 = vld [vmem:[%s1 + $0x178] sm:$0xf]
        %v3334 = vld [vmem:[%s1 + $0x17c] sm:$0xf]
        %v3335 = vld [vmem:[%s1 + $0x180] sm:$0xf]
        %v3336 = vld [vmem:[%s1 + $0x184] sm:$0xf]
        %v3337 = vld [vmem:[%s1 + $0x188] sm:$0xf]
        %v3338 = vld [vmem:[%s1 + $0x18c] sm:$0xf]
        %v3339 = vld [vmem:[%s1 + $0x190] sm:$0xf]
        %v3340 = vld [vmem:[%s1 + $0x194] sm:$0xf]
        %v3341 = vld [vmem:[%s1 + $0x198] sm:$0xf]
        %v3342 = vld [vmem:[%s1 + $0x19c] sm:$0xf]
        %v3343 = vld [vmem:[%s1 + $0x1a0] sm:$0xf]
        %v3344 = vld [vmem:[%s1 + $0x1a4] sm:$0xf]
        %v3345 = vld [vmem:[%s1 + $0x1a8] sm:$0xf]
        %v3346 = vld [vmem:[%s1 + $0x1ac] sm:$0xf]
        %v3347 = vld [vmem:[%s1 + $0x1b0] sm:$0xf]
        %v3348 = vld [vmem:[%s1 + $0x1b4] sm:$0xf]
        %v3349 = vld [vmem:[%s1 + $0x1b8] sm:$0xf]
        %v3350 = vld [vmem:[%s1 + $0x1bc] sm:$0xf]
        %v3351 = vld [vmem:[%s1 + $0x1c0] sm:$0xf]
        %v3352 = vld [vmem:[%s1 + $0x1c4] sm:$0xf]
        %v3353 = vld [vmem:[%s1 + $0x1c8] sm:$0xf]
        %v3354 = vld [vmem:[%s1 + $0x1cc] sm:$0xf]
        %v3355 = vld [vmem:[%s1 + $0x1d0] sm:$0xf]
        %v3356 = vld [vmem:[%s1 + $0x1d4] sm:$0xf]
        %v3357 = vld [vmem:[%s1 + $0x1d8] sm:$0xf]
        %v3358 = vld [vmem:[%s1 + $0x1dc] sm:$0xf]
        %v3359 = vld [vmem:[%s1 + $0x1e0] sm:$0xf]
        %v3360 = vld [vmem:[%s1 + $0x1e4] sm:$0xf]
        %v3361 = vld [vmem:[%s1 + $0x1e8] sm:$0xf]
        %v3362 = vld [vmem:[%s1 + $0x1ec] sm:$0xf]
        %v3363 = vld [vmem:[%s1 + $0x1f0] sm:$0xf]
        %v3364 = vld [vmem:[%s1 + $0x1f4] sm:$0xf]
        %v3365 = vld [vmem:[%s1 + $0x1f8] sm:$0xf]
        %v3366 = vld [vmem:[%s1 + $0x1fc] sm:$0xf]
        %v3367 = vld [vmem:[%s1 + $0x200] sm:$0xf]
        %v3368 = vld [vmem:[%s1 + $0x204] sm:$0xf]
        %v3369 = vld [vmem:[%s1 + $0x208] sm:$0xf]
        %v3370 = vld [vmem:[%s1 + $0x20c] sm:$0xf]
        %v3371 = vld [vmem:[%s1 + $0x210] sm:$0xf]
        %v3372 = vld [vmem:[%s1 + $0x214] sm:$0xf]
        %v3373 = vld [vmem:[%s1 + $0x218] sm:$0xf]
        %v3374 = vld [vmem:[%s1 + $0x21c] sm:$0xf]
        %v3375 = vld [vmem:[%s1 + $0x220] sm:$0xf]
        %v3376 = vld [vmem:[%s1 + $0x224] sm:$0xf]
        %v3377 = vld [vmem:[%s1 + $0x228] sm:$0xf]
        %v3378 = vld [vmem:[%s1 + $0x22c] sm:$0xf]
        %v3379 = vld [vmem:[%s1 + $0x230] sm:$0xf]
        %v3380 = vld [vmem:[%s1 + $0x234] sm:$0xf]
        %v3381 = vld [vmem:[%s1 + $0x238] sm:$0xf]
        %v3382 = vld [vmem:[%s1 + $0x23c] sm:$0xf]
        %v3383 = vld [vmem:[%s2] sm:$0x1]
        %v3385 = vlaneseq
        %v3386 = vshrl.u32 %v3385, 7
        %v3387 = vsub.s32 0, %v3386
        %v3388 = vrot.slane %v3383, %v3387
        %v3534 = vunpack.c.l.b16 %v3239
        %v3535 = vunpack.c.l.b16 %v3240
        %v3536 = vunpack.c.l.b16 %v3241
        %v3537 = vunpack.c.l.b16 %v3242
        %v3538 = vunpack.c.l.b16 %v3243
        %v3539 = vunpack.c.l.b16 %v3244
        %v3540 = vunpack.c.l.b16 %v3245
        %v3541 = vunpack.c.l.b16 %v3246
        %v3542 = vunpack.c.l.b16 %v3247
        %v3543 = vunpack.c.l.b16 %v3248
        %v3544 = vunpack.c.l.b16 %v3249
        %v3545 = vunpack.c.l.b16 %v3250
        %v3546 = vunpack.c.l.b16 %v3251
        %v3547 = vunpack.c.l.b16 %v3252
        %v3548 = vunpack.c.l.b16 %v3253
        %v3549 = vunpack.c.l.b16 %v3254
        %v3550 = vunpack.c.l.b16 %v3255
        %v3551 = vunpack.c.l.b16 %v3256
        %v3552 = vunpack.c.l.b16 %v3257
        %v3553 = vunpack.c.l.b16 %v3258
        %v3554 = vunpack.c.l.b16 %v3259
        %v3555 = vunpack.c.l.b16 %v3260
        %v3556 = vunpack.c.l.b16 %v3261
        %v3557 = vunpack.c.l.b16 %v3262
        %v3558 = vunpack.c.l.b16 %v3263
        %v3559 = vunpack.c.l.b16 %v3264
        %v3560 = vunpack.c.l.b16 %v3265
        %v3561 = vunpack.c.l.b16 %v3266
        %v3562 = vunpack.c.l.b16 %v3267
        %v3563 = vunpack.c.l.b16 %v3268
        %v3564 = vunpack.c.l.b16 %v3269
        %v3565 = vunpack.c.l.b16 %v3270
        %v3566 = vunpack.c.l.b16 %v3271
        %v3567 = vunpack.c.l.b16 %v3272
        %v3568 = vunpack.c.l.b16 %v3273
        %v3569 = vunpack.c.l.b16 %v3274
        %v3570 = vunpack.c.l.b16 %v3275
        %v3571 = vunpack.c.l.b16 %v3276
        %v3572 = vunpack.c.l.b16 %v3277
        %v3573 = vunpack.c.l.b16 %v3278
        %v3574 = vunpack.c.l.b16 %v3279
        %v3575 = vunpack.c.l.b16 %v3280
        %v3576 = vunpack.c.l.b16 %v3281
        %v3577 = vunpack.c.l.b16 %v3282
        %v3578 = vunpack.c.l.b16 %v3283
        %v3579 = vunpack.c.l.b16 %v3284
        %v3580 = vunpack.c.l.b16 %v3285
        %v3581 = vunpack.c.l.b16 %v3286
        %v3582 = vunpack.c.l.b16 %v3287
        %v3583 = vunpack.c.l.b16 %v3288
        %v3584 = vunpack.c.l.b16 %v3289
        %v3585 = vunpack.c.l.b16 %v3290
        %v3586 = vunpack.c.l.b16 %v3291
        %v3587 = vunpack.c.l.b16 %v3292
        %v3588 = vunpack.c.l.b16 %v3293
        %v3589 = vunpack.c.l.b16 %v3294
        %v3590 = vunpack.c.l.b16 %v3295
        %v3591 = vunpack.c.l.b16 %v3296
        %v3592 = vunpack.c.l.b16 %v3297
        %v3593 = vunpack.c.l.b16 %v3298
        %v3594 = vunpack.c.l.b16 %v3299
        %v3595 = vunpack.c.l.b16 %v3300
        %v3596 = vunpack.c.l.b16 %v3301
        %v3597 = vunpack.c.l.b16 %v3302
        %v3598 = vunpack.c.l.b16 %v3303
        %v3599 = vunpack.c.l.b16 %v3304
        %v3600 = vunpack.c.l.b16 %v3305
        %v3601 = vunpack.c.l.b16 %v3306
        %v3602 = vunpack.c.l.b16 %v3307
        %v3603 = vunpack.c.l.b16 %v3308
        %v3604 = vunpack.c.l.b16 %v3309
        %v3605 = vunpack.c.l.b16 %v3310
        %v3606 = vunpack.c.l.b16 %v3311
        %v3607 = vunpack.c.l.b16 %v3312
        %v3608 = vunpack.c.l.b16 %v3313
        %v3609 = vunpack.c.l.b16 %v3314
        %v3610 = vunpack.c.l.b16 %v3315
        %v3611 = vunpack.c.l.b16 %v3316
        %v3612 = vunpack.c.l.b16 %v3317
        %v3613 = vunpack.c.l.b16 %v3318
        %v3614 = vunpack.c.l.b16 %v3319
        %v3615 = vunpack.c.l.b16 %v3320
        %v3616 = vunpack.c.l.b16 %v3321
        %v3617 = vunpack.c.l.b16 %v3322
        %v3618 = vunpack.c.l.b16 %v3323
        %v3619 = vunpack.c.l.b16 %v3324
        %v3620 = vunpack.c.l.b16 %v3325
        %v3621 = vunpack.c.l.b16 %v3326
        %v3622 = vunpack.c.l.b16 %v3327
        %v3623 = vunpack.c.l.b16 %v3328
        %v3624 = vunpack.c.l.b16 %v3329
        %v3625 = vunpack.c.l.b16 %v3330
        %v3626 = vunpack.c.l.b16 %v3331
        %v3627 = vunpack.c.l.b16 %v3332
        %v3628 = vunpack.c.l.b16 %v3333
        %v3629 = vunpack.c.l.b16 %v3334
        %v3630 = vunpack.c.l.b16 %v3335
        %v3631 = vunpack.c.l.b16 %v3336
        %v3632 = vunpack.c.l.b16 %v3337
        %v3633 = vunpack.c.l.b16 %v3338
        %v3634 = vunpack.c.l.b16 %v3339
        %v3635 = vunpack.c.l.b16 %v3340
        %v3636 = vunpack.c.l.b16 %v3341
        %v3637 = vunpack.c.l.b16 %v3342
        %v3638 = vunpack.c.l.b16 %v3343
        %v3639 = vunpack.c.l.b16 %v3344
        %v3640 = vunpack.c.l.b16 %v3345
        %v3641 = vunpack.c.l.b16 %v3346
        %v3642 = vunpack.c.l.b16 %v3347
        %v3643 = vunpack.c.l.b16 %v3348
        %v3644 = vunpack.c.l.b16 %v3349
        %v3645 = vunpack.c.l.b16 %v3350
        %v3646 = vunpack.c.l.b16 %v3351
        %v3647 = vunpack.c.l.b16 %v3352
        %v3648 = vunpack.c.l.b16 %v3353
        %v3649 = vunpack.c.l.b16 %v3354
        %v3650 = vunpack.c.l.b16 %v3355
        %v3651 = vunpack.c.l.b16 %v3356
        %v3652 = vunpack.c.l.b16 %v3357
        %v3653 = vunpack.c.l.b16 %v3358
        %v3654 = vunpack.c.l.b16 %v3359
        %v3655 = vunpack.c.l.b16 %v3360
        %v3656 = vunpack.c.l.b16 %v3361
        %v3657 = vunpack.c.l.b16 %v3362
        %v3658 = vunpack.c.l.b16 %v3363
        %v3659 = vunpack.c.l.b16 %v3364
        %v3660 = vunpack.c.l.b16 %v3365
        %v3661 = vunpack.c.l.b16 %v3366
        %v3662 = vunpack.c.l.b16 %v3367
        %v3663 = vunpack.c.l.b16 %v3368
        %v3664 = vunpack.c.l.b16 %v3369
        %v3665 = vunpack.c.l.b16 %v3370
        %v3666 = vunpack.c.l.b16 %v3371
        %v3667 = vunpack.c.l.b16 %v3372
        %v3668 = vunpack.c.l.b16 %v3373
        %v3669 = vunpack.c.l.b16 %v3374
        %v3670 = vunpack.c.l.b16 %v3375
        %v3671 = vunpack.c.l.b16 %v3376
        %v3672 = vunpack.c.l.b16 %v3377
        %v3673 = vunpack.c.l.b16 %v3378
        %v3674 = vunpack.c.l.b16 %v3379
        %v3675 = vunpack.c.l.b16 %v3380
        %v3676 = vunpack.c.l.b16 %v3381
        %v3677 = vunpack.c.l.b16 %v3382
        %v3678 = vpack.c.b16 %v3535, %v3534
        %v3679 = vpack.c.b16 %v3537, %v3536
        %v3680 = vpack.c.b16 %v3539, %v3538
        %v3681 = vpack.c.b16 %v3541, %v3540
        %v3682 = vpack.c.b16 %v3543, %v3542
        %v3683 = vpack.c.b16 %v3545, %v3544
        %v3684 = vpack.c.b16 %v3547, %v3546
        %v3685 = vpack.c.b16 %v3549, %v3548
        %v3686 = vpack.c.b16 %v3551, %v3550
        %v3687 = vpack.c.b16 %v3553, %v3552
        %v3688 = vpack.c.b16 %v3555, %v3554
        %v3689 = vpack.c.b16 %v3557, %v3556
        %v3690 = vpack.c.b16 %v3559, %v3558
        %v3691 = vpack.c.b16 %v3561, %v3560
        %v3692 = vpack.c.b16 %v3563, %v3562
        %v3693 = vpack.c.b16 %v3565, %v3564
        %v3694 = vpack.c.b16 %v3567, %v3566
        %v3695 = vpack.c.b16 %v3569, %v3568
        %v3696 = vpack.c.b16 %v3571, %v3570
        %v3697 = vpack.c.b16 %v3573, %v3572
        %v3698 = vpack.c.b16 %v3575, %v3574
        %v3699 = vpack.c.b16 %v3577, %v3576
        %v3700 = vpack.c.b16 %v3579, %v3578
        %v3701 = vpack.c.b16 %v3581, %v3580
        %v3702 = vpack.c.b16 %v3583, %v3582
        %v3703 = vpack.c.b16 %v3585, %v3584
        %v3704 = vpack.c.b16 %v3587, %v3586
        %v3705 = vpack.c.b16 %v3589, %v3588
        %v3706 = vpack.c.b16 %v3591, %v3590
        %v3707 = vpack.c.b16 %v3593, %v3592
        %v3708 = vpack.c.b16 %v3595, %v3594
        %v3709 = vpack.c.b16 %v3597, %v3596
        %v3710 = vpack.c.b16 %v3599, %v3598
        %v3711 = vpack.c.b16 %v3601, %v3600
        %v3712 = vpack.c.b16 %v3603, %v3602
        %v3713 = vpack.c.b16 %v3605, %v3604
        %v3714 = vpack.c.b16 %v3607, %v3606
        %v3715 = vpack.c.b16 %v3609, %v3608
        %v3716 = vpack.c.b16 %v3611, %v3610
        %v3717 = vpack.c.b16 %v3613, %v3612
        %v3718 = vpack.c.b16 %v3615, %v3614
        %v3719 = vpack.c.b16 %v3617, %v3616
        %v3720 = vpack.c.b16 %v3619, %v3618
        %v3721 = vpack.c.b16 %v3621, %v3620
        %v3722 = vpack.c.b16 %v3623, %v3622
        %v3723 = vpack.c.b16 %v3625, %v3624
        %v3724 = vpack.c.b16 %v3627, %v3626
        %v3725 = vpack.c.b16 %v3629, %v3628
        %v3726 = vpack.c.b16 %v3631, %v3630
        %v3727 = vpack.c.b16 %v3633, %v3632
        %v3728 = vpack.c.b16 %v3635, %v3634
        %v3729 = vpack.c.b16 %v3637, %v3636
        %v3730 = vpack.c.b16 %v3639, %v3638
        %v3731 = vpack.c.b16 %v3641, %v3640
        %v3732 = vpack.c.b16 %v3643, %v3642
        %v3733 = vpack.c.b16 %v3645, %v3644
        %v3734 = vpack.c.b16 %v3647, %v3646
        %v3735 = vpack.c.b16 %v3649, %v3648
        %v3736 = vpack.c.b16 %v3651, %v3650
        %v3737 = vpack.c.b16 %v3653, %v3652
        %v3738 = vpack.c.b16 %v3655, %v3654
        %v3739 = vpack.c.b16 %v3657, %v3656
        %v3740 = vpack.c.b16 %v3659, %v3658
        %v3741 = vpack.c.b16 %v3661, %v3660
        %v3742 = vpack.c.b16 %v3663, %v3662
        %v3743 = vpack.c.b16 %v3665, %v3664
        %v3744 = vpack.c.b16 %v3667, %v3666
        %v3745 = vpack.c.b16 %v3669, %v3668
        %v3746 = vpack.c.b16 %v3671, %v3670
        %v3747 = vpack.c.b16 %v3673, %v3672
        %v3748 = vpack.c.b16 %v3675, %v3674
        %v3749 = vpack.c.b16 %v3677, %v3676
        %3822 = vmatprep.subr.bf16.mxu0 0
        %3823 = vmatpush1.bf16.msra.mxu0 %v3678
        %3824 = vmatprep.subr.bf16.mxu0 0
        %3825 = vmatpush1.bf16.msra.mxu0 %v3679
        %3826 = vmatprep.subr.bf16.mxu0 0
        %3827 = vmatpush1.bf16.msra.mxu0 %v3680
        %3828 = vmatprep.subr.bf16.mxu0 0
        %3829 = vmatpush1.bf16.msra.mxu0 %v3681
        %3830 = vmatprep.subr.bf16.mxu0 0
        %3831 = vmatpush1.bf16.msra.mxu0 %v3682
        %3832 = vmatprep.subr.bf16.mxu0 0
        %3833 = vmatpush1.bf16.msra.mxu0 %v3683
        %3834 = vmatprep.subr.bf16.mxu0 0
        %3835 = vmatpush1.bf16.msra.mxu0 %v3684
        %3836 = vmatprep.subr.bf16.mxu0 0
        %3837 = vmatpush1.bf16.msra.mxu0 %v3685
        %3838 = vmatprep.subr.bf16.mxu0 0
        %3839 = vmatpush1.bf16.msra.mxu0 %v3686
        %3840 = vmatprep.subr.bf16.mxu0 0
        %3841 = vmatpush1.bf16.msra.mxu0 %v3687
        %3842 = vmatprep.subr.bf16.mxu0 0
        %3843 = vmatpush1.bf16.msra.mxu0 %v3688
        %3844 = vmatprep.subr.bf16.mxu0 0
        %3845 = vmatpush1.bf16.msra.mxu0 %v3689
        %3846 = vmatprep.subr.bf16.mxu0 0
        %3847 = vmatpush1.bf16.msra.mxu0 %v3690
        %3848 = vmatprep.subr.bf16.mxu0 0
        %3849 = vmatpush1.bf16.msra.mxu0 %v3691
        %3850 = vmatprep.subr.bf16.mxu0 0
        %3851 = vmatpush1.bf16.msra.mxu0 %v3692
        %3852 = vmatprep.subr.bf16.mxu0 0
        %3853 = vmatpush1.bf16.msra.mxu0 %v3693
        %3854 = vmatprep.mubr.bf16.mxu0 %v3096
        %3855 = vmatmul.mubr.bf16.gmra.mrb[0].mxu0 %v3095
        %v3856 = vpop.f32.mrb[0].mxu0
        %v3857 = vadd.f32 %v3388, %v3856
        %v3858 = vpop.f32.mrb[0].mxu0
        %v3859 = vpop.f32.mrb[0].mxu0
        %v3860 = vadd.f32 %v3388, %v3859
        %v3861 = vpop.f32.mrb[0].mxu0
        %3862 = vmatprep.mubr.bf16.mxu0 %v3105
        %3863 = vmatmul.mubr.bf16.gmra.mrb[0].mxu0 %v3104
        %v3864 = vpop.f32.mrb[0].mxu0
        %v3865 = vadd.f32 %v3388, %v3864
        %v3866 = vpop.f32.mrb[0].mxu0
        %v3867 = vpop.f32.mrb[0].mxu0
        %v3868 = vadd.f32 %v3388, %v3867
        %v3869 = vpop.f32.mrb[0].mxu0
        %3870 = vmatprep.mubr.bf16.mxu0 %v3114
        %3871 = vmatmul.mubr.bf16.gmra.mrb[0].mxu0 %v3113
        %v3872 = vpop.f32.mrb[0].mxu0
        %v3873 = vadd.f32 %v3388, %v3872
        %v3874 = vpop.f32.mrb[0].mxu0
        %v3875 = vpop.f32.mrb[0].mxu0
        %v3876 = vadd.f32 %v3388, %v3875
        %v3877 = vpop.f32.mrb[0].mxu0
        %3878 = vmatprep.mubr.bf16.mxu0 %v3123
        %3879 = vmatmul.mubr.bf16.gmra.mrb[0].mxu0 %v3122
        %v3880 = vpop.f32.mrb[0].mxu0
        %v3881 = vadd.f32 %v3388, %v3880
        %v3882 = vpop.f32.mrb[0].mxu0
        %v3883 = vpop.f32.mrb[0].mxu0
        %v3884 = vadd.f32 %v3388, %v3883
        %v3885 = vpop.f32.mrb[0].mxu0
        %3886 = vmatprep.mubr.bf16.mxu0 %v3132
        %3887 = vmatmul.mubr.bf16.gmra.mrb[0].mxu0 %v3131
        %v3888 = vpop.f32.mrb[0].mxu0
        %v3889 = vadd.f32 %v3388, %v3888
        %v3890 = vpop.f32.mrb[0].mxu0
        %v3891 = vpop.f32.mrb[0].mxu0
        %v3892 = vadd.f32 %v3388, %v3891
        %v3893 = vpop.f32.mrb[0].mxu0
        %3894 = vmatprep.mubr.bf16.mxu0 %v3141
        %3895 = vmatmul.mubr.bf16.gmra.mrb[0].mxu0 %v3140
        %v3896 = vpop.f32.mrb[0].mxu0
        %v3897 = vadd.f32 %v3388, %v3896
        %v3898 = vpop.f32.mrb[0].mxu0
        %v3899 = vpop.f32.mrb[0].mxu0
        %v3900 = vadd.f32 %v3388, %v3899
        %v3901 = vpop.f32.mrb[0].mxu0
        %3902 = vmatprep.mubr.bf16.mxu0 %v3150
        %3903 = vmatmul.mubr.bf16.gmra.mrb[0].mxu0 %v3149
        %v3904 = vpop.f32.mrb[0].mxu0
        %v3905 = vadd.f32 %v3388, %v3904
        %v3906 = vpop.f32.mrb[0].mxu0
        %v3907 = vpop.f32.mrb[0].mxu0
        %v3908 = vadd.f32 %v3388, %v3907
        %v3909 = vpop.f32.mrb[0].mxu0
        %3910 = vmatprep.mubr.bf16.mxu0 %v3159
        %3911 = vmatmul.mubr.bf16.gmra.mrb[0].mxu0 %v3158
        %v3912 = vpop.f32.mrb[0].mxu0
        %v3913 = vadd.f32 %v3388, %v3912
        %v3914 = vpop.f32.mrb[0].mxu0
        %v3915 = vpop.f32.mrb[0].mxu0
        %v3916 = vadd.f32 %v3388, %v3915
        %v3917 = vpop.f32.mrb[0].mxu0
        %3918 = vmatprep.mubr.bf16.mxu0 %v3168
        %3919 = vmatmul.mubr.bf16.gmra.mrb[0].mxu0 %v3167
        %v3920 = vpop.f32.mrb[0].mxu0
        %v3921 = vadd.f32 %v3388, %v3920
        %v3922 = vpop.f32.mrb[0].mxu0
        %v3923 = vpop.f32.mrb[0].mxu0
        %v3924 = vadd.f32 %v3388, %v3923
        %v3925 = vpop.f32.mrb[0].mxu0
        %3926 = vmatprep.mubr.bf16.mxu0 %v3177
        %3927 = vmatmul.mubr.bf16.gmra.mrb[0].mxu0 %v3176
        %v3928 = vpop.f32.mrb[0].mxu0
        %v3929 = vadd.f32 %v3388, %v3928
        %v3930 = vpop.f32.mrb[0].mxu0
        %v3931 = vpop.f32.mrb[0].mxu0
        %v3932 = vadd.f32 %v3388, %v3931
        %v3933 = vpop.f32.mrb[0].mxu0
        %3934 = vmatprep.mubr.bf16.mxu0 %v3186
        %3935 = vmatmul.mubr.bf16.gmra.mrb[0].mxu0 %v3185
        %v3936 = vpop.f32.mrb[0].mxu0
        %v3937 = vadd.f32 %v3388, %v3936
        %v3938 = vpop.f32.mrb[0].mxu0
        %v3939 = vpop.f32.mrb[0].mxu0
        %v3940 = vadd.f32 %v3388, %v3939
        %v3941 = vpop.f32.mrb[0].mxu0
        %3942 = vmatprep.mubr.bf16.mxu0 %v3195
        %3943 = vmatmul.mubr.bf16.gmra.mrb[0].mxu0 %v3194
        %v3944 = vpop.f32.mrb[0].mxu0
        %v3945 = vadd.f32 %v3388, %v3944
        %v3946 = vpop.f32.mrb[0].mxu0
        %v3947 = vpop.f32.mrb[0].mxu0
        %v3948 = vadd.f32 %v3388, %v3947
        %v3949 = vpop.f32.mrb[0].mxu0
        %3950 = vmatprep.mubr.bf16.mxu0 %v3204
        %3951 = vmatmul.mubr.bf16.gmra.mrb[0].mxu0 %v3203
        %v3952 = vpop.f32.mrb[0].mxu0
        %v3953 = vadd.f32 %v3388, %v3952
        %v3954 = vpop.f32.mrb[0].mxu0
        %v3955 = vpop.f32.mrb[0].mxu0
        %v3956 = vadd.f32 %v3388, %v3955
        %v3957 = vpop.f32.mrb[0].mxu0
        %3958 = vmatprep.mubr.bf16.mxu0 %v3213
        %3959 = vmatmul.mubr.bf16.gmra.mrb[0].mxu0 %v3212
        %v3960 = vpop.f32.mrb[0].mxu0
        %v3961 = vadd.f32 %v3388, %v3960
        %v3962 = vpop.f32.mrb[0].mxu0
        %v3963 = vpop.f32.mrb[0].mxu0
        %v3964 = vadd.f32 %v3388, %v3963
        %v3965 = vpop.f32.mrb[0].mxu0
        %3966 = vmatprep.mubr.bf16.mxu0 %v3222
        %3967 = vmatmul.mubr.bf16.gmra.mrb[0].mxu0 %v3221
        %v3968 = vpop.f32.mrb[0].mxu0
        %v3969 = vadd.f32 %v3388, %v3968
        %v3970 = vpop.f32.mrb[0].mxu0
        %v3971 = vpop.f32.mrb[0].mxu0
        %v3972 = vadd.f32 %v3388, %v3971
        %v3973 = vpop.f32.mrb[0].mxu0
        %3974 = vmatprep.mubr.bf16.mxu0 %v3231
        %3975 = vmatmul.mubr.bf16.gmra.mrb[0].mxu0 %v3230
        %v3976 = vpop.f32.mrb[0].mxu0
        %v3977 = vadd.f32 %v3388, %v3976
        %v3978 = vpop.f32.mrb[0].mxu0
        %v3979 = vpop.f32.mrb[0].mxu0
        %v3980 = vadd.f32 %v3388, %v3979
        %v3981 = vpop.f32.mrb[0].mxu0
        %3982 = vdwg.mxu0
        %3983 = vmatprep.subr.bf16.mxu0 0
        %3984 = vmatpush1.bf16.msra.mxu0 %v3694
        %3985 = vmatprep.subr.bf16.mxu0 0
        %3986 = vmatpush1.bf16.msra.mxu0 %v3695
        %3987 = vmatprep.subr.bf16.mxu0 0
        %3988 = vmatpush1.bf16.msra.mxu0 %v3696
        %3989 = vmatprep.subr.bf16.mxu0 0
        %3990 = vmatpush1.bf16.msra.mxu0 %v3697
        %3991 = vmatprep.subr.bf16.mxu0 0
        %3992 = vmatpush1.bf16.msra.mxu0 %v3698
        %3993 = vmatprep.subr.bf16.mxu0 0
        %3994 = vmatpush1.bf16.msra.mxu0 %v3699
        %3995 = vmatprep.subr.bf16.mxu0 0
        %3996 = vmatpush1.bf16.msra.mxu0 %v3700
        %3997 = vmatprep.subr.bf16.mxu0 0
        %3998 = vmatpush1.bf16.msra.mxu0 %v3701
        %3999 = vmatprep.subr.bf16.mxu0 0
        %4000 = vmatpush1.bf16.msra.mxu0 %v3702
        %4001 = vmatprep.subr.bf16.mxu0 0
        %4002 = vmatpush1.bf16.msra.mxu0 %v3703
        %4003 = vmatprep.subr.bf16.mxu0 0
        %4004 = vmatpush1.bf16.msra.mxu0 %v3704
        %4005 = vmatprep.subr.bf16.mxu0 0
        %4006 = vmatpush1.bf16.msra.mxu0 %v3705
        %4007 = vmatprep.subr.bf16.mxu0 0
        %4008 = vmatpush1.bf16.msra.mxu0 %v3706
        %4009 = vmatprep.subr.bf16.mxu0 0
        %4010 = vmatpush1.bf16.msra.mxu0 %v3707
        %4011 = vmatprep.subr.bf16.mxu0 0
        %4012 = vmatpush1.bf16.msra.mxu0 %v3708
        %4013 = vmatprep.subr.bf16.mxu0 0
        %4014 = vmatpush1.bf16.msra.mxu0 %v3709
        %4015 = vmatprep.mubr.bf16.mxu0 %v3098
        %4016 = vmatmul.mubr.bf16.gmra.mrb[0].mxu0 %v3097
        %v4017 = vpop.f32.mrb[0].mxu0
        %v4018 = vadd.f32 %v3857, %v4017
        %v4019 = vpop.f32.mrb[0].mxu0
        %v4020 = vpop.f32.mrb[0].mxu0
        %v4021 = vadd.f32 %v3860, %v4020
        %v4022 = vpop.f32.mrb[0].mxu0
        %4023 = vmatprep.mubr.bf16.mxu0 %v3107
        %4024 = vmatmul.mubr.bf16.gmra.mrb[0].mxu0 %v3106
        %v4025 = vpop.f32.mrb[0].mxu0
        %v4026 = vadd.f32 %v3865, %v4025
        %v4027 = vpop.f32.mrb[0].mxu0
        %v4028 = vpop.f32.mrb[0].mxu0
        %v4029 = vadd.f32 %v3868, %v4028
        %v4030 = vpop.f32.mrb[0].mxu0
        %4031 = vmatprep.mubr.bf16.mxu0 %v3116
        %4032 = vmatmul.mubr.bf16.gmra.mrb[0].mxu0 %v3115
        %v4033 = vpop.f32.mrb[0].mxu0
        %v4034 = vadd.f32 %v3873, %v4033
        %v4035 = vpop.f32.mrb[0].mxu0
        %v4036 = vpop.f32.mrb[0].mxu0
        %v4037 = vadd.f32 %v3876, %v4036
        %v4038 = vpop.f32.mrb[0].mxu0
        %4039 = vmatprep.mubr.bf16.mxu0 %v3125
        %4040 = vmatmul.mubr.bf16.gmra.mrb[0].mxu0 %v3124
        %v4041 = vpop.f32.mrb[0].mxu0
        %v4042 = vadd.f32 %v3881, %v4041
        %v4043 = vpop.f32.mrb[0].mxu0
        %v4044 = vpop.f32.mrb[0].mxu0
        %v4045 = vadd.f32 %v3884, %v4044
        %v4046 = vpop.f32.mrb[0].mxu0
        %4047 = vmatprep.mubr.bf16.mxu0 %v3134
        %4048 = vmatmul.mubr.bf16.gmra.mrb[0].mxu0 %v3133
        %v4049 = vpop.f32.mrb[0].mxu0
        %v4050 = vadd.f32 %v3889, %v4049
        %v4051 = vpop.f32.mrb[0].mxu0
        %v4052 = vpop.f32.mrb[0].mxu0
        %v4053 = vadd.f32 %v3892, %v4052
        %v4054 = vpop.f32.mrb[0].mxu0
        %4055 = vmatprep.mubr.bf16.mxu0 %v3143
        %4056 = vmatmul.mubr.bf16.gmra.mrb[0].mxu0 %v3142
        %v4057 = vpop.f32.mrb[0].mxu0
        %v4058 = vadd.f32 %v3897, %v4057
        %v4059 = vpop.f32.mrb[0].mxu0
        %v4060 = vpop.f32.mrb[0].mxu0
        %v4061 = vadd.f32 %v3900, %v4060
        %v4062 = vpop.f32.mrb[0].mxu0
        %4063 = vmatprep.mubr.bf16.mxu0 %v3152
        %4064 = vmatmul.mubr.bf16.gmra.mrb[0].mxu0 %v3151
        %v4065 = vpop.f32.mrb[0].mxu0
        %v4066 = vadd.f32 %v3905, %v4065
        %v4067 = vpop.f32.mrb[0].mxu0
        %v4068 = vpop.f32.mrb[0].mxu0
        %v4069 = vadd.f32 %v3908, %v4068
        %v4070 = vpop.f32.mrb[0].mxu0
        %4071 = vmatprep.mubr.bf16.mxu0 %v3161
        %4072 = vmatmul.mubr.bf16.gmra.mrb[0].mxu0 %v3160
        %v4073 = vpop.f32.mrb[0].mxu0
        %v4074 = vadd.f32 %v3913, %v4073
        %v4075 = vpop.f32.mrb[0].mxu0
        %v4076 = vpop.f32.mrb[0].mxu0
        %v4077 = vadd.f32 %v3916, %v4076
        %v4078 = vpop.f32.mrb[0].mxu0
        %4079 = vmatprep.mubr.bf16.mxu0 %v3170
        %4080 = vmatmul.mubr.bf16.gmra.mrb[0].mxu0 %v3169
        %v4081 = vpop.f32.mrb[0].mxu0
        %v4082 = vadd.f32 %v3921, %v4081
        %v4083 = vpop.f32.mrb[0].mxu0
        %v4084 = vpop.f32.mrb[0].mxu0
        %v4085 = vadd.f32 %v3924, %v4084
        %v4086 = vpop.f32.mrb[0].mxu0
        %4087 = vmatprep.mubr.bf16.mxu0 %v3179
        %4088 = vmatmul.mubr.bf16.gmra.mrb[0].mxu0 %v3178
        %v4089 = vpop.f32.mrb[0].mxu0
        %v4090 = vadd.f32 %v3929, %v4089
        %v4091 = vpop.f32.mrb[0].mxu0
        %v4092 = vpop.f32.mrb[0].mxu0
        %v4093 = vadd.f32 %v3932, %v4092
        %v4094 = vpop.f32.mrb[0].mxu0
        %4095 = vmatprep.mubr.bf16.mxu0 %v3188
        %4096 = vmatmul.mubr.bf16.gmra.mrb[0].mxu0 %v3187
        %v4097 = vpop.f32.mrb[0].mxu0
        %v4098 = vadd.f32 %v3937, %v4097
        %v4099 = vpop.f32.mrb[0].mxu0
        %v4100 = vpop.f32.mrb[0].mxu0
        %v4101 = vadd.f32 %v3940, %v4100
        %v4102 = vpop.f32.mrb[0].mxu0
        %4103 = vmatprep.mubr.bf16.mxu0 %v3197
        %4104 = vmatmul.mubr.bf16.gmra.mrb[0].mxu0 %v3196
        %v4105 = vpop.f32.mrb[0].mxu0
        %v4106 = vadd.f32 %v3945, %v4105
        %v4107 = vpop.f32.mrb[0].mxu0
        %v4108 = vpop.f32.mrb[0].mxu0
        %v4109 = vadd.f32 %v3948, %v4108
        %v4110 = vpop.f32.mrb[0].mxu0
        %4111 = vmatprep.mubr.bf16.mxu0 %v3206
        %4112 = vmatmul.mubr.bf16.gmra.mrb[0].mxu0 %v3205
        %v4113 = vpop.f32.mrb[0].mxu0
        %v4114 = vadd.f32 %v3953, %v4113
        %v4115 = vpop.f32.mrb[0].mxu0
        %v4116 = vpop.f32.mrb[0].mxu0
        %v4117 = vadd.f32 %v3956, %v4116
        %v4118 = vpop.f32.mrb[0].mxu0
        %4119 = vmatprep.mubr.bf16.mxu0 %v3215
        %4120 = vmatmul.mubr.bf16.gmra.mrb[0].mxu0 %v3214
        %v4121 = vpop.f32.mrb[0].mxu0
        %v4122 = vadd.f32 %v3961, %v4121
        %v4123 = vpop.f32.mrb[0].mxu0
        %v4124 = vpop.f32.mrb[0].mxu0
        %v4125 = vadd.f32 %v3964, %v4124
        %v4126 = vpop.f32.mrb[0].mxu0
        %4127 = vmatprep.mubr.bf16.mxu0 %v3224
        %4128 = vmatmul.mubr.bf16.gmra.mrb[0].mxu0 %v3223
        %v4129 = vpop.f32.mrb[0].mxu0
        %v4130 = vadd.f32 %v3969, %v4129
        %v4131 = vpop.f32.mrb[0].mxu0
        %v4132 = vpop.f32.mrb[0].mxu0
        %v4133 = vadd.f32 %v3972, %v4132
        %v4134 = vpop.f32.mrb[0].mxu0
        %4135 = vmatprep.mubr.bf16.mxu0 %v3233
        %4136 = vmatmul.mubr.bf16.gmra.mrb[0].mxu0 %v3232
        %v4137 = vpop.f32.mrb[0].mxu0
        %v4138 = vadd.f32 %v3977, %v4137
        %v4139 = vpop.f32.mrb[0].mxu0
        %v4140 = vpop.f32.mrb[0].mxu0
        %v4141 = vadd.f32 %v3980, %v4140
        %v4142 = vpop.f32.mrb[0].mxu0
        %4143 = vdwg.mxu0
        %4144 = vmatprep.subr.bf16.mxu0 0
        %4145 = vmatpush1.bf16.msra.mxu0 %v3710
        %4146 = vmatprep.subr.bf16.mxu0 0
        %4147 = vmatpush1.bf16.msra.mxu0 %v3711
        %4148 = vmatprep.subr.bf16.mxu0 0
        %4149 = vmatpush1.bf16.msra.mxu0 %v3712
        %4150 = vmatprep.subr.bf16.mxu0 0
        %4151 = vmatpush1.bf16.msra.mxu0 %v3713
        %4152 = vmatprep.subr.bf16.mxu0 0
        %4153 = vmatpush1.bf16.msra.mxu0 %v3714
        %4154 = vmatprep.subr.bf16.mxu0 0
        %4155 = vmatpush1.bf16.msra.mxu0 %v3715
        %4156 = vmatprep.subr.bf16.mxu0 0
        %4157 = vmatpush1.bf16.msra.mxu0 %v3716
        %4158 = vmatprep.subr.bf16.mxu0 0
        %4159 = vmatpush1.bf16.msra.mxu0 %v3717
        %4160 = vmatprep.subr.bf16.mxu0 0
        %4161 = vmatpush1.bf16.msra.mxu0 %v3718
        %4162 = vmatprep.subr.bf16.mxu0 0
        %4163 = vmatpush1.bf16.msra.mxu0 %v3719
        %4164 = vmatprep.subr.bf16.mxu0 0
        %4165 = vmatpush1.bf16.msra.mxu0 %v3720
        %4166 = vmatprep.subr.bf16.mxu0 0
        %4167 = vmatpush1.bf16.msra.mxu0 %v3721
        %4168 = vmatprep.subr.bf16.mxu0 0
        %4169 = vmatpush1.bf16.msra.mxu0 %v3722
        %4170 = vmatprep.subr.bf16.mxu0 0
        %4171 = vmatpush1.bf16.msra.mxu0 %v3723
        %4172 = vmatprep.subr.bf16.mxu0 0
        %4173 = vmatpush1.bf16.msra.mxu0 %v3724
        %4174 = vmatprep.subr.bf16.mxu0 0
        %4175 = vmatpush1.bf16.msra.mxu0 %v3725
        %4176 = vmatprep.mubr.bf16.mxu0 %v3100
        %4177 = vmatmul.mubr.bf16.gmra.mrb[0].mxu0 %v3099
        %v4178 = vpop.f32.mrb[0].mxu0
        %v4179 = vadd.f32 %v4018, %v4178
        %v4180 = vpop.f32.mrb[0].mxu0
        %v4181 = vpop.f32.mrb[0].mxu0
        %v4182 = vadd.f32 %v4021, %v4181
        %v4183 = vpop.f32.mrb[0].mxu0
        %4184 = vmatprep.mubr.bf16.mxu0 %v3109
        %4185 = vmatmul.mubr.bf16.gmra.mrb[0].mxu0 %v3108
        %v4186 = vpop.f32.mrb[0].mxu0
        %v4187 = vadd.f32 %v4026, %v4186
        %v4188 = vpop.f32.mrb[0].mxu0
        %v4189 = vpop.f32.mrb[0].mxu0
        %v4190 = vadd.f32 %v4029, %v4189
        %v4191 = vpop.f32.mrb[0].mxu0
        %4192 = vmatprep.mubr.bf16.mxu0 %v3118
        %4193 = vmatmul.mubr.bf16.gmra.mrb[0].mxu0 %v3117
        %v4194 = vpop.f32.mrb[0].mxu0
        %v4195 = vadd.f32 %v4034, %v4194
        %v4196 = vpop.f32.mrb[0].mxu0
        %v4197 = vpop.f32.mrb[0].mxu0
        %v4198 = vadd.f32 %v4037, %v4197
        %v4199 = vpop.f32.mrb[0].mxu0
        %4200 = vmatprep.mubr.bf16.mxu0 %v3127
        %4201 = vmatmul.mubr.bf16.gmra.mrb[0].mxu0 %v3126
        %v4202 = vpop.f32.mrb[0].mxu0
        %v4203 = vadd.f32 %v4042, %v4202
        %v4204 = vpop.f32.mrb[0].mxu0
        %v4205 = vpop.f32.mrb[0].mxu0
        %v4206 = vadd.f32 %v4045, %v4205
        %v4207 = vpop.f32.mrb[0].mxu0
        %4208 = vmatprep.mubr.bf16.mxu0 %v3136
        %4209 = vmatmul.mubr.bf16.gmra.mrb[0].mxu0 %v3135
        %v4210 = vpop.f32.mrb[0].mxu0
        %v4211 = vadd.f32 %v4050, %v4210
        %v4212 = vpop.f32.mrb[0].mxu0
        %v4213 = vpop.f32.mrb[0].mxu0
        %v4214 = vadd.f32 %v4053, %v4213
        %v4215 = vpop.f32.mrb[0].mxu0
        %4216 = vmatprep.mubr.bf16.mxu0 %v3145
        %4217 = vmatmul.mubr.bf16.gmra.mrb[0].mxu0 %v3144
        %v4218 = vpop.f32.mrb[0].mxu0
        %v4219 = vadd.f32 %v4058, %v4218
        %v4220 = vpop.f32.mrb[0].mxu0
        %v4221 = vpop.f32.mrb[0].mxu0
        %v4222 = vadd.f32 %v4061, %v4221
        %v4223 = vpop.f32.mrb[0].mxu0
        %4224 = vmatprep.mubr.bf16.mxu0 %v3154
        %4225 = vmatmul.mubr.bf16.gmra.mrb[0].mxu0 %v3153
        %v4226 = vpop.f32.mrb[0].mxu0
        %v4227 = vadd.f32 %v4066, %v4226
        %v4228 = vpop.f32.mrb[0].mxu0
        %v4229 = vpop.f32.mrb[0].mxu0
        %v4230 = vadd.f32 %v4069, %v4229
        %v4231 = vpop.f32.mrb[0].mxu0
        %4232 = vmatprep.mubr.bf16.mxu0 %v3163
        %4233 = vmatmul.mubr.bf16.gmra.mrb[0].mxu0 %v3162
        %v4234 = vpop.f32.mrb[0].mxu0
        %v4235 = vadd.f32 %v4074, %v4234
        %v4236 = vpop.f32.mrb[0].mxu0
        %v4237 = vpop.f32.mrb[0].mxu0
        %v4238 = vadd.f32 %v4077, %v4237
        %v4239 = vpop.f32.mrb[0].mxu0
        %4240 = vmatprep.mubr.bf16.mxu0 %v3172
        %4241 = vmatmul.mubr.bf16.gmra.mrb[0].mxu0 %v3171
        %v4242 = vpop.f32.mrb[0].mxu0
        %v4243 = vadd.f32 %v4082, %v4242
        %v4244 = vpop.f32.mrb[0].mxu0
        %v4245 = vpop.f32.mrb[0].mxu0
        %v4246 = vadd.f32 %v4085, %v4245
        %v4247 = vpop.f32.mrb[0].mxu0
        %4248 = vmatprep.mubr.bf16.mxu0 %v3181
        %4249 = vmatmul.mubr.bf16.gmra.mrb[0].mxu0 %v3180
        %v4250 = vpop.f32.mrb[0].mxu0
        %v4251 = vadd.f32 %v4090, %v4250
        %v4252 = vpop.f32.mrb[0].mxu0
        %v4253 = vpop.f32.mrb[0].mxu0
        %v4254 = vadd.f32 %v4093, %v4253
        %v4255 = vpop.f32.mrb[0].mxu0
        %4256 = vmatprep.mubr.bf16.mxu0 %v3190
        %4257 = vmatmul.mubr.bf16.gmra.mrb[0].mxu0 %v3189
        %v4258 = vpop.f32.mrb[0].mxu0
        %v4259 = vadd.f32 %v4098, %v4258
        %v4260 = vpop.f32.mrb[0].mxu0
        %v4261 = vpop.f32.mrb[0].mxu0
        %v4262 = vadd.f32 %v4101, %v4261
        %v4263 = vpop.f32.mrb[0].mxu0
        %4264 = vmatprep.mubr.bf16.mxu0 %v3199
        %4265 = vmatmul.mubr.bf16.gmra.mrb[0].mxu0 %v3198
        %v4266 = vpop.f32.mrb[0].mxu0
        %v4267 = vadd.f32 %v4106, %v4266
        %v4268 = vpop.f32.mrb[0].mxu0
        %v4269 = vpop.f32.mrb[0].mxu0
        %v4270 = vadd.f32 %v4109, %v4269
        %v4271 = vpop.f32.mrb[0].mxu0
        %4272 = vmatprep.mubr.bf16.mxu0 %v3208
        %4273 = vmatmul.mubr.bf16.gmra.mrb[0].mxu0 %v3207
        %v4274 = vpop.f32.mrb[0].mxu0
        %v4275 = vadd.f32 %v4114, %v4274
        %v4276 = vpop.f32.mrb[0].mxu0
        %v4277 = vpop.f32.mrb[0].mxu0
        %v4278 = vadd.f32 %v4117, %v4277
        %v4279 = vpop.f32.mrb[0].mxu0
        %4280 = vmatprep.mubr.bf16.mxu0 %v3217
        %4281 = vmatmul.mubr.bf16.gmra.mrb[0].mxu0 %v3216
        %v4282 = vpop.f32.mrb[0].mxu0
        %v4283 = vadd.f32 %v4122, %v4282
        %v4284 = vpop.f32.mrb[0].mxu0
        %v4285 = vpop.f32.mrb[0].mxu0
        %v4286 = vadd.f32 %v4125, %v4285
        %v4287 = vpop.f32.mrb[0].mxu0
        %4288 = vmatprep.mubr.bf16.mxu0 %v3226
        %4289 = vmatmul.mubr.bf16.gmra.mrb[0].mxu0 %v3225
        %v4290 = vpop.f32.mrb[0].mxu0
        %v4291 = vadd.f32 %v4130, %v4290
        %v4292 = vpop.f32.mrb[0].mxu0
        %v4293 = vpop.f32.mrb[0].mxu0
        %v4294 = vadd.f32 %v4133, %v4293
        %v4295 = vpop.f32.mrb[0].mxu0
        %4296 = vmatprep.mubr.bf16.mxu0 %v3235
        %4297 = vmatmul.mubr.bf16.gmra.mrb[0].mxu0 %v3234
        %v4298 = vpop.f32.mrb[0].mxu0
        %v4299 = vadd.f32 %v4138, %v4298
        %v4300 = vpop.f32.mrb[0].mxu0
        %v4301 = vpop.f32.mrb[0].mxu0
        %v4302 = vadd.f32 %v4141, %v4301
        %v4303 = vpop.f32.mrb[0].mxu0
        %4304 = vdwg.mxu0
        %4305 = vmatprep.subr.bf16.mxu0 0
        %4306 = vmatpush1.bf16.msra.mxu0 %v3726
        %4307 = vmatprep.subr.bf16.mxu0 0
        %4308 = vmatpush1.bf16.msra.mxu0 %v3727
        %4309 = vmatprep.subr.bf16.mxu0 0
        %4310 = vmatpush1.bf16.msra.mxu0 %v3728
        %4311 = vmatprep.subr.bf16.mxu0 0
        %4312 = vmatpush1.bf16.msra.mxu0 %v3729
        %4313 = vmatprep.subr.bf16.mxu0 0
        %4314 = vmatpush1.bf16.msra.mxu0 %v3730
        %4315 = vmatprep.subr.bf16.mxu0 0
        %4316 = vmatpush1.bf16.msra.mxu0 %v3731
        %4317 = vmatprep.subr.bf16.mxu0 0
        %4318 = vmatpush1.bf16.msra.mxu0 %v3732
        %4319 = vmatprep.subr.bf16.mxu0 0
        %4320 = vmatpush1.bf16.msra.mxu0 %v3733
        %4321 = vmatprep.subr.bf16.mxu0 0
        %4322 = vmatpush1.bf16.msra.mxu0 %v3734
        %4323 = vmatprep.subr.bf16.mxu0 0
        %4324 = vmatpush1.bf16.msra.mxu0 %v3735
        %4325 = vmatprep.subr.bf16.mxu0 0
        %4326 = vmatpush1.bf16.msra.mxu0 %v3736
        %4327 = vmatprep.subr.bf16.mxu0 0
        %4328 = vmatpush1.bf16.msra.mxu0 %v3737
        %4329 = vmatprep.subr.bf16.mxu0 0
        %4330 = vmatpush1.bf16.msra.mxu0 %v3738
        %4331 = vmatprep.subr.bf16.mxu0 0
        %4332 = vmatpush1.bf16.msra.mxu0 %v3739
        %4333 = vmatprep.subr.bf16.mxu0 0
        %4334 = vmatpush1.bf16.msra.mxu0 %v3740
        %4335 = vmatprep.subr.bf16.mxu0 0
        %4336 = vmatpush1.bf16.msra.mxu0 %v3741
        %4337 = vmatprep.mubr.bf16.mxu0 %v3102
        %4338 = vmatmul.mubr.bf16.gmra.mrb[0].mxu0 %v3101
        %v4339 = vpop.f32.mrb[0].mxu0
        %v4340 = vadd.f32 %v4179, %v4339
        %v4341 = vpop.f32.mrb[0].mxu0
        %v4342 = vpop.f32.mrb[0].mxu0
        %v4343 = vadd.f32 %v4182, %v4342
        %v4344 = vpop.f32.mrb[0].mxu0
        %4345 = vmatprep.mubr.bf16.mxu0 %v3111
        %4346 = vmatmul.mubr.bf16.gmra.mrb[0].mxu0 %v3110
        %v4347 = vpop.f32.mrb[0].mxu0
        %v4348 = vadd.f32 %v4187, %v4347
        %v4349 = vpop.f32.mrb[0].mxu0
        %v4350 = vpop.f32.mrb[0].mxu0
        %v4351 = vadd.f32 %v4190, %v4350
        %v4352 = vpop.f32.mrb[0].mxu0
        %4353 = vmatprep.mubr.bf16.mxu0 %v3120
        %4354 = vmatmul.mubr.bf16.gmra.mrb[0].mxu0 %v3119
        %v4355 = vpop.f32.mrb[0].mxu0
        %v4356 = vadd.f32 %v4195, %v4355
        %v4357 = vpop.f32.mrb[0].mxu0
        %v4358 = vpop.f32.mrb[0].mxu0
        %v4359 = vadd.f32 %v4198, %v4358
        %v4360 = vpop.f32.mrb[0].mxu0
        %4361 = vmatprep.mubr.bf16.mxu0 %v3129
        %4362 = vmatmul.mubr.bf16.gmra.mrb[0].mxu0 %v3128
        %v4363 = vpop.f32.mrb[0].mxu0
        %v4364 = vadd.f32 %v4203, %v4363
        %v4365 = vpop.f32.mrb[0].mxu0
        %v4366 = vpop.f32.mrb[0].mxu0
        %v4367 = vadd.f32 %v4206, %v4366
        %v4368 = vpop.f32.mrb[0].mxu0
        %4369 = vmatprep.mubr.bf16.mxu0 %v3138
        %4370 = vmatmul.mubr.bf16.gmra.mrb[0].mxu0 %v3137
        %v4371 = vpop.f32.mrb[0].mxu0
        %v4372 = vadd.f32 %v4211, %v4371
        %v4373 = vpop.f32.mrb[0].mxu0
        %v4374 = vpop.f32.mrb[0].mxu0
        %v4375 = vadd.f32 %v4214, %v4374
        %v4376 = vpop.f32.mrb[0].mxu0
        %4377 = vmatprep.mubr.bf16.mxu0 %v3147
        %4378 = vmatmul.mubr.bf16.gmra.mrb[0].mxu0 %v3146
        %v4379 = vpop.f32.mrb[0].mxu0
        %v4380 = vadd.f32 %v4219, %v4379
        %v4381 = vpop.f32.mrb[0].mxu0
        %v4382 = vpop.f32.mrb[0].mxu0
        %v4383 = vadd.f32 %v4222, %v4382
        %v4384 = vpop.f32.mrb[0].mxu0
        %4385 = vmatprep.mubr.bf16.mxu0 %v3156
        %4386 = vmatmul.mubr.bf16.gmra.mrb[0].mxu0 %v3155
        %v4387 = vpop.f32.mrb[0].mxu0
        %v4388 = vadd.f32 %v4227, %v4387
        %v4389 = vpop.f32.mrb[0].mxu0
        %v4390 = vpop.f32.mrb[0].mxu0
        %v4391 = vadd.f32 %v4230, %v4390
        %v4392 = vpop.f32.mrb[0].mxu0
        %4393 = vmatprep.mubr.bf16.mxu0 %v3165
        %4394 = vmatmul.mubr.bf16.gmra.mrb[0].mxu0 %v3164
        %v4395 = vpop.f32.mrb[0].mxu0
        %v4396 = vadd.f32 %v4235, %v4395
        %v4397 = vpop.f32.mrb[0].mxu0
        %v4398 = vpop.f32.mrb[0].mxu0
        %v4399 = vadd.f32 %v4238, %v4398
        %v4400 = vpop.f32.mrb[0].mxu0
        %4401 = vmatprep.mubr.bf16.mxu0 %v3174
        %4402 = vmatmul.mubr.bf16.gmra.mrb[0].mxu0 %v3173
        %v4403 = vpop.f32.mrb[0].mxu0
        %v4404 = vadd.f32 %v4243, %v4403
        %v4405 = vpop.f32.mrb[0].mxu0
        %v4406 = vpop.f32.mrb[0].mxu0
        %v4407 = vadd.f32 %v4246, %v4406
        %v4408 = vpop.f32.mrb[0].mxu0
        %4409 = vmatprep.mubr.bf16.mxu0 %v3183
        %4410 = vmatmul.mubr.bf16.gmra.mrb[0].mxu0 %v3182
        %v4411 = vpop.f32.mrb[0].mxu0
        %v4412 = vadd.f32 %v4251, %v4411
        %v4413 = vpop.f32.mrb[0].mxu0
        %v4414 = vpop.f32.mrb[0].mxu0
        %v4415 = vadd.f32 %v4254, %v4414
        %v4416 = vpop.f32.mrb[0].mxu0
        %4417 = vmatprep.mubr.bf16.mxu0 %v3192
        %4418 = vmatmul.mubr.bf16.gmra.mrb[0].mxu0 %v3191
        %v4419 = vpop.f32.mrb[0].mxu0
        %v4420 = vadd.f32 %v4259, %v4419
        %v4421 = vpop.f32.mrb[0].mxu0
        %v4422 = vpop.f32.mrb[0].mxu0
        %v4423 = vadd.f32 %v4262, %v4422
        %v4424 = vpop.f32.mrb[0].mxu0
        %4425 = vmatprep.mubr.bf16.mxu0 %v3201
        %4426 = vmatmul.mubr.bf16.gmra.mrb[0].mxu0 %v3200
        %v4427 = vpop.f32.mrb[0].mxu0
        %v4428 = vadd.f32 %v4267, %v4427
        %v4429 = vpop.f32.mrb[0].mxu0
        %v4430 = vpop.f32.mrb[0].mxu0
        %v4431 = vadd.f32 %v4270, %v4430
        %v4432 = vpop.f32.mrb[0].mxu0
        %4433 = vmatprep.mubr.bf16.mxu0 %v3210
        %4434 = vmatmul.mubr.bf16.gmra.mrb[0].mxu0 %v3209
        %v4435 = vpop.f32.mrb[0].mxu0
        %v4436 = vadd.f32 %v4275, %v4435
        %v4437 = vpop.f32.mrb[0].mxu0
        %v4438 = vpop.f32.mrb[0].mxu0
        %v4439 = vadd.f32 %v4278, %v4438
        %v4440 = vpop.f32.mrb[0].mxu0
        %4441 = vmatprep.mubr.bf16.mxu0 %v3219
        %4442 = vmatmul.mubr.bf16.gmra.mrb[0].mxu0 %v3218
        %v4443 = vpop.f32.mrb[0].mxu0
        %v4444 = vadd.f32 %v4283, %v4443
        %v4445 = vpop.f32.mrb[0].mxu0
        %v4446 = vpop.f32.mrb[0].mxu0
        %v4447 = vadd.f32 %v4286, %v4446
        %v4448 = vpop.f32.mrb[0].mxu0
        %4449 = vmatprep.mubr.bf16.mxu0 %v3228
        %4450 = vmatmul.mubr.bf16.gmra.mrb[0].mxu0 %v3227
        %v4451 = vpop.f32.mrb[0].mxu0
        %v4452 = vadd.f32 %v4291, %v4451
        %v4453 = vpop.f32.mrb[0].mxu0
        %v4454 = vpop.f32.mrb[0].mxu0
        %v4455 = vadd.f32 %v4294, %v4454
        %v4456 = vpop.f32.mrb[0].mxu0
        %4457 = vmatprep.mubr.bf16.mxu0 %v3237
        %4458 = vmatmul.mubr.bf16.gmra.mrb[0].mxu0 %v3236
        %v4459 = vpop.f32.mrb[0].mxu0
        %v4460 = vadd.f32 %v4299, %v4459
        %v4461 = vpop.f32.mrb[0].mxu0
        %v4462 = vpop.f32.mrb[0].mxu0
        %v4463 = vadd.f32 %v4302, %v4462
        %v4464 = vpop.f32.mrb[0].mxu0
        %4465 = vdwg.mxu0
        %4466 = vmatprep.subr.bf16.mxu0 0
        %4467 = vmatpush1.bf16.msra.mxu0 %v3742
        %4468 = vmatprep.subr.bf16.mxu0 0
        %4469 = vmatpush1.bf16.msra.mxu0 %v3743
        %4470 = vmatprep.subr.bf16.mxu0 0
        %4471 = vmatpush1.bf16.msra.mxu0 %v3744
        %4472 = vmatprep.subr.bf16.mxu0 0
        %4473 = vmatpush1.bf16.msra.mxu0 %v3745
        %4474 = vmatprep.subr.bf16.mxu0 0
        %4475 = vmatpush1.bf16.msra.mxu0 %v3746
        %4476 = vmatprep.subr.bf16.mxu0 0
        %4477 = vmatpush1.bf16.msra.mxu0 %v3747
        %4478 = vmatprep.subr.bf16.mxu0 0
        %4479 = vmatpush1.bf16.msra.mxu0 %v3748
        %4480 = vmatprep.subr.bf16.mxu0 0
        %4481 = vmatpush1.bf16.msra.mxu0 %v3749
        %4482 = vmatprep.subr.bf16.mxu0 0
        %4483 = vmatpush1.bf16.msra.mxu0 0
        %4484 = vmatprep.subr.bf16.mxu0 0
        %4485 = vmatpush1.bf16.msra.mxu0 0
        %4486 = vmatprep.subr.bf16.mxu0 0
        %4487 = vmatpush1.bf16.msra.mxu0 0
        %4488 = vmatprep.subr.bf16.mxu0 0
        %4489 = vmatpush1.bf16.msra.mxu0 0
        %4490 = vmatprep.subr.bf16.mxu0 0
        %4491 = vmatpush1.bf16.msra.mxu0 0
        %4492 = vmatprep.subr.bf16.mxu0 0
        %4493 = vmatpush1.bf16.msra.mxu0 0
        %4494 = vmatprep.subr.bf16.mxu0 0
        %4495 = vmatpush1.bf16.msra.mxu0 0
        %4496 = vmatprep.subr.bf16.mxu0 0
        %4497 = vmatpush1.bf16.msra.mxu0 0
        %4498 = vmatprep.mubr.bf16.mxu0 0
        %4499 = vmatmul.mubr.bf16.gmra.mrb[0].mxu0 %v3103
        %v4500 = vpop.f32.mrb[0].mxu0
        %v4501 = vadd.f32 %v4340, %v4500
        %v4502 = vpop.f32.mrb[0].mxu0
        %v4503 = vpop.f32.mrb[0].mxu0
        %v4504 = vadd.f32 %v4343, %v4503
        %v4505 = vpop.f32.mrb[0].mxu0
        %4506 = vmatprep.mubr.bf16.mxu0 0
        %4507 = vmatmul.mubr.bf16.gmra.mrb[0].mxu0 %v3112
        %v4508 = vpop.f32.mrb[0].mxu0
        %v4509 = vadd.f32 %v4348, %v4508
        %v4510 = vpop.f32.mrb[0].mxu0
        %v4511 = vpop.f32.mrb[0].mxu0
        %v4512 = vadd.f32 %v4351, %v4511
        %v4513 = vpop.f32.mrb[0].mxu0
        %4514 = vmatprep.mubr.bf16.mxu0 0
        %4515 = vmatmul.mubr.bf16.gmra.mrb[0].mxu0 %v3121
        %v4516 = vpop.f32.mrb[0].mxu0
        %v4517 = vadd.f32 %v4356, %v4516
        %v4518 = vpop.f32.mrb[0].mxu0
        %v4519 = vpop.f32.mrb[0].mxu0
        %v4520 = vadd.f32 %v4359, %v4519
        %v4521 = vpop.f32.mrb[0].mxu0
        %4522 = vmatprep.mubr.bf16.mxu0 0
        %4523 = vmatmul.mubr.bf16.gmra.mrb[0].mxu0 %v3130
        %v4524 = vpop.f32.mrb[0].mxu0
        %v4525 = vadd.f32 %v4364, %v4524
        %v4526 = vpop.f32.mrb[0].mxu0
        %v4527 = vpop.f32.mrb[0].mxu0
        %v4528 = vadd.f32 %v4367, %v4527
        %v4529 = vpop.f32.mrb[0].mxu0
        %4530 = vmatprep.mubr.bf16.mxu0 0
        %4531 = vmatmul.mubr.bf16.gmra.mrb[0].mxu0 %v3139
        %v4532 = vpop.f32.mrb[0].mxu0
        %v4533 = vadd.f32 %v4372, %v4532
        %v4534 = vpop.f32.mrb[0].mxu0
        %v4535 = vpop.f32.mrb[0].mxu0
        %v4536 = vadd.f32 %v4375, %v4535
        %v4537 = vpop.f32.mrb[0].mxu0
        %4538 = vmatprep.mubr.bf16.mxu0 0
        %4539 = vmatmul.mubr.bf16.gmra.mrb[0].mxu0 %v3148
        %v4540 = vpop.f32.mrb[0].mxu0
        %v4541 = vadd.f32 %v4380, %v4540
        %v4542 = vpop.f32.mrb[0].mxu0
        %v4543 = vpop.f32.mrb[0].mxu0
        %v4544 = vadd.f32 %v4383, %v4543
        %v4545 = vpop.f32.mrb[0].mxu0
        %4546 = vmatprep.mubr.bf16.mxu0 0
        %4547 = vmatmul.mubr.bf16.gmra.mrb[0].mxu0 %v3157
        %v4548 = vpop.f32.mrb[0].mxu0
        %v4549 = vadd.f32 %v4388, %v4548
        %v4550 = vpop.f32.mrb[0].mxu0
        %v4551 = vpop.f32.mrb[0].mxu0
        %v4552 = vadd.f32 %v4391, %v4551
        %v4553 = vpop.f32.mrb[0].mxu0
        %4554 = vmatprep.mubr.bf16.mxu0 0
        %4555 = vmatmul.mubr.bf16.gmra.mrb[0].mxu0 %v3166
        %v4556 = vpop.f32.mrb[0].mxu0
        %v4557 = vadd.f32 %v4396, %v4556
        %v4558 = vpop.f32.mrb[0].mxu0
        %v4559 = vpop.f32.mrb[0].mxu0
        %v4560 = vadd.f32 %v4399, %v4559
        %v4561 = vpop.f32.mrb[0].mxu0
        %4562 = vmatprep.mubr.bf16.mxu0 0
        %4563 = vmatmul.mubr.bf16.gmra.mrb[0].mxu0 %v3175
        %v4564 = vpop.f32.mrb[0].mxu0
        %v4565 = vadd.f32 %v4404, %v4564
        %v4566 = vpop.f32.mrb[0].mxu0
        %v4567 = vpop.f32.mrb[0].mxu0
        %v4568 = vadd.f32 %v4407, %v4567
        %v4569 = vpop.f32.mrb[0].mxu0
        %4570 = vmatprep.mubr.bf16.mxu0 0
        %4571 = vmatmul.mubr.bf16.gmra.mrb[0].mxu0 %v3184
        %v4572 = vpop.f32.mrb[0].mxu0
        %v4573 = vadd.f32 %v4412, %v4572
        %v4574 = vpop.f32.mrb[0].mxu0
        %v4575 = vpop.f32.mrb[0].mxu0
        %v4576 = vadd.f32 %v4415, %v4575
        %v4577 = vpop.f32.mrb[0].mxu0
        %4578 = vmatprep.mubr.bf16.mxu0 0
        %4579 = vmatmul.mubr.bf16.gmra.mrb[0].mxu0 %v3193
        %v4580 = vpop.f32.mrb[0].mxu0
        %v4581 = vadd.f32 %v4420, %v4580
        %v4582 = vpop.f32.mrb[0].mxu0
        %v4583 = vpop.f32.mrb[0].mxu0
        %v4584 = vadd.f32 %v4423, %v4583
        %v4585 = vpop.f32.mrb[0].mxu0
        %4586 = vmatprep.mubr.bf16.mxu0 0
        %4587 = vmatmul.mubr.bf16.gmra.mrb[0].mxu0 %v3202
        %v4588 = vpop.f32.mrb[0].mxu0
        %v4589 = vadd.f32 %v4428, %v4588
        %v4590 = vpop.f32.mrb[0].mxu0
        %v4591 = vpop.f32.mrb[0].mxu0
        %v4592 = vadd.f32 %v4431, %v4591
        %v4593 = vpop.f32.mrb[0].mxu0
        %4594 = vmatprep.mubr.bf16.mxu0 0
        %4595 = vmatmul.mubr.bf16.gmra.mrb[0].mxu0 %v3211
        %v4596 = vpop.f32.mrb[0].mxu0
        %v4597 = vadd.f32 %v4436, %v4596
        %v4598 = vpop.f32.mrb[0].mxu0
        %v4599 = vpop.f32.mrb[0].mxu0
        %v4600 = vadd.f32 %v4439, %v4599
        %v4601 = vpop.f32.mrb[0].mxu0
        %4602 = vmatprep.mubr.bf16.mxu0 0
        %4603 = vmatmul.mubr.bf16.gmra.mrb[0].mxu0 %v3220
        %v4604 = vpop.f32.mrb[0].mxu0
        %v4605 = vadd.f32 %v4444, %v4604
        %v4606 = vpop.f32.mrb[0].mxu0
        %v4607 = vpop.f32.mrb[0].mxu0
        %v4608 = vadd.f32 %v4447, %v4607
        %v4609 = vpop.f32.mrb[0].mxu0
        %4610 = vmatprep.mubr.bf16.mxu0 0
        %4611 = vmatmul.mubr.bf16.gmra.mrb[0].mxu0 %v3229
        %v4612 = vpop.f32.mrb[0].mxu0
        %v4613 = vadd.f32 %v4452, %v4612
        %v4614 = vpop.f32.mrb[0].mxu0
        %v4615 = vpop.f32.mrb[0].mxu0
        %v4616 = vadd.f32 %v4455, %v4615
        %v4617 = vpop.f32.mrb[0].mxu0
        %4618 = vmatprep.mubr.bf16.mxu0 0
        %4619 = vmatmul.mubr.bf16.gmra.mrb[0].mxu0 %v3238
        %v4620 = vpop.f32.mrb[0].mxu0
        %v4621 = vadd.f32 %v4460, %v4620
        %v4622 = vpop.f32.mrb[0].mxu0
        %v4623 = vpop.f32.mrb[0].mxu0
        %v4624 = vadd.f32 %v4463, %v4623
        %v4625 = vpop.f32.mrb[0].mxu0
        %4626 = vdwg.mxu0
        %v4627 = vmax.f32 %v4501, 0.0
        %v4628 = vmax.f32 %v4504, 0.0
        %v4629 = vmax.f32 %v4509, 0.0
        %v4630 = vmax.f32 %v4512, 0.0
        %v4631 = vmax.f32 %v4517, 0.0
        %v4632 = vmax.f32 %v4520, 0.0
        %v4633 = vmax.f32 %v4525, 0.0
        %v4634 = vmax.f32 %v4528, 0.0
        %v4635 = vmax.f32 %v4533, 0.0
        %v4636 = vmax.f32 %v4536, 0.0
        %v4637 = vmax.f32 %v4541, 0.0
        %v4638 = vmax.f32 %v4544, 0.0
        %v4639 = vmax.f32 %v4549, 0.0
        %v4640 = vmax.f32 %v4552, 0.0
        %v4641 = vmax.f32 %v4557, 0.0
        %v4642 = vmax.f32 %v4560, 0.0
        %v4643 = vmax.f32 %v4565, 0.0
        %v4644 = vmax.f32 %v4568, 0.0
        %v4645 = vmax.f32 %v4573, 0.0
        %v4646 = vmax.f32 %v4576, 0.0
        %v4647 = vmax.f32 %v4581, 0.0
        %v4648 = vmax.f32 %v4584, 0.0
        %v4649 = vmax.f32 %v4589, 0.0
        %v4650 = vmax.f32 %v4592, 0.0
        %v4651 = vmax.f32 %v4597, 0.0
        %v4652 = vmax.f32 %v4600, 0.0
        %v4653 = vmax.f32 %v4605, 0.0
        %v4654 = vmax.f32 %v4608, 0.0
        %v4655 = vmax.f32 %v4613, 0.0
        %v4656 = vmax.f32 %v4616, 0.0
        %v4657 = vmax.f32 %v4621, 0.0
        %v4658 = vmax.f32 %v4624, 0.0
        %4659 = vst [vmem:[#allocation3] sm:$0xf] 0
        %4660 = vst [vmem:[#allocation3 + $0x4] sm:$0xf] 0
        %4661 = vst [vmem:[#allocation3 + $0x8] sm:$0x1] 0
        %s4662 = scalar_lea.vmem [#allocation3], 204
        %4663 = vst [vmem:[%s4662] sm:$0xf] 0
        %4664 = vst [vmem:[%s4662 + $0x4] sm:$0xf] 0
        %4665 = vst [vmem:[%s4662 + $0x8] sm:$0x1] 0
        %vm4666 = vcmask 1040384
        %vm4667 = vsmask.f32 256
        %vm4668 = vmand %vm4666, %vm4667
        %v4669 = vld [vmem:[#allocation3] sm:$0x1]
        %v4670 = vsel %vm4668, 0, %v4669
        %4671 = vst [vmem:[#allocation3] sm:$0x1] %v4670
        %v4672 = vld [vmem:[#allocation3 + $0xc] sm:$0x1]
        %v4673 = vsel %vm4668, 0, %v4672
        %4674 = vst [vmem:[#allocation3 + $0xc] sm:$0x1] %v4673
        %v4675 = vld [vmem:[#allocation3 + $0x18] sm:$0x1]
        %v4676 = vsel %vm4668, 0, %v4675
        %4677 = vst [vmem:[#allocation3 + $0x18] sm:$0x1] %v4676
        %v4678 = vld [vmem:[#allocation3 + $0x24] sm:$0x1]
        %v4679 = vsel %vm4668, 0, %v4678
        %4680 = vst [vmem:[#allocation3 + $0x24] sm:$0x1] %v4679
        %v4681 = vld [vmem:[#allocation3 + $0x30] sm:$0x1]
        %v4682 = vsel %vm4668, 0, %v4681
        %4683 = vst [vmem:[#allocation3 + $0x30] sm:$0x1] %v4682
        %v4684 = vld [vmem:[#allocation3 + $0x3c] sm:$0x1]
        %v4685 = vsel %vm4668, 0, %v4684
        %4686 = vst [vmem:[#allocation3 + $0x3c] sm:$0x1] %v4685
        %v4687 = vld [vmem:[#allocation3 + $0x48] sm:$0x1]
        %v4688 = vsel %vm4668, 0, %v4687
        %4689 = vst [vmem:[#allocation3 + $0x48] sm:$0x1] %v4688
        %v4690 = vld [vmem:[#allocation3 + $0x54] sm:$0x1]
        %v4691 = vsel %vm4668, 0, %v4690
        %4692 = vst [vmem:[#allocation3 + $0x54] sm:$0x1] %v4691
        %v4693 = vld [vmem:[#allocation3 + $0x60] sm:$0x1]
        %v4694 = vsel %vm4668, 0, %v4693
        %4695 = vst [vmem:[#allocation3 + $0x60] sm:$0x1] %v4694
        %v4696 = vld [vmem:[#allocation3 + $0x6c] sm:$0x1]
        %v4697 = vsel %vm4668, 0, %v4696
        %4698 = vst [vmem:[#allocation3 + $0x6c] sm:$0x1] %v4697
        %v4699 = vld [vmem:[#allocation3 + $0x78] sm:$0x1]
        %v4700 = vsel %vm4668, 0, %v4699
        %4701 = vst [vmem:[#allocation3 + $0x78] sm:$0x1] %v4700
        %v4702 = vld [vmem:[#allocation3 + $0x84] sm:$0x1]
        %v4703 = vsel %vm4668, 0, %v4702
        %4704 = vst [vmem:[#allocation3 + $0x84] sm:$0x1] %v4703
        %v4705 = vld [vmem:[#allocation3 + $0x90] sm:$0x1]
        %v4706 = vsel %vm4668, 0, %v4705
        %4707 = vst [vmem:[#allocation3 + $0x90] sm:$0x1] %v4706
        %v4708 = vld [vmem:[#allocation3 + $0x9c] sm:$0x1]
        %v4709 = vsel %vm4668, 0, %v4708
        %4710 = vst [vmem:[#allocation3 + $0x9c] sm:$0x1] %v4709
        %v4711 = vld [vmem:[#allocation3 + $0xa8] sm:$0x1]
        %v4712 = vsel %vm4668, 0, %v4711
        %4713 = vst [vmem:[#allocation3 + $0xa8] sm:$0x1] %v4712
        %v4714 = vld [vmem:[#allocation3 + $0xb4] sm:$0x1]
        %v4715 = vsel %vm4668, 0, %v4714
        %4716 = vst [vmem:[#allocation3 + $0xb4] sm:$0x1] %v4715
        %v4717 = vld [vmem:[#allocation3 + $0xc0] sm:$0x1]
        %v4718 = vsel %vm4668, 0, %v4717
        %4719 = vst [vmem:[#allocation3 + $0xc0] sm:$0x1] %v4718
        %v4720 = vld [vmem:[#allocation3 + $0xcc] sm:$0x1]
        %v4721 = vsel %vm4668, 0, %v4720
        %4722 = vst [vmem:[#allocation3 + $0xcc] sm:$0x1] %v4721
        %vm4723 = vsmask.f32 7938
        %vm4724 = vmand %vm4666, %vm4723
        %v4725 = vld [vmem:[#allocation3 + $0x8] sm:$0x1]
        %v4726 = vsel %vm4724, 0, %v4725
        %4727 = vst [vmem:[#allocation3 + $0x8] sm:$0x1] %v4726
        %v4728 = vld [vmem:[#allocation3 + $0x14] sm:$0x1]
        %v4729 = vsel %vm4724, 0, %v4728
        %4730 = vst [vmem:[#allocation3 + $0x14] sm:$0x1] %v4729
        %v4731 = vld [vmem:[#allocation3 + $0x20] sm:$0x1]
        %v4732 = vsel %vm4724, 0, %v4731
        %4733 = vst [vmem:[#allocation3 + $0x20] sm:$0x1] %v4732
        %v4734 = vld [vmem:[#allocation3 + $0x2c] sm:$0x1]
        %v4735 = vsel %vm4724, 0, %v4734
        %4736 = vst [vmem:[#allocation3 + $0x2c] sm:$0x1] %v4735
        %v4737 = vld [vmem:[#allocation3 + $0x38] sm:$0x1]
        %v4738 = vsel %vm4724, 0, %v4737
        %4739 = vst [vmem:[#allocation3 + $0x38] sm:$0x1] %v4738
        %v4740 = vld [vmem:[#allocation3 + $0x44] sm:$0x1]
        %v4741 = vsel %vm4724, 0, %v4740
        %4742 = vst [vmem:[#allocation3 + $0x44] sm:$0x1] %v4741
        %v4743 = vld [vmem:[#allocation3 + $0x50] sm:$0x1]
        %v4744 = vsel %vm4724, 0, %v4743
        %4745 = vst [vmem:[#allocation3 + $0x50] sm:$0x1] %v4744
        %v4746 = vld [vmem:[#allocation3 + $0x5c] sm:$0x1]
        %v4747 = vsel %vm4724, 0, %v4746
        %4748 = vst [vmem:[#allocation3 + $0x5c] sm:$0x1] %v4747
        %v4749 = vld [vmem:[#allocation3 + $0x68] sm:$0x1]
        %v4750 = vsel %vm4724, 0, %v4749
        %4751 = vst [vmem:[#allocation3 + $0x68] sm:$0x1] %v4750
        %v4752 = vld [vmem:[#allocation3 + $0x74] sm:$0x1]
        %v4753 = vsel %vm4724, 0, %v4752
        %4754 = vst [vmem:[#allocation3 + $0x74] sm:$0x1] %v4753
        %v4755 = vld [vmem:[#allocation3 + $0x80] sm:$0x1]
        %v4756 = vsel %vm4724, 0, %v4755
        %4757 = vst [vmem:[#allocation3 + $0x80] sm:$0x1] %v4756
        %v4758 = vld [vmem:[#allocation3 + $0x8c] sm:$0x1]
        %v4759 = vsel %vm4724, 0, %v4758
        %4760 = vst [vmem:[#allocation3 + $0x8c] sm:$0x1] %v4759
        %v4761 = vld [vmem:[#allocation3 + $0x98] sm:$0x1]
        %v4762 = vsel %vm4724, 0, %v4761
        %4763 = vst [vmem:[#allocation3 + $0x98] sm:$0x1] %v4762
        %v4764 = vld [vmem:[#allocation3 + $0xa4] sm:$0x1]
        %v4765 = vsel %vm4724, 0, %v4764
        %4766 = vst [vmem:[#allocation3 + $0xa4] sm:$0x1] %v4765
        %v4767 = vld [vmem:[#allocation3 + $0xb0] sm:$0x1]
        %v4768 = vsel %vm4724, 0, %v4767
        %4769 = vst [vmem:[#allocation3 + $0xb0] sm:$0x1] %v4768
        %v4770 = vld [vmem:[#allocation3 + $0xbc] sm:$0x1]
        %v4771 = vsel %vm4724, 0, %v4770
        %4772 = vst [vmem:[#allocation3 + $0xbc] sm:$0x1] %v4771
        %v4773 = vld [vmem:[#allocation3 + $0xc8] sm:$0x1]
        %v4774 = vsel %vm4724, 0, %v4773
        %4775 = vst [vmem:[#allocation3 + $0xc8] sm:$0x1] %v4774
        %v4776 = vld [vmem:[#allocation3 + $0xd4] sm:$0x1]
        %v4777 = vsel %vm4724, 0, %v4776
        %4778 = vst [vmem:[#allocation3 + $0xd4] sm:$0x1] %v4777
        %v4779 = vpack.c.bf16 %v4628, %v4627
        %v4780 = vpack.c.bf16 %v4630, %v4629
        %v4781 = vpack.c.bf16 %v4632, %v4631
        %v4782 = vpack.c.bf16 %v4634, %v4633
        %v4783 = vpack.c.bf16 %v4636, %v4635
        %v4784 = vpack.c.bf16 %v4638, %v4637
        %v4785 = vpack.c.bf16 %v4640, %v4639
        %v4786 = vpack.c.bf16 %v4642, %v4641
        %v4787 = vpack.c.bf16 %v4644, %v4643
        %v4788 = vpack.c.bf16 %v4646, %v4645
        %v4789 = vpack.c.bf16 %v4648, %v4647
        %v4790 = vpack.c.bf16 %v4650, %v4649
        %v4791 = vpack.c.bf16 %v4652, %v4651
        %v4792 = vpack.c.bf16 %v4654, %v4653
        %v4793 = vpack.c.bf16 %v4656, %v4655
        %v4794 = vpack.c.bf16 %v4658, %v4657
        %v4811 = vunpack.c.l.b16 %v4779
        %v4812 = vunpack.c.h.b16 %v4779
        %v4813 = vunpack.c.l.b16 %v4780
        %v4814 = vunpack.c.h.b16 %v4780
        %v4815 = vunpack.c.l.b16 %v4781
        %v4816 = vunpack.c.h.b16 %v4781
        %v4817 = vunpack.c.l.b16 %v4782
        %v4818 = vunpack.c.h.b16 %v4782
        %v4819 = vunpack.c.l.b16 %v4783
        %v4820 = vunpack.c.h.b16 %v4783
        %v4821 = vunpack.c.l.b16 %v4784
        %v4822 = vunpack.c.h.b16 %v4784
        %v4823 = vunpack.c.l.b16 %v4785
        %v4824 = vunpack.c.h.b16 %v4785
        %v4825 = vunpack.c.l.b16 %v4786
        %v4826 = vunpack.c.h.b16 %v4786
        %v4827 = vunpack.c.l.b16 %v4787
        %v4828 = vunpack.c.h.b16 %v4787
        %v4829 = vunpack.c.l.b16 %v4788
        %v4830 = vunpack.c.h.b16 %v4788
        %v4831 = vunpack.c.l.b16 %v4789
        %v4832 = vunpack.c.h.b16 %v4789
        %v4833 = vunpack.c.l.b16 %v4790
        %v4834 = vunpack.c.h.b16 %v4790
        %v4835 = vunpack.c.l.b16 %v4791
        %v4836 = vunpack.c.h.b16 %v4791
        %v4837 = vunpack.c.l.b16 %v4792
        %v4838 = vunpack.c.h.b16 %v4792
        %v4839 = vunpack.c.l.b16 %v4793
        %v4840 = vunpack.c.h.b16 %v4793
        %v4841 = vunpack.c.l.b16 %v4794
        %v4842 = vunpack.c.h.b16 %v4794
        %v4843 = vpack.c.b16 %v4811, %v4811
        %v4844 = vpack.c.b16 %v4812, %v4812
        %v4845 = vpack.c.b16 %v4813, %v4813
        %v4846 = vpack.c.b16 %v4814, %v4814
        %v4847 = vpack.c.b16 %v4815, %v4815
        %v4848 = vpack.c.b16 %v4816, %v4816
        %v4849 = vpack.c.b16 %v4817, %v4817
        %v4850 = vpack.c.b16 %v4818, %v4818
        %v4851 = vpack.c.b16 %v4819, %v4819
        %v4852 = vpack.c.b16 %v4820, %v4820
        %v4853 = vpack.c.b16 %v4821, %v4821
        %v4854 = vpack.c.b16 %v4822, %v4822
        %v4855 = vpack.c.b16 %v4823, %v4823
        %v4856 = vpack.c.b16 %v4824, %v4824
        %v4857 = vpack.c.b16 %v4825, %v4825
        %v4858 = vpack.c.b16 %v4826, %v4826
        %v4859 = vpack.c.b16 %v4827, %v4827
        %v4860 = vpack.c.b16 %v4828, %v4828
        %v4861 = vpack.c.b16 %v4829, %v4829
        %v4862 = vpack.c.b16 %v4830, %v4830
        %v4863 = vpack.c.b16 %v4831, %v4831
        %v4864 = vpack.c.b16 %v4832, %v4832
        %v4865 = vpack.c.b16 %v4833, %v4833
        %v4866 = vpack.c.b16 %v4834, %v4834
        %v4867 = vpack.c.b16 %v4835, %v4835
        %v4868 = vpack.c.b16 %v4836, %v4836
        %v4869 = vpack.c.b16 %v4837, %v4837
        %v4870 = vpack.c.b16 %v4838, %v4838
        %v4871 = vpack.c.b16 %v4839, %v4839
        %v4872 = vpack.c.b16 %v4840, %v4840
        %v4873 = vpack.c.b16 %v4841, %v4841
        %v4874 = vpack.c.b16 %v4842, %v4842
        %vm4875 = vsmask.f32 4368
        %vm4876 = vmor %vm4667, %vm4875
        %v4878 = vshrl.u32 %v4843, 16
        %v4880 = vrot.slane %v4878, 7
        %v4881 = vshll.u32 %v4843, 16
        %v4883 = vor.u32 %v4880, %v4881
        %v4884 = vrot.slane %v4880, 4
        %v4886 = vshrl.u32 %v4844, 16
        %v4888 = vrot.slane %v4886, 7
        %v4889 = vshll.u32 %v4844, 16
        %v4891 = vor.u32 %v4888, %v4889
        %v4892 = vsel %vm4876, %v4884, %v4891
        %v4893 = vrot.slane %v4888, 4
        %v4895 = vshrl.u32 %v4845, 16
        %v4897 = vrot.slane %v4895, 7
        %v4898 = vshll.u32 %v4845, 16
        %v4900 = vor.u32 %v4897, %v4898
        %v4901 = vrot.slane %v4897, 4
        %v4903 = vshrl.u32 %v4846, 16
        %v4905 = vrot.slane %v4903, 7
        %v4906 = vshll.u32 %v4846, 16
        %v4908 = vor.u32 %v4905, %v4906
        %v4909 = vsel %vm4876, %v4901, %v4908
        %v4910 = vrot.slane %v4905, 4
        %v4912 = vshrl.u32 %v4847, 16
        %v4914 = vrot.slane %v4912, 7
        %v4915 = vshll.u32 %v4847, 16
        %v4917 = vor.u32 %v4914, %v4915
        %v4918 = vrot.slane %v4914, 4
        %v4920 = vshrl.u32 %v4848, 16
        %v4922 = vrot.slane %v4920, 7
        %v4923 = vshll.u32 %v4848, 16
        %v4925 = vor.u32 %v4922, %v4923
        %v4926 = vsel %vm4876, %v4918, %v4925
        %v4927 = vrot.slane %v4922, 4
        %v4929 = vshrl.u32 %v4849, 16
        %v4931 = vrot.slane %v4929, 7
        %v4932 = vshll.u32 %v4849, 16
        %v4934 = vor.u32 %v4931, %v4932
        %v4935 = vrot.slane %v4931, 4
        %v4937 = vshrl.u32 %v4850, 16
        %v4939 = vrot.slane %v4937, 7
        %v4940 = vshll.u32 %v4850, 16
        %v4942 = vor.u32 %v4939, %v4940
        %v4943 = vsel %vm4876, %v4935, %v4942
        %v4944 = vrot.slane %v4939, 4
        %v4946 = vshrl.u32 %v4851, 16
        %v4948 = vrot.slane %v4946, 7
        %v4949 = vshll.u32 %v4851, 16
        %v4951 = vor.u32 %v4948, %v4949
        %v4952 = vrot.slane %v4948, 4
        %v4954 = vshrl.u32 %v4852, 16
        %v4956 = vrot.slane %v4954, 7
        %v4957 = vshll.u32 %v4852, 16
        %v4959 = vor.u32 %v4956, %v4957
        %v4960 = vsel %vm4876, %v4952, %v4959
        %v4961 = vrot.slane %v4956, 4
        %v4963 = vshrl.u32 %v4853, 16
        %v4965 = vrot.slane %v4963, 7
        %v4966 = vshll.u32 %v4853, 16
        %v4968 = vor.u32 %v4965, %v4966
        %v4969 = vrot.slane %v4965, 4
        %v4971 = vshrl.u32 %v4854, 16
        %v4973 = vrot.slane %v4971, 7
        %v4974 = vshll.u32 %v4854, 16
        %v4976 = vor.u32 %v4973, %v4974
        %v4977 = vsel %vm4876, %v4969, %v4976
        %v4978 = vrot.slane %v4973, 4
        %v4980 = vshrl.u32 %v4855, 16
        %v4982 = vrot.slane %v4980, 7
        %v4983 = vshll.u32 %v4855, 16
        %v4985 = vor.u32 %v4982, %v4983
        %v4986 = vrot.slane %v4982, 4
        %v4988 = vshrl.u32 %v4856, 16
        %v4990 = vrot.slane %v4988, 7
        %v4991 = vshll.u32 %v4856, 16
        %v4993 = vor.u32 %v4990, %v4991
        %v4994 = vsel %vm4876, %v4986, %v4993
        %v4995 = vrot.slane %v4990, 4
        %v4997 = vshrl.u32 %v4857, 16
        %v4999 = vrot.slane %v4997, 7
        %v5000 = vshll.u32 %v4857, 16
        %v5002 = vor.u32 %v4999, %v5000
        %v5003 = vrot.slane %v4999, 4
        %v5005 = vshrl.u32 %v4858, 16
        %v5007 = vrot.slane %v5005, 7
        %v5008 = vshll.u32 %v4858, 16
        %v5010 = vor.u32 %v5007, %v5008
        %v5011 = vsel %vm4876, %v5003, %v5010
        %v5012 = vrot.slane %v5007, 4
        %v5014 = vshrl.u32 %v4859, 16
        %v5016 = vrot.slane %v5014, 7
        %v5017 = vshll.u32 %v4859, 16
        %v5019 = vor.u32 %v5016, %v5017
        %v5020 = vrot.slane %v5016, 4
        %v5022 = vshrl.u32 %v4860, 16
        %v5024 = vrot.slane %v5022, 7
        %v5025 = vshll.u32 %v4860, 16
        %v5027 = vor.u32 %v5024, %v5025
        %v5028 = vsel %vm4876, %v5020, %v5027
        %v5029 = vrot.slane %v5024, 4
        %v5031 = vshrl.u32 %v4861, 16
        %v5033 = vrot.slane %v5031, 7
        %v5034 = vshll.u32 %v4861, 16
        %v5036 = vor.u32 %v5033, %v5034
        %v5037 = vrot.slane %v5033, 4
        %v5039 = vshrl.u32 %v4862, 16
        %v5041 = vrot.slane %v5039, 7
        %v5042 = vshll.u32 %v4862, 16
        %v5044 = vor.u32 %v5041, %v5042
        %v5045 = vsel %vm4876, %v5037, %v5044
        %v5046 = vrot.slane %v5041, 4
        %v5048 = vshrl.u32 %v4863, 16
        %v5050 = vrot.slane %v5048, 7
        %v5051 = vshll.u32 %v4863, 16
        %v5053 = vor.u32 %v5050, %v5051
        %v5054 = vrot.slane %v5050, 4
        %v5056 = vshrl.u32 %v4864, 16
        %v5058 = vrot.slane %v5056, 7
        %v5059 = vshll.u32 %v4864, 16
        %v5061 = vor.u32 %v5058, %v5059
        %v5062 = vsel %vm4876, %v5054, %v5061
        %v5063 = vrot.slane %v5058, 4
        %v5065 = vshrl.u32 %v4865, 16
        %v5067 = vrot.slane %v5065, 7
        %v5068 = vshll.u32 %v4865, 16
        %v5070 = vor.u32 %v5067, %v5068
        %v5071 = vrot.slane %v5067, 4
        %v5073 = vshrl.u32 %v4866, 16
        %v5075 = vrot.slane %v5073, 7
        %v5076 = vshll.u32 %v4866, 16
        %v5078 = vor.u32 %v5075, %v5076
        %v5079 = vsel %vm4876, %v5071, %v5078
        %v5080 = vrot.slane %v5075, 4
        %v5082 = vshrl.u32 %v4867, 16
        %v5084 = vrot.slane %v5082, 7
        %v5085 = vshll.u32 %v4867, 16
        %v5087 = vor.u32 %v5084, %v5085
        %v5088 = vrot.slane %v5084, 4
        %v5090 = vshrl.u32 %v4868, 16
        %v5092 = vrot.slane %v5090, 7
        %v5093 = vshll.u32 %v4868, 16
        %v5095 = vor.u32 %v5092, %v5093
        %v5096 = vsel %vm4876, %v5088, %v5095
        %v5097 = vrot.slane %v5092, 4
        %v5099 = vshrl.u32 %v4869, 16
        %v5101 = vrot.slane %v5099, 7
        %v5102 = vshll.u32 %v4869, 16
        %v5104 = vor.u32 %v5101, %v5102
        %v5105 = vrot.slane %v5101, 4
        %v5107 = vshrl.u32 %v4870, 16
        %v5109 = vrot.slane %v5107, 7
        %v5110 = vshll.u32 %v4870, 16
        %v5112 = vor.u32 %v5109, %v5110
        %v5113 = vsel %vm4876, %v5105, %v5112
        %v5114 = vrot.slane %v5109, 4
        %v5116 = vshrl.u32 %v4871, 16
        %v5118 = vrot.slane %v5116, 7
        %v5119 = vshll.u32 %v4871, 16
        %v5121 = vor.u32 %v5118, %v5119
        %v5122 = vrot.slane %v5118, 4
        %v5124 = vshrl.u32 %v4872, 16
        %v5126 = vrot.slane %v5124, 7
        %v5127 = vshll.u32 %v4872, 16
        %v5129 = vor.u32 %v5126, %v5127
        %v5130 = vsel %vm4876, %v5122, %v5129
        %v5131 = vrot.slane %v5126, 4
        %v5133 = vshrl.u32 %v4873, 16
        %v5135 = vrot.slane %v5133, 7
        %v5136 = vshll.u32 %v4873, 16
        %v5138 = vor.u32 %v5135, %v5136
        %v5139 = vrot.slane %v5135, 4
        %v5141 = vshrl.u32 %v4874, 16
        %v5143 = vrot.slane %v5141, 7
        %v5144 = vshll.u32 %v4874, 16
        %v5146 = vor.u32 %v5143, %v5144
        %v5147 = vsel %vm4876, %v5139, %v5146
        %v5148 = vrot.slane %v5143, 4
        %s5197 = scalar_lea.vmem [#allocation3], 12
        %vm5198 = vcmask 1043456
        %vm5199 = vmand %vm5198, %vm4723
        %v5200 = vld [vmem:[%s5197] sm:$0xf]
        %v5201 = vsel %vm5199, %v4883, %v5200
        %5202 = vst [vmem:[%s5197] sm:$0xf] %v5201
        %5203 = vst [vmem:[%s5197 + $0x4] sm:$0xf] %v4892
        %v5204 = vld [vmem:[%s5197 + $0x8] sm:$0x1]
        %v5205 = vsel %vm4668, %v4893, %v5204
        %5206 = vst [vmem:[%s5197 + $0x8] sm:$0x1] %v5205
        %v5207 = vld [vmem:[%s5197 + $0xc] sm:$0xf]
        %v5208 = vsel %vm5199, %v4900, %v5207
        %5209 = vst [vmem:[%s5197 + $0xc] sm:$0xf] %v5208
        %5210 = vst [vmem:[%s5197 + $0x10] sm:$0xf] %v4909
        %v5211 = vld [vmem:[%s5197 + $0x14] sm:$0x1]
        %v5212 = vsel %vm4668, %v4910, %v5211
        %5213 = vst [vmem:[%s5197 + $0x14] sm:$0x1] %v5212
        %v5214 = vld [vmem:[%s5197 + $0x18] sm:$0xf]
        %v5215 = vsel %vm5199, %v4917, %v5214
        %5216 = vst [vmem:[%s5197 + $0x18] sm:$0xf] %v5215
        %5217 = vst [vmem:[%s5197 + $0x1c] sm:$0xf] %v4926
        %v5218 = vld [vmem:[%s5197 + $0x20] sm:$0x1]
        %v5219 = vsel %vm4668, %v4927, %v5218
        %5220 = vst [vmem:[%s5197 + $0x20] sm:$0x1] %v5219
        %v5221 = vld [vmem:[%s5197 + $0x24] sm:$0xf]
        %v5222 = vsel %vm5199, %v4934, %v5221
        %5223 = vst [vmem:[%s5197 + $0x24] sm:$0xf] %v5222
        %5224 = vst [vmem:[%s5197 + $0x28] sm:$0xf] %v4943
        %v5225 = vld [vmem:[%s5197 + $0x2c] sm:$0x1]
        %v5226 = vsel %vm4668, %v4944, %v5225
        %5227 = vst [vmem:[%s5197 + $0x2c] sm:$0x1] %v5226
        %v5228 = vld [vmem:[%s5197 + $0x30] sm:$0xf]
        %v5229 = vsel %vm5199, %v4951, %v5228
        %5230 = vst [vmem:[%s5197 + $0x30] sm:$0xf] %v5229
        %5231 = vst [vmem:[%s5197 + $0x34] sm:$0xf] %v4960
        %v5232 = vld [vmem:[%s5197 + $0x38] sm:$0x1]
        %v5233 = vsel %vm4668, %v4961, %v5232
        %5234 = vst [vmem:[%s5197 + $0x38] sm:$0x1] %v5233
        %v5235 = vld [vmem:[%s5197 + $0x3c] sm:$0xf]
        %v5236 = vsel %vm5199, %v4968, %v5235
        %5237 = vst [vmem:[%s5197 + $0x3c] sm:$0xf] %v5236
        %5238 = vst [vmem:[%s5197 + $0x40] sm:$0xf] %v4977
        %v5239 = vld [vmem:[%s5197 + $0x44] sm:$0x1]
        %v5240 = vsel %vm4668, %v4978, %v5239
        %5241 = vst [vmem:[%s5197 + $0x44] sm:$0x1] %v5240
        %v5242 = vld [vmem:[%s5197 + $0x48] sm:$0xf]
        %v5243 = vsel %vm5199, %v4985, %v5242
        %5244 = vst [vmem:[%s5197 + $0x48] sm:$0xf] %v5243
        %5245 = vst [vmem:[%s5197 + $0x4c] sm:$0xf] %v4994
        %v5246 = vld [vmem:[%s5197 + $0x50] sm:$0x1]
        %v5247 = vsel %vm4668, %v4995, %v5246
        %5248 = vst [vmem:[%s5197 + $0x50] sm:$0x1] %v5247
        %v5249 = vld [vmem:[%s5197 + $0x54] sm:$0xf]
        %v5250 = vsel %vm5199, %v5002, %v5249
        %5251 = vst [vmem:[%s5197 + $0x54] sm:$0xf] %v5250
        %5252 = vst [vmem:[%s5197 + $0x58] sm:$0xf] %v5011
        %v5253 = vld [vmem:[%s5197 + $0x5c] sm:$0x1]
        %v5254 = vsel %vm4668, %v5012, %v5253
        %5255 = vst [vmem:[%s5197 + $0x5c] sm:$0x1] %v5254
        %v5256 = vld [vmem:[%s5197 + $0x60] sm:$0xf]
        %v5257 = vsel %vm5199, %v5019, %v5256
        %5258 = vst [vmem:[%s5197 + $0x60] sm:$0xf] %v5257
        %5259 = vst [vmem:[%s5197 + $0x64] sm:$0xf] %v5028
        %v5260 = vld [vmem:[%s5197 + $0x68] sm:$0x1]
        %v5261 = vsel %vm4668, %v5029, %v5260
        %5262 = vst [vmem:[%s5197 + $0x68] sm:$0x1] %v5261
        %v5263 = vld [vmem:[%s5197 + $0x6c] sm:$0xf]
        %v5264 = vsel %vm5199, %v5036, %v5263
        %5265 = vst [vmem:[%s5197 + $0x6c] sm:$0xf] %v5264
        %5266 = vst [vmem:[%s5197 + $0x70] sm:$0xf] %v5045
        %v5267 = vld [vmem:[%s5197 + $0x74] sm:$0x1]
        %v5268 = vsel %vm4668, %v5046, %v5267
        %5269 = vst [vmem:[%s5197 + $0x74] sm:$0x1] %v5268
        %v5270 = vld [vmem:[%s5197 + $0x78] sm:$0xf]
        %v5271 = vsel %vm5199, %v5053, %v5270
        %5272 = vst [vmem:[%s5197 + $0x78] sm:$0xf] %v5271
        %5273 = vst [vmem:[%s5197 + $0x7c] sm:$0xf] %v5062
        %v5274 = vld [vmem:[%s5197 + $0x80] sm:$0x1]
        %v5275 = vsel %vm4668, %v5063, %v5274
        %5276 = vst [vmem:[%s5197 + $0x80] sm:$0x1] %v5275
        %v5277 = vld [vmem:[%s5197 + $0x84] sm:$0xf]
        %v5278 = vsel %vm5199, %v5070, %v5277
        %5279 = vst [vmem:[%s5197 + $0x84] sm:$0xf] %v5278
        %5280 = vst [vmem:[%s5197 + $0x88] sm:$0xf] %v5079
        %v5281 = vld [vmem:[%s5197 + $0x8c] sm:$0x1]
        %v5282 = vsel %vm4668, %v5080, %v5281
        %5283 = vst [vmem:[%s5197 + $0x8c] sm:$0x1] %v5282
        %v5284 = vld [vmem:[%s5197 + $0x90] sm:$0xf]
        %v5285 = vsel %vm5199, %v5087, %v5284
        %5286 = vst [vmem:[%s5197 + $0x90] sm:$0xf] %v5285
        %5287 = vst [vmem:[%s5197 + $0x94] sm:$0xf] %v5096
        %v5288 = vld [vmem:[%s5197 + $0x98] sm:$0x1]
        %v5289 = vsel %vm4668, %v5097, %v5288
        %5290 = vst [vmem:[%s5197 + $0x98] sm:$0x1] %v5289
        %v5291 = vld [vmem:[%s5197 + $0x9c] sm:$0xf]
        %v5292 = vsel %vm5199, %v5104, %v5291
        %5293 = vst [vmem:[%s5197 + $0x9c] sm:$0xf] %v5292
        %5294 = vst [vmem:[%s5197 + $0xa0] sm:$0xf] %v5113
        %v5295 = vld [vmem:[%s5197 + $0xa4] sm:$0x1]
        %v5296 = vsel %vm4668, %v5114, %v5295
        %5297 = vst [vmem:[%s5197 + $0xa4] sm:$0x1] %v5296
        %v5298 = vld [vmem:[%s5197 + $0xa8] sm:$0xf]
        %v5299 = vsel %vm5199, %v5121, %v5298
        %5300 = vst [vmem:[%s5197 + $0xa8] sm:$0xf] %v5299
        %5301 = vst [vmem:[%s5197 + $0xac] sm:$0xf] %v5130
        %v5302 = vld [vmem:[%s5197 + $0xb0] sm:$0x1]
        %v5303 = vsel %vm4668, %v5131, %v5302
        %5304 = vst [vmem:[%s5197 + $0xb0] sm:$0x1] %v5303
        %v5305 = vld [vmem:[%s5197 + $0xb4] sm:$0xf]
        %v5306 = vsel %vm5199, %v5138, %v5305
        %5307 = vst [vmem:[%s5197 + $0xb4] sm:$0xf] %v5306
        %5308 = vst [vmem:[%s5197 + $0xb8] sm:$0xf] %v5147
        %v5309 = vld [vmem:[%s5197 + $0xbc] sm:$0x1]
        %v5310 = vsel %vm4668, %v5148, %v5309
        %5311 = vst [vmem:[%s5197 + $0xbc] sm:$0x1] %v5310
        %v5312 = vld [vmem:[#allocation3] sm:$0xf]
        %v5313 = vld [vmem:[#allocation3 + $0x4] sm:$0xf]
        %v5314 = vld [vmem:[#allocation3 + $0xc] sm:$0xf]
        %v5315 = vld [vmem:[#allocation3 + $0x10] sm:$0xf]
        %v5316 = vld [vmem:[#allocation3 + $0x18] sm:$0xf]
        %v5317 = vld [vmem:[#allocation3 + $0x1c] sm:$0xf]
        %v5318 = vld [vmem:[#allocation3 + $0x24] sm:$0xf]
        %v5319 = vld [vmem:[#allocation3 + $0x28] sm:$0xf]
        %v5320 = vld [vmem:[#allocation3 + $0x30] sm:$0xf]
        %v5321 = vld [vmem:[#allocation3 + $0x34] sm:$0xf]
        %v5322 = vld [vmem:[#allocation3 + $0x3c] sm:$0xf]
        %v5323 = vld [vmem:[#allocation3 + $0x40] sm:$0xf]
        %v5324 = vld [vmem:[#allocation3 + $0x48] sm:$0xf]
        %v5325 = vld [vmem:[#allocation3 + $0x4c] sm:$0xf]
        %v5326 = vld [vmem:[#allocation3 + $0x54] sm:$0xf]
        %v5327 = vld [vmem:[#allocation3 + $0x58] sm:$0xf]
        %v5328 = vld [vmem:[#allocation3 + $0x60] sm:$0xf]
        %v5329 = vld [vmem:[#allocation3 + $0x64] sm:$0xf]
        %v5330 = vld [vmem:[#allocation3 + $0x6c] sm:$0xf]
        %v5331 = vld [vmem:[#allocation3 + $0x70] sm:$0xf]
        %v5332 = vld [vmem:[#allocation3 + $0x78] sm:$0xf]
        %v5333 = vld [vmem:[#allocation3 + $0x7c] sm:$0xf]
        %v5334 = vld [vmem:[#allocation3 + $0x84] sm:$0xf]
        %v5335 = vld [vmem:[#allocation3 + $0x88] sm:$0xf]
        %v5336 = vld [vmem:[#allocation3 + $0x90] sm:$0xf]
        %v5337 = vld [vmem:[#allocation3 + $0x94] sm:$0xf]
        %v5338 = vld [vmem:[#allocation3 + $0x9c] sm:$0xf]
        %v5339 = vld [vmem:[#allocation3 + $0xa0] sm:$0xf]
        %v5340 = vld [vmem:[#allocation3 + $0xa8] sm:$0xf]
        %v5341 = vld [vmem:[#allocation3 + $0xac] sm:$0xf]
        %v5342 = vld [vmem:[#allocation3 + $0xb4] sm:$0xf]
        %v5343 = vld [vmem:[#allocation3 + $0xb8] sm:$0xf]
        %v5376 = vunpack.c.l.b16 %v5312
        %v5377 = vunpack.c.l.b16 %v5313
        %v5378 = vunpack.c.l.b16 %v5314
        %v5379 = vunpack.c.l.b16 %v5315
        %v5380 = vunpack.c.l.b16 %v5316
        %v5381 = vunpack.c.l.b16 %v5317
        %v5382 = vunpack.c.l.b16 %v5318
        %v5383 = vunpack.c.l.b16 %v5319
        %v5384 = vunpack.c.l.b16 %v5320
        %v5385 = vunpack.c.l.b16 %v5321
        %v5386 = vunpack.c.l.b16 %v5322
        %v5387 = vunpack.c.l.b16 %v5323
        %v5388 = vunpack.c.l.b16 %v5324
        %v5389 = vunpack.c.l.b16 %v5325
        %v5390 = vunpack.c.l.b16 %v5326
        %v5391 = vunpack.c.l.b16 %v5327
        %v5392 = vunpack.c.l.b16 %v5328
        %v5393 = vunpack.c.l.b16 %v5329
        %v5394 = vunpack.c.l.b16 %v5330
        %v5395 = vunpack.c.l.b16 %v5331
        %v5396 = vunpack.c.l.b16 %v5332
        %v5397 = vunpack.c.l.b16 %v5333
        %v5398 = vunpack.c.l.b16 %v5334
        %v5399 = vunpack.c.l.b16 %v5335
        %v5400 = vunpack.c.l.b16 %v5336
        %v5401 = vunpack.c.l.b16 %v5337
        %v5402 = vunpack.c.l.b16 %v5338
        %v5403 = vunpack.c.l.b16 %v5339
        %v5404 = vunpack.c.l.b16 %v5340
        %v5405 = vunpack.c.l.b16 %v5341
        %v5406 = vunpack.c.l.b16 %v5342
        %v5407 = vunpack.c.l.b16 %v5343
        %v5408 = vpack.c.b16 %v5377, %v5376
        %v5409 = vpack.c.b16 %v5379, %v5378
        %v5410 = vpack.c.b16 %v5381, %v5380
        %v5411 = vpack.c.b16 %v5383, %v5382
        %v5412 = vpack.c.b16 %v5385, %v5384
        %v5413 = vpack.c.b16 %v5387, %v5386
        %v5414 = vpack.c.b16 %v5389, %v5388
        %v5415 = vpack.c.b16 %v5391, %v5390
        %v5416 = vpack.c.b16 %v5393, %v5392
        %v5417 = vpack.c.b16 %v5395, %v5394
        %v5418 = vpack.c.b16 %v5397, %v5396
        %v5419 = vpack.c.b16 %v5399, %v5398
        %v5420 = vpack.c.b16 %v5401, %v5400
        %v5421 = vpack.c.b16 %v5403, %v5402
        %v5422 = vpack.c.b16 %v5405, %v5404
        %v5423 = vpack.c.b16 %v5407, %v5406
        %5440 = vst [vmem:[#allocation2] sm:$0xff] %v5408
        %5441 = vst [vmem:[#allocation2 + $0x48] sm:$0xff] %v5409
        %5442 = vst [vmem:[#allocation2 + $0x90] sm:$0xff] %v5410
        %5443 = vst [vmem:[#allocation2 + $0xd8] sm:$0xff] %v5411
        %5444 = vst [vmem:[#allocation2 + $0x120] sm:$0xff] %v5412
        %5445 = vst [vmem:[#allocation2 + $0x168] sm:$0xff] %v5413
        %5446 = vst [vmem:[#allocation2 + $0x1b0] sm:$0xff] %v5414
        %5447 = vst [vmem:[#allocation2 + $0x1f8] sm:$0xff] %v5415
        %5448 = vst [vmem:[#allocation2 + $0x240] sm:$0xff] %v5416
        %5449 = vst [vmem:[#allocation2 + $0x288] sm:$0xff] %v5417
        %5450 = vst [vmem:[#allocation2 + $0x2d0] sm:$0xff] %v5418
        %5451 = vst [vmem:[#allocation2 + $0x318] sm:$0xff] %v5419
        %5452 = vst [vmem:[#allocation2 + $0x360] sm:$0xff] %v5420
        %5453 = vst [vmem:[#allocation2 + $0x3a8] sm:$0xff] %v5421
        %5454 = vst [vmem:[#allocation2 + $0x3f0] sm:$0xff] %v5422
        %5455 = vst [vmem:[#allocation2 + $0x438] sm:$0xff] %v5423
        %v5456 = vld [vmem:[#allocation3] sm:$0xf]
        %v5457 = vld [vmem:[#allocation3 + $0x4] sm:$0xf]
        %v5458 = vld [vmem:[#allocation3 + $0x8] sm:$0x1]
        %v5459 = vld [vmem:[#allocation3 + $0xc] sm:$0xf]
        %v5460 = vld [vmem:[#allocation3 + $0x10] sm:$0xf]
        %v5461 = vld [vmem:[#allocation3 + $0x14] sm:$0x1]
        %v5462 = vld [vmem:[#allocation3 + $0x18] sm:$0xf]
        %v5463 = vld [vmem:[#allocation3 + $0x1c] sm:$0xf]
        %v5464 = vld [vmem:[#allocation3 + $0x20] sm:$0x1]
        %v5465 = vld [vmem:[#allocation3 + $0x24] sm:$0xf]
        %v5466 = vld [vmem:[#allocation3 + $0x28] sm:$0xf]
        %v5467 = vld [vmem:[#allocation3 + $0x2c] sm:$0x1]
        %v5468 = vld [vmem:[#allocation3 + $0x30] sm:$0xf]
        %v5469 = vld [vmem:[#allocation3 + $0x34] sm:$0xf]
        %v5470 = vld [vmem:[#allocation3 + $0x38] sm:$0x1]
        %v5471 = vld [vmem:[#allocation3 + $0x3c] sm:$0xf]
        %v5472 = vld [vmem:[#allocation3 + $0x40] sm:$0xf]
        %v5473 = vld [vmem:[#allocation3 + $0x44] sm:$0x1]
        %v5474 = vld [vmem:[#allocation3 + $0x48] sm:$0xf]
        %v5475 = vld [vmem:[#allocation3 + $0x4c] sm:$0xf]
        %v5476 = vld [vmem:[#allocation3 + $0x50] sm:$0x1]
        %v5477 = vld [vmem:[#allocation3 + $0x54] sm:$0xf]
        %v5478 = vld [vmem:[#allocation3 + $0x58] sm:$0xf]
        %v5479 = vld [vmem:[#allocation3 + $0x5c] sm:$0x1]
        %v5480 = vld [vmem:[#allocation3 + $0x60] sm:$0xf]
        %v5481 = vld [vmem:[#allocation3 + $0x64] sm:$0xf]
        %v5482 = vld [vmem:[#allocation3 + $0x68] sm:$0x1]
        %v5483 = vld [vmem:[#allocation3 + $0x6c] sm:$0xf]
        %v5484 = vld [vmem:[#allocation3 + $0x70] sm:$0xf]
        %v5485 = vld [vmem:[#allocation3 + $0x74] sm:$0x1]
        %v5486 = vld [vmem:[#allocation3 + $0x78] sm:$0xf]
        %v5487 = vld [vmem:[#allocation3 + $0x7c] sm:$0xf]
        %v5488 = vld [vmem:[#allocation3 + $0x80] sm:$0x1]
        %v5489 = vld [vmem:[#allocation3 + $0x84] sm:$0xf]
        %v5490 = vld [vmem:[#allocation3 + $0x88] sm:$0xf]
        %v5491 = vld [vmem:[#allocation3 + $0x8c] sm:$0x1]
        %v5492 = vld [vmem:[#allocation3 + $0x90] sm:$0xf]
        %v5493 = vld [vmem:[#allocation3 + $0x94] sm:$0xf]
        %v5494 = vld [vmem:[#allocation3 + $0x98] sm:$0x1]
        %v5495 = vld [vmem:[#allocation3 + $0x9c] sm:$0xf]
        %v5496 = vld [vmem:[#allocation3 + $0xa0] sm:$0xf]
        %v5497 = vld [vmem:[#allocation3 + $0xa4] sm:$0x1]
        %v5498 = vld [vmem:[#allocation3 + $0xa8] sm:$0xf]
        %v5499 = vld [vmem:[#allocation3 + $0xac] sm:$0xf]
        %v5500 = vld [vmem:[#allocation3 + $0xb0] sm:$0x1]
        %v5501 = vld [vmem:[#allocation3 + $0xb4] sm:$0xf]
        %v5502 = vld [vmem:[#allocation3 + $0xb8] sm:$0xf]
        %v5503 = vld [vmem:[#allocation3 + $0xbc] sm:$0x1]
        %v5505 = vshrl.u32 %v5456, 16
        %v5507 = vrot.slane %v5505, 4
        %v5508 = vshll.u32 %v5456, 16
        %v5510 = vrot.slane %v5508, 5
        %v5511 = vor.u32 %v5507, %v5510
        %v5512 = vrot.slane %v5511, 4
        %v5514 = vshll.u32 %v5457, 16
        %v5516 = vrot.slane %v5514, 5
        %v5517 = vsel %vm433, %v5512, %v5516
        %v5518 = vshrl.u32 %v5457, 16
        %v5520 = vrot.slane %v5518, 4
        %v5521 = vor.u32 %v5520, %v5516
        %v5522 = vrot.slane %v5521, 4
        %v5524 = vshll.u32 %v5458, 16
        %v5526 = vrot.slane %v5524, 5
        %v5527 = vsel %vm433, %v5522, %v5526
        %v5529 = vshrl.u32 %v5459, 16
        %v5531 = vrot.slane %v5529, 4
        %v5532 = vshll.u32 %v5459, 16
        %v5534 = vrot.slane %v5532, 5
        %v5535 = vor.u32 %v5531, %v5534
        %v5536 = vrot.slane %v5535, 4
        %v5538 = vshll.u32 %v5460, 16
        %v5540 = vrot.slane %v5538, 5
        %v5541 = vsel %vm433, %v5536, %v5540
        %v5542 = vshrl.u32 %v5460, 16
        %v5544 = vrot.slane %v5542, 4
        %v5545 = vor.u32 %v5544, %v5540
        %v5546 = vrot.slane %v5545, 4
        %v5548 = vshll.u32 %v5461, 16
        %v5550 = vrot.slane %v5548, 5
        %v5551 = vsel %vm433, %v5546, %v5550
        %v5553 = vshrl.u32 %v5462, 16
        %v5555 = vrot.slane %v5553, 4
        %v5556 = vshll.u32 %v5462, 16
        %v5558 = vrot.slane %v5556, 5
        %v5559 = vor.u32 %v5555, %v5558
        %v5560 = vrot.slane %v5559, 4
        %v5562 = vshll.u32 %v5463, 16
        %v5564 = vrot.slane %v5562, 5
        %v5565 = vsel %vm433, %v5560, %v5564
        %v5566 = vshrl.u32 %v5463, 16
        %v5568 = vrot.slane %v5566, 4
        %v5569 = vor.u32 %v5568, %v5564
        %v5570 = vrot.slane %v5569, 4
        %v5572 = vshll.u32 %v5464, 16
        %v5574 = vrot.slane %v5572, 5
        %v5575 = vsel %vm433, %v5570, %v5574
        %v5577 = vshrl.u32 %v5465, 16
        %v5579 = vrot.slane %v5577, 4
        %v5580 = vshll.u32 %v5465, 16
        %v5582 = vrot.slane %v5580, 5
        %v5583 = vor.u32 %v5579, %v5582
        %v5584 = vrot.slane %v5583, 4
        %v5586 = vshll.u32 %v5466, 16
        %v5588 = vrot.slane %v5586, 5
        %v5589 = vsel %vm433, %v5584, %v5588
        %v5590 = vshrl.u32 %v5466, 16
        %v5592 = vrot.slane %v5590, 4
        %v5593 = vor.u32 %v5592, %v5588
        %v5594 = vrot.slane %v5593, 4
        %v5596 = vshll.u32 %v5467, 16
        %v5598 = vrot.slane %v5596, 5
        %v5599 = vsel %vm433, %v5594, %v5598
        %v5601 = vshrl.u32 %v5468, 16
        %v5603 = vrot.slane %v5601, 4
        %v5604 = vshll.u32 %v5468, 16
        %v5606 = vrot.slane %v5604, 5
        %v5607 = vor.u32 %v5603, %v5606
        %v5608 = vrot.slane %v5607, 4
        %v5610 = vshll.u32 %v5469, 16
        %v5612 = vrot.slane %v5610, 5
        %v5613 = vsel %vm433, %v5608, %v5612
        %v5614 = vshrl.u32 %v5469, 16
        %v5616 = vrot.slane %v5614, 4
        %v5617 = vor.u32 %v5616, %v5612
        %v5618 = vrot.slane %v5617, 4
        %v5620 = vshll.u32 %v5470, 16
        %v5622 = vrot.slane %v5620, 5
        %v5623 = vsel %vm433, %v5618, %v5622
        %v5625 = vshrl.u32 %v5471, 16
        %v5627 = vrot.slane %v5625, 4
        %v5628 = vshll.u32 %v5471, 16
        %v5630 = vrot.slane %v5628, 5
        %v5631 = vor.u32 %v5627, %v5630
        %v5632 = vrot.slane %v5631, 4
        %v5634 = vshll.u32 %v5472, 16
        %v5636 = vrot.slane %v5634, 5
        %v5637 = vsel %vm433, %v5632, %v5636
        %v5638 = vshrl.u32 %v5472, 16
        %v5640 = vrot.slane %v5638, 4
        %v5641 = vor.u32 %v5640, %v5636
        %v5642 = vrot.slane %v5641, 4
        %v5644 = vshll.u32 %v5473, 16
        %v5646 = vrot.slane %v5644, 5
        %v5647 = vsel %vm433, %v5642, %v5646
        %v5649 = vshrl.u32 %v5474, 16
        %v5651 = vrot.slane %v5649, 4
        %v5652 = vshll.u32 %v5474, 16
        %v5654 = vrot.slane %v5652, 5
        %v5655 = vor.u32 %v5651, %v5654
        %v5656 = vrot.slane %v5655, 4
        %v5658 = vshll.u32 %v5475, 16
        %v5660 = vrot.slane %v5658, 5
        %v5661 = vsel %vm433, %v5656, %v5660
        %v5662 = vshrl.u32 %v5475, 16
        %v5664 = vrot.slane %v5662, 4
        %v5665 = vor.u32 %v5664, %v5660
        %v5666 = vrot.slane %v5665, 4
        %v5668 = vshll.u32 %v5476, 16
        %v5670 = vrot.slane %v5668, 5
        %v5671 = vsel %vm433, %v5666, %v5670
        %v5673 = vshrl.u32 %v5477, 16
        %v5675 = vrot.slane %v5673, 4
        %v5676 = vshll.u32 %v5477, 16
        %v5678 = vrot.slane %v5676, 5
        %v5679 = vor.u32 %v5675, %v5678
        %v5680 = vrot.slane %v5679, 4
        %v5682 = vshll.u32 %v5478, 16
        %v5684 = vrot.slane %v5682, 5
        %v5685 = vsel %vm433, %v5680, %v5684
        %v5686 = vshrl.u32 %v5478, 16
        %v5688 = vrot.slane %v5686, 4
        %v5689 = vor.u32 %v5688, %v5684
        %v5690 = vrot.slane %v5689, 4
        %v5692 = vshll.u32 %v5479, 16
        %v5694 = vrot.slane %v5692, 5
        %v5695 = vsel %vm433, %v5690, %v5694
        %v5697 = vshrl.u32 %v5480, 16
        %v5699 = vrot.slane %v5697, 4
        %v5700 = vshll.u32 %v5480, 16
        %v5702 = vrot.slane %v5700, 5
        %v5703 = vor.u32 %v5699, %v5702
        %v5704 = vrot.slane %v5703, 4
        %v5706 = vshll.u32 %v5481, 16
        %v5708 = vrot.slane %v5706, 5
        %v5709 = vsel %vm433, %v5704, %v5708
        %v5710 = vshrl.u32 %v5481, 16
        %v5712 = vrot.slane %v5710, 4
        %v5713 = vor.u32 %v5712, %v5708
        %v5714 = vrot.slane %v5713, 4
        %v5716 = vshll.u32 %v5482, 16
        %v5718 = vrot.slane %v5716, 5
        %v5719 = vsel %vm433, %v5714, %v5718
        %v5721 = vshrl.u32 %v5483, 16
        %v5723 = vrot.slane %v5721, 4
        %v5724 = vshll.u32 %v5483, 16
        %v5726 = vrot.slane %v5724, 5
        %v5727 = vor.u32 %v5723, %v5726
        %v5728 = vrot.slane %v5727, 4
        %v5730 = vshll.u32 %v5484, 16
        %v5732 = vrot.slane %v5730, 5
        %v5733 = vsel %vm433, %v5728, %v5732
        %v5734 = vshrl.u32 %v5484, 16
        %v5736 = vrot.slane %v5734, 4
        %v5737 = vor.u32 %v5736, %v5732
        %v5738 = vrot.slane %v5737, 4
        %v5740 = vshll.u32 %v5485, 16
        %v5742 = vrot.slane %v5740, 5
        %v5743 = vsel %vm433, %v5738, %v5742
        %v5745 = vshrl.u32 %v5486, 16
        %v5747 = vrot.slane %v5745, 4
        %v5748 = vshll.u32 %v5486, 16
        %v5750 = vrot.slane %v5748, 5
        %v5751 = vor.u32 %v5747, %v5750
        %v5752 = vrot.slane %v5751, 4
        %v5754 = vshll.u32 %v5487, 16
        %v5756 = vrot.slane %v5754, 5
        %v5757 = vsel %vm433, %v5752, %v5756
        %v5758 = vshrl.u32 %v5487, 16
        %v5760 = vrot.slane %v5758, 4
        %v5761 = vor.u32 %v5760, %v5756
        %v5762 = vrot.slane %v5761, 4
        %v5764 = vshll.u32 %v5488, 16
        %v5766 = vrot.slane %v5764, 5
        %v5767 = vsel %vm433, %v5762, %v5766
        %v5769 = vshrl.u32 %v5489, 16
        %v5771 = vrot.slane %v5769, 4
        %v5772 = vshll.u32 %v5489, 16
        %v5774 = vrot.slane %v5772, 5
        %v5775 = vor.u32 %v5771, %v5774
        %v5776 = vrot.slane %v5775, 4
        %v5778 = vshll.u32 %v5490, 16
        %v5780 = vrot.slane %v5778, 5
        %v5781 = vsel %vm433, %v5776, %v5780
        %v5782 = vshrl.u32 %v5490, 16
        %v5784 = vrot.slane %v5782, 4
        %v5785 = vor.u32 %v5784, %v5780
        %v5786 = vrot.slane %v5785, 4
        %v5788 = vshll.u32 %v5491, 16
        %v5790 = vrot.slane %v5788, 5
        %v5791 = vsel %vm433, %v5786, %v5790
        %v5793 = vshrl.u32 %v5492, 16
        %v5795 = vrot.slane %v5793, 4
        %v5796 = vshll.u32 %v5492, 16
        %v5798 = vrot.slane %v5796, 5
        %v5799 = vor.u32 %v5795, %v5798
        %v5800 = vrot.slane %v5799, 4
        %v5802 = vshll.u32 %v5493, 16
        %v5804 = vrot.slane %v5802, 5
        %v5805 = vsel %vm433, %v5800, %v5804
        %v5806 = vshrl.u32 %v5493, 16
        %v5808 = vrot.slane %v5806, 4
        %v5809 = vor.u32 %v5808, %v5804
        %v5810 = vrot.slane %v5809, 4
        %v5812 = vshll.u32 %v5494, 16
        %v5814 = vrot.slane %v5812, 5
        %v5815 = vsel %vm433, %v5810, %v5814
        %v5817 = vshrl.u32 %v5495, 16
        %v5819 = vrot.slane %v5817, 4
        %v5820 = vshll.u32 %v5495, 16
        %v5822 = vrot.slane %v5820, 5
        %v5823 = vor.u32 %v5819, %v5822
        %v5824 = vrot.slane %v5823, 4
        %v5826 = vshll.u32 %v5496, 16
        %v5828 = vrot.slane %v5826, 5
        %v5829 = vsel %vm433, %v5824, %v5828
        %v5830 = vshrl.u32 %v5496, 16
        %v5832 = vrot.slane %v5830, 4
        %v5833 = vor.u32 %v5832, %v5828
        %v5834 = vrot.slane %v5833, 4
        %v5836 = vshll.u32 %v5497, 16
        %v5838 = vrot.slane %v5836, 5
        %v5839 = vsel %vm433, %v5834, %v5838
        %v5841 = vshrl.u32 %v5498, 16
        %v5843 = vrot.slane %v5841, 4
        %v5844 = vshll.u32 %v5498, 16
        %v5846 = vrot.slane %v5844, 5
        %v5847 = vor.u32 %v5843, %v5846
        %v5848 = vrot.slane %v5847, 4
        %v5850 = vshll.u32 %v5499, 16
        %v5852 = vrot.slane %v5850, 5
        %v5853 = vsel %vm433, %v5848, %v5852
        %v5854 = vshrl.u32 %v5499, 16
        %v5856 = vrot.slane %v5854, 4
        %v5857 = vor.u32 %v5856, %v5852
        %v5858 = vrot.slane %v5857, 4
        %v5860 = vshll.u32 %v5500, 16
        %v5862 = vrot.slane %v5860, 5
        %v5863 = vsel %vm433, %v5858, %v5862
        %v5865 = vshrl.u32 %v5501, 16
        %v5867 = vrot.slane %v5865, 4
        %v5868 = vshll.u32 %v5501, 16
        %v5870 = vrot.slane %v5868, 5
        %v5871 = vor.u32 %v5867, %v5870
        %v5872 = vrot.slane %v5871, 4
        %v5874 = vshll.u32 %v5502, 16
        %v5876 = vrot.slane %v5874, 5
        %v5877 = vsel %vm433, %v5872, %v5876
        %v5878 = vshrl.u32 %v5502, 16
        %v5880 = vrot.slane %v5878, 4
        %v5881 = vor.u32 %v5880, %v5876
        %v5882 = vrot.slane %v5881, 4
        %v5884 = vshll.u32 %v5503, 16
        %v5886 = vrot.slane %v5884, 5
        %v5887 = vsel %vm433, %v5882, %v5886
        %v5888 = vunpack.c.l.b16 %v5517
        %v5889 = vunpack.c.l.b16 %v5527
        %v5890 = vunpack.c.l.b16 %v5541
        %v5891 = vunpack.c.l.b16 %v5551
        %v5892 = vunpack.c.l.b16 %v5565
        %v5893 = vunpack.c.l.b16 %v5575
        %v5894 = vunpack.c.l.b16 %v5589
        %v5895 = vunpack.c.l.b16 %v5599
        %v5896 = vunpack.c.l.b16 %v5613
        %v5897 = vunpack.c.l.b16 %v5623
        %v5898 = vunpack.c.l.b16 %v5637
        %v5899 = vunpack.c.l.b16 %v5647
        %v5900 = vunpack.c.l.b16 %v5661
        %v5901 = vunpack.c.l.b16 %v5671
        %v5902 = vunpack.c.l.b16 %v5685
        %v5903 = vunpack.c.l.b16 %v5695
        %v5904 = vunpack.c.l.b16 %v5709
        %v5905 = vunpack.c.l.b16 %v5719
        %v5906 = vunpack.c.l.b16 %v5733
        %v5907 = vunpack.c.l.b16 %v5743
        %v5908 = vunpack.c.l.b16 %v5757
        %v5909 = vunpack.c.l.b16 %v5767
        %v5910 = vunpack.c.l.b16 %v5781
        %v5911 = vunpack.c.l.b16 %v5791
        %v5912 = vunpack.c.l.b16 %v5805
        %v5913 = vunpack.c.l.b16 %v5815
        %v5914 = vunpack.c.l.b16 %v5829
        %v5915 = vunpack.c.l.b16 %v5839
        %v5916 = vunpack.c.l.b16 %v5853
        %v5917 = vunpack.c.l.b16 %v5863
        %v5918 = vunpack.c.l.b16 %v5877
        %v5919 = vunpack.c.l.b16 %v5887
        %v5920 = vpack.c.b16 %v5889, %v5888
        %v5921 = vpack.c.b16 %v5891, %v5890
        %v5922 = vpack.c.b16 %v5893, %v5892
        %v5923 = vpack.c.b16 %v5895, %v5894
        %v5924 = vpack.c.b16 %v5897, %v5896
        %v5925 = vpack.c.b16 %v5899, %v5898
        %v5926 = vpack.c.b16 %v5901, %v5900
        %v5927 = vpack.c.b16 %v5903, %v5902
        %v5928 = vpack.c.b16 %v5905, %v5904
        %v5929 = vpack.c.b16 %v5907, %v5906
        %v5930 = vpack.c.b16 %v5909, %v5908
        %v5931 = vpack.c.b16 %v5911, %v5910
        %v5932 = vpack.c.b16 %v5913, %v5912
        %v5933 = vpack.c.b16 %v5915, %v5914
        %v5934 = vpack.c.b16 %v5917, %v5916
        %v5935 = vpack.c.b16 %v5919, %v5918
        %5952 = vst [vmem:[#allocation2 + $0x8] sm:$0xff] %v5920
        %5953 = vst [vmem:[#allocation2 + $0x50] sm:$0xff] %v5921
        %5954 = vst [vmem:[#allocation2 + $0x98] sm:$0xff] %v5922
        %5955 = vst [vmem:[#allocation2 + $0xe0] sm:$0xff] %v5923
        %5956 = vst [vmem:[#allocation2 + $0x128] sm:$0xff] %v5924
        %5957 = vst [vmem:[#allocation2 + $0x170] sm:$0xff] %v5925
        %5958 = vst [vmem:[#allocation2 + $0x1b8] sm:$0xff] %v5926
        %5959 = vst [vmem:[#allocation2 + $0x200] sm:$0xff] %v5927
        %5960 = vst [vmem:[#allocation2 + $0x248] sm:$0xff] %v5928
        %5961 = vst [vmem:[#allocation2 + $0x290] sm:$0xff] %v5929
        %5962 = vst [vmem:[#allocation2 + $0x2d8] sm:$0xff] %v5930
        %5963 = vst [vmem:[#allocation2 + $0x320] sm:$0xff] %v5931
        %5964 = vst [vmem:[#allocation2 + $0x368] sm:$0xff] %v5932
        %5965 = vst [vmem:[#allocation2 + $0x3b0] sm:$0xff] %v5933
        %5966 = vst [vmem:[#allocation2 + $0x3f8] sm:$0xff] %v5934
        %5967 = vst [vmem:[#allocation2 + $0x440] sm:$0xff] %v5935
        %v5968 = vld [vmem:[#allocation3] sm:$0xe]
        %v5969 = vld [vmem:[#allocation3 + $0x4] sm:$0xf]
        %v5970 = vld [vmem:[#allocation3 + $0x8] sm:$0x1]
        %v5971 = vld [vmem:[#allocation3 + $0xc] sm:$0xe]
        %v5972 = vld [vmem:[#allocation3 + $0x10] sm:$0xf]
        %v5973 = vld [vmem:[#allocation3 + $0x14] sm:$0x1]
        %v5974 = vld [vmem:[#allocation3 + $0x18] sm:$0xe]
        %v5975 = vld [vmem:[#allocation3 + $0x1c] sm:$0xf]
        %v5976 = vld [vmem:[#allocation3 + $0x20] sm:$0x1]
        %v5977 = vld [vmem:[#allocation3 + $0x24] sm:$0xe]
        %v5978 = vld [vmem:[#allocation3 + $0x28] sm:$0xf]
        %v5979 = vld [vmem:[#allocation3 + $0x2c] sm:$0x1]
        %v5980 = vld [vmem:[#allocation3 + $0x30] sm:$0xe]
        %v5981 = vld [vmem:[#allocation3 + $0x34] sm:$0xf]
        %v5982 = vld [vmem:[#allocation3 + $0x38] sm:$0x1]
        %v5983 = vld [vmem:[#allocation3 + $0x3c] sm:$0xe]
        %v5984 = vld [vmem:[#allocation3 + $0x40] sm:$0xf]
        %v5985 = vld [vmem:[#allocation3 + $0x44] sm:$0x1]
        %v5986 = vld [vmem:[#allocation3 + $0x48] sm:$0xe]
        %v5987 = vld [vmem:[#allocation3 + $0x4c] sm:$0xf]
        %v5988 = vld [vmem:[#allocation3 + $0x50] sm:$0x1]
        %v5989 = vld [vmem:[#allocation3 + $0x54] sm:$0xe]
        %v5990 = vld [vmem:[#allocation3 + $0x58] sm:$0xf]
        %v5991 = vld [vmem:[#allocation3 + $0x5c] sm:$0x1]
        %v5992 = vld [vmem:[#allocation3 + $0x60] sm:$0xe]
        %v5993 = vld [vmem:[#allocation3 + $0x64] sm:$0xf]
        %v5994 = vld [vmem:[#allocation3 + $0x68] sm:$0x1]
        %v5995 = vld [vmem:[#allocation3 + $0x6c] sm:$0xe]
        %v5996 = vld [vmem:[#allocation3 + $0x70] sm:$0xf]
        %v5997 = vld [vmem:[#allocation3 + $0x74] sm:$0x1]
        %v5998 = vld [vmem:[#allocation3 + $0x78] sm:$0xe]
        %v5999 = vld [vmem:[#allocation3 + $0x7c] sm:$0xf]
        %v6000 = vld [vmem:[#allocation3 + $0x80] sm:$0x1]
        %v6001 = vld [vmem:[#allocation3 + $0x84] sm:$0xe]
        %v6002 = vld [vmem:[#allocation3 + $0x88] sm:$0xf]
        %v6003 = vld [vmem:[#allocation3 + $0x8c] sm:$0x1]
        %v6004 = vld [vmem:[#allocation3 + $0x90] sm:$0xe]
        %v6005 = vld [vmem:[#allocation3 + $0x94] sm:$0xf]
        %v6006 = vld [vmem:[#allocation3 + $0x98] sm:$0x1]
        %v6007 = vld [vmem:[#allocation3 + $0x9c] sm:$0xe]
        %v6008 = vld [vmem:[#allocation3 + $0xa0] sm:$0xf]
        %v6009 = vld [vmem:[#allocation3 + $0xa4] sm:$0x1]
        %v6010 = vld [vmem:[#allocation3 + $0xa8] sm:$0xe]
        %v6011 = vld [vmem:[#allocation3 + $0xac] sm:$0xf]
        %v6012 = vld [vmem:[#allocation3 + $0xb0] sm:$0x1]
        %v6013 = vld [vmem:[#allocation3 + $0xb4] sm:$0xe]
        %v6014 = vld [vmem:[#allocation3 + $0xb8] sm:$0xf]
        %v6015 = vld [vmem:[#allocation3 + $0xbc] sm:$0x1]
        %v6064 = vrot.slane %v5968, 5
        %v6065 = vrot.slane %v6064, 4
        %v6066 = vrot.slane %v5969, 5
        %v6067 = vsel %vm996, %v6065, %v6066
        %v6068 = vrot.slane %v6066, 4
        %v6069 = vrot.slane %v5970, 5
        %v6070 = vsel %vm996, %v6068, %v6069
        %v6071 = vrot.slane %v5971, 5
        %v6072 = vrot.slane %v6071, 4
        %v6073 = vrot.slane %v5972, 5
        %v6074 = vsel %vm996, %v6072, %v6073
        %v6075 = vrot.slane %v6073, 4
        %v6076 = vrot.slane %v5973, 5
        %v6077 = vsel %vm996, %v6075, %v6076
        %v6078 = vrot.slane %v5974, 5
        %v6079 = vrot.slane %v6078, 4
        %v6080 = vrot.slane %v5975, 5
        %v6081 = vsel %vm996, %v6079, %v6080
        %v6082 = vrot.slane %v6080, 4
        %v6083 = vrot.slane %v5976, 5
        %v6084 = vsel %vm996, %v6082, %v6083
        %v6085 = vrot.slane %v5977, 5
        %v6086 = vrot.slane %v6085, 4
        %v6087 = vrot.slane %v5978, 5
        %v6088 = vsel %vm996, %v6086, %v6087
        %v6089 = vrot.slane %v6087, 4
        %v6090 = vrot.slane %v5979, 5
        %v6091 = vsel %vm996, %v6089, %v6090
        %v6092 = vrot.slane %v5980, 5
        %v6093 = vrot.slane %v6092, 4
        %v6094 = vrot.slane %v5981, 5
        %v6095 = vsel %vm996, %v6093, %v6094
        %v6096 = vrot.slane %v6094, 4
        %v6097 = vrot.slane %v5982, 5
        %v6098 = vsel %vm996, %v6096, %v6097
        %v6099 = vrot.slane %v5983, 5
        %v6100 = vrot.slane %v6099, 4
        %v6101 = vrot.slane %v5984, 5
        %v6102 = vsel %vm996, %v6100, %v6101
        %v6103 = vrot.slane %v6101, 4
        %v6104 = vrot.slane %v5985, 5
        %v6105 = vsel %vm996, %v6103, %v6104
        %v6106 = vrot.slane %v5986, 5
        %v6107 = vrot.slane %v6106, 4
        %v6108 = vrot.slane %v5987, 5
        %v6109 = vsel %vm996, %v6107, %v6108
        %v6110 = vrot.slane %v6108, 4
        %v6111 = vrot.slane %v5988, 5
        %v6112 = vsel %vm996, %v6110, %v6111
        %v6113 = vrot.slane %v5989, 5
        %v6114 = vrot.slane %v6113, 4
        %v6115 = vrot.slane %v5990, 5
        %v6116 = vsel %vm996, %v6114, %v6115
        %v6117 = vrot.slane %v6115, 4
        %v6118 = vrot.slane %v5991, 5
        %v6119 = vsel %vm996, %v6117, %v6118
        %v6120 = vrot.slane %v5992, 5
        %v6121 = vrot.slane %v6120, 4
        %v6122 = vrot.slane %v5993, 5
        %v6123 = vsel %vm996, %v6121, %v6122
        %v6124 = vrot.slane %v6122, 4
        %v6125 = vrot.slane %v5994, 5
        %v6126 = vsel %vm996, %v6124, %v6125
        %v6127 = vrot.slane %v5995, 5
        %v6128 = vrot.slane %v6127, 4
        %v6129 = vrot.slane %v5996, 5
        %v6130 = vsel %vm996, %v6128, %v6129
        %v6131 = vrot.slane %v6129, 4
        %v6132 = vrot.slane %v5997, 5
        %v6133 = vsel %vm996, %v6131, %v6132
        %v6134 = vrot.slane %v5998, 5
        %v6135 = vrot.slane %v6134, 4
        %v6136 = vrot.slane %v5999, 5
        %v6137 = vsel %vm996, %v6135, %v6136
        %v6138 = vrot.slane %v6136, 4
        %v6139 = vrot.slane %v6000, 5
        %v6140 = vsel %vm996, %v6138, %v6139
        %v6141 = vrot.slane %v6001, 5
        %v6142 = vrot.slane %v6141, 4
        %v6143 = vrot.slane %v6002, 5
        %v6144 = vsel %vm996, %v6142, %v6143
        %v6145 = vrot.slane %v6143, 4
        %v6146 = vrot.slane %v6003, 5
        %v6147 = vsel %vm996, %v6145, %v6146
        %v6148 = vrot.slane %v6004, 5
        %v6149 = vrot.slane %v6148, 4
        %v6150 = vrot.slane %v6005, 5
        %v6151 = vsel %vm996, %v6149, %v6150
        %v6152 = vrot.slane %v6150, 4
        %v6153 = vrot.slane %v6006, 5
        %v6154 = vsel %vm996, %v6152, %v6153
        %v6155 = vrot.slane %v6007, 5
        %v6156 = vrot.slane %v6155, 4
        %v6157 = vrot.slane %v6008, 5
        %v6158 = vsel %vm996, %v6156, %v6157
        %v6159 = vrot.slane %v6157, 4
        %v6160 = vrot.slane %v6009, 5
        %v6161 = vsel %vm996, %v6159, %v6160
        %v6162 = vrot.slane %v6010, 5
        %v6163 = vrot.slane %v6162, 4
        %v6164 = vrot.slane %v6011, 5
        %v6165 = vsel %vm996, %v6163, %v6164
        %v6166 = vrot.slane %v6164, 4
        %v6167 = vrot.slane %v6012, 5
        %v6168 = vsel %vm996, %v6166, %v6167
        %v6169 = vrot.slane %v6013, 5
        %v6170 = vrot.slane %v6169, 4
        %v6171 = vrot.slane %v6014, 5
        %v6172 = vsel %vm996, %v6170, %v6171
        %v6173 = vrot.slane %v6171, 4
        %v6174 = vrot.slane %v6015, 5
        %v6175 = vsel %vm996, %v6173, %v6174
        %v6176 = vunpack.c.l.b16 %v6067
        %v6177 = vunpack.c.l.b16 %v6070
        %v6178 = vunpack.c.l.b16 %v6074
        %v6179 = vunpack.c.l.b16 %v6077
        %v6180 = vunpack.c.l.b16 %v6081
        %v6181 = vunpack.c.l.b16 %v6084
        %v6182 = vunpack.c.l.b16 %v6088
        %v6183 = vunpack.c.l.b16 %v6091
        %v6184 = vunpack.c.l.b16 %v6095
        %v6185 = vunpack.c.l.b16 %v6098
        %v6186 = vunpack.c.l.b16 %v6102
        %v6187 = vunpack.c.l.b16 %v6105
        %v6188 = vunpack.c.l.b16 %v6109
        %v6189 = vunpack.c.l.b16 %v6112
        %v6190 = vunpack.c.l.b16 %v6116
        %v6191 = vunpack.c.l.b16 %v6119
        %v6192 = vunpack.c.l.b16 %v6123
        %v6193 = vunpack.c.l.b16 %v6126
        %v6194 = vunpack.c.l.b16 %v6130
        %v6195 = vunpack.c.l.b16 %v6133
        %v6196 = vunpack.c.l.b16 %v6137
        %v6197 = vunpack.c.l.b16 %v6140
        %v6198 = vunpack.c.l.b16 %v6144
        %v6199 = vunpack.c.l.b16 %v6147
        %v6200 = vunpack.c.l.b16 %v6151
        %v6201 = vunpack.c.l.b16 %v6154
        %v6202 = vunpack.c.l.b16 %v6158
        %v6203 = vunpack.c.l.b16 %v6161
        %v6204 = vunpack.c.l.b16 %v6165
        %v6205 = vunpack.c.l.b16 %v6168
        %v6206 = vunpack.c.l.b16 %v6172
        %v6207 = vunpack.c.l.b16 %v6175
        %v6208 = vpack.c.b16 %v6177, %v6176
        %v6209 = vpack.c.b16 %v6179, %v6178
        %v6210 = vpack.c.b16 %v6181, %v6180
        %v6211 = vpack.c.b16 %v6183, %v6182
        %v6212 = vpack.c.b16 %v6185, %v6184
        %v6213 = vpack.c.b16 %v6187, %v6186
        %v6214 = vpack.c.b16 %v6189, %v6188
        %v6215 = vpack.c.b16 %v6191, %v6190
        %v6216 = vpack.c.b16 %v6193, %v6192
        %v6217 = vpack.c.b16 %v6195, %v6194
        %v6218 = vpack.c.b16 %v6197, %v6196
        %v6219 = vpack.c.b16 %v6199, %v6198
        %v6220 = vpack.c.b16 %v6201, %v6200
        %v6221 = vpack.c.b16 %v6203, %v6202
        %v6222 = vpack.c.b16 %v6205, %v6204
        %v6223 = vpack.c.b16 %v6207, %v6206
        %6240 = vst [vmem:[#allocation2 + $0x10] sm:$0xff] %v6208
        %6241 = vst [vmem:[#allocation2 + $0x58] sm:$0xff] %v6209
        %6242 = vst [vmem:[#allocation2 + $0xa0] sm:$0xff] %v6210
        %6243 = vst [vmem:[#allocation2 + $0xe8] sm:$0xff] %v6211
        %6244 = vst [vmem:[#allocation2 + $0x130] sm:$0xff] %v6212
        %6245 = vst [vmem:[#allocation2 + $0x178] sm:$0xff] %v6213
        %6246 = vst [vmem:[#allocation2 + $0x1c0] sm:$0xff] %v6214
        %6247 = vst [vmem:[#allocation2 + $0x208] sm:$0xff] %v6215
        %6248 = vst [vmem:[#allocation2 + $0x250] sm:$0xff] %v6216
        %6249 = vst [vmem:[#allocation2 + $0x298] sm:$0xff] %v6217
        %6250 = vst [vmem:[#allocation2 + $0x2e0] sm:$0xff] %v6218
        %6251 = vst [vmem:[#allocation2 + $0x328] sm:$0xff] %v6219
        %6252 = vst [vmem:[#allocation2 + $0x370] sm:$0xff] %v6220
        %6253 = vst [vmem:[#allocation2 + $0x3b8] sm:$0xff] %v6221
        %6254 = vst [vmem:[#allocation2 + $0x400] sm:$0xff] %v6222
        %6255 = vst [vmem:[#allocation2 + $0x448] sm:$0xff] %v6223
        %v6256 = vld [vmem:[%s5197] sm:$0xf]
        %v6257 = vld [vmem:[%s5197 + $0x4] sm:$0xf]
        %v6258 = vld [vmem:[%s5197 + $0xc] sm:$0xf]
        %v6259 = vld [vmem:[%s5197 + $0x10] sm:$0xf]
        %v6260 = vld [vmem:[%s5197 + $0x18] sm:$0xf]
        %v6261 = vld [vmem:[%s5197 + $0x1c] sm:$0xf]
        %v6262 = vld [vmem:[%s5197 + $0x24] sm:$0xf]
        %v6263 = vld [vmem:[%s5197 + $0x28] sm:$0xf]
        %v6264 = vld [vmem:[%s5197 + $0x30] sm:$0xf]
        %v6265 = vld [vmem:[%s5197 + $0x34] sm:$0xf]
        %v6266 = vld [vmem:[%s5197 + $0x3c] sm:$0xf]
        %v6267 = vld [vmem:[%s5197 + $0x40] sm:$0xf]
        %v6268 = vld [vmem:[%s5197 + $0x48] sm:$0xf]
        %v6269 = vld [vmem:[%s5197 + $0x4c] sm:$0xf]
        %v6270 = vld [vmem:[%s5197 + $0x54] sm:$0xf]
        %v6271 = vld [vmem:[%s5197 + $0x58] sm:$0xf]
        %v6272 = vld [vmem:[%s5197 + $0x60] sm:$0xf]
        %v6273 = vld [vmem:[%s5197 + $0x64] sm:$0xf]
        %v6274 = vld [vmem:[%s5197 + $0x6c] sm:$0xf]
        %v6275 = vld [vmem:[%s5197 + $0x70] sm:$0xf]
        %v6276 = vld [vmem:[%s5197 + $0x78] sm:$0xf]
        %v6277 = vld [vmem:[%s5197 + $0x7c] sm:$0xf]
        %v6278 = vld [vmem:[%s5197 + $0x84] sm:$0xf]
        %v6279 = vld [vmem:[%s5197 + $0x88] sm:$0xf]
        %v6280 = vld [vmem:[%s5197 + $0x90] sm:$0xf]
        %v6281 = vld [vmem:[%s5197 + $0x94] sm:$0xf]
        %v6282 = vld [vmem:[%s5197 + $0x9c] sm:$0xf]
        %v6283 = vld [vmem:[%s5197 + $0xa0] sm:$0xf]
        %v6284 = vld [vmem:[%s5197 + $0xa8] sm:$0xf]
        %v6285 = vld [vmem:[%s5197 + $0xac] sm:$0xf]
        %v6286 = vld [vmem:[%s5197 + $0xb4] sm:$0xf]
        %v6287 = vld [vmem:[%s5197 + $0xb8] sm:$0xf]
        %v6320 = vunpack.c.l.b16 %v6256
        %v6321 = vunpack.c.l.b16 %v6257
        %v6322 = vunpack.c.l.b16 %v6258
        %v6323 = vunpack.c.l.b16 %v6259
        %v6324 = vunpack.c.l.b16 %v6260
        %v6325 = vunpack.c.l.b16 %v6261
        %v6326 = vunpack.c.l.b16 %v6262
        %v6327 = vunpack.c.l.b16 %v6263
        %v6328 = vunpack.c.l.b16 %v6264
        %v6329 = vunpack.c.l.b16 %v6265
        %v6330 = vunpack.c.l.b16 %v6266
        %v6331 = vunpack.c.l.b16 %v6267
        %v6332 = vunpack.c.l.b16 %v6268
        %v6333 = vunpack.c.l.b16 %v6269
        %v6334 = vunpack.c.l.b16 %v6270
        %v6335 = vunpack.c.l.b16 %v6271
        %v6336 = vunpack.c.l.b16 %v6272
        %v6337 = vunpack.c.l.b16 %v6273
        %v6338 = vunpack.c.l.b16 %v6274
        %v6339 = vunpack.c.l.b16 %v6275
        %v6340 = vunpack.c.l.b16 %v6276
        %v6341 = vunpack.c.l.b16 %v6277
        %v6342 = vunpack.c.l.b16 %v6278
        %v6343 = vunpack.c.l.b16 %v6279
        %v6344 = vunpack.c.l.b16 %v6280
        %v6345 = vunpack.c.l.b16 %v6281
        %v6346 = vunpack.c.l.b16 %v6282
        %v6347 = vunpack.c.l.b16 %v6283
        %v6348 = vunpack.c.l.b16 %v6284
        %v6349 = vunpack.c.l.b16 %v6285
        %v6350 = vunpack.c.l.b16 %v6286
        %v6351 = vunpack.c.l.b16 %v6287
        %v6352 = vpack.c.b16 %v6321, %v6320
        %v6353 = vpack.c.b16 %v6323, %v6322
        %v6354 = vpack.c.b16 %v6325, %v6324
        %v6355 = vpack.c.b16 %v6327, %v6326
        %v6356 = vpack.c.b16 %v6329, %v6328
        %v6357 = vpack.c.b16 %v6331, %v6330
        %v6358 = vpack.c.b16 %v6333, %v6332
        %v6359 = vpack.c.b16 %v6335, %v6334
        %v6360 = vpack.c.b16 %v6337, %v6336
        %v6361 = vpack.c.b16 %v6339, %v6338
        %v6362 = vpack.c.b16 %v6341, %v6340
        %v6363 = vpack.c.b16 %v6343, %v6342
        %v6364 = vpack.c.b16 %v6345, %v6344
        %v6365 = vpack.c.b16 %v6347, %v6346
        %v6366 = vpack.c.b16 %v6349, %v6348
        %v6367 = vpack.c.b16 %v6351, %v6350
        %6384 = vst [vmem:[#allocation2 + $0x18] sm:$0xff] %v6352
        %6385 = vst [vmem:[#allocation2 + $0x60] sm:$0xff] %v6353
        %6386 = vst [vmem:[#allocation2 + $0xa8] sm:$0xff] %v6354
        %6387 = vst [vmem:[#allocation2 + $0xf0] sm:$0xff] %v6355
        %6388 = vst [vmem:[#allocation2 + $0x138] sm:$0xff] %v6356
        %6389 = vst [vmem:[#allocation2 + $0x180] sm:$0xff] %v6357
        %6390 = vst [vmem:[#allocation2 + $0x1c8] sm:$0xff] %v6358
        %6391 = vst [vmem:[#allocation2 + $0x210] sm:$0xff] %v6359
        %6392 = vst [vmem:[#allocation2 + $0x258] sm:$0xff] %v6360
        %6393 = vst [vmem:[#allocation2 + $0x2a0] sm:$0xff] %v6361
        %6394 = vst [vmem:[#allocation2 + $0x2e8] sm:$0xff] %v6362
        %6395 = vst [vmem:[#allocation2 + $0x330] sm:$0xff] %v6363
        %6396 = vst [vmem:[#allocation2 + $0x378] sm:$0xff] %v6364
        %6397 = vst [vmem:[#allocation2 + $0x3c0] sm:$0xff] %v6365
        %6398 = vst [vmem:[#allocation2 + $0x408] sm:$0xff] %v6366
        %6399 = vst [vmem:[#allocation2 + $0x450] sm:$0xff] %v6367
        %v6400 = vld [vmem:[%s5197] sm:$0xf]
        %v6401 = vld [vmem:[%s5197 + $0x4] sm:$0xf]
        %v6402 = vld [vmem:[%s5197 + $0x8] sm:$0x1]
        %v6403 = vld [vmem:[%s5197 + $0xc] sm:$0xf]
        %v6404 = vld [vmem:[%s5197 + $0x10] sm:$0xf]
        %v6405 = vld [vmem:[%s5197 + $0x14] sm:$0x1]
        %v6406 = vld [vmem:[%s5197 + $0x18] sm:$0xf]
        %v6407 = vld [vmem:[%s5197 + $0x1c] sm:$0xf]
        %v6408 = vld [vmem:[%s5197 + $0x20] sm:$0x1]
        %v6409 = vld [vmem:[%s5197 + $0x24] sm:$0xf]
        %v6410 = vld [vmem:[%s5197 + $0x28] sm:$0xf]
        %v6411 = vld [vmem:[%s5197 + $0x2c] sm:$0x1]
        %v6412 = vld [vmem:[%s5197 + $0x30] sm:$0xf]
        %v6413 = vld [vmem:[%s5197 + $0x34] sm:$0xf]
        %v6414 = vld [vmem:[%s5197 + $0x38] sm:$0x1]
        %v6415 = vld [vmem:[%s5197 + $0x3c] sm:$0xf]
        %v6416 = vld [vmem:[%s5197 + $0x40] sm:$0xf]
        %v6417 = vld [vmem:[%s5197 + $0x44] sm:$0x1]
        %v6418 = vld [vmem:[%s5197 + $0x48] sm:$0xf]
        %v6419 = vld [vmem:[%s5197 + $0x4c] sm:$0xf]
        %v6420 = vld [vmem:[%s5197 + $0x50] sm:$0x1]
        %v6421 = vld [vmem:[%s5197 + $0x54] sm:$0xf]
        %v6422 = vld [vmem:[%s5197 + $0x58] sm:$0xf]
        %v6423 = vld [vmem:[%s5197 + $0x5c] sm:$0x1]
        %v6424 = vld [vmem:[%s5197 + $0x60] sm:$0xf]
        %v6425 = vld [vmem:[%s5197 + $0x64] sm:$0xf]
        %v6426 = vld [vmem:[%s5197 + $0x68] sm:$0x1]
        %v6427 = vld [vmem:[%s5197 + $0x6c] sm:$0xf]
        %v6428 = vld [vmem:[%s5197 + $0x70] sm:$0xf]
        %v6429 = vld [vmem:[%s5197 + $0x74] sm:$0x1]
        %v6430 = vld [vmem:[%s5197 + $0x78] sm:$0xf]
        %v6431 = vld [vmem:[%s5197 + $0x7c] sm:$0xf]
        %v6432 = vld [vmem:[%s5197 + $0x80] sm:$0x1]
        %v6433 = vld [vmem:[%s5197 + $0x84] sm:$0xf]
        %v6434 = vld [vmem:[%s5197 + $0x88] sm:$0xf]
        %v6435 = vld [vmem:[%s5197 + $0x8c] sm:$0x1]
        %v6436 = vld [vmem:[%s5197 + $0x90] sm:$0xf]
        %v6437 = vld [vmem:[%s5197 + $0x94] sm:$0xf]
        %v6438 = vld [vmem:[%s5197 + $0x98] sm:$0x1]
        %v6439 = vld [vmem:[%s5197 + $0x9c] sm:$0xf]
        %v6440 = vld [vmem:[%s5197 + $0xa0] sm:$0xf]
        %v6441 = vld [vmem:[%s5197 + $0xa4] sm:$0x1]
        %v6442 = vld [vmem:[%s5197 + $0xa8] sm:$0xf]
        %v6443 = vld [vmem:[%s5197 + $0xac] sm:$0xf]
        %v6444 = vld [vmem:[%s5197 + $0xb0] sm:$0x1]
        %v6445 = vld [vmem:[%s5197 + $0xb4] sm:$0xf]
        %v6446 = vld [vmem:[%s5197 + $0xb8] sm:$0xf]
        %v6447 = vld [vmem:[%s5197 + $0xbc] sm:$0x1]
        %v6449 = vshrl.u32 %v6400, 16
        %v6451 = vrot.slane %v6449, 4
        %v6452 = vshll.u32 %v6400, 16
        %v6454 = vrot.slane %v6452, 5
        %v6455 = vor.u32 %v6451, %v6454
        %v6456 = vrot.slane %v6455, 4
        %v6458 = vshll.u32 %v6401, 16
        %v6460 = vrot.slane %v6458, 5
        %v6461 = vsel %vm433, %v6456, %v6460
        %v6462 = vshrl.u32 %v6401, 16
        %v6464 = vrot.slane %v6462, 4
        %v6465 = vor.u32 %v6464, %v6460
        %v6466 = vrot.slane %v6465, 4
        %v6468 = vshll.u32 %v6402, 16
        %v6470 = vrot.slane %v6468, 5
        %v6471 = vsel %vm433, %v6466, %v6470
        %v6473 = vshrl.u32 %v6403, 16
        %v6475 = vrot.slane %v6473, 4
        %v6476 = vshll.u32 %v6403, 16
        %v6478 = vrot.slane %v6476, 5
        %v6479 = vor.u32 %v6475, %v6478
        %v6480 = vrot.slane %v6479, 4
        %v6482 = vshll.u32 %v6404, 16
        %v6484 = vrot.slane %v6482, 5
        %v6485 = vsel %vm433, %v6480, %v6484
        %v6486 = vshrl.u32 %v6404, 16
        %v6488 = vrot.slane %v6486, 4
        %v6489 = vor.u32 %v6488, %v6484
        %v6490 = vrot.slane %v6489, 4
        %v6492 = vshll.u32 %v6405, 16
        %v6494 = vrot.slane %v6492, 5
        %v6495 = vsel %vm433, %v6490, %v6494
        %v6497 = vshrl.u32 %v6406, 16
        %v6499 = vrot.slane %v6497, 4
        %v6500 = vshll.u32 %v6406, 16
        %v6502 = vrot.slane %v6500, 5
        %v6503 = vor.u32 %v6499, %v6502
        %v6504 = vrot.slane %v6503, 4
        %v6506 = vshll.u32 %v6407, 16
        %v6508 = vrot.slane %v6506, 5
        %v6509 = vsel %vm433, %v6504, %v6508
        %v6510 = vshrl.u32 %v6407, 16
        %v6512 = vrot.slane %v6510, 4
        %v6513 = vor.u32 %v6512, %v6508
        %v6514 = vrot.slane %v6513, 4
        %v6516 = vshll.u32 %v6408, 16
        %v6518 = vrot.slane %v6516, 5
        %v6519 = vsel %vm433, %v6514, %v6518
        %v6521 = vshrl.u32 %v6409, 16
        %v6523 = vrot.slane %v6521, 4
        %v6524 = vshll.u32 %v6409, 16
        %v6526 = vrot.slane %v6524, 5
        %v6527 = vor.u32 %v6523, %v6526
        %v6528 = vrot.slane %v6527, 4
        %v6530 = vshll.u32 %v6410, 16
        %v6532 = vrot.slane %v6530, 5
        %v6533 = vsel %vm433, %v6528, %v6532
        %v6534 = vshrl.u32 %v6410, 16
        %v6536 = vrot.slane %v6534, 4
        %v6537 = vor.u32 %v6536, %v6532
        %v6538 = vrot.slane %v6537, 4
        %v6540 = vshll.u32 %v6411, 16
        %v6542 = vrot.slane %v6540, 5
        %v6543 = vsel %vm433, %v6538, %v6542
        %v6545 = vshrl.u32 %v6412, 16
        %v6547 = vrot.slane %v6545, 4
        %v6548 = vshll.u32 %v6412, 16
        %v6550 = vrot.slane %v6548, 5
        %v6551 = vor.u32 %v6547, %v6550
        %v6552 = vrot.slane %v6551, 4
        %v6554 = vshll.u32 %v6413, 16
        %v6556 = vrot.slane %v6554, 5
        %v6557 = vsel %vm433, %v6552, %v6556
        %v6558 = vshrl.u32 %v6413, 16
        %v6560 = vrot.slane %v6558, 4
        %v6561 = vor.u32 %v6560, %v6556
        %v6562 = vrot.slane %v6561, 4
        %v6564 = vshll.u32 %v6414, 16
        %v6566 = vrot.slane %v6564, 5
        %v6567 = vsel %vm433, %v6562, %v6566
        %v6569 = vshrl.u32 %v6415, 16
        %v6571 = vrot.slane %v6569, 4
        %v6572 = vshll.u32 %v6415, 16
        %v6574 = vrot.slane %v6572, 5
        %v6575 = vor.u32 %v6571, %v6574
        %v6576 = vrot.slane %v6575, 4
        %v6578 = vshll.u32 %v6416, 16
        %v6580 = vrot.slane %v6578, 5
        %v6581 = vsel %vm433, %v6576, %v6580
        %v6582 = vshrl.u32 %v6416, 16
        %v6584 = vrot.slane %v6582, 4
        %v6585 = vor.u32 %v6584, %v6580
        %v6586 = vrot.slane %v6585, 4
        %v6588 = vshll.u32 %v6417, 16
        %v6590 = vrot.slane %v6588, 5
        %v6591 = vsel %vm433, %v6586, %v6590
        %v6593 = vshrl.u32 %v6418, 16
        %v6595 = vrot.slane %v6593, 4
        %v6596 = vshll.u32 %v6418, 16
        %v6598 = vrot.slane %v6596, 5
        %v6599 = vor.u32 %v6595, %v6598
        %v6600 = vrot.slane %v6599, 4
        %v6602 = vshll.u32 %v6419, 16
        %v6604 = vrot.slane %v6602, 5
        %v6605 = vsel %vm433, %v6600, %v6604
        %v6606 = vshrl.u32 %v6419, 16
        %v6608 = vrot.slane %v6606, 4
        %v6609 = vor.u32 %v6608, %v6604
        %v6610 = vrot.slane %v6609, 4
        %v6612 = vshll.u32 %v6420, 16
        %v6614 = vrot.slane %v6612, 5
        %v6615 = vsel %vm433, %v6610, %v6614
        %v6617 = vshrl.u32 %v6421, 16
        %v6619 = vrot.slane %v6617, 4
        %v6620 = vshll.u32 %v6421, 16
        %v6622 = vrot.slane %v6620, 5
        %v6623 = vor.u32 %v6619, %v6622
        %v6624 = vrot.slane %v6623, 4
        %v6626 = vshll.u32 %v6422, 16
        %v6628 = vrot.slane %v6626, 5
        %v6629 = vsel %vm433, %v6624, %v6628
        %v6630 = vshrl.u32 %v6422, 16
        %v6632 = vrot.slane %v6630, 4
        %v6633 = vor.u32 %v6632, %v6628
        %v6634 = vrot.slane %v6633, 4
        %v6636 = vshll.u32 %v6423, 16
        %v6638 = vrot.slane %v6636, 5
        %v6639 = vsel %vm433, %v6634, %v6638
        %v6641 = vshrl.u32 %v6424, 16
        %v6643 = vrot.slane %v6641, 4
        %v6644 = vshll.u32 %v6424, 16
        %v6646 = vrot.slane %v6644, 5
        %v6647 = vor.u32 %v6643, %v6646
        %v6648 = vrot.slane %v6647, 4
        %v6650 = vshll.u32 %v6425, 16
        %v6652 = vrot.slane %v6650, 5
        %v6653 = vsel %vm433, %v6648, %v6652
        %v6654 = vshrl.u32 %v6425, 16
        %v6656 = vrot.slane %v6654, 4
        %v6657 = vor.u32 %v6656, %v6652
        %v6658 = vrot.slane %v6657, 4
        %v6660 = vshll.u32 %v6426, 16
        %v6662 = vrot.slane %v6660, 5
        %v6663 = vsel %vm433, %v6658, %v6662
        %v6665 = vshrl.u32 %v6427, 16
        %v6667 = vrot.slane %v6665, 4
        %v6668 = vshll.u32 %v6427, 16
        %v6670 = vrot.slane %v6668, 5
        %v6671 = vor.u32 %v6667, %v6670
        %v6672 = vrot.slane %v6671, 4
        %v6674 = vshll.u32 %v6428, 16
        %v6676 = vrot.slane %v6674, 5
        %v6677 = vsel %vm433, %v6672, %v6676
        %v6678 = vshrl.u32 %v6428, 16
        %v6680 = vrot.slane %v6678, 4
        %v6681 = vor.u32 %v6680, %v6676
        %v6682 = vrot.slane %v6681, 4
        %v6684 = vshll.u32 %v6429, 16
        %v6686 = vrot.slane %v6684, 5
        %v6687 = vsel %vm433, %v6682, %v6686
        %v6689 = vshrl.u32 %v6430, 16
        %v6691 = vrot.slane %v6689, 4
        %v6692 = vshll.u32 %v6430, 16
        %v6694 = vrot.slane %v6692, 5
        %v6695 = vor.u32 %v6691, %v6694
        %v6696 = vrot.slane %v6695, 4
        %v6698 = vshll.u32 %v6431, 16
        %v6700 = vrot.slane %v6698, 5
        %v6701 = vsel %vm433, %v6696, %v6700
        %v6702 = vshrl.u32 %v6431, 16
        %v6704 = vrot.slane %v6702, 4
        %v6705 = vor.u32 %v6704, %v6700
        %v6706 = vrot.slane %v6705, 4
        %v6708 = vshll.u32 %v6432, 16
        %v6710 = vrot.slane %v6708, 5
        %v6711 = vsel %vm433, %v6706, %v6710
        %v6713 = vshrl.u32 %v6433, 16
        %v6715 = vrot.slane %v6713, 4
        %v6716 = vshll.u32 %v6433, 16
        %v6718 = vrot.slane %v6716, 5
        %v6719 = vor.u32 %v6715, %v6718
        %v6720 = vrot.slane %v6719, 4
        %v6722 = vshll.u32 %v6434, 16
        %v6724 = vrot.slane %v6722, 5
        %v6725 = vsel %vm433, %v6720, %v6724
        %v6726 = vshrl.u32 %v6434, 16
        %v6728 = vrot.slane %v6726, 4
        %v6729 = vor.u32 %v6728, %v6724
        %v6730 = vrot.slane %v6729, 4
        %v6732 = vshll.u32 %v6435, 16
        %v6734 = vrot.slane %v6732, 5
        %v6735 = vsel %vm433, %v6730, %v6734
        %v6737 = vshrl.u32 %v6436, 16
        %v6739 = vrot.slane %v6737, 4
        %v6740 = vshll.u32 %v6436, 16
        %v6742 = vrot.slane %v6740, 5
        %v6743 = vor.u32 %v6739, %v6742
        %v6744 = vrot.slane %v6743, 4
        %v6746 = vshll.u32 %v6437, 16
        %v6748 = vrot.slane %v6746, 5
        %v6749 = vsel %vm433, %v6744, %v6748
        %v6750 = vshrl.u32 %v6437, 16
        %v6752 = vrot.slane %v6750, 4
        %v6753 = vor.u32 %v6752, %v6748
        %v6754 = vrot.slane %v6753, 4
        %v6756 = vshll.u32 %v6438, 16
        %v6758 = vrot.slane %v6756, 5
        %v6759 = vsel %vm433, %v6754, %v6758
        %v6761 = vshrl.u32 %v6439, 16
        %v6763 = vrot.slane %v6761, 4
        %v6764 = vshll.u32 %v6439, 16
        %v6766 = vrot.slane %v6764, 5
        %v6767 = vor.u32 %v6763, %v6766
        %v6768 = vrot.slane %v6767, 4
        %v6770 = vshll.u32 %v6440, 16
        %v6772 = vrot.slane %v6770, 5
        %v6773 = vsel %vm433, %v6768, %v6772
        %v6774 = vshrl.u32 %v6440, 16
        %v6776 = vrot.slane %v6774, 4
        %v6777 = vor.u32 %v6776, %v6772
        %v6778 = vrot.slane %v6777, 4
        %v6780 = vshll.u32 %v6441, 16
        %v6782 = vrot.slane %v6780, 5
        %v6783 = vsel %vm433, %v6778, %v6782
        %v6785 = vshrl.u32 %v6442, 16
        %v6787 = vrot.slane %v6785, 4
        %v6788 = vshll.u32 %v6442, 16
        %v6790 = vrot.slane %v6788, 5
        %v6791 = vor.u32 %v6787, %v6790
        %v6792 = vrot.slane %v6791, 4
        %v6794 = vshll.u32 %v6443, 16
        %v6796 = vrot.slane %v6794, 5
        %v6797 = vsel %vm433, %v6792, %v6796
        %v6798 = vshrl.u32 %v6443, 16
        %v6800 = vrot.slane %v6798, 4
        %v6801 = vor.u32 %v6800, %v6796
        %v6802 = vrot.slane %v6801, 4
        %v6804 = vshll.u32 %v6444, 16
        %v6806 = vrot.slane %v6804, 5
        %v6807 = vsel %vm433, %v6802, %v6806
        %v6809 = vshrl.u32 %v6445, 16
        %v6811 = vrot.slane %v6809, 4
        %v6812 = vshll.u32 %v6445, 16
        %v6814 = vrot.slane %v6812, 5
        %v6815 = vor.u32 %v6811, %v6814
        %v6816 = vrot.slane %v6815, 4
        %v6818 = vshll.u32 %v6446, 16
        %v6820 = vrot.slane %v6818, 5
        %v6821 = vsel %vm433, %v6816, %v6820
        %v6822 = vshrl.u32 %v6446, 16
        %v6824 = vrot.slane %v6822, 4
        %v6825 = vor.u32 %v6824, %v6820
        %v6826 = vrot.slane %v6825, 4
        %v6828 = vshll.u32 %v6447, 16
        %v6830 = vrot.slane %v6828, 5
        %v6831 = vsel %vm433, %v6826, %v6830
        %v6832 = vunpack.c.l.b16 %v6461
        %v6833 = vunpack.c.l.b16 %v6471
        %v6834 = vunpack.c.l.b16 %v6485
        %v6835 = vunpack.c.l.b16 %v6495
        %v6836 = vunpack.c.l.b16 %v6509
        %v6837 = vunpack.c.l.b16 %v6519
        %v6838 = vunpack.c.l.b16 %v6533
        %v6839 = vunpack.c.l.b16 %v6543
        %v6840 = vunpack.c.l.b16 %v6557
        %v6841 = vunpack.c.l.b16 %v6567
        %v6842 = vunpack.c.l.b16 %v6581
        %v6843 = vunpack.c.l.b16 %v6591
        %v6844 = vunpack.c.l.b16 %v6605
        %v6845 = vunpack.c.l.b16 %v6615
        %v6846 = vunpack.c.l.b16 %v6629
        %v6847 = vunpack.c.l.b16 %v6639
        %v6848 = vunpack.c.l.b16 %v6653
        %v6849 = vunpack.c.l.b16 %v6663
        %v6850 = vunpack.c.l.b16 %v6677
        %v6851 = vunpack.c.l.b16 %v6687
        %v6852 = vunpack.c.l.b16 %v6701
        %v6853 = vunpack.c.l.b16 %v6711
        %v6854 = vunpack.c.l.b16 %v6725
        %v6855 = vunpack.c.l.b16 %v6735
        %v6856 = vunpack.c.l.b16 %v6749
        %v6857 = vunpack.c.l.b16 %v6759
        %v6858 = vunpack.c.l.b16 %v6773
        %v6859 = vunpack.c.l.b16 %v6783
        %v6860 = vunpack.c.l.b16 %v6797
        %v6861 = vunpack.c.l.b16 %v6807
        %v6862 = vunpack.c.l.b16 %v6821
        %v6863 = vunpack.c.l.b16 %v6831
        %v6864 = vpack.c.b16 %v6833, %v6832
        %v6865 = vpack.c.b16 %v6835, %v6834
        %v6866 = vpack.c.b16 %v6837, %v6836
        %v6867 = vpack.c.b16 %v6839, %v6838
        %v6868 = vpack.c.b16 %v6841, %v6840
        %v6869 = vpack.c.b16 %v6843, %v6842
        %v6870 = vpack.c.b16 %v6845, %v6844
        %v6871 = vpack.c.b16 %v6847, %v6846
        %v6872 = vpack.c.b16 %v6849, %v6848
        %v6873 = vpack.c.b16 %v6851, %v6850
        %v6874 = vpack.c.b16 %v6853, %v6852
        %v6875 = vpack.c.b16 %v6855, %v6854
        %v6876 = vpack.c.b16 %v6857, %v6856
        %v6877 = vpack.c.b16 %v6859, %v6858
        %v6878 = vpack.c.b16 %v6861, %v6860
        %v6879 = vpack.c.b16 %v6863, %v6862
        %6896 = vst [vmem:[#allocation2 + $0x20] sm:$0xff] %v6864
        %6897 = vst [vmem:[#allocation2 + $0x68] sm:$0xff] %v6865
        %6898 = vst [vmem:[#allocation2 + $0xb0] sm:$0xff] %v6866
        %6899 = vst [vmem:[#allocation2 + $0xf8] sm:$0xff] %v6867
        %6900 = vst [vmem:[#allocation2 + $0x140] sm:$0xff] %v6868
        %6901 = vst [vmem:[#allocation2 + $0x188] sm:$0xff] %v6869
        %6902 = vst [vmem:[#allocation2 + $0x1d0] sm:$0xff] %v6870
        %6903 = vst [vmem:[#allocation2 + $0x218] sm:$0xff] %v6871
        %6904 = vst [vmem:[#allocation2 + $0x260] sm:$0xff] %v6872
        %6905 = vst [vmem:[#allocation2 + $0x2a8] sm:$0xff] %v6873
        %6906 = vst [vmem:[#allocation2 + $0x2f0] sm:$0xff] %v6874
        %6907 = vst [vmem:[#allocation2 + $0x338] sm:$0xff] %v6875
        %6908 = vst [vmem:[#allocation2 + $0x380] sm:$0xff] %v6876
        %6909 = vst [vmem:[#allocation2 + $0x3c8] sm:$0xff] %v6877
        %6910 = vst [vmem:[#allocation2 + $0x410] sm:$0xff] %v6878
        %6911 = vst [vmem:[#allocation2 + $0x458] sm:$0xff] %v6879
        %v6912 = vld [vmem:[%s5197] sm:$0xe]
        %v6913 = vld [vmem:[%s5197 + $0x4] sm:$0xf]
        %v6914 = vld [vmem:[%s5197 + $0x8] sm:$0x1]
        %v6915 = vld [vmem:[%s5197 + $0xc] sm:$0xe]
        %v6916 = vld [vmem:[%s5197 + $0x10] sm:$0xf]
        %v6917 = vld [vmem:[%s5197 + $0x14] sm:$0x1]
        %v6918 = vld [vmem:[%s5197 + $0x18] sm:$0xe]
        %v6919 = vld [vmem:[%s5197 + $0x1c] sm:$0xf]
        %v6920 = vld [vmem:[%s5197 + $0x20] sm:$0x1]
        %v6921 = vld [vmem:[%s5197 + $0x24] sm:$0xe]
        %v6922 = vld [vmem:[%s5197 + $0x28] sm:$0xf]
        %v6923 = vld [vmem:[%s5197 + $0x2c] sm:$0x1]
        %v6924 = vld [vmem:[%s5197 + $0x30] sm:$0xe]
        %v6925 = vld [vmem:[%s5197 + $0x34] sm:$0xf]
        %v6926 = vld [vmem:[%s5197 + $0x38] sm:$0x1]
        %v6927 = vld [vmem:[%s5197 + $0x3c] sm:$0xe]
        %v6928 = vld [vmem:[%s5197 + $0x40] sm:$0xf]
        %v6929 = vld [vmem:[%s5197 + $0x44] sm:$0x1]
        %v6930 = vld [vmem:[%s5197 + $0x48] sm:$0xe]
        %v6931 = vld [vmem:[%s5197 + $0x4c] sm:$0xf]
        %v6932 = vld [vmem:[%s5197 + $0x50] sm:$0x1]
        %v6933 = vld [vmem:[%s5197 + $0x54] sm:$0xe]
        %v6934 = vld [vmem:[%s5197 + $0x58] sm:$0xf]
        %v6935 = vld [vmem:[%s5197 + $0x5c] sm:$0x1]
        %v6936 = vld [vmem:[%s5197 + $0x60] sm:$0xe]
        %v6937 = vld [vmem:[%s5197 + $0x64] sm:$0xf]
        %v6938 = vld [vmem:[%s5197 + $0x68] sm:$0x1]
        %v6939 = vld [vmem:[%s5197 + $0x6c] sm:$0xe]
        %v6940 = vld [vmem:[%s5197 + $0x70] sm:$0xf]
        %v6941 = vld [vmem:[%s5197 + $0x74] sm:$0x1]
        %v6942 = vld [vmem:[%s5197 + $0x78] sm:$0xe]
        %v6943 = vld [vmem:[%s5197 + $0x7c] sm:$0xf]
        %v6944 = vld [vmem:[%s5197 + $0x80] sm:$0x1]
        %v6945 = vld [vmem:[%s5197 + $0x84] sm:$0xe]
        %v6946 = vld [vmem:[%s5197 + $0x88] sm:$0xf]
        %v6947 = vld [vmem:[%s5197 + $0x8c] sm:$0x1]
        %v6948 = vld [vmem:[%s5197 + $0x90] sm:$0xe]
        %v6949 = vld [vmem:[%s5197 + $0x94] sm:$0xf]
        %v6950 = vld [vmem:[%s5197 + $0x98] sm:$0x1]
        %v6951 = vld [vmem:[%s5197 + $0x9c] sm:$0xe]
        %v6952 = vld [vmem:[%s5197 + $0xa0] sm:$0xf]
        %v6953 = vld [vmem:[%s5197 + $0xa4] sm:$0x1]
        %v6954 = vld [vmem:[%s5197 + $0xa8] sm:$0xe]
        %v6955 = vld [vmem:[%s5197 + $0xac] sm:$0xf]
        %v6956 = vld [vmem:[%s5197 + $0xb0] sm:$0x1]
        %v6957 = vld [vmem:[%s5197 + $0xb4] sm:$0xe]
        %v6958 = vld [vmem:[%s5197 + $0xb8] sm:$0xf]
        %v6959 = vld [vmem:[%s5197 + $0xbc] sm:$0x1]
        %v7008 = vrot.slane %v6912, 5
        %v7009 = vrot.slane %v7008, 4
        %v7010 = vrot.slane %v6913, 5
        %v7011 = vsel %vm996, %v7009, %v7010
        %v7012 = vrot.slane %v7010, 4
        %v7013 = vrot.slane %v6914, 5
        %v7014 = vsel %vm996, %v7012, %v7013
        %v7015 = vrot.slane %v6915, 5
        %v7016 = vrot.slane %v7015, 4
        %v7017 = vrot.slane %v6916, 5
        %v7018 = vsel %vm996, %v7016, %v7017
        %v7019 = vrot.slane %v7017, 4
        %v7020 = vrot.slane %v6917, 5
        %v7021 = vsel %vm996, %v7019, %v7020
        %v7022 = vrot.slane %v6918, 5
        %v7023 = vrot.slane %v7022, 4
        %v7024 = vrot.slane %v6919, 5
        %v7025 = vsel %vm996, %v7023, %v7024
        %v7026 = vrot.slane %v7024, 4
        %v7027 = vrot.slane %v6920, 5
        %v7028 = vsel %vm996, %v7026, %v7027
        %v7029 = vrot.slane %v6921, 5
        %v7030 = vrot.slane %v7029, 4
        %v7031 = vrot.slane %v6922, 5
        %v7032 = vsel %vm996, %v7030, %v7031
        %v7033 = vrot.slane %v7031, 4
        %v7034 = vrot.slane %v6923, 5
        %v7035 = vsel %vm996, %v7033, %v7034
        %v7036 = vrot.slane %v6924, 5
        %v7037 = vrot.slane %v7036, 4
        %v7038 = vrot.slane %v6925, 5
        %v7039 = vsel %vm996, %v7037, %v7038
        %v7040 = vrot.slane %v7038, 4
        %v7041 = vrot.slane %v6926, 5
        %v7042 = vsel %vm996, %v7040, %v7041
        %v7043 = vrot.slane %v6927, 5
        %v7044 = vrot.slane %v7043, 4
        %v7045 = vrot.slane %v6928, 5
        %v7046 = vsel %vm996, %v7044, %v7045
        %v7047 = vrot.slane %v7045, 4
        %v7048 = vrot.slane %v6929, 5
        %v7049 = vsel %vm996, %v7047, %v7048
        %v7050 = vrot.slane %v6930, 5
        %v7051 = vrot.slane %v7050, 4
        %v7052 = vrot.slane %v6931, 5
        %v7053 = vsel %vm996, %v7051, %v7052
        %v7054 = vrot.slane %v7052, 4
        %v7055 = vrot.slane %v6932, 5
        %v7056 = vsel %vm996, %v7054, %v7055
        %v7057 = vrot.slane %v6933, 5
        %v7058 = vrot.slane %v7057, 4
        %v7059 = vrot.slane %v6934, 5
        %v7060 = vsel %vm996, %v7058, %v7059
        %v7061 = vrot.slane %v7059, 4
        %v7062 = vrot.slane %v6935, 5
        %v7063 = vsel %vm996, %v7061, %v7062
        %v7064 = vrot.slane %v6936, 5
        %v7065 = vrot.slane %v7064, 4
        %v7066 = vrot.slane %v6937, 5
        %v7067 = vsel %vm996, %v7065, %v7066
        %v7068 = vrot.slane %v7066, 4
        %v7069 = vrot.slane %v6938, 5
        %v7070 = vsel %vm996, %v7068, %v7069
        %v7071 = vrot.slane %v6939, 5
        %v7072 = vrot.slane %v7071, 4
        %v7073 = vrot.slane %v6940, 5
        %v7074 = vsel %vm996, %v7072, %v7073
        %v7075 = vrot.slane %v7073, 4
        %v7076 = vrot.slane %v6941, 5
        %v7077 = vsel %vm996, %v7075, %v7076
        %v7078 = vrot.slane %v6942, 5
        %v7079 = vrot.slane %v7078, 4
        %v7080 = vrot.slane %v6943, 5
        %v7081 = vsel %vm996, %v7079, %v7080
        %v7082 = vrot.slane %v7080, 4
        %v7083 = vrot.slane %v6944, 5
        %v7084 = vsel %vm996, %v7082, %v7083
        %v7085 = vrot.slane %v6945, 5
        %v7086 = vrot.slane %v7085, 4
        %v7087 = vrot.slane %v6946, 5
        %v7088 = vsel %vm996, %v7086, %v7087
        %v7089 = vrot.slane %v7087, 4
        %v7090 = vrot.slane %v6947, 5
        %v7091 = vsel %vm996, %v7089, %v7090
        %v7092 = vrot.slane %v6948, 5
        %v7093 = vrot.slane %v7092, 4
        %v7094 = vrot.slane %v6949, 5
        %v7095 = vsel %vm996, %v7093, %v7094
        %v7096 = vrot.slane %v7094, 4
        %v7097 = vrot.slane %v6950, 5
        %v7098 = vsel %vm996, %v7096, %v7097
        %v7099 = vrot.slane %v6951, 5
        %v7100 = vrot.slane %v7099, 4
        %v7101 = vrot.slane %v6952, 5
        %v7102 = vsel %vm996, %v7100, %v7101
        %v7103 = vrot.slane %v7101, 4
        %v7104 = vrot.slane %v6953, 5
        %v7105 = vsel %vm996, %v7103, %v7104
        %v7106 = vrot.slane %v6954, 5
        %v7107 = vrot.slane %v7106, 4
        %v7108 = vrot.slane %v6955, 5
        %v7109 = vsel %vm996, %v7107, %v7108
        %v7110 = vrot.slane %v7108, 4
        %v7111 = vrot.slane %v6956, 5
        %v7112 = vsel %vm996, %v7110, %v7111
        %v7113 = vrot.slane %v6957, 5
        %v7114 = vrot.slane %v7113, 4
        %v7115 = vrot.slane %v6958, 5
        %v7116 = vsel %vm996, %v7114, %v7115
        %v7117 = vrot.slane %v7115, 4
        %v7118 = vrot.slane %v6959, 5
        %v7119 = vsel %vm996, %v7117, %v7118
        %v7120 = vunpack.c.l.b16 %v7011
        %v7121 = vunpack.c.l.b16 %v7014
        %v7122 = vunpack.c.l.b16 %v7018
        %v7123 = vunpack.c.l.b16 %v7021
        %v7124 = vunpack.c.l.b16 %v7025
        %v7125 = vunpack.c.l.b16 %v7028
        %v7126 = vunpack.c.l.b16 %v7032
        %v7127 = vunpack.c.l.b16 %v7035
        %v7128 = vunpack.c.l.b16 %v7039
        %v7129 = vunpack.c.l.b16 %v7042
        %v7130 = vunpack.c.l.b16 %v7046
        %v7131 = vunpack.c.l.b16 %v7049
        %v7132 = vunpack.c.l.b16 %v7053
        %v7133 = vunpack.c.l.b16 %v7056
        %v7134 = vunpack.c.l.b16 %v7060
        %v7135 = vunpack.c.l.b16 %v7063
        %v7136 = vunpack.c.l.b16 %v7067
        %v7137 = vunpack.c.l.b16 %v7070
        %v7138 = vunpack.c.l.b16 %v7074
        %v7139 = vunpack.c.l.b16 %v7077
        %v7140 = vunpack.c.l.b16 %v7081
        %v7141 = vunpack.c.l.b16 %v7084
        %v7142 = vunpack.c.l.b16 %v7088
        %v7143 = vunpack.c.l.b16 %v7091
        %v7144 = vunpack.c.l.b16 %v7095
        %v7145 = vunpack.c.l.b16 %v7098
        %v7146 = vunpack.c.l.b16 %v7102
        %v7147 = vunpack.c.l.b16 %v7105
        %v7148 = vunpack.c.l.b16 %v7109
        %v7149 = vunpack.c.l.b16 %v7112
        %v7150 = vunpack.c.l.b16 %v7116
        %v7151 = vunpack.c.l.b16 %v7119
        %v7152 = vpack.c.b16 %v7121, %v7120
        %v7153 = vpack.c.b16 %v7123, %v7122
        %v7154 = vpack.c.b16 %v7125, %v7124
        %v7155 = vpack.c.b16 %v7127, %v7126
        %v7156 = vpack.c.b16 %v7129, %v7128
        %v7157 = vpack.c.b16 %v7131, %v7130
        %v7158 = vpack.c.b16 %v7133, %v7132
        %v7159 = vpack.c.b16 %v7135, %v7134
        %v7160 = vpack.c.b16 %v7137, %v7136
        %v7161 = vpack.c.b16 %v7139, %v7138
        %v7162 = vpack.c.b16 %v7141, %v7140
        %v7163 = vpack.c.b16 %v7143, %v7142
        %v7164 = vpack.c.b16 %v7145, %v7144
        %v7165 = vpack.c.b16 %v7147, %v7146
        %v7166 = vpack.c.b16 %v7149, %v7148
        %v7167 = vpack.c.b16 %v7151, %v7150
        %7184 = vst [vmem:[#allocation2 + $0x28] sm:$0xff] %v7152
        %7185 = vst [vmem:[#allocation2 + $0x70] sm:$0xff] %v7153
        %7186 = vst [vmem:[#allocation2 + $0xb8] sm:$0xff] %v7154
        %7187 = vst [vmem:[#allocation2 + $0x100] sm:$0xff] %v7155
        %7188 = vst [vmem:[#allocation2 + $0x148] sm:$0xff] %v7156
        %7189 = vst [vmem:[#allocation2 + $0x190] sm:$0xff] %v7157
        %7190 = vst [vmem:[#allocation2 + $0x1d8] sm:$0xff] %v7158
        %7191 = vst [vmem:[#allocation2 + $0x220] sm:$0xff] %v7159
        %7192 = vst [vmem:[#allocation2 + $0x268] sm:$0xff] %v7160
        %7193 = vst [vmem:[#allocation2 + $0x2b0] sm:$0xff] %v7161
        %7194 = vst [vmem:[#allocation2 + $0x2f8] sm:$0xff] %v7162
        %7195 = vst [vmem:[#allocation2 + $0x340] sm:$0xff] %v7163
        %7196 = vst [vmem:[#allocation2 + $0x388] sm:$0xff] %v7164
        %7197 = vst [vmem:[#allocation2 + $0x3d0] sm:$0xff] %v7165
        %7198 = vst [vmem:[#allocation2 + $0x418] sm:$0xff] %v7166
        %7199 = vst [vmem:[#allocation2 + $0x460] sm:$0xff] %v7167
        %s7200 = scalar_lea.vmem [#allocation3], 24
        %v7201 = vld [vmem:[%s7200] sm:$0xf]
        %v7202 = vld [vmem:[%s7200 + $0x4] sm:$0xf]
        %v7203 = vld [vmem:[%s7200 + $0xc] sm:$0xf]
        %v7204 = vld [vmem:[%s7200 + $0x10] sm:$0xf]
        %v7205 = vld [vmem:[%s7200 + $0x18] sm:$0xf]
        %v7206 = vld [vmem:[%s7200 + $0x1c] sm:$0xf]
        %v7207 = vld [vmem:[%s7200 + $0x24] sm:$0xf]
        %v7208 = vld [vmem:[%s7200 + $0x28] sm:$0xf]
        %v7209 = vld [vmem:[%s7200 + $0x30] sm:$0xf]
        %v7210 = vld [vmem:[%s7200 + $0x34] sm:$0xf]
        %v7211 = vld [vmem:[%s7200 + $0x3c] sm:$0xf]
        %v7212 = vld [vmem:[%s7200 + $0x40] sm:$0xf]
        %v7213 = vld [vmem:[%s7200 + $0x48] sm:$0xf]
        %v7214 = vld [vmem:[%s7200 + $0x4c] sm:$0xf]
        %v7215 = vld [vmem:[%s7200 + $0x54] sm:$0xf]
        %v7216 = vld [vmem:[%s7200 + $0x58] sm:$0xf]
        %v7217 = vld [vmem:[%s7200 + $0x60] sm:$0xf]
        %v7218 = vld [vmem:[%s7200 + $0x64] sm:$0xf]
        %v7219 = vld [vmem:[%s7200 + $0x6c] sm:$0xf]
        %v7220 = vld [vmem:[%s7200 + $0x70] sm:$0xf]
        %v7221 = vld [vmem:[%s7200 + $0x78] sm:$0xf]
        %v7222 = vld [vmem:[%s7200 + $0x7c] sm:$0xf]
        %v7223 = vld [vmem:[%s7200 + $0x84] sm:$0xf]
        %v7224 = vld [vmem:[%s7200 + $0x88] sm:$0xf]
        %v7225 = vld [vmem:[%s7200 + $0x90] sm:$0xf]
        %v7226 = vld [vmem:[%s7200 + $0x94] sm:$0xf]
        %v7227 = vld [vmem:[%s7200 + $0x9c] sm:$0xf]
        %v7228 = vld [vmem:[%s7200 + $0xa0] sm:$0xf]
        %v7229 = vld [vmem:[%s7200 + $0xa8] sm:$0xf]
        %v7230 = vld [vmem:[%s7200 + $0xac] sm:$0xf]
        %v7231 = vld [vmem:[%s7200 + $0xb4] sm:$0xf]
        %v7232 = vld [vmem:[%s7200 + $0xb8] sm:$0xf]
        %v7265 = vunpack.c.l.b16 %v7201
        %v7266 = vunpack.c.l.b16 %v7202
        %v7267 = vunpack.c.l.b16 %v7203
        %v7268 = vunpack.c.l.b16 %v7204
        %v7269 = vunpack.c.l.b16 %v7205
        %v7270 = vunpack.c.l.b16 %v7206
        %v7271 = vunpack.c.l.b16 %v7207
        %v7272 = vunpack.c.l.b16 %v7208
        %v7273 = vunpack.c.l.b16 %v7209
        %v7274 = vunpack.c.l.b16 %v7210
        %v7275 = vunpack.c.l.b16 %v7211
        %v7276 = vunpack.c.l.b16 %v7212
        %v7277 = vunpack.c.l.b16 %v7213
        %v7278 = vunpack.c.l.b16 %v7214
        %v7279 = vunpack.c.l.b16 %v7215
        %v7280 = vunpack.c.l.b16 %v7216
        %v7281 = vunpack.c.l.b16 %v7217
        %v7282 = vunpack.c.l.b16 %v7218
        %v7283 = vunpack.c.l.b16 %v7219
        %v7284 = vunpack.c.l.b16 %v7220
        %v7285 = vunpack.c.l.b16 %v7221
        %v7286 = vunpack.c.l.b16 %v7222
        %v7287 = vunpack.c.l.b16 %v7223
        %v7288 = vunpack.c.l.b16 %v7224
        %v7289 = vunpack.c.l.b16 %v7225
        %v7290 = vunpack.c.l.b16 %v7226
        %v7291 = vunpack.c.l.b16 %v7227
        %v7292 = vunpack.c.l.b16 %v7228
        %v7293 = vunpack.c.l.b16 %v7229
        %v7294 = vunpack.c.l.b16 %v7230
        %v7295 = vunpack.c.l.b16 %v7231
        %v7296 = vunpack.c.l.b16 %v7232
        %v7297 = vpack.c.b16 %v7266, %v7265
        %v7298 = vpack.c.b16 %v7268, %v7267
        %v7299 = vpack.c.b16 %v7270, %v7269
        %v7300 = vpack.c.b16 %v7272, %v7271
        %v7301 = vpack.c.b16 %v7274, %v7273
        %v7302 = vpack.c.b16 %v7276, %v7275
        %v7303 = vpack.c.b16 %v7278, %v7277
        %v7304 = vpack.c.b16 %v7280, %v7279
        %v7305 = vpack.c.b16 %v7282, %v7281
        %v7306 = vpack.c.b16 %v7284, %v7283
        %v7307 = vpack.c.b16 %v7286, %v7285
        %v7308 = vpack.c.b16 %v7288, %v7287
        %v7309 = vpack.c.b16 %v7290, %v7289
        %v7310 = vpack.c.b16 %v7292, %v7291
        %v7311 = vpack.c.b16 %v7294, %v7293
        %v7312 = vpack.c.b16 %v7296, %v7295
        %7329 = vst [vmem:[#allocation2 + $0x30] sm:$0xff] %v7297
        %7330 = vst [vmem:[#allocation2 + $0x78] sm:$0xff] %v7298
        %7331 = vst [vmem:[#allocation2 + $0xc0] sm:$0xff] %v7299
        %7332 = vst [vmem:[#allocation2 + $0x108] sm:$0xff] %v7300
        %7333 = vst [vmem:[#allocation2 + $0x150] sm:$0xff] %v7301
        %7334 = vst [vmem:[#allocation2 + $0x198] sm:$0xff] %v7302
        %7335 = vst [vmem:[#allocation2 + $0x1e0] sm:$0xff] %v7303
        %7336 = vst [vmem:[#allocation2 + $0x228] sm:$0xff] %v7304
        %7337 = vst [vmem:[#allocation2 + $0x270] sm:$0xff] %v7305
        %7338 = vst [vmem:[#allocation2 + $0x2b8] sm:$0xff] %v7306
        %7339 = vst [vmem:[#allocation2 + $0x300] sm:$0xff] %v7307
        %7340 = vst [vmem:[#allocation2 + $0x348] sm:$0xff] %v7308
        %7341 = vst [vmem:[#allocation2 + $0x390] sm:$0xff] %v7309
        %7342 = vst [vmem:[#allocation2 + $0x3d8] sm:$0xff] %v7310
        %7343 = vst [vmem:[#allocation2 + $0x420] sm:$0xff] %v7311
        %7344 = vst [vmem:[#allocation2 + $0x468] sm:$0xff] %v7312
        %v7345 = vld [vmem:[%s7200] sm:$0xf]
        %v7346 = vld [vmem:[%s7200 + $0x4] sm:$0xf]
        %v7347 = vld [vmem:[%s7200 + $0x8] sm:$0x1]
        %v7348 = vld [vmem:[%s7200 + $0xc] sm:$0xf]
        %v7349 = vld [vmem:[%s7200 + $0x10] sm:$0xf]
        %v7350 = vld [vmem:[%s7200 + $0x14] sm:$0x1]
        %v7351 = vld [vmem:[%s7200 + $0x18] sm:$0xf]
        %v7352 = vld [vmem:[%s7200 + $0x1c] sm:$0xf]
        %v7353 = vld [vmem:[%s7200 + $0x20] sm:$0x1]
        %v7354 = vld [vmem:[%s7200 + $0x24] sm:$0xf]
        %v7355 = vld [vmem:[%s7200 + $0x28] sm:$0xf]
        %v7356 = vld [vmem:[%s7200 + $0x2c] sm:$0x1]
        %v7357 = vld [vmem:[%s7200 + $0x30] sm:$0xf]
        %v7358 = vld [vmem:[%s7200 + $0x34] sm:$0xf]
        %v7359 = vld [vmem:[%s7200 + $0x38] sm:$0x1]
        %v7360 = vld [vmem:[%s7200 + $0x3c] sm:$0xf]
        %v7361 = vld [vmem:[%s7200 + $0x40] sm:$0xf]
        %v7362 = vld [vmem:[%s7200 + $0x44] sm:$0x1]
        %v7363 = vld [vmem:[%s7200 + $0x48] sm:$0xf]
        %v7364 = vld [vmem:[%s7200 + $0x4c] sm:$0xf]
        %v7365 = vld [vmem:[%s7200 + $0x50] sm:$0x1]
        %v7366 = vld [vmem:[%s7200 + $0x54] sm:$0xf]
        %v7367 = vld [vmem:[%s7200 + $0x58] sm:$0xf]
        %v7368 = vld [vmem:[%s7200 + $0x5c] sm:$0x1]
        %v7369 = vld [vmem:[%s7200 + $0x60] sm:$0xf]
        %v7370 = vld [vmem:[%s7200 + $0x64] sm:$0xf]
        %v7371 = vld [vmem:[%s7200 + $0x68] sm:$0x1]
        %v7372 = vld [vmem:[%s7200 + $0x6c] sm:$0xf]
        %v7373 = vld [vmem:[%s7200 + $0x70] sm:$0xf]
        %v7374 = vld [vmem:[%s7200 + $0x74] sm:$0x1]
        %v7375 = vld [vmem:[%s7200 + $0x78] sm:$0xf]
        %v7376 = vld [vmem:[%s7200 + $0x7c] sm:$0xf]
        %v7377 = vld [vmem:[%s7200 + $0x80] sm:$0x1]
        %v7378 = vld [vmem:[%s7200 + $0x84] sm:$0xf]
        %v7379 = vld [vmem:[%s7200 + $0x88] sm:$0xf]
        %v7380 = vld [vmem:[%s7200 + $0x8c] sm:$0x1]
        %v7381 = vld [vmem:[%s7200 + $0x90] sm:$0xf]
        %v7382 = vld [vmem:[%s7200 + $0x94] sm:$0xf]
        %v7383 = vld [vmem:[%s7200 + $0x98] sm:$0x1]
        %v7384 = vld [vmem:[%s7200 + $0x9c] sm:$0xf]
        %v7385 = vld [vmem:[%s7200 + $0xa0] sm:$0xf]
        %v7386 = vld [vmem:[%s7200 + $0xa4] sm:$0x1]
        %v7387 = vld [vmem:[%s7200 + $0xa8] sm:$0xf]
        %v7388 = vld [vmem:[%s7200 + $0xac] sm:$0xf]
        %v7389 = vld [vmem:[%s7200 + $0xb0] sm:$0x1]
        %v7390 = vld [vmem:[%s7200 + $0xb4] sm:$0xf]
        %v7391 = vld [vmem:[%s7200 + $0xb8] sm:$0xf]
        %v7392 = vld [vmem:[%s7200 + $0xbc] sm:$0x1]
        %v7394 = vshrl.u32 %v7345, 16
        %v7396 = vrot.slane %v7394, 4
        %v7397 = vshll.u32 %v7345, 16
        %v7399 = vrot.slane %v7397, 5
        %v7400 = vor.u32 %v7396, %v7399
        %v7401 = vrot.slane %v7400, 4
        %v7403 = vshll.u32 %v7346, 16
        %v7405 = vrot.slane %v7403, 5
        %v7406 = vsel %vm433, %v7401, %v7405
        %v7407 = vshrl.u32 %v7346, 16
        %v7409 = vrot.slane %v7407, 4
        %v7410 = vor.u32 %v7409, %v7405
        %v7411 = vrot.slane %v7410, 4
        %v7413 = vshll.u32 %v7347, 16
        %v7415 = vrot.slane %v7413, 5
        %v7416 = vsel %vm433, %v7411, %v7415
        %v7418 = vshrl.u32 %v7348, 16
        %v7420 = vrot.slane %v7418, 4
        %v7421 = vshll.u32 %v7348, 16
        %v7423 = vrot.slane %v7421, 5
        %v7424 = vor.u32 %v7420, %v7423
        %v7425 = vrot.slane %v7424, 4
        %v7427 = vshll.u32 %v7349, 16
        %v7429 = vrot.slane %v7427, 5
        %v7430 = vsel %vm433, %v7425, %v7429
        %v7431 = vshrl.u32 %v7349, 16
        %v7433 = vrot.slane %v7431, 4
        %v7434 = vor.u32 %v7433, %v7429
        %v7435 = vrot.slane %v7434, 4
        %v7437 = vshll.u32 %v7350, 16
        %v7439 = vrot.slane %v7437, 5
        %v7440 = vsel %vm433, %v7435, %v7439
        %v7442 = vshrl.u32 %v7351, 16
        %v7444 = vrot.slane %v7442, 4
        %v7445 = vshll.u32 %v7351, 16
        %v7447 = vrot.slane %v7445, 5
        %v7448 = vor.u32 %v7444, %v7447
        %v7449 = vrot.slane %v7448, 4
        %v7451 = vshll.u32 %v7352, 16
        %v7453 = vrot.slane %v7451, 5
        %v7454 = vsel %vm433, %v7449, %v7453
        %v7455 = vshrl.u32 %v7352, 16
        %v7457 = vrot.slane %v7455, 4
        %v7458 = vor.u32 %v7457, %v7453
        %v7459 = vrot.slane %v7458, 4
        %v7461 = vshll.u32 %v7353, 16
        %v7463 = vrot.slane %v7461, 5
        %v7464 = vsel %vm433, %v7459, %v7463
        %v7466 = vshrl.u32 %v7354, 16
        %v7468 = vrot.slane %v7466, 4
        %v7469 = vshll.u32 %v7354, 16
        %v7471 = vrot.slane %v7469, 5
        %v7472 = vor.u32 %v7468, %v7471
        %v7473 = vrot.slane %v7472, 4
        %v7475 = vshll.u32 %v7355, 16
        %v7477 = vrot.slane %v7475, 5
        %v7478 = vsel %vm433, %v7473, %v7477
        %v7479 = vshrl.u32 %v7355, 16
        %v7481 = vrot.slane %v7479, 4
        %v7482 = vor.u32 %v7481, %v7477
        %v7483 = vrot.slane %v7482, 4
        %v7485 = vshll.u32 %v7356, 16
        %v7487 = vrot.slane %v7485, 5
        %v7488 = vsel %vm433, %v7483, %v7487
        %v7490 = vshrl.u32 %v7357, 16
        %v7492 = vrot.slane %v7490, 4
        %v7493 = vshll.u32 %v7357, 16
        %v7495 = vrot.slane %v7493, 5
        %v7496 = vor.u32 %v7492, %v7495
        %v7497 = vrot.slane %v7496, 4
        %v7499 = vshll.u32 %v7358, 16
        %v7501 = vrot.slane %v7499, 5
        %v7502 = vsel %vm433, %v7497, %v7501
        %v7503 = vshrl.u32 %v7358, 16
        %v7505 = vrot.slane %v7503, 4
        %v7506 = vor.u32 %v7505, %v7501
        %v7507 = vrot.slane %v7506, 4
        %v7509 = vshll.u32 %v7359, 16
        %v7511 = vrot.slane %v7509, 5
        %v7512 = vsel %vm433, %v7507, %v7511
        %v7514 = vshrl.u32 %v7360, 16
        %v7516 = vrot.slane %v7514, 4
        %v7517 = vshll.u32 %v7360, 16
        %v7519 = vrot.slane %v7517, 5
        %v7520 = vor.u32 %v7516, %v7519
        %v7521 = vrot.slane %v7520, 4
        %v7523 = vshll.u32 %v7361, 16
        %v7525 = vrot.slane %v7523, 5
        %v7526 = vsel %vm433, %v7521, %v7525
        %v7527 = vshrl.u32 %v7361, 16
        %v7529 = vrot.slane %v7527, 4
        %v7530 = vor.u32 %v7529, %v7525
        %v7531 = vrot.slane %v7530, 4
        %v7533 = vshll.u32 %v7362, 16
        %v7535 = vrot.slane %v7533, 5
        %v7536 = vsel %vm433, %v7531, %v7535
        %v7538 = vshrl.u32 %v7363, 16
        %v7540 = vrot.slane %v7538, 4
        %v7541 = vshll.u32 %v7363, 16
        %v7543 = vrot.slane %v7541, 5
        %v7544 = vor.u32 %v7540, %v7543
        %v7545 = vrot.slane %v7544, 4
        %v7547 = vshll.u32 %v7364, 16
        %v7549 = vrot.slane %v7547, 5
        %v7550 = vsel %vm433, %v7545, %v7549
        %v7551 = vshrl.u32 %v7364, 16
        %v7553 = vrot.slane %v7551, 4
        %v7554 = vor.u32 %v7553, %v7549
        %v7555 = vrot.slane %v7554, 4
        %v7557 = vshll.u32 %v7365, 16
        %v7559 = vrot.slane %v7557, 5
        %v7560 = vsel %vm433, %v7555, %v7559
        %v7562 = vshrl.u32 %v7366, 16
        %v7564 = vrot.slane %v7562, 4
        %v7565 = vshll.u32 %v7366, 16
        %v7567 = vrot.slane %v7565, 5
        %v7568 = vor.u32 %v7564, %v7567
        %v7569 = vrot.slane %v7568, 4
        %v7571 = vshll.u32 %v7367, 16
        %v7573 = vrot.slane %v7571, 5
        %v7574 = vsel %vm433, %v7569, %v7573
        %v7575 = vshrl.u32 %v7367, 16
        %v7577 = vrot.slane %v7575, 4
        %v7578 = vor.u32 %v7577, %v7573
        %v7579 = vrot.slane %v7578, 4
        %v7581 = vshll.u32 %v7368, 16
        %v7583 = vrot.slane %v7581, 5
        %v7584 = vsel %vm433, %v7579, %v7583
        %v7586 = vshrl.u32 %v7369, 16
        %v7588 = vrot.slane %v7586, 4
        %v7589 = vshll.u32 %v7369, 16
        %v7591 = vrot.slane %v7589, 5
        %v7592 = vor.u32 %v7588, %v7591
        %v7593 = vrot.slane %v7592, 4
        %v7595 = vshll.u32 %v7370, 16
        %v7597 = vrot.slane %v7595, 5
        %v7598 = vsel %vm433, %v7593, %v7597
        %v7599 = vshrl.u32 %v7370, 16
        %v7601 = vrot.slane %v7599, 4
        %v7602 = vor.u32 %v7601, %v7597
        %v7603 = vrot.slane %v7602, 4
        %v7605 = vshll.u32 %v7371, 16
        %v7607 = vrot.slane %v7605, 5
        %v7608 = vsel %vm433, %v7603, %v7607
        %v7610 = vshrl.u32 %v7372, 16
        %v7612 = vrot.slane %v7610, 4
        %v7613 = vshll.u32 %v7372, 16
        %v7615 = vrot.slane %v7613, 5
        %v7616 = vor.u32 %v7612, %v7615
        %v7617 = vrot.slane %v7616, 4
        %v7619 = vshll.u32 %v7373, 16
        %v7621 = vrot.slane %v7619, 5
        %v7622 = vsel %vm433, %v7617, %v7621
        %v7623 = vshrl.u32 %v7373, 16
        %v7625 = vrot.slane %v7623, 4
        %v7626 = vor.u32 %v7625, %v7621
        %v7627 = vrot.slane %v7626, 4
        %v7629 = vshll.u32 %v7374, 16
        %v7631 = vrot.slane %v7629, 5
        %v7632 = vsel %vm433, %v7627, %v7631
        %v7634 = vshrl.u32 %v7375, 16
        %v7636 = vrot.slane %v7634, 4
        %v7637 = vshll.u32 %v7375, 16
        %v7639 = vrot.slane %v7637, 5
        %v7640 = vor.u32 %v7636, %v7639
        %v7641 = vrot.slane %v7640, 4
        %v7643 = vshll.u32 %v7376, 16
        %v7645 = vrot.slane %v7643, 5
        %v7646 = vsel %vm433, %v7641, %v7645
        %v7647 = vshrl.u32 %v7376, 16
        %v7649 = vrot.slane %v7647, 4
        %v7650 = vor.u32 %v7649, %v7645
        %v7651 = vrot.slane %v7650, 4
        %v7653 = vshll.u32 %v7377, 16
        %v7655 = vrot.slane %v7653, 5
        %v7656 = vsel %vm433, %v7651, %v7655
        %v7658 = vshrl.u32 %v7378, 16
        %v7660 = vrot.slane %v7658, 4
        %v7661 = vshll.u32 %v7378, 16
        %v7663 = vrot.slane %v7661, 5
        %v7664 = vor.u32 %v7660, %v7663
        %v7665 = vrot.slane %v7664, 4
        %v7667 = vshll.u32 %v7379, 16
        %v7669 = vrot.slane %v7667, 5
        %v7670 = vsel %vm433, %v7665, %v7669
        %v7671 = vshrl.u32 %v7379, 16
        %v7673 = vrot.slane %v7671, 4
        %v7674 = vor.u32 %v7673, %v7669
        %v7675 = vrot.slane %v7674, 4
        %v7677 = vshll.u32 %v7380, 16
        %v7679 = vrot.slane %v7677, 5
        %v7680 = vsel %vm433, %v7675, %v7679
        %v7682 = vshrl.u32 %v7381, 16
        %v7684 = vrot.slane %v7682, 4
        %v7685 = vshll.u32 %v7381, 16
        %v7687 = vrot.slane %v7685, 5
        %v7688 = vor.u32 %v7684, %v7687
        %v7689 = vrot.slane %v7688, 4
        %v7691 = vshll.u32 %v7382, 16
        %v7693 = vrot.slane %v7691, 5
        %v7694 = vsel %vm433, %v7689, %v7693
        %v7695 = vshrl.u32 %v7382, 16
        %v7697 = vrot.slane %v7695, 4
        %v7698 = vor.u32 %v7697, %v7693
        %v7699 = vrot.slane %v7698, 4
        %v7701 = vshll.u32 %v7383, 16
        %v7703 = vrot.slane %v7701, 5
        %v7704 = vsel %vm433, %v7699, %v7703
        %v7706 = vshrl.u32 %v7384, 16
        %v7708 = vrot.slane %v7706, 4
        %v7709 = vshll.u32 %v7384, 16
        %v7711 = vrot.slane %v7709, 5
        %v7712 = vor.u32 %v7708, %v7711
        %v7713 = vrot.slane %v7712, 4
        %v7715 = vshll.u32 %v7385, 16
        %v7717 = vrot.slane %v7715, 5
        %v7718 = vsel %vm433, %v7713, %v7717
        %v7719 = vshrl.u32 %v7385, 16
        %v7721 = vrot.slane %v7719, 4
        %v7722 = vor.u32 %v7721, %v7717
        %v7723 = vrot.slane %v7722, 4
        %v7725 = vshll.u32 %v7386, 16
        %v7727 = vrot.slane %v7725, 5
        %v7728 = vsel %vm433, %v7723, %v7727
        %v7730 = vshrl.u32 %v7387, 16
        %v7732 = vrot.slane %v7730, 4
        %v7733 = vshll.u32 %v7387, 16
        %v7735 = vrot.slane %v7733, 5
        %v7736 = vor.u32 %v7732, %v7735
        %v7737 = vrot.slane %v7736, 4
        %v7739 = vshll.u32 %v7388, 16
        %v7741 = vrot.slane %v7739, 5
        %v7742 = vsel %vm433, %v7737, %v7741
        %v7743 = vshrl.u32 %v7388, 16
        %v7745 = vrot.slane %v7743, 4
        %v7746 = vor.u32 %v7745, %v7741
        %v7747 = vrot.slane %v7746, 4
        %v7749 = vshll.u32 %v7389, 16
        %v7751 = vrot.slane %v7749, 5
        %v7752 = vsel %vm433, %v7747, %v7751
        %v7754 = vshrl.u32 %v7390, 16
        %v7756 = vrot.slane %v7754, 4
        %v7757 = vshll.u32 %v7390, 16
        %v7759 = vrot.slane %v7757, 5
        %v7760 = vor.u32 %v7756, %v7759
        %v7761 = vrot.slane %v7760, 4
        %v7763 = vshll.u32 %v7391, 16
        %v7765 = vrot.slane %v7763, 5
        %v7766 = vsel %vm433, %v7761, %v7765
        %v7767 = vshrl.u32 %v7391, 16
        %v7769 = vrot.slane %v7767, 4
        %v7770 = vor.u32 %v7769, %v7765
        %v7771 = vrot.slane %v7770, 4
        %v7773 = vshll.u32 %v7392, 16
        %v7775 = vrot.slane %v7773, 5
        %v7776 = vsel %vm433, %v7771, %v7775
        %v7777 = vunpack.c.l.b16 %v7406
        %v7778 = vunpack.c.l.b16 %v7416
        %v7779 = vunpack.c.l.b16 %v7430
        %v7780 = vunpack.c.l.b16 %v7440
        %v7781 = vunpack.c.l.b16 %v7454
        %v7782 = vunpack.c.l.b16 %v7464
        %v7783 = vunpack.c.l.b16 %v7478
        %v7784 = vunpack.c.l.b16 %v7488
        %v7785 = vunpack.c.l.b16 %v7502
        %v7786 = vunpack.c.l.b16 %v7512
        %v7787 = vunpack.c.l.b16 %v7526
        %v7788 = vunpack.c.l.b16 %v7536
        %v7789 = vunpack.c.l.b16 %v7550
        %v7790 = vunpack.c.l.b16 %v7560
        %v7791 = vunpack.c.l.b16 %v7574
        %v7792 = vunpack.c.l.b16 %v7584
        %v7793 = vunpack.c.l.b16 %v7598
        %v7794 = vunpack.c.l.b16 %v7608
        %v7795 = vunpack.c.l.b16 %v7622
        %v7796 = vunpack.c.l.b16 %v7632
        %v7797 = vunpack.c.l.b16 %v7646
        %v7798 = vunpack.c.l.b16 %v7656
        %v7799 = vunpack.c.l.b16 %v7670
        %v7800 = vunpack.c.l.b16 %v7680
        %v7801 = vunpack.c.l.b16 %v7694
        %v7802 = vunpack.c.l.b16 %v7704
        %v7803 = vunpack.c.l.b16 %v7718
        %v7804 = vunpack.c.l.b16 %v7728
        %v7805 = vunpack.c.l.b16 %v7742
        %v7806 = vunpack.c.l.b16 %v7752
        %v7807 = vunpack.c.l.b16 %v7766
        %v7808 = vunpack.c.l.b16 %v7776
        %v7809 = vpack.c.b16 %v7778, %v7777
        %v7810 = vpack.c.b16 %v7780, %v7779
        %v7811 = vpack.c.b16 %v7782, %v7781
        %v7812 = vpack.c.b16 %v7784, %v7783
        %v7813 = vpack.c.b16 %v7786, %v7785
        %v7814 = vpack.c.b16 %v7788, %v7787
        %v7815 = vpack.c.b16 %v7790, %v7789
        %v7816 = vpack.c.b16 %v7792, %v7791
        %v7817 = vpack.c.b16 %v7794, %v7793
        %v7818 = vpack.c.b16 %v7796, %v7795
        %v7819 = vpack.c.b16 %v7798, %v7797
        %v7820 = vpack.c.b16 %v7800, %v7799
        %v7821 = vpack.c.b16 %v7802, %v7801
        %v7822 = vpack.c.b16 %v7804, %v7803
        %v7823 = vpack.c.b16 %v7806, %v7805
        %v7824 = vpack.c.b16 %v7808, %v7807
        %7841 = vst [vmem:[#allocation2 + $0x38] sm:$0xff] %v7809
        %7842 = vst [vmem:[#allocation2 + $0x80] sm:$0xff] %v7810
        %7843 = vst [vmem:[#allocation2 + $0xc8] sm:$0xff] %v7811
        %7844 = vst [vmem:[#allocation2 + $0x110] sm:$0xff] %v7812
        %7845 = vst [vmem:[#allocation2 + $0x158] sm:$0xff] %v7813
        %7846 = vst [vmem:[#allocation2 + $0x1a0] sm:$0xff] %v7814
        %7847 = vst [vmem:[#allocation2 + $0x1e8] sm:$0xff] %v7815
        %7848 = vst [vmem:[#allocation2 + $0x230] sm:$0xff] %v7816
        %7849 = vst [vmem:[#allocation2 + $0x278] sm:$0xff] %v7817
        %7850 = vst [vmem:[#allocation2 + $0x2c0] sm:$0xff] %v7818
        %7851 = vst [vmem:[#allocation2 + $0x308] sm:$0xff] %v7819
        %7852 = vst [vmem:[#allocation2 + $0x350] sm:$0xff] %v7820
        %7853 = vst [vmem:[#allocation2 + $0x398] sm:$0xff] %v7821
        %7854 = vst [vmem:[#allocation2 + $0x3e0] sm:$0xff] %v7822
        %7855 = vst [vmem:[#allocation2 + $0x428] sm:$0xff] %v7823
        %7856 = vst [vmem:[#allocation2 + $0x470] sm:$0xff] %v7824
        %v7857 = vld [vmem:[%s7200] sm:$0xe]
        %v7858 = vld [vmem:[%s7200 + $0x4] sm:$0xf]
        %v7859 = vld [vmem:[%s7200 + $0x8] sm:$0x1]
        %v7860 = vld [vmem:[%s7200 + $0xc] sm:$0xe]
        %v7861 = vld [vmem:[%s7200 + $0x10] sm:$0xf]
        %v7862 = vld [vmem:[%s7200 + $0x14] sm:$0x1]
        %v7863 = vld [vmem:[%s7200 + $0x18] sm:$0xe]
        %v7864 = vld [vmem:[%s7200 + $0x1c] sm:$0xf]
        %v7865 = vld [vmem:[%s7200 + $0x20] sm:$0x1]
        %v7866 = vld [vmem:[%s7200 + $0x24] sm:$0xe]
        %v7867 = vld [vmem:[%s7200 + $0x28] sm:$0xf]
        %v7868 = vld [vmem:[%s7200 + $0x2c] sm:$0x1]
        %v7869 = vld [vmem:[%s7200 + $0x30] sm:$0xe]
        %v7870 = vld [vmem:[%s7200 + $0x34] sm:$0xf]
        %v7871 = vld [vmem:[%s7200 + $0x38] sm:$0x1]
        %v7872 = vld [vmem:[%s7200 + $0x3c] sm:$0xe]
        %v7873 = vld [vmem:[%s7200 + $0x40] sm:$0xf]
        %v7874 = vld [vmem:[%s7200 + $0x44] sm:$0x1]
        %v7875 = vld [vmem:[%s7200 + $0x48] sm:$0xe]
        %v7876 = vld [vmem:[%s7200 + $0x4c] sm:$0xf]
        %v7877 = vld [vmem:[%s7200 + $0x50] sm:$0x1]
        %v7878 = vld [vmem:[%s7200 + $0x54] sm:$0xe]
        %v7879 = vld [vmem:[%s7200 + $0x58] sm:$0xf]
        %v7880 = vld [vmem:[%s7200 + $0x5c] sm:$0x1]
        %v7881 = vld [vmem:[%s7200 + $0x60] sm:$0xe]
        %v7882 = vld [vmem:[%s7200 + $0x64] sm:$0xf]
        %v7883 = vld [vmem:[%s7200 + $0x68] sm:$0x1]
        %v7884 = vld [vmem:[%s7200 + $0x6c] sm:$0xe]
        %v7885 = vld [vmem:[%s7200 + $0x70] sm:$0xf]
        %v7886 = vld [vmem:[%s7200 + $0x74] sm:$0x1]
        %v7887 = vld [vmem:[%s7200 + $0x78] sm:$0xe]
        %v7888 = vld [vmem:[%s7200 + $0x7c] sm:$0xf]
        %v7889 = vld [vmem:[%s7200 + $0x80] sm:$0x1]
        %v7890 = vld [vmem:[%s7200 + $0x84] sm:$0xe]
        %v7891 = vld [vmem:[%s7200 + $0x88] sm:$0xf]
        %v7892 = vld [vmem:[%s7200 + $0x8c] sm:$0x1]
        %v7893 = vld [vmem:[%s7200 + $0x90] sm:$0xe]
        %v7894 = vld [vmem:[%s7200 + $0x94] sm:$0xf]
        %v7895 = vld [vmem:[%s7200 + $0x98] sm:$0x1]
        %v7896 = vld [vmem:[%s7200 + $0x9c] sm:$0xe]
        %v7897 = vld [vmem:[%s7200 + $0xa0] sm:$0xf]
        %v7898 = vld [vmem:[%s7200 + $0xa4] sm:$0x1]
        %v7899 = vld [vmem:[%s7200 + $0xa8] sm:$0xe]
        %v7900 = vld [vmem:[%s7200 + $0xac] sm:$0xf]
        %v7901 = vld [vmem:[%s7200 + $0xb0] sm:$0x1]
        %v7902 = vld [vmem:[%s7200 + $0xb4] sm:$0xe]
        %v7903 = vld [vmem:[%s7200 + $0xb8] sm:$0xf]
        %v7904 = vld [vmem:[%s7200 + $0xbc] sm:$0x1]
        %v7953 = vrot.slane %v7857, 5
        %v7954 = vrot.slane %v7953, 4
        %v7955 = vrot.slane %v7858, 5
        %v7956 = vsel %vm996, %v7954, %v7955
        %v7957 = vrot.slane %v7955, 4
        %v7958 = vrot.slane %v7859, 5
        %v7959 = vsel %vm996, %v7957, %v7958
        %v7960 = vrot.slane %v7860, 5
        %v7961 = vrot.slane %v7960, 4
        %v7962 = vrot.slane %v7861, 5
        %v7963 = vsel %vm996, %v7961, %v7962
        %v7964 = vrot.slane %v7962, 4
        %v7965 = vrot.slane %v7862, 5
        %v7966 = vsel %vm996, %v7964, %v7965
        %v7967 = vrot.slane %v7863, 5
        %v7968 = vrot.slane %v7967, 4
        %v7969 = vrot.slane %v7864, 5
        %v7970 = vsel %vm996, %v7968, %v7969
        %v7971 = vrot.slane %v7969, 4
        %v7972 = vrot.slane %v7865, 5
        %v7973 = vsel %vm996, %v7971, %v7972
        %v7974 = vrot.slane %v7866, 5
        %v7975 = vrot.slane %v7974, 4
        %v7976 = vrot.slane %v7867, 5
        %v7977 = vsel %vm996, %v7975, %v7976
        %v7978 = vrot.slane %v7976, 4
        %v7979 = vrot.slane %v7868, 5
        %v7980 = vsel %vm996, %v7978, %v7979
        %v7981 = vrot.slane %v7869, 5
        %v7982 = vrot.slane %v7981, 4
        %v7983 = vrot.slane %v7870, 5
        %v7984 = vsel %vm996, %v7982, %v7983
        %v7985 = vrot.slane %v7983, 4
        %v7986 = vrot.slane %v7871, 5
        %v7987 = vsel %vm996, %v7985, %v7986
        %v7988 = vrot.slane %v7872, 5
        %v7989 = vrot.slane %v7988, 4
        %v7990 = vrot.slane %v7873, 5
        %v7991 = vsel %vm996, %v7989, %v7990
        %v7992 = vrot.slane %v7990, 4
        %v7993 = vrot.slane %v7874, 5
        %v7994 = vsel %vm996, %v7992, %v7993
        %v7995 = vrot.slane %v7875, 5
        %v7996 = vrot.slane %v7995, 4
        %v7997 = vrot.slane %v7876, 5
        %v7998 = vsel %vm996, %v7996, %v7997
        %v7999 = vrot.slane %v7997, 4
        %v8000 = vrot.slane %v7877, 5
        %v8001 = vsel %vm996, %v7999, %v8000
        %v8002 = vrot.slane %v7878, 5
        %v8003 = vrot.slane %v8002, 4
        %v8004 = vrot.slane %v7879, 5
        %v8005 = vsel %vm996, %v8003, %v8004
        %v8006 = vrot.slane %v8004, 4
        %v8007 = vrot.slane %v7880, 5
        %v8008 = vsel %vm996, %v8006, %v8007
        %v8009 = vrot.slane %v7881, 5
        %v8010 = vrot.slane %v8009, 4
        %v8011 = vrot.slane %v7882, 5
        %v8012 = vsel %vm996, %v8010, %v8011
        %v8013 = vrot.slane %v8011, 4
        %v8014 = vrot.slane %v7883, 5
        %v8015 = vsel %vm996, %v8013, %v8014
        %v8016 = vrot.slane %v7884, 5
        %v8017 = vrot.slane %v8016, 4
        %v8018 = vrot.slane %v7885, 5
        %v8019 = vsel %vm996, %v8017, %v8018
        %v8020 = vrot.slane %v8018, 4
        %v8021 = vrot.slane %v7886, 5
        %v8022 = vsel %vm996, %v8020, %v8021
        %v8023 = vrot.slane %v7887, 5
        %v8024 = vrot.slane %v8023, 4
        %v8025 = vrot.slane %v7888, 5
        %v8026 = vsel %vm996, %v8024, %v8025
        %v8027 = vrot.slane %v8025, 4
        %v8028 = vrot.slane %v7889, 5
        %v8029 = vsel %vm996, %v8027, %v8028
        %v8030 = vrot.slane %v7890, 5
        %v8031 = vrot.slane %v8030, 4
        %v8032 = vrot.slane %v7891, 5
        %v8033 = vsel %vm996, %v8031, %v8032
        %v8034 = vrot.slane %v8032, 4
        %v8035 = vrot.slane %v7892, 5
        %v8036 = vsel %vm996, %v8034, %v8035
        %v8037 = vrot.slane %v7893, 5
        %v8038 = vrot.slane %v8037, 4
        %v8039 = vrot.slane %v7894, 5
        %v8040 = vsel %vm996, %v8038, %v8039
        %v8041 = vrot.slane %v8039, 4
        %v8042 = vrot.slane %v7895, 5
        %v8043 = vsel %vm996, %v8041, %v8042
        %v8044 = vrot.slane %v7896, 5
        %v8045 = vrot.slane %v8044, 4
        %v8046 = vrot.slane %v7897, 5
        %v8047 = vsel %vm996, %v8045, %v8046
        %v8048 = vrot.slane %v8046, 4
        %v8049 = vrot.slane %v7898, 5
        %v8050 = vsel %vm996, %v8048, %v8049
        %v8051 = vrot.slane %v7899, 5
        %v8052 = vrot.slane %v8051, 4
        %v8053 = vrot.slane %v7900, 5
        %v8054 = vsel %vm996, %v8052, %v8053
        %v8055 = vrot.slane %v8053, 4
        %v8056 = vrot.slane %v7901, 5
        %v8057 = vsel %vm996, %v8055, %v8056
        %v8058 = vrot.slane %v7902, 5
        %v8059 = vrot.slane %v8058, 4
        %v8060 = vrot.slane %v7903, 5
        %v8061 = vsel %vm996, %v8059, %v8060
        %v8062 = vrot.slane %v8060, 4
        %v8063 = vrot.slane %v7904, 5
        %v8064 = vsel %vm996, %v8062, %v8063
        %v8065 = vunpack.c.l.b16 %v7956
        %v8066 = vunpack.c.l.b16 %v7959
        %v8067 = vunpack.c.l.b16 %v7963
        %v8068 = vunpack.c.l.b16 %v7966
        %v8069 = vunpack.c.l.b16 %v7970
        %v8070 = vunpack.c.l.b16 %v7973
        %v8071 = vunpack.c.l.b16 %v7977
        %v8072 = vunpack.c.l.b16 %v7980
        %v8073 = vunpack.c.l.b16 %v7984
        %v8074 = vunpack.c.l.b16 %v7987
        %v8075 = vunpack.c.l.b16 %v7991
        %v8076 = vunpack.c.l.b16 %v7994
        %v8077 = vunpack.c.l.b16 %v7998
        %v8078 = vunpack.c.l.b16 %v8001
        %v8079 = vunpack.c.l.b16 %v8005
        %v8080 = vunpack.c.l.b16 %v8008
        %v8081 = vunpack.c.l.b16 %v8012
        %v8082 = vunpack.c.l.b16 %v8015
        %v8083 = vunpack.c.l.b16 %v8019
        %v8084 = vunpack.c.l.b16 %v8022
        %v8085 = vunpack.c.l.b16 %v8026
        %v8086 = vunpack.c.l.b16 %v8029
        %v8087 = vunpack.c.l.b16 %v8033
        %v8088 = vunpack.c.l.b16 %v8036
        %v8089 = vunpack.c.l.b16 %v8040
        %v8090 = vunpack.c.l.b16 %v8043
        %v8091 = vunpack.c.l.b16 %v8047
        %v8092 = vunpack.c.l.b16 %v8050
        %v8093 = vunpack.c.l.b16 %v8054
        %v8094 = vunpack.c.l.b16 %v8057
        %v8095 = vunpack.c.l.b16 %v8061
        %v8096 = vunpack.c.l.b16 %v8064
        %v8097 = vpack.c.b16 %v8066, %v8065
        %v8098 = vpack.c.b16 %v8068, %v8067
        %v8099 = vpack.c.b16 %v8070, %v8069
        %v8100 = vpack.c.b16 %v8072, %v8071
        %v8101 = vpack.c.b16 %v8074, %v8073
        %v8102 = vpack.c.b16 %v8076, %v8075
        %v8103 = vpack.c.b16 %v8078, %v8077
        %v8104 = vpack.c.b16 %v8080, %v8079
        %v8105 = vpack.c.b16 %v8082, %v8081
        %v8106 = vpack.c.b16 %v8084, %v8083
        %v8107 = vpack.c.b16 %v8086, %v8085
        %v8108 = vpack.c.b16 %v8088, %v8087
        %v8109 = vpack.c.b16 %v8090, %v8089
        %v8110 = vpack.c.b16 %v8092, %v8091
        %v8111 = vpack.c.b16 %v8094, %v8093
        %v8112 = vpack.c.b16 %v8096, %v8095
        %8129 = vst [vmem:[#allocation2 + $0x40] sm:$0xff] %v8097
        %8130 = vst [vmem:[#allocation2 + $0x88] sm:$0xff] %v8098
        %8131 = vst [vmem:[#allocation2 + $0xd0] sm:$0xff] %v8099
        %8132 = vst [vmem:[#allocation2 + $0x118] sm:$0xff] %v8100
        %8133 = vst [vmem:[#allocation2 + $0x160] sm:$0xff] %v8101
        %8134 = vst [vmem:[#allocation2 + $0x1a8] sm:$0xff] %v8102
        %8135 = vst [vmem:[#allocation2 + $0x1f0] sm:$0xff] %v8103
        %8136 = vst [vmem:[#allocation2 + $0x238] sm:$0xff] %v8104
        %8137 = vst [vmem:[#allocation2 + $0x280] sm:$0xff] %v8105
        %8138 = vst [vmem:[#allocation2 + $0x2c8] sm:$0xff] %v8106
        %8139 = vst [vmem:[#allocation2 + $0x310] sm:$0xff] %v8107
        %8140 = vst [vmem:[#allocation2 + $0x358] sm:$0xff] %v8108
        %8141 = vst [vmem:[#allocation2 + $0x3a0] sm:$0xff] %v8109
        %8142 = vst [vmem:[#allocation2 + $0x3e8] sm:$0xff] %v8110
        %8143 = vst [vmem:[#allocation2 + $0x430] sm:$0xff] %v8111
        %8144 = vst [vmem:[#allocation2 + $0x478] sm:$0xff] %v8112
        %v8145 = vld [vmem:[#allocation2] sm:$0xff]
        %v8146 = vld [vmem:[#allocation2 + $0x8] sm:$0xff]
        %v8147 = vld [vmem:[#allocation2 + $0x10] sm:$0xff]
        %v8148 = vld [vmem:[#allocation2 + $0x18] sm:$0xff]
        %v8149 = vld [vmem:[#allocation2 + $0x20] sm:$0xff]
        %v8150 = vld [vmem:[#allocation2 + $0x28] sm:$0xff]
        %v8151 = vld [vmem:[#allocation2 + $0x30] sm:$0xff]
        %v8152 = vld [vmem:[#allocation2 + $0x38] sm:$0xff]
        %v8153 = vld [vmem:[#allocation2 + $0x40] sm:$0xff]
        %v8154 = vld [vmem:[#allocation2 + $0x48] sm:$0xff]
        %v8155 = vld [vmem:[#allocation2 + $0x50] sm:$0xff]
        %v8156 = vld [vmem:[#allocation2 + $0x58] sm:$0xff]
        %v8157 = vld [vmem:[#allocation2 + $0x60] sm:$0xff]
        %v8158 = vld [vmem:[#allocation2 + $0x68] sm:$0xff]
        %v8159 = vld [vmem:[#allocation2 + $0x70] sm:$0xff]
        %v8160 = vld [vmem:[#allocation2 + $0x78] sm:$0xff]
        %v8161 = vld [vmem:[#allocation2 + $0x80] sm:$0xff]
        %v8162 = vld [vmem:[#allocation2 + $0x88] sm:$0xff]
        %v8163 = vld [vmem:[#allocation2 + $0x90] sm:$0xff]
        %v8164 = vld [vmem:[#allocation2 + $0x98] sm:$0xff]
        %v8165 = vld [vmem:[#allocation2 + $0xa0] sm:$0xff]
        %v8166 = vld [vmem:[#allocation2 + $0xa8] sm:$0xff]
        %v8167 = vld [vmem:[#allocation2 + $0xb0] sm:$0xff]
        %v8168 = vld [vmem:[#allocation2 + $0xb8] sm:$0xff]
        %v8169 = vld [vmem:[#allocation2 + $0xc0] sm:$0xff]
        %v8170 = vld [vmem:[#allocation2 + $0xc8] sm:$0xff]
        %v8171 = vld [vmem:[#allocation2 + $0xd0] sm:$0xff]
        %v8172 = vld [vmem:[#allocation2 + $0xd8] sm:$0xff]
        %v8173 = vld [vmem:[#allocation2 + $0xe0] sm:$0xff]
        %v8174 = vld [vmem:[#allocation2 + $0xe8] sm:$0xff]
        %v8175 = vld [vmem:[#allocation2 + $0xf0] sm:$0xff]
        %v8176 = vld [vmem:[#allocation2 + $0xf8] sm:$0xff]
        %v8177 = vld [vmem:[#allocation2 + $0x100] sm:$0xff]
        %v8178 = vld [vmem:[#allocation2 + $0x108] sm:$0xff]
        %v8179 = vld [vmem:[#allocation2 + $0x110] sm:$0xff]
        %v8180 = vld [vmem:[#allocation2 + $0x118] sm:$0xff]
        %v8181 = vld [vmem:[#allocation2 + $0x120] sm:$0xff]
        %v8182 = vld [vmem:[#allocation2 + $0x128] sm:$0xff]
        %v8183 = vld [vmem:[#allocation2 + $0x130] sm:$0xff]
        %v8184 = vld [vmem:[#allocation2 + $0x138] sm:$0xff]
        %v8185 = vld [vmem:[#allocation2 + $0x140] sm:$0xff]
        %v8186 = vld [vmem:[#allocation2 + $0x148] sm:$0xff]
        %v8187 = vld [vmem:[#allocation2 + $0x150] sm:$0xff]
        %v8188 = vld [vmem:[#allocation2 + $0x158] sm:$0xff]
        %v8189 = vld [vmem:[#allocation2 + $0x160] sm:$0xff]
        %v8190 = vld [vmem:[#allocation2 + $0x168] sm:$0xff]
        %v8191 = vld [vmem:[#allocation2 + $0x170] sm:$0xff]
        %v8192 = vld [vmem:[#allocation2 + $0x178] sm:$0xff]
        %v8193 = vld [vmem:[#allocation2 + $0x180] sm:$0xff]
        %v8194 = vld [vmem:[#allocation2 + $0x188] sm:$0xff]
        %v8195 = vld [vmem:[#allocation2 + $0x190] sm:$0xff]
        %v8196 = vld [vmem:[#allocation2 + $0x198] sm:$0xff]
        %v8197 = vld [vmem:[#allocation2 + $0x1a0] sm:$0xff]
        %v8198 = vld [vmem:[#allocation2 + $0x1a8] sm:$0xff]
        %v8199 = vld [vmem:[#allocation2 + $0x1b0] sm:$0xff]
        %v8200 = vld [vmem:[#allocation2 + $0x1b8] sm:$0xff]
        %v8201 = vld [vmem:[#allocation2 + $0x1c0] sm:$0xff]
        %v8202 = vld [vmem:[#allocation2 + $0x1c8] sm:$0xff]
        %v8203 = vld [vmem:[#allocation2 + $0x1d0] sm:$0xff]
        %v8204 = vld [vmem:[#allocation2 + $0x1d8] sm:$0xff]
        %v8205 = vld [vmem:[#allocation2 + $0x1e0] sm:$0xff]
        %v8206 = vld [vmem:[#allocation2 + $0x1e8] sm:$0xff]
        %v8207 = vld [vmem:[#allocation2 + $0x1f0] sm:$0xff]
        %v8208 = vld [vmem:[#allocation2 + $0x1f8] sm:$0xff]
        %v8209 = vld [vmem:[#allocation2 + $0x200] sm:$0xff]
        %v8210 = vld [vmem:[#allocation2 + $0x208] sm:$0xff]
        %v8211 = vld [vmem:[#allocation2 + $0x210] sm:$0xff]
        %v8212 = vld [vmem:[#allocation2 + $0x218] sm:$0xff]
        %v8213 = vld [vmem:[#allocation2 + $0x220] sm:$0xff]
        %v8214 = vld [vmem:[#allocation2 + $0x228] sm:$0xff]
        %v8215 = vld [vmem:[#allocation2 + $0x230] sm:$0xff]
        %v8216 = vld [vmem:[#allocation2 + $0x238] sm:$0xff]
        %v8217 = vld [vmem:[#allocation2 + $0x240] sm:$0xff]
        %v8218 = vld [vmem:[#allocation2 + $0x248] sm:$0xff]
        %v8219 = vld [vmem:[#allocation2 + $0x250] sm:$0xff]
        %v8220 = vld [vmem:[#allocation2 + $0x258] sm:$0xff]
        %v8221 = vld [vmem:[#allocation2 + $0x260] sm:$0xff]
        %v8222 = vld [vmem:[#allocation2 + $0x268] sm:$0xff]
        %v8223 = vld [vmem:[#allocation2 + $0x270] sm:$0xff]
        %v8224 = vld [vmem:[#allocation2 + $0x278] sm:$0xff]
        %v8225 = vld [vmem:[#allocation2 + $0x280] sm:$0xff]
        %v8226 = vld [vmem:[#allocation2 + $0x288] sm:$0xff]
        %v8227 = vld [vmem:[#allocation2 + $0x290] sm:$0xff]
        %v8228 = vld [vmem:[#allocation2 + $0x298] sm:$0xff]
        %v8229 = vld [vmem:[#allocation2 + $0x2a0] sm:$0xff]
        %v8230 = vld [vmem:[#allocation2 + $0x2a8] sm:$0xff]
        %v8231 = vld [vmem:[#allocation2 + $0x2b0] sm:$0xff]
        %v8232 = vld [vmem:[#allocation2 + $0x2b8] sm:$0xff]
        %v8233 = vld [vmem:[#allocation2 + $0x2c0] sm:$0xff]
        %v8234 = vld [vmem:[#allocation2 + $0x2c8] sm:$0xff]
        %v8235 = vld [vmem:[#allocation2 + $0x2d0] sm:$0xff]
        %v8236 = vld [vmem:[#allocation2 + $0x2d8] sm:$0xff]
        %v8237 = vld [vmem:[#allocation2 + $0x2e0] sm:$0xff]
        %v8238 = vld [vmem:[#allocation2 + $0x2e8] sm:$0xff]
        %v8239 = vld [vmem:[#allocation2 + $0x2f0] sm:$0xff]
        %v8240 = vld [vmem:[#allocation2 + $0x2f8] sm:$0xff]
        %v8241 = vld [vmem:[#allocation2 + $0x300] sm:$0xff]
        %v8242 = vld [vmem:[#allocation2 + $0x308] sm:$0xff]
        %v8243 = vld [vmem:[#allocation2 + $0x310] sm:$0xff]
        %v8244 = vld [vmem:[#allocation2 + $0x318] sm:$0xff]
        %v8245 = vld [vmem:[#allocation2 + $0x320] sm:$0xff]
        %v8246 = vld [vmem:[#allocation2 + $0x328] sm:$0xff]
        %v8247 = vld [vmem:[#allocation2 + $0x330] sm:$0xff]
        %v8248 = vld [vmem:[#allocation2 + $0x338] sm:$0xff]
        %v8249 = vld [vmem:[#allocation2 + $0x340] sm:$0xff]
        %v8250 = vld [vmem:[#allocation2 + $0x348] sm:$0xff]
        %v8251 = vld [vmem:[#allocation2 + $0x350] sm:$0xff]
        %v8252 = vld [vmem:[#allocation2 + $0x358] sm:$0xff]
        %v8253 = vld [vmem:[#allocation2 + $0x360] sm:$0xff]
        %v8254 = vld [vmem:[#allocation2 + $0x368] sm:$0xff]
        %v8255 = vld [vmem:[#allocation2 + $0x370] sm:$0xff]
        %v8256 = vld [vmem:[#allocation2 + $0x378] sm:$0xff]
        %v8257 = vld [vmem:[#allocation2 + $0x380] sm:$0xff]
        %v8258 = vld [vmem:[#allocation2 + $0x388] sm:$0xff]
        %v8259 = vld [vmem:[#allocation2 + $0x390] sm:$0xff]
        %v8260 = vld [vmem:[#allocation2 + $0x398] sm:$0xff]
        %v8261 = vld [vmem:[#allocation2 + $0x3a0] sm:$0xff]
        %v8262 = vld [vmem:[#allocation2 + $0x3a8] sm:$0xff]
        %v8263 = vld [vmem:[#allocation2 + $0x3b0] sm:$0xff]
        %v8264 = vld [vmem:[#allocation2 + $0x3b8] sm:$0xff]
        %v8265 = vld [vmem:[#allocation2 + $0x3c0] sm:$0xff]
        %v8266 = vld [vmem:[#allocation2 + $0x3c8] sm:$0xff]
        %v8267 = vld [vmem:[#allocation2 + $0x3d0] sm:$0xff]
        %v8268 = vld [vmem:[#allocation2 + $0x3d8] sm:$0xff]
        %v8269 = vld [vmem:[#allocation2 + $0x3e0] sm:$0xff]
        %v8270 = vld [vmem:[#allocation2 + $0x3e8] sm:$0xff]
        %v8271 = vld [vmem:[#allocation2 + $0x3f0] sm:$0xff]
        %v8272 = vld [vmem:[#allocation2 + $0x3f8] sm:$0xff]
        %v8273 = vld [vmem:[#allocation2 + $0x400] sm:$0xff]
        %v8274 = vld [vmem:[#allocation2 + $0x408] sm:$0xff]
        %v8275 = vld [vmem:[#allocation2 + $0x410] sm:$0xff]
        %v8276 = vld [vmem:[#allocation2 + $0x418] sm:$0xff]
        %v8277 = vld [vmem:[#allocation2 + $0x420] sm:$0xff]
        %v8278 = vld [vmem:[#allocation2 + $0x428] sm:$0xff]
        %v8279 = vld [vmem:[#allocation2 + $0x430] sm:$0xff]
        %v8280 = vld [vmem:[#allocation2 + $0x438] sm:$0xff]
        %v8281 = vld [vmem:[#allocation2 + $0x440] sm:$0xff]
        %v8282 = vld [vmem:[#allocation2 + $0x448] sm:$0xff]
        %v8283 = vld [vmem:[#allocation2 + $0x450] sm:$0xff]
        %v8284 = vld [vmem:[#allocation2 + $0x458] sm:$0xff]
        %v8285 = vld [vmem:[#allocation2 + $0x460] sm:$0xff]
        %v8286 = vld [vmem:[#allocation2 + $0x468] sm:$0xff]
        %v8287 = vld [vmem:[#allocation2 + $0x470] sm:$0xff]
        %v8288 = vld [vmem:[#allocation2 + $0x478] sm:$0xff]
        %v8289 = vld [vmem:[#allocation4] sm:$0xf]
        %v8290 = vld [vmem:[#allocation4 + $0x4] sm:$0xf]
        %v8291 = vld [vmem:[#allocation4 + $0x8] sm:$0xf]
        %v8292 = vld [vmem:[#allocation4 + $0xc] sm:$0xf]
        %v8293 = vld [vmem:[#allocation4 + $0x10] sm:$0xf]
        %v8294 = vld [vmem:[#allocation4 + $0x14] sm:$0xf]
        %v8295 = vld [vmem:[#allocation4 + $0x18] sm:$0xf]
        %v8296 = vld [vmem:[#allocation4 + $0x1c] sm:$0xf]
        %v8297 = vld [vmem:[#allocation4 + $0x20] sm:$0xf]
        %v8298 = vld [vmem:[#allocation4 + $0x24] sm:$0xf]
        %v8299 = vld [vmem:[#allocation4 + $0x28] sm:$0xf]
        %v8300 = vld [vmem:[#allocation4 + $0x2c] sm:$0xf]
        %v8301 = vld [vmem:[#allocation4 + $0x30] sm:$0xf]
        %v8302 = vld [vmem:[#allocation4 + $0x34] sm:$0xf]
        %v8303 = vld [vmem:[#allocation4 + $0x38] sm:$0xf]
        %v8304 = vld [vmem:[#allocation4 + $0x3c] sm:$0xf]
        %v8305 = vld [vmem:[#allocation4 + $0x40] sm:$0xf]
        %v8306 = vld [vmem:[#allocation4 + $0x44] sm:$0xf]
        %v8307 = vld [vmem:[#allocation4 + $0x48] sm:$0xf]
        %v8308 = vld [vmem:[#allocation4 + $0x4c] sm:$0xf]
        %v8309 = vld [vmem:[#allocation4 + $0x50] sm:$0xf]
        %v8310 = vld [vmem:[#allocation4 + $0x54] sm:$0xf]
        %v8311 = vld [vmem:[#allocation4 + $0x58] sm:$0xf]
        %v8312 = vld [vmem:[#allocation4 + $0x5c] sm:$0xf]
        %v8313 = vld [vmem:[#allocation4 + $0x60] sm:$0xf]
        %v8314 = vld [vmem:[#allocation4 + $0x64] sm:$0xf]
        %v8315 = vld [vmem:[#allocation4 + $0x68] sm:$0xf]
        %v8316 = vld [vmem:[#allocation4 + $0x6c] sm:$0xf]
        %v8317 = vld [vmem:[#allocation4 + $0x70] sm:$0xf]
        %v8318 = vld [vmem:[#allocation4 + $0x74] sm:$0xf]
        %v8319 = vld [vmem:[#allocation4 + $0x78] sm:$0xf]
        %v8320 = vld [vmem:[#allocation4 + $0x7c] sm:$0xf]
        %v8321 = vld [vmem:[#allocation4 + $0x80] sm:$0xf]
        %v8322 = vld [vmem:[#allocation4 + $0x84] sm:$0xf]
        %v8323 = vld [vmem:[#allocation4 + $0x88] sm:$0xf]
        %v8324 = vld [vmem:[#allocation4 + $0x8c] sm:$0xf]
        %v8325 = vld [vmem:[#allocation4 + $0x90] sm:$0xf]
        %v8326 = vld [vmem:[#allocation4 + $0x94] sm:$0xf]
        %v8327 = vld [vmem:[#allocation4 + $0x98] sm:$0xf]
        %v8328 = vld [vmem:[#allocation4 + $0x9c] sm:$0xf]
        %v8329 = vld [vmem:[#allocation4 + $0xa0] sm:$0xf]
        %v8330 = vld [vmem:[#allocation4 + $0xa4] sm:$0xf]
        %v8331 = vld [vmem:[#allocation4 + $0xa8] sm:$0xf]
        %v8332 = vld [vmem:[#allocation4 + $0xac] sm:$0xf]
        %v8333 = vld [vmem:[#allocation4 + $0xb0] sm:$0xf]
        %v8334 = vld [vmem:[#allocation4 + $0xb4] sm:$0xf]
        %v8335 = vld [vmem:[#allocation4 + $0xb8] sm:$0xf]
        %v8336 = vld [vmem:[#allocation4 + $0xbc] sm:$0xf]
        %v8337 = vld [vmem:[#allocation4 + $0xc0] sm:$0xf]
        %v8338 = vld [vmem:[#allocation4 + $0xc4] sm:$0xf]
        %v8339 = vld [vmem:[#allocation4 + $0xc8] sm:$0xf]
        %v8340 = vld [vmem:[#allocation4 + $0xcc] sm:$0xf]
        %v8341 = vld [vmem:[#allocation4 + $0xd0] sm:$0xf]
        %v8342 = vld [vmem:[#allocation4 + $0xd4] sm:$0xf]
        %v8343 = vld [vmem:[#allocation4 + $0xd8] sm:$0xf]
        %v8344 = vld [vmem:[#allocation4 + $0xdc] sm:$0xf]
        %v8345 = vld [vmem:[#allocation4 + $0xe0] sm:$0xf]
        %v8346 = vld [vmem:[#allocation4 + $0xe4] sm:$0xf]
        %v8347 = vld [vmem:[#allocation4 + $0xe8] sm:$0xf]
        %v8348 = vld [vmem:[#allocation4 + $0xec] sm:$0xf]
        %v8349 = vld [vmem:[#allocation4 + $0xf0] sm:$0xf]
        %v8350 = vld [vmem:[#allocation4 + $0xf4] sm:$0xf]
        %v8351 = vld [vmem:[#allocation4 + $0xf8] sm:$0xf]
        %v8352 = vld [vmem:[#allocation4 + $0xfc] sm:$0xf]
        %v8353 = vld [vmem:[#allocation4 + $0x100] sm:$0xf]
        %v8354 = vld [vmem:[#allocation4 + $0x104] sm:$0xf]
        %v8355 = vld [vmem:[#allocation4 + $0x108] sm:$0xf]
        %v8356 = vld [vmem:[#allocation4 + $0x10c] sm:$0xf]
        %v8357 = vld [vmem:[#allocation4 + $0x110] sm:$0xf]
        %v8358 = vld [vmem:[#allocation4 + $0x114] sm:$0xf]
        %v8359 = vld [vmem:[#allocation4 + $0x118] sm:$0xf]
        %v8360 = vld [vmem:[#allocation4 + $0x11c] sm:$0xf]
        %v8361 = vld [vmem:[#allocation4 + $0x120] sm:$0xf]
        %v8362 = vld [vmem:[#allocation4 + $0x124] sm:$0xf]
        %v8363 = vld [vmem:[#allocation4 + $0x128] sm:$0xf]
        %v8364 = vld [vmem:[#allocation4 + $0x12c] sm:$0xf]
        %v8365 = vld [vmem:[#allocation4 + $0x130] sm:$0xf]
        %v8366 = vld [vmem:[#allocation4 + $0x134] sm:$0xf]
        %v8367 = vld [vmem:[#allocation4 + $0x138] sm:$0xf]
        %v8368 = vld [vmem:[#allocation4 + $0x13c] sm:$0xf]
        %v8369 = vld [vmem:[#allocation4 + $0x140] sm:$0xf]
        %v8370 = vld [vmem:[#allocation4 + $0x144] sm:$0xf]
        %v8371 = vld [vmem:[#allocation4 + $0x148] sm:$0xf]
        %v8372 = vld [vmem:[#allocation4 + $0x14c] sm:$0xf]
        %v8373 = vld [vmem:[#allocation4 + $0x150] sm:$0xf]
        %v8374 = vld [vmem:[#allocation4 + $0x154] sm:$0xf]
        %v8375 = vld [vmem:[#allocation4 + $0x158] sm:$0xf]
        %v8376 = vld [vmem:[#allocation4 + $0x15c] sm:$0xf]
        %v8377 = vld [vmem:[#allocation4 + $0x160] sm:$0xf]
        %v8378 = vld [vmem:[#allocation4 + $0x164] sm:$0xf]
        %v8379 = vld [vmem:[#allocation4 + $0x168] sm:$0xf]
        %v8380 = vld [vmem:[#allocation4 + $0x16c] sm:$0xf]
        %v8381 = vld [vmem:[#allocation4 + $0x170] sm:$0xf]
        %v8382 = vld [vmem:[#allocation4 + $0x174] sm:$0xf]
        %v8383 = vld [vmem:[#allocation4 + $0x178] sm:$0xf]
        %v8384 = vld [vmem:[#allocation4 + $0x17c] sm:$0xf]
        %v8385 = vld [vmem:[#allocation4 + $0x180] sm:$0xf]
        %v8386 = vld [vmem:[#allocation4 + $0x184] sm:$0xf]
        %v8387 = vld [vmem:[#allocation4 + $0x188] sm:$0xf]
        %v8388 = vld [vmem:[#allocation4 + $0x18c] sm:$0xf]
        %v8389 = vld [vmem:[#allocation4 + $0x190] sm:$0xf]
        %v8390 = vld [vmem:[#allocation4 + $0x194] sm:$0xf]
        %v8391 = vld [vmem:[#allocation4 + $0x198] sm:$0xf]
        %v8392 = vld [vmem:[#allocation4 + $0x19c] sm:$0xf]
        %v8393 = vld [vmem:[#allocation4 + $0x1a0] sm:$0xf]
        %v8394 = vld [vmem:[#allocation4 + $0x1a4] sm:$0xf]
        %v8395 = vld [vmem:[#allocation4 + $0x1a8] sm:$0xf]
        %v8396 = vld [vmem:[#allocation4 + $0x1ac] sm:$0xf]
        %v8397 = vld [vmem:[#allocation4 + $0x1b0] sm:$0xf]
        %v8398 = vld [vmem:[#allocation4 + $0x1b4] sm:$0xf]
        %v8399 = vld [vmem:[#allocation4 + $0x1b8] sm:$0xf]
        %v8400 = vld [vmem:[#allocation4 + $0x1bc] sm:$0xf]
        %v8401 = vld [vmem:[#allocation4 + $0x1c0] sm:$0xf]
        %v8402 = vld [vmem:[#allocation4 + $0x1c4] sm:$0xf]
        %v8403 = vld [vmem:[#allocation4 + $0x1c8] sm:$0xf]
        %v8404 = vld [vmem:[#allocation4 + $0x1cc] sm:$0xf]
        %v8405 = vld [vmem:[#allocation4 + $0x1d0] sm:$0xf]
        %v8406 = vld [vmem:[#allocation4 + $0x1d4] sm:$0xf]
        %v8407 = vld [vmem:[#allocation4 + $0x1d8] sm:$0xf]
        %v8408 = vld [vmem:[#allocation4 + $0x1dc] sm:$0xf]
        %v8409 = vld [vmem:[#allocation4 + $0x1e0] sm:$0xf]
        %v8410 = vld [vmem:[#allocation4 + $0x1e4] sm:$0xf]
        %v8411 = vld [vmem:[#allocation4 + $0x1e8] sm:$0xf]
        %v8412 = vld [vmem:[#allocation4 + $0x1ec] sm:$0xf]
        %v8413 = vld [vmem:[#allocation4 + $0x1f0] sm:$0xf]
        %v8414 = vld [vmem:[#allocation4 + $0x1f4] sm:$0xf]
        %v8415 = vld [vmem:[#allocation4 + $0x1f8] sm:$0xf]
        %v8416 = vld [vmem:[#allocation4 + $0x1fc] sm:$0xf]
        %v8417 = vld [vmem:[#allocation4 + $0x200] sm:$0xf]
        %v8418 = vld [vmem:[#allocation4 + $0x204] sm:$0xf]
        %v8419 = vld [vmem:[#allocation4 + $0x208] sm:$0xf]
        %v8420 = vld [vmem:[#allocation4 + $0x20c] sm:$0xf]
        %v8421 = vld [vmem:[#allocation4 + $0x210] sm:$0xf]
        %v8422 = vld [vmem:[#allocation4 + $0x214] sm:$0xf]
        %v8423 = vld [vmem:[#allocation4 + $0x218] sm:$0xf]
        %v8424 = vld [vmem:[#allocation4 + $0x21c] sm:$0xf]
        %v8425 = vld [vmem:[#allocation4 + $0x220] sm:$0xf]
        %v8426 = vld [vmem:[#allocation4 + $0x224] sm:$0xf]
        %v8427 = vld [vmem:[#allocation4 + $0x228] sm:$0xf]
        %v8428 = vld [vmem:[#allocation4 + $0x22c] sm:$0xf]
        %v8429 = vld [vmem:[#allocation4 + $0x230] sm:$0xf]
        %v8430 = vld [vmem:[#allocation4 + $0x234] sm:$0xf]
        %v8431 = vld [vmem:[#allocation4 + $0x238] sm:$0xf]
        %v8432 = vld [vmem:[#allocation4 + $0x23c] sm:$0xf]
        %v8433 = vld [vmem:[%s4] sm:$0x1]
        %v8435 = vlaneseq
        %v8436 = vshrl.u32 %v8435, 7
        %v8437 = vsub.s32 0, %v8436
        %v8438 = vrot.slane %v8433, %v8437
        %v8584 = vunpack.c.l.b16 %v8289
        %v8585 = vunpack.c.l.b16 %v8290
        %v8586 = vunpack.c.l.b16 %v8291
        %v8587 = vunpack.c.l.b16 %v8292
        %v8588 = vunpack.c.l.b16 %v8293
        %v8589 = vunpack.c.l.b16 %v8294
        %v8590 = vunpack.c.l.b16 %v8295
        %v8591 = vunpack.c.l.b16 %v8296
        %v8592 = vunpack.c.l.b16 %v8297
        %v8593 = vunpack.c.l.b16 %v8298
        %v8594 = vunpack.c.l.b16 %v8299
        %v8595 = vunpack.c.l.b16 %v8300
        %v8596 = vunpack.c.l.b16 %v8301
        %v8597 = vunpack.c.l.b16 %v8302
        %v8598 = vunpack.c.l.b16 %v8303
        %v8599 = vunpack.c.l.b16 %v8304
        %v8600 = vunpack.c.l.b16 %v8305
        %v8601 = vunpack.c.l.b16 %v8306
        %v8602 = vunpack.c.l.b16 %v8307
        %v8603 = vunpack.c.l.b16 %v8308
        %v8604 = vunpack.c.l.b16 %v8309
        %v8605 = vunpack.c.l.b16 %v8310
        %v8606 = vunpack.c.l.b16 %v8311
        %v8607 = vunpack.c.l.b16 %v8312
        %v8608 = vunpack.c.l.b16 %v8313
        %v8609 = vunpack.c.l.b16 %v8314
        %v8610 = vunpack.c.l.b16 %v8315
        %v8611 = vunpack.c.l.b16 %v8316
        %v8612 = vunpack.c.l.b16 %v8317
        %v8613 = vunpack.c.l.b16 %v8318
        %v8614 = vunpack.c.l.b16 %v8319
        %v8615 = vunpack.c.l.b16 %v8320
        %v8616 = vunpack.c.l.b16 %v8321
        %v8617 = vunpack.c.l.b16 %v8322
        %v8618 = vunpack.c.l.b16 %v8323
        %v8619 = vunpack.c.l.b16 %v8324
        %v8620 = vunpack.c.l.b16 %v8325
        %v8621 = vunpack.c.l.b16 %v8326
        %v8622 = vunpack.c.l.b16 %v8327
        %v8623 = vunpack.c.l.b16 %v8328
        %v8624 = vunpack.c.l.b16 %v8329
        %v8625 = vunpack.c.l.b16 %v8330
        %v8626 = vunpack.c.l.b16 %v8331
        %v8627 = vunpack.c.l.b16 %v8332
        %v8628 = vunpack.c.l.b16 %v8333
        %v8629 = vunpack.c.l.b16 %v8334
        %v8630 = vunpack.c.l.b16 %v8335
        %v8631 = vunpack.c.l.b16 %v8336
        %v8632 = vunpack.c.l.b16 %v8337
        %v8633 = vunpack.c.l.b16 %v8338
        %v8634 = vunpack.c.l.b16 %v8339
        %v8635 = vunpack.c.l.b16 %v8340
        %v8636 = vunpack.c.l.b16 %v8341
        %v8637 = vunpack.c.l.b16 %v8342
        %v8638 = vunpack.c.l.b16 %v8343
        %v8639 = vunpack.c.l.b16 %v8344
        %v8640 = vunpack.c.l.b16 %v8345
        %v8641 = vunpack.c.l.b16 %v8346
        %v8642 = vunpack.c.l.b16 %v8347
        %v8643 = vunpack.c.l.b16 %v8348
        %v8644 = vunpack.c.l.b16 %v8349
        %v8645 = vunpack.c.l.b16 %v8350
        %v8646 = vunpack.c.l.b16 %v8351
        %v8647 = vunpack.c.l.b16 %v8352
        %v8648 = vunpack.c.l.b16 %v8353
        %v8649 = vunpack.c.l.b16 %v8354
        %v8650 = vunpack.c.l.b16 %v8355
        %v8651 = vunpack.c.l.b16 %v8356
        %v8652 = vunpack.c.l.b16 %v8357
        %v8653 = vunpack.c.l.b16 %v8358
        %v8654 = vunpack.c.l.b16 %v8359
        %v8655 = vunpack.c.l.b16 %v8360
        %v8656 = vunpack.c.l.b16 %v8361
        %v8657 = vunpack.c.l.b16 %v8362
        %v8658 = vunpack.c.l.b16 %v8363
        %v8659 = vunpack.c.l.b16 %v8364
        %v8660 = vunpack.c.l.b16 %v8365
        %v8661 = vunpack.c.l.b16 %v8366
        %v8662 = vunpack.c.l.b16 %v8367
        %v8663 = vunpack.c.l.b16 %v8368
        %v8664 = vunpack.c.l.b16 %v8369
        %v8665 = vunpack.c.l.b16 %v8370
        %v8666 = vunpack.c.l.b16 %v8371
        %v8667 = vunpack.c.l.b16 %v8372
        %v8668 = vunpack.c.l.b16 %v8373
        %v8669 = vunpack.c.l.b16 %v8374
        %v8670 = vunpack.c.l.b16 %v8375
        %v8671 = vunpack.c.l.b16 %v8376
        %v8672 = vunpack.c.l.b16 %v8377
        %v8673 = vunpack.c.l.b16 %v8378
        %v8674 = vunpack.c.l.b16 %v8379
        %v8675 = vunpack.c.l.b16 %v8380
        %v8676 = vunpack.c.l.b16 %v8381
        %v8677 = vunpack.c.l.b16 %v8382
        %v8678 = vunpack.c.l.b16 %v8383
        %v8679 = vunpack.c.l.b16 %v8384
        %v8680 = vunpack.c.l.b16 %v8385
        %v8681 = vunpack.c.l.b16 %v8386
        %v8682 = vunpack.c.l.b16 %v8387
        %v8683 = vunpack.c.l.b16 %v8388
        %v8684 = vunpack.c.l.b16 %v8389
        %v8685 = vunpack.c.l.b16 %v8390
        %v8686 = vunpack.c.l.b16 %v8391
        %v8687 = vunpack.c.l.b16 %v8392
        %v8688 = vunpack.c.l.b16 %v8393
        %v8689 = vunpack.c.l.b16 %v8394
        %v8690 = vunpack.c.l.b16 %v8395
        %v8691 = vunpack.c.l.b16 %v8396
        %v8692 = vunpack.c.l.b16 %v8397
        %v8693 = vunpack.c.l.b16 %v8398
        %v8694 = vunpack.c.l.b16 %v8399
        %v8695 = vunpack.c.l.b16 %v8400
        %v8696 = vunpack.c.l.b16 %v8401
        %v8697 = vunpack.c.l.b16 %v8402
        %v8698 = vunpack.c.l.b16 %v8403
        %v8699 = vunpack.c.l.b16 %v8404
        %v8700 = vunpack.c.l.b16 %v8405
        %v8701 = vunpack.c.l.b16 %v8406
        %v8702 = vunpack.c.l.b16 %v8407
        %v8703 = vunpack.c.l.b16 %v8408
        %v8704 = vunpack.c.l.b16 %v8409
        %v8705 = vunpack.c.l.b16 %v8410
        %v8706 = vunpack.c.l.b16 %v8411
        %v8707 = vunpack.c.l.b16 %v8412
        %v8708 = vunpack.c.l.b16 %v8413
        %v8709 = vunpack.c.l.b16 %v8414
        %v8710 = vunpack.c.l.b16 %v8415
        %v8711 = vunpack.c.l.b16 %v8416
        %v8712 = vunpack.c.l.b16 %v8417
        %v8713 = vunpack.c.l.b16 %v8418
        %v8714 = vunpack.c.l.b16 %v8419
        %v8715 = vunpack.c.l.b16 %v8420
        %v8716 = vunpack.c.l.b16 %v8421
        %v8717 = vunpack.c.l.b16 %v8422
        %v8718 = vunpack.c.l.b16 %v8423
        %v8719 = vunpack.c.l.b16 %v8424
        %v8720 = vunpack.c.l.b16 %v8425
        %v8721 = vunpack.c.l.b16 %v8426
        %v8722 = vunpack.c.l.b16 %v8427
        %v8723 = vunpack.c.l.b16 %v8428
        %v8724 = vunpack.c.l.b16 %v8429
        %v8725 = vunpack.c.l.b16 %v8430
        %v8726 = vunpack.c.l.b16 %v8431
        %v8727 = vunpack.c.l.b16 %v8432
        %v8728 = vpack.c.b16 %v8585, %v8584
        %v8729 = vpack.c.b16 %v8587, %v8586
        %v8730 = vpack.c.b16 %v8589, %v8588
        %v8731 = vpack.c.b16 %v8591, %v8590
        %v8732 = vpack.c.b16 %v8593, %v8592
        %v8733 = vpack.c.b16 %v8595, %v8594
        %v8734 = vpack.c.b16 %v8597, %v8596
        %v8735 = vpack.c.b16 %v8599, %v8598
        %v8736 = vpack.c.b16 %v8601, %v8600
        %v8737 = vpack.c.b16 %v8603, %v8602
        %v8738 = vpack.c.b16 %v8605, %v8604
        %v8739 = vpack.c.b16 %v8607, %v8606
        %v8740 = vpack.c.b16 %v8609, %v8608
        %v8741 = vpack.c.b16 %v8611, %v8610
        %v8742 = vpack.c.b16 %v8613, %v8612
        %v8743 = vpack.c.b16 %v8615, %v8614
        %v8744 = vpack.c.b16 %v8617, %v8616
        %v8745 = vpack.c.b16 %v8619, %v8618
        %v8746 = vpack.c.b16 %v8621, %v8620
        %v8747 = vpack.c.b16 %v8623, %v8622
        %v8748 = vpack.c.b16 %v8625, %v8624
        %v8749 = vpack.c.b16 %v8627, %v8626
        %v8750 = vpack.c.b16 %v8629, %v8628
        %v8751 = vpack.c.b16 %v8631, %v8630
        %v8752 = vpack.c.b16 %v8633, %v8632
        %v8753 = vpack.c.b16 %v8635, %v8634
        %v8754 = vpack.c.b16 %v8637, %v8636
        %v8755 = vpack.c.b16 %v8639, %v8638
        %v8756 = vpack.c.b16 %v8641, %v8640
        %v8757 = vpack.c.b16 %v8643, %v8642
        %v8758 = vpack.c.b16 %v8645, %v8644
        %v8759 = vpack.c.b16 %v8647, %v8646
        %v8760 = vpack.c.b16 %v8649, %v8648
        %v8761 = vpack.c.b16 %v8651, %v8650
        %v8762 = vpack.c.b16 %v8653, %v8652
        %v8763 = vpack.c.b16 %v8655, %v8654
        %v8764 = vpack.c.b16 %v8657, %v8656
        %v8765 = vpack.c.b16 %v8659, %v8658
        %v8766 = vpack.c.b16 %v8661, %v8660
        %v8767 = vpack.c.b16 %v8663, %v8662
        %v8768 = vpack.c.b16 %v8665, %v8664
        %v8769 = vpack.c.b16 %v8667, %v8666
        %v8770 = vpack.c.b16 %v8669, %v8668
        %v8771 = vpack.c.b16 %v8671, %v8670
        %v8772 = vpack.c.b16 %v8673, %v8672
        %v8773 = vpack.c.b16 %v8675, %v8674
        %v8774 = vpack.c.b16 %v8677, %v8676
        %v8775 = vpack.c.b16 %v8679, %v8678
        %v8776 = vpack.c.b16 %v8681, %v8680
        %v8777 = vpack.c.b16 %v8683, %v8682
        %v8778 = vpack.c.b16 %v8685, %v8684
        %v8779 = vpack.c.b16 %v8687, %v8686
        %v8780 = vpack.c.b16 %v8689, %v8688
        %v8781 = vpack.c.b16 %v8691, %v8690
        %v8782 = vpack.c.b16 %v8693, %v8692
        %v8783 = vpack.c.b16 %v8695, %v8694
        %v8784 = vpack.c.b16 %v8697, %v8696
        %v8785 = vpack.c.b16 %v8699, %v8698
        %v8786 = vpack.c.b16 %v8701, %v8700
        %v8787 = vpack.c.b16 %v8703, %v8702
        %v8788 = vpack.c.b16 %v8705, %v8704
        %v8789 = vpack.c.b16 %v8707, %v8706
        %v8790 = vpack.c.b16 %v8709, %v8708
        %v8791 = vpack.c.b16 %v8711, %v8710
        %v8792 = vpack.c.b16 %v8713, %v8712
        %v8793 = vpack.c.b16 %v8715, %v8714
        %v8794 = vpack.c.b16 %v8717, %v8716
        %v8795 = vpack.c.b16 %v8719, %v8718
        %v8796 = vpack.c.b16 %v8721, %v8720
        %v8797 = vpack.c.b16 %v8723, %v8722
        %v8798 = vpack.c.b16 %v8725, %v8724
        %v8799 = vpack.c.b16 %v8727, %v8726
        %8872 = vmatprep.subr.bf16.mxu0 0
        %8873 = vmatpush1.bf16.msra.mxu0 %v8728
        %8874 = vmatprep.subr.bf16.mxu0 0
        %8875 = vmatpush1.bf16.msra.mxu0 %v8729
        %8876 = vmatprep.subr.bf16.mxu0 0
        %8877 = vmatpush1.bf16.msra.mxu0 %v8730
        %8878 = vmatprep.subr.bf16.mxu0 0
        %8879 = vmatpush1.bf16.msra.mxu0 %v8731
        %8880 = vmatprep.subr.bf16.mxu0 0
        %8881 = vmatpush1.bf16.msra.mxu0 %v8732
        %8882 = vmatprep.subr.bf16.mxu0 0
        %8883 = vmatpush1.bf16.msra.mxu0 %v8733
        %8884 = vmatprep.subr.bf16.mxu0 0
        %8885 = vmatpush1.bf16.msra.mxu0 %v8734
        %8886 = vmatprep.subr.bf16.mxu0 0
        %8887 = vmatpush1.bf16.msra.mxu0 %v8735
        %8888 = vmatprep.subr.bf16.mxu0 0
        %8889 = vmatpush1.bf16.msra.mxu0 %v8736
        %8890 = vmatprep.subr.bf16.mxu0 0
        %8891 = vmatpush1.bf16.msra.mxu0 %v8737
        %8892 = vmatprep.subr.bf16.mxu0 0
        %8893 = vmatpush1.bf16.msra.mxu0 %v8738
        %8894 = vmatprep.subr.bf16.mxu0 0
        %8895 = vmatpush1.bf16.msra.mxu0 %v8739
        %8896 = vmatprep.subr.bf16.mxu0 0
        %8897 = vmatpush1.bf16.msra.mxu0 %v8740
        %8898 = vmatprep.subr.bf16.mxu0 0
        %8899 = vmatpush1.bf16.msra.mxu0 %v8741
        %8900 = vmatprep.subr.bf16.mxu0 0
        %8901 = vmatpush1.bf16.msra.mxu0 %v8742
        %8902 = vmatprep.subr.bf16.mxu0 0
        %8903 = vmatpush1.bf16.msra.mxu0 %v8743
        %8904 = vmatprep.mubr.bf16.mxu0 %v8146
        %8905 = vmatmul.mubr.bf16.gmra.mrb[0].mxu0 %v8145
        %v8906 = vpop.f32.mrb[0].mxu0
        %v8907 = vadd.f32 %v8438, %v8906
        %v8908 = vpop.f32.mrb[0].mxu0
        %v8909 = vpop.f32.mrb[0].mxu0
        %v8910 = vadd.f32 %v8438, %v8909
        %v8911 = vpop.f32.mrb[0].mxu0
        %8912 = vmatprep.mubr.bf16.mxu0 %v8155
        %8913 = vmatmul.mubr.bf16.gmra.mrb[0].mxu0 %v8154
        %v8914 = vpop.f32.mrb[0].mxu0
        %v8915 = vadd.f32 %v8438, %v8914
        %v8916 = vpop.f32.mrb[0].mxu0
        %v8917 = vpop.f32.mrb[0].mxu0
        %v8918 = vadd.f32 %v8438, %v8917
        %v8919 = vpop.f32.mrb[0].mxu0
        %8920 = vmatprep.mubr.bf16.mxu0 %v8164
        %8921 = vmatmul.mubr.bf16.gmra.mrb[0].mxu0 %v8163
        %v8922 = vpop.f32.mrb[0].mxu0
        %v8923 = vadd.f32 %v8438, %v8922
        %v8924 = vpop.f32.mrb[0].mxu0
        %v8925 = vpop.f32.mrb[0].mxu0
        %v8926 = vadd.f32 %v8438, %v8925
        %v8927 = vpop.f32.mrb[0].mxu0
        %8928 = vmatprep.mubr.bf16.mxu0 %v8173
        %8929 = vmatmul.mubr.bf16.gmra.mrb[0].mxu0 %v8172
        %v8930 = vpop.f32.mrb[0].mxu0
        %v8931 = vadd.f32 %v8438, %v8930
        %v8932 = vpop.f32.mrb[0].mxu0
        %v8933 = vpop.f32.mrb[0].mxu0
        %v8934 = vadd.f32 %v8438, %v8933
        %v8935 = vpop.f32.mrb[0].mxu0
        %8936 = vmatprep.mubr.bf16.mxu0 %v8182
        %8937 = vmatmul.mubr.bf16.gmra.mrb[0].mxu0 %v8181
        %v8938 = vpop.f32.mrb[0].mxu0
        %v8939 = vadd.f32 %v8438, %v8938
        %v8940 = vpop.f32.mrb[0].mxu0
        %v8941 = vpop.f32.mrb[0].mxu0
        %v8942 = vadd.f32 %v8438, %v8941
        %v8943 = vpop.f32.mrb[0].mxu0
        %8944 = vmatprep.mubr.bf16.mxu0 %v8191
        %8945 = vmatmul.mubr.bf16.gmra.mrb[0].mxu0 %v8190
        %v8946 = vpop.f32.mrb[0].mxu0
        %v8947 = vadd.f32 %v8438, %v8946
        %v8948 = vpop.f32.mrb[0].mxu0
        %v8949 = vpop.f32.mrb[0].mxu0
        %v8950 = vadd.f32 %v8438, %v8949
        %v8951 = vpop.f32.mrb[0].mxu0
        %8952 = vmatprep.mubr.bf16.mxu0 %v8200
        %8953 = vmatmul.mubr.bf16.gmra.mrb[0].mxu0 %v8199
        %v8954 = vpop.f32.mrb[0].mxu0
        %v8955 = vadd.f32 %v8438, %v8954
        %v8956 = vpop.f32.mrb[0].mxu0
        %v8957 = vpop.f32.mrb[0].mxu0
        %v8958 = vadd.f32 %v8438, %v8957
        %v8959 = vpop.f32.mrb[0].mxu0
        %8960 = vmatprep.mubr.bf16.mxu0 %v8209
        %8961 = vmatmul.mubr.bf16.gmra.mrb[0].mxu0 %v8208
        %v8962 = vpop.f32.mrb[0].mxu0
        %v8963 = vadd.f32 %v8438, %v8962
        %v8964 = vpop.f32.mrb[0].mxu0
        %v8965 = vpop.f32.mrb[0].mxu0
        %v8966 = vadd.f32 %v8438, %v8965
        %v8967 = vpop.f32.mrb[0].mxu0
        %8968 = vmatprep.mubr.bf16.mxu0 %v8218
        %8969 = vmatmul.mubr.bf16.gmra.mrb[0].mxu0 %v8217
        %v8970 = vpop.f32.mrb[0].mxu0
        %v8971 = vadd.f32 %v8438, %v8970
        %v8972 = vpop.f32.mrb[0].mxu0
        %v8973 = vpop.f32.mrb[0].mxu0
        %v8974 = vadd.f32 %v8438, %v8973
        %v8975 = vpop.f32.mrb[0].mxu0
        %8976 = vmatprep.mubr.bf16.mxu0 %v8227
        %8977 = vmatmul.mubr.bf16.gmra.mrb[0].mxu0 %v8226
        %v8978 = vpop.f32.mrb[0].mxu0
        %v8979 = vadd.f32 %v8438, %v8978
        %v8980 = vpop.f32.mrb[0].mxu0
        %v8981 = vpop.f32.mrb[0].mxu0
        %v8982 = vadd.f32 %v8438, %v8981
        %v8983 = vpop.f32.mrb[0].mxu0
        %8984 = vmatprep.mubr.bf16.mxu0 %v8236
        %8985 = vmatmul.mubr.bf16.gmra.mrb[0].mxu0 %v8235
        %v8986 = vpop.f32.mrb[0].mxu0
        %v8987 = vadd.f32 %v8438, %v8986
        %v8988 = vpop.f32.mrb[0].mxu0
        %v8989 = vpop.f32.mrb[0].mxu0
        %v8990 = vadd.f32 %v8438, %v8989
        %v8991 = vpop.f32.mrb[0].mxu0
        %8992 = vmatprep.mubr.bf16.mxu0 %v8245
        %8993 = vmatmul.mubr.bf16.gmra.mrb[0].mxu0 %v8244
        %v8994 = vpop.f32.mrb[0].mxu0
        %v8995 = vadd.f32 %v8438, %v8994
        %v8996 = vpop.f32.mrb[0].mxu0
        %v8997 = vpop.f32.mrb[0].mxu0
        %v8998 = vadd.f32 %v8438, %v8997
        %v8999 = vpop.f32.mrb[0].mxu0
        %9000 = vmatprep.mubr.bf16.mxu0 %v8254
        %9001 = vmatmul.mubr.bf16.gmra.mrb[0].mxu0 %v8253
        %v9002 = vpop.f32.mrb[0].mxu0
        %v9003 = vadd.f32 %v8438, %v9002
        %v9004 = vpop.f32.mrb[0].mxu0
        %v9005 = vpop.f32.mrb[0].mxu0
        %v9006 = vadd.f32 %v8438, %v9005
        %v9007 = vpop.f32.mrb[0].mxu0
        %9008 = vmatprep.mubr.bf16.mxu0 %v8263
        %9009 = vmatmul.mubr.bf16.gmra.mrb[0].mxu0 %v8262
        %v9010 = vpop.f32.mrb[0].mxu0
        %v9011 = vadd.f32 %v8438, %v9010
        %v9012 = vpop.f32.mrb[0].mxu0
        %v9013 = vpop.f32.mrb[0].mxu0
        %v9014 = vadd.f32 %v8438, %v9013
        %v9015 = vpop.f32.mrb[0].mxu0
        %9016 = vmatprep.mubr.bf16.mxu0 %v8272
        %9017 = vmatmul.mubr.bf16.gmra.mrb[0].mxu0 %v8271
        %v9018 = vpop.f32.mrb[0].mxu0
        %v9019 = vadd.f32 %v8438, %v9018
        %v9020 = vpop.f32.mrb[0].mxu0
        %v9021 = vpop.f32.mrb[0].mxu0
        %v9022 = vadd.f32 %v8438, %v9021
        %v9023 = vpop.f32.mrb[0].mxu0
        %9024 = vmatprep.mubr.bf16.mxu0 %v8281
        %9025 = vmatmul.mubr.bf16.gmra.mrb[0].mxu0 %v8280
        %v9026 = vpop.f32.mrb[0].mxu0
        %v9027 = vadd.f32 %v8438, %v9026
        %v9028 = vpop.f32.mrb[0].mxu0
        %v9029 = vpop.f32.mrb[0].mxu0
        %v9030 = vadd.f32 %v8438, %v9029
        %v9031 = vpop.f32.mrb[0].mxu0
        %9032 = vdwg.mxu0
        %9033 = vmatprep.subr.bf16.mxu0 0
        %9034 = vmatpush1.bf16.msra.mxu0 %v8744
        %9035 = vmatprep.subr.bf16.mxu0 0
        %9036 = vmatpush1.bf16.msra.mxu0 %v8745
        %9037 = vmatprep.subr.bf16.mxu0 0
        %9038 = vmatpush1.bf16.msra.mxu0 %v8746
        %9039 = vmatprep.subr.bf16.mxu0 0
        %9040 = vmatpush1.bf16.msra.mxu0 %v8747
        %9041 = vmatprep.subr.bf16.mxu0 0
        %9042 = vmatpush1.bf16.msra.mxu0 %v8748
        %9043 = vmatprep.subr.bf16.mxu0 0
        %9044 = vmatpush1.bf16.msra.mxu0 %v8749
        %9045 = vmatprep.subr.bf16.mxu0 0
        %9046 = vmatpush1.bf16.msra.mxu0 %v8750
        %9047 = vmatprep.subr.bf16.mxu0 0
        %9048 = vmatpush1.bf16.msra.mxu0 %v8751
        %9049 = vmatprep.subr.bf16.mxu0 0
        %9050 = vmatpush1.bf16.msra.mxu0 %v8752
        %9051 = vmatprep.subr.bf16.mxu0 0
        %9052 = vmatpush1.bf16.msra.mxu0 %v8753
        %9053 = vmatprep.subr.bf16.mxu0 0
        %9054 = vmatpush1.bf16.msra.mxu0 %v8754
        %9055 = vmatprep.subr.bf16.mxu0 0
        %9056 = vmatpush1.bf16.msra.mxu0 %v8755
        %9057 = vmatprep.subr.bf16.mxu0 0
        %9058 = vmatpush1.bf16.msra.mxu0 %v8756
        %9059 = vmatprep.subr.bf16.mxu0 0
        %9060 = vmatpush1.bf16.msra.mxu0 %v8757
        %9061 = vmatprep.subr.bf16.mxu0 0
        %9062 = vmatpush1.bf16.msra.mxu0 %v8758
        %9063 = vmatprep.subr.bf16.mxu0 0
        %9064 = vmatpush1.bf16.msra.mxu0 %v8759
        %9065 = vmatprep.mubr.bf16.mxu0 %v8148
        %9066 = vmatmul.mubr.bf16.gmra.mrb[0].mxu0 %v8147
        %v9067 = vpop.f32.mrb[0].mxu0
        %v9068 = vadd.f32 %v8907, %v9067
        %v9069 = vpop.f32.mrb[0].mxu0
        %v9070 = vpop.f32.mrb[0].mxu0
        %v9071 = vadd.f32 %v8910, %v9070
        %v9072 = vpop.f32.mrb[0].mxu0
        %9073 = vmatprep.mubr.bf16.mxu0 %v8157
        %9074 = vmatmul.mubr.bf16.gmra.mrb[0].mxu0 %v8156
        %v9075 = vpop.f32.mrb[0].mxu0
        %v9076 = vadd.f32 %v8915, %v9075
        %v9077 = vpop.f32.mrb[0].mxu0
        %v9078 = vpop.f32.mrb[0].mxu0
        %v9079 = vadd.f32 %v8918, %v9078
        %v9080 = vpop.f32.mrb[0].mxu0
        %9081 = vmatprep.mubr.bf16.mxu0 %v8166
        %9082 = vmatmul.mubr.bf16.gmra.mrb[0].mxu0 %v8165
        %v9083 = vpop.f32.mrb[0].mxu0
        %v9084 = vadd.f32 %v8923, %v9083
        %v9085 = vpop.f32.mrb[0].mxu0
        %v9086 = vpop.f32.mrb[0].mxu0
        %v9087 = vadd.f32 %v8926, %v9086
        %v9088 = vpop.f32.mrb[0].mxu0
        %9089 = vmatprep.mubr.bf16.mxu0 %v8175
        %9090 = vmatmul.mubr.bf16.gmra.mrb[0].mxu0 %v8174
        %v9091 = vpop.f32.mrb[0].mxu0
        %v9092 = vadd.f32 %v8931, %v9091
        %v9093 = vpop.f32.mrb[0].mxu0
        %v9094 = vpop.f32.mrb[0].mxu0
        %v9095 = vadd.f32 %v8934, %v9094
        %v9096 = vpop.f32.mrb[0].mxu0
        %9097 = vmatprep.mubr.bf16.mxu0 %v8184
        %9098 = vmatmul.mubr.bf16.gmra.mrb[0].mxu0 %v8183
        %v9099 = vpop.f32.mrb[0].mxu0
        %v9100 = vadd.f32 %v8939, %v9099
        %v9101 = vpop.f32.mrb[0].mxu0
        %v9102 = vpop.f32.mrb[0].mxu0
        %v9103 = vadd.f32 %v8942, %v9102
        %v9104 = vpop.f32.mrb[0].mxu0
        %9105 = vmatprep.mubr.bf16.mxu0 %v8193
        %9106 = vmatmul.mubr.bf16.gmra.mrb[0].mxu0 %v8192
        %v9107 = vpop.f32.mrb[0].mxu0
        %v9108 = vadd.f32 %v8947, %v9107
        %v9109 = vpop.f32.mrb[0].mxu0
        %v9110 = vpop.f32.mrb[0].mxu0
        %v9111 = vadd.f32 %v8950, %v9110
        %v9112 = vpop.f32.mrb[0].mxu0
        %9113 = vmatprep.mubr.bf16.mxu0 %v8202
        %9114 = vmatmul.mubr.bf16.gmra.mrb[0].mxu0 %v8201
        %v9115 = vpop.f32.mrb[0].mxu0
        %v9116 = vadd.f32 %v8955, %v9115
        %v9117 = vpop.f32.mrb[0].mxu0
        %v9118 = vpop.f32.mrb[0].mxu0
        %v9119 = vadd.f32 %v8958, %v9118
        %v9120 = vpop.f32.mrb[0].mxu0
        %9121 = vmatprep.mubr.bf16.mxu0 %v8211
        %9122 = vmatmul.mubr.bf16.gmra.mrb[0].mxu0 %v8210
        %v9123 = vpop.f32.mrb[0].mxu0
        %v9124 = vadd.f32 %v8963, %v9123
        %v9125 = vpop.f32.mrb[0].mxu0
        %v9126 = vpop.f32.mrb[0].mxu0
        %v9127 = vadd.f32 %v8966, %v9126
        %v9128 = vpop.f32.mrb[0].mxu0
        %9129 = vmatprep.mubr.bf16.mxu0 %v8220
        %9130 = vmatmul.mubr.bf16.gmra.mrb[0].mxu0 %v8219
        %v9131 = vpop.f32.mrb[0].mxu0
        %v9132 = vadd.f32 %v8971, %v9131
        %v9133 = vpop.f32.mrb[0].mxu0
        %v9134 = vpop.f32.mrb[0].mxu0
        %v9135 = vadd.f32 %v8974, %v9134
        %v9136 = vpop.f32.mrb[0].mxu0
        %9137 = vmatprep.mubr.bf16.mxu0 %v8229
        %9138 = vmatmul.mubr.bf16.gmra.mrb[0].mxu0 %v8228
        %v9139 = vpop.f32.mrb[0].mxu0
        %v9140 = vadd.f32 %v8979, %v9139
        %v9141 = vpop.f32.mrb[0].mxu0
        %v9142 = vpop.f32.mrb[0].mxu0
        %v9143 = vadd.f32 %v8982, %v9142
        %v9144 = vpop.f32.mrb[0].mxu0
        %9145 = vmatprep.mubr.bf16.mxu0 %v8238
        %9146 = vmatmul.mubr.bf16.gmra.mrb[0].mxu0 %v8237
        %v9147 = vpop.f32.mrb[0].mxu0
        %v9148 = vadd.f32 %v8987, %v9147
        %v9149 = vpop.f32.mrb[0].mxu0
        %v9150 = vpop.f32.mrb[0].mxu0
        %v9151 = vadd.f32 %v8990, %v9150
        %v9152 = vpop.f32.mrb[0].mxu0
        %9153 = vmatprep.mubr.bf16.mxu0 %v8247
        %9154 = vmatmul.mubr.bf16.gmra.mrb[0].mxu0 %v8246
        %v9155 = vpop.f32.mrb[0].mxu0
        %v9156 = vadd.f32 %v8995, %v9155
        %v9157 = vpop.f32.mrb[0].mxu0
        %v9158 = vpop.f32.mrb[0].mxu0
        %v9159 = vadd.f32 %v8998, %v9158
        %v9160 = vpop.f32.mrb[0].mxu0
        %9161 = vmatprep.mubr.bf16.mxu0 %v8256
        %9162 = vmatmul.mubr.bf16.gmra.mrb[0].mxu0 %v8255
        %v9163 = vpop.f32.mrb[0].mxu0
        %v9164 = vadd.f32 %v9003, %v9163
        %v9165 = vpop.f32.mrb[0].mxu0
        %v9166 = vpop.f32.mrb[0].mxu0
        %v9167 = vadd.f32 %v9006, %v9166
        %v9168 = vpop.f32.mrb[0].mxu0
        %9169 = vmatprep.mubr.bf16.mxu0 %v8265
        %9170 = vmatmul.mubr.bf16.gmra.mrb[0].mxu0 %v8264
        %v9171 = vpop.f32.mrb[0].mxu0
        %v9172 = vadd.f32 %v9011, %v9171
        %v9173 = vpop.f32.mrb[0].mxu0
        %v9174 = vpop.f32.mrb[0].mxu0
        %v9175 = vadd.f32 %v9014, %v9174
        %v9176 = vpop.f32.mrb[0].mxu0
        %9177 = vmatprep.mubr.bf16.mxu0 %v8274
        %9178 = vmatmul.mubr.bf16.gmra.mrb[0].mxu0 %v8273
        %v9179 = vpop.f32.mrb[0].mxu0
        %v9180 = vadd.f32 %v9019, %v9179
        %v9181 = vpop.f32.mrb[0].mxu0
        %v9182 = vpop.f32.mrb[0].mxu0
        %v9183 = vadd.f32 %v9022, %v9182
        %v9184 = vpop.f32.mrb[0].mxu0
        %9185 = vmatprep.mubr.bf16.mxu0 %v8283
        %9186 = vmatmul.mubr.bf16.gmra.mrb[0].mxu0 %v8282
        %v9187 = vpop.f32.mrb[0].mxu0
        %v9188 = vadd.f32 %v9027, %v9187
        %v9189 = vpop.f32.mrb[0].mxu0
        %v9190 = vpop.f32.mrb[0].mxu0
        %v9191 = vadd.f32 %v9030, %v9190
        %v9192 = vpop.f32.mrb[0].mxu0
        %9193 = vdwg.mxu0
        %9194 = vmatprep.subr.bf16.mxu0 0
        %9195 = vmatpush1.bf16.msra.mxu0 %v8760
        %9196 = vmatprep.subr.bf16.mxu0 0
        %9197 = vmatpush1.bf16.msra.mxu0 %v8761
        %9198 = vmatprep.subr.bf16.mxu0 0
        %9199 = vmatpush1.bf16.msra.mxu0 %v8762
        %9200 = vmatprep.subr.bf16.mxu0 0
        %9201 = vmatpush1.bf16.msra.mxu0 %v8763
        %9202 = vmatprep.subr.bf16.mxu0 0
        %9203 = vmatpush1.bf16.msra.mxu0 %v8764
        %9204 = vmatprep.subr.bf16.mxu0 0
        %9205 = vmatpush1.bf16.msra.mxu0 %v8765
        %9206 = vmatprep.subr.bf16.mxu0 0
        %9207 = vmatpush1.bf16.msra.mxu0 %v8766
        %9208 = vmatprep.subr.bf16.mxu0 0
        %9209 = vmatpush1.bf16.msra.mxu0 %v8767
        %9210 = vmatprep.subr.bf16.mxu0 0
        %9211 = vmatpush1.bf16.msra.mxu0 %v8768
        %9212 = vmatprep.subr.bf16.mxu0 0
        %9213 = vmatpush1.bf16.msra.mxu0 %v8769
        %9214 = vmatprep.subr.bf16.mxu0 0
        %9215 = vmatpush1.bf16.msra.mxu0 %v8770
        %9216 = vmatprep.subr.bf16.mxu0 0
        %9217 = vmatpush1.bf16.msra.mxu0 %v8771
        %9218 = vmatprep.subr.bf16.mxu0 0
        %9219 = vmatpush1.bf16.msra.mxu0 %v8772
        %9220 = vmatprep.subr.bf16.mxu0 0
        %9221 = vmatpush1.bf16.msra.mxu0 %v8773
        %9222 = vmatprep.subr.bf16.mxu0 0
        %9223 = vmatpush1.bf16.msra.mxu0 %v8774
        %9224 = vmatprep.subr.bf16.mxu0 0
        %9225 = vmatpush1.bf16.msra.mxu0 %v8775
        %9226 = vmatprep.mubr.bf16.mxu0 %v8150
        %9227 = vmatmul.mubr.bf16.gmra.mrb[0].mxu0 %v8149
        %v9228 = vpop.f32.mrb[0].mxu0
        %v9229 = vadd.f32 %v9068, %v9228
        %v9230 = vpop.f32.mrb[0].mxu0
        %v9231 = vpop.f32.mrb[0].mxu0
        %v9232 = vadd.f32 %v9071, %v9231
        %v9233 = vpop.f32.mrb[0].mxu0
        %9234 = vmatprep.mubr.bf16.mxu0 %v8159
        %9235 = vmatmul.mubr.bf16.gmra.mrb[0].mxu0 %v8158
        %v9236 = vpop.f32.mrb[0].mxu0
        %v9237 = vadd.f32 %v9076, %v9236
        %v9238 = vpop.f32.mrb[0].mxu0
        %v9239 = vpop.f32.mrb[0].mxu0
        %v9240 = vadd.f32 %v9079, %v9239
        %v9241 = vpop.f32.mrb[0].mxu0
        %9242 = vmatprep.mubr.bf16.mxu0 %v8168
        %9243 = vmatmul.mubr.bf16.gmra.mrb[0].mxu0 %v8167
        %v9244 = vpop.f32.mrb[0].mxu0
        %v9245 = vadd.f32 %v9084, %v9244
        %v9246 = vpop.f32.mrb[0].mxu0
        %v9247 = vpop.f32.mrb[0].mxu0
        %v9248 = vadd.f32 %v9087, %v9247
        %v9249 = vpop.f32.mrb[0].mxu0
        %9250 = vmatprep.mubr.bf16.mxu0 %v8177
        %9251 = vmatmul.mubr.bf16.gmra.mrb[0].mxu0 %v8176
        %v9252 = vpop.f32.mrb[0].mxu0
        %v9253 = vadd.f32 %v9092, %v9252
        %v9254 = vpop.f32.mrb[0].mxu0
        %v9255 = vpop.f32.mrb[0].mxu0
        %v9256 = vadd.f32 %v9095, %v9255
        %v9257 = vpop.f32.mrb[0].mxu0
        %9258 = vmatprep.mubr.bf16.mxu0 %v8186
        %9259 = vmatmul.mubr.bf16.gmra.mrb[0].mxu0 %v8185
        %v9260 = vpop.f32.mrb[0].mxu0
        %v9261 = vadd.f32 %v9100, %v9260
        %v9262 = vpop.f32.mrb[0].mxu0
        %v9263 = vpop.f32.mrb[0].mxu0
        %v9264 = vadd.f32 %v9103, %v9263
        %v9265 = vpop.f32.mrb[0].mxu0
        %9266 = vmatprep.mubr.bf16.mxu0 %v8195
        %9267 = vmatmul.mubr.bf16.gmra.mrb[0].mxu0 %v8194
        %v9268 = vpop.f32.mrb[0].mxu0
        %v9269 = vadd.f32 %v9108, %v9268
        %v9270 = vpop.f32.mrb[0].mxu0
        %v9271 = vpop.f32.mrb[0].mxu0
        %v9272 = vadd.f32 %v9111, %v9271
        %v9273 = vpop.f32.mrb[0].mxu0
        %9274 = vmatprep.mubr.bf16.mxu0 %v8204
        %9275 = vmatmul.mubr.bf16.gmra.mrb[0].mxu0 %v8203
        %v9276 = vpop.f32.mrb[0].mxu0
        %v9277 = vadd.f32 %v9116, %v9276
        %v9278 = vpop.f32.mrb[0].mxu0
        %v9279 = vpop.f32.mrb[0].mxu0
        %v9280 = vadd.f32 %v9119, %v9279
        %v9281 = vpop.f32.mrb[0].mxu0
        %9282 = vmatprep.mubr.bf16.mxu0 %v8213
        %9283 = vmatmul.mubr.bf16.gmra.mrb[0].mxu0 %v8212
        %v9284 = vpop.f32.mrb[0].mxu0
        %v9285 = vadd.f32 %v9124, %v9284
        %v9286 = vpop.f32.mrb[0].mxu0
        %v9287 = vpop.f32.mrb[0].mxu0
        %v9288 = vadd.f32 %v9127, %v9287
        %v9289 = vpop.f32.mrb[0].mxu0
        %9290 = vmatprep.mubr.bf16.mxu0 %v8222
        %9291 = vmatmul.mubr.bf16.gmra.mrb[0].mxu0 %v8221
        %v9292 = vpop.f32.mrb[0].mxu0
        %v9293 = vadd.f32 %v9132, %v9292
        %v9294 = vpop.f32.mrb[0].mxu0
        %v9295 = vpop.f32.mrb[0].mxu0
        %v9296 = vadd.f32 %v9135, %v9295
        %v9297 = vpop.f32.mrb[0].mxu0
        %9298 = vmatprep.mubr.bf16.mxu0 %v8231
        %9299 = vmatmul.mubr.bf16.gmra.mrb[0].mxu0 %v8230
        %v9300 = vpop.f32.mrb[0].mxu0
        %v9301 = vadd.f32 %v9140, %v9300
        %v9302 = vpop.f32.mrb[0].mxu0
        %v9303 = vpop.f32.mrb[0].mxu0
        %v9304 = vadd.f32 %v9143, %v9303
        %v9305 = vpop.f32.mrb[0].mxu0
        %9306 = vmatprep.mubr.bf16.mxu0 %v8240
        %9307 = vmatmul.mubr.bf16.gmra.mrb[0].mxu0 %v8239
        %v9308 = vpop.f32.mrb[0].mxu0
        %v9309 = vadd.f32 %v9148, %v9308
        %v9310 = vpop.f32.mrb[0].mxu0
        %v9311 = vpop.f32.mrb[0].mxu0
        %v9312 = vadd.f32 %v9151, %v9311
        %v9313 = vpop.f32.mrb[0].mxu0
        %9314 = vmatprep.mubr.bf16.mxu0 %v8249
        %9315 = vmatmul.mubr.bf16.gmra.mrb[0].mxu0 %v8248
        %v9316 = vpop.f32.mrb[0].mxu0
        %v9317 = vadd.f32 %v9156, %v9316
        %v9318 = vpop.f32.mrb[0].mxu0
        %v9319 = vpop.f32.mrb[0].mxu0
        %v9320 = vadd.f32 %v9159, %v9319
        %v9321 = vpop.f32.mrb[0].mxu0
        %9322 = vmatprep.mubr.bf16.mxu0 %v8258
        %9323 = vmatmul.mubr.bf16.gmra.mrb[0].mxu0 %v8257
        %v9324 = vpop.f32.mrb[0].mxu0
        %v9325 = vadd.f32 %v9164, %v9324
        %v9326 = vpop.f32.mrb[0].mxu0
        %v9327 = vpop.f32.mrb[0].mxu0
        %v9328 = vadd.f32 %v9167, %v9327
        %v9329 = vpop.f32.mrb[0].mxu0
        %9330 = vmatprep.mubr.bf16.mxu0 %v8267
        %9331 = vmatmul.mubr.bf16.gmra.mrb[0].mxu0 %v8266
        %v9332 = vpop.f32.mrb[0].mxu0
        %v9333 = vadd.f32 %v9172, %v9332
        %v9334 = vpop.f32.mrb[0].mxu0
        %v9335 = vpop.f32.mrb[0].mxu0
        %v9336 = vadd.f32 %v9175, %v9335
        %v9337 = vpop.f32.mrb[0].mxu0
        %9338 = vmatprep.mubr.bf16.mxu0 %v8276
        %9339 = vmatmul.mubr.bf16.gmra.mrb[0].mxu0 %v8275
        %v9340 = vpop.f32.mrb[0].mxu0
        %v9341 = vadd.f32 %v9180, %v9340
        %v9342 = vpop.f32.mrb[0].mxu0
        %v9343 = vpop.f32.mrb[0].mxu0
        %v9344 = vadd.f32 %v9183, %v9343
        %v9345 = vpop.f32.mrb[0].mxu0
        %9346 = vmatprep.mubr.bf16.mxu0 %v8285
        %9347 = vmatmul.mubr.bf16.gmra.mrb[0].mxu0 %v8284
        %v9348 = vpop.f32.mrb[0].mxu0
        %v9349 = vadd.f32 %v9188, %v9348
        %v9350 = vpop.f32.mrb[0].mxu0
        %v9351 = vpop.f32.mrb[0].mxu0
        %v9352 = vadd.f32 %v9191, %v9351
        %v9353 = vpop.f32.mrb[0].mxu0
        %9354 = vdwg.mxu0
        %9355 = vmatprep.subr.bf16.mxu0 0
        %9356 = vmatpush1.bf16.msra.mxu0 %v8776
        %9357 = vmatprep.subr.bf16.mxu0 0
        %9358 = vmatpush1.bf16.msra.mxu0 %v8777
        %9359 = vmatprep.subr.bf16.mxu0 0
        %9360 = vmatpush1.bf16.msra.mxu0 %v8778
        %9361 = vmatprep.subr.bf16.mxu0 0
        %9362 = vmatpush1.bf16.msra.mxu0 %v8779
        %9363 = vmatprep.subr.bf16.mxu0 0
        %9364 = vmatpush1.bf16.msra.mxu0 %v8780
        %9365 = vmatprep.subr.bf16.mxu0 0
        %9366 = vmatpush1.bf16.msra.mxu0 %v8781
        %9367 = vmatprep.subr.bf16.mxu0 0
        %9368 = vmatpush1.bf16.msra.mxu0 %v8782
        %9369 = vmatprep.subr.bf16.mxu0 0
        %9370 = vmatpush1.bf16.msra.mxu0 %v8783
        %9371 = vmatprep.subr.bf16.mxu0 0
        %9372 = vmatpush1.bf16.msra.mxu0 %v8784
        %9373 = vmatprep.subr.bf16.mxu0 0
        %9374 = vmatpush1.bf16.msra.mxu0 %v8785
        %9375 = vmatprep.subr.bf16.mxu0 0
        %9376 = vmatpush1.bf16.msra.mxu0 %v8786
        %9377 = vmatprep.subr.bf16.mxu0 0
        %9378 = vmatpush1.bf16.msra.mxu0 %v8787
        %9379 = vmatprep.subr.bf16.mxu0 0
        %9380 = vmatpush1.bf16.msra.mxu0 %v8788
        %9381 = vmatprep.subr.bf16.mxu0 0
        %9382 = vmatpush1.bf16.msra.mxu0 %v8789
        %9383 = vmatprep.subr.bf16.mxu0 0
        %9384 = vmatpush1.bf16.msra.mxu0 %v8790
        %9385 = vmatprep.subr.bf16.mxu0 0
        %9386 = vmatpush1.bf16.msra.mxu0 %v8791
        %9387 = vmatprep.mubr.bf16.mxu0 %v8152
        %9388 = vmatmul.mubr.bf16.gmra.mrb[0].mxu0 %v8151
        %v9389 = vpop.f32.mrb[0].mxu0
        %v9390 = vadd.f32 %v9229, %v9389
        %v9391 = vpop.f32.mrb[0].mxu0
        %v9392 = vpop.f32.mrb[0].mxu0
        %v9393 = vadd.f32 %v9232, %v9392
        %v9394 = vpop.f32.mrb[0].mxu0
        %9395 = vmatprep.mubr.bf16.mxu0 %v8161
        %9396 = vmatmul.mubr.bf16.gmra.mrb[0].mxu0 %v8160
        %v9397 = vpop.f32.mrb[0].mxu0
        %v9398 = vadd.f32 %v9237, %v9397
        %v9399 = vpop.f32.mrb[0].mxu0
        %v9400 = vpop.f32.mrb[0].mxu0
        %v9401 = vadd.f32 %v9240, %v9400
        %v9402 = vpop.f32.mrb[0].mxu0
        %9403 = vmatprep.mubr.bf16.mxu0 %v8170
        %9404 = vmatmul.mubr.bf16.gmra.mrb[0].mxu0 %v8169
        %v9405 = vpop.f32.mrb[0].mxu0
        %v9406 = vadd.f32 %v9245, %v9405
        %v9407 = vpop.f32.mrb[0].mxu0
        %v9408 = vpop.f32.mrb[0].mxu0
        %v9409 = vadd.f32 %v9248, %v9408
        %v9410 = vpop.f32.mrb[0].mxu0
        %9411 = vmatprep.mubr.bf16.mxu0 %v8179
        %9412 = vmatmul.mubr.bf16.gmra.mrb[0].mxu0 %v8178
        %v9413 = vpop.f32.mrb[0].mxu0
        %v9414 = vadd.f32 %v9253, %v9413
        %v9415 = vpop.f32.mrb[0].mxu0
        %v9416 = vpop.f32.mrb[0].mxu0
        %v9417 = vadd.f32 %v9256, %v9416
        %v9418 = vpop.f32.mrb[0].mxu0
        %9419 = vmatprep.mubr.bf16.mxu0 %v8188
        %9420 = vmatmul.mubr.bf16.gmra.mrb[0].mxu0 %v8187
        %v9421 = vpop.f32.mrb[0].mxu0
        %v9422 = vadd.f32 %v9261, %v9421
        %v9423 = vpop.f32.mrb[0].mxu0
        %v9424 = vpop.f32.mrb[0].mxu0
        %v9425 = vadd.f32 %v9264, %v9424
        %v9426 = vpop.f32.mrb[0].mxu0
        %9427 = vmatprep.mubr.bf16.mxu0 %v8197
        %9428 = vmatmul.mubr.bf16.gmra.mrb[0].mxu0 %v8196
        %v9429 = vpop.f32.mrb[0].mxu0
        %v9430 = vadd.f32 %v9269, %v9429
        %v9431 = vpop.f32.mrb[0].mxu0
        %v9432 = vpop.f32.mrb[0].mxu0
        %v9433 = vadd.f32 %v9272, %v9432
        %v9434 = vpop.f32.mrb[0].mxu0
        %9435 = vmatprep.mubr.bf16.mxu0 %v8206
        %9436 = vmatmul.mubr.bf16.gmra.mrb[0].mxu0 %v8205
        %v9437 = vpop.f32.mrb[0].mxu0
        %v9438 = vadd.f32 %v9277, %v9437
        %v9439 = vpop.f32.mrb[0].mxu0
        %v9440 = vpop.f32.mrb[0].mxu0
        %v9441 = vadd.f32 %v9280, %v9440
        %v9442 = vpop.f32.mrb[0].mxu0
        %9443 = vmatprep.mubr.bf16.mxu0 %v8215
        %9444 = vmatmul.mubr.bf16.gmra.mrb[0].mxu0 %v8214
        %v9445 = vpop.f32.mrb[0].mxu0
        %v9446 = vadd.f32 %v9285, %v9445
        %v9447 = vpop.f32.mrb[0].mxu0
        %v9448 = vpop.f32.mrb[0].mxu0
        %v9449 = vadd.f32 %v9288, %v9448
        %v9450 = vpop.f32.mrb[0].mxu0
        %9451 = vmatprep.mubr.bf16.mxu0 %v8224
        %9452 = vmatmul.mubr.bf16.gmra.mrb[0].mxu0 %v8223
        %v9453 = vpop.f32.mrb[0].mxu0
        %v9454 = vadd.f32 %v9293, %v9453
        %v9455 = vpop.f32.mrb[0].mxu0
        %v9456 = vpop.f32.mrb[0].mxu0
        %v9457 = vadd.f32 %v9296, %v9456
        %v9458 = vpop.f32.mrb[0].mxu0
        %9459 = vmatprep.mubr.bf16.mxu0 %v8233
        %9460 = vmatmul.mubr.bf16.gmra.mrb[0].mxu0 %v8232
        %v9461 = vpop.f32.mrb[0].mxu0
        %v9462 = vadd.f32 %v9301, %v9461
        %v9463 = vpop.f32.mrb[0].mxu0
        %v9464 = vpop.f32.mrb[0].mxu0
        %v9465 = vadd.f32 %v9304, %v9464
        %v9466 = vpop.f32.mrb[0].mxu0
        %9467 = vmatprep.mubr.bf16.mxu0 %v8242
        %9468 = vmatmul.mubr.bf16.gmra.mrb[0].mxu0 %v8241
        %v9469 = vpop.f32.mrb[0].mxu0
        %v9470 = vadd.f32 %v9309, %v9469
        %v9471 = vpop.f32.mrb[0].mxu0
        %v9472 = vpop.f32.mrb[0].mxu0
        %v9473 = vadd.f32 %v9312, %v9472
        %v9474 = vpop.f32.mrb[0].mxu0
        %9475 = vmatprep.mubr.bf16.mxu0 %v8251
        %9476 = vmatmul.mubr.bf16.gmra.mrb[0].mxu0 %v8250
        %v9477 = vpop.f32.mrb[0].mxu0
        %v9478 = vadd.f32 %v9317, %v9477
        %v9479 = vpop.f32.mrb[0].mxu0
        %v9480 = vpop.f32.mrb[0].mxu0
        %v9481 = vadd.f32 %v9320, %v9480
        %v9482 = vpop.f32.mrb[0].mxu0
        %9483 = vmatprep.mubr.bf16.mxu0 %v8260
        %9484 = vmatmul.mubr.bf16.gmra.mrb[0].mxu0 %v8259
        %v9485 = vpop.f32.mrb[0].mxu0
        %v9486 = vadd.f32 %v9325, %v9485
        %v9487 = vpop.f32.mrb[0].mxu0
        %v9488 = vpop.f32.mrb[0].mxu0
        %v9489 = vadd.f32 %v9328, %v9488
        %v9490 = vpop.f32.mrb[0].mxu0
        %9491 = vmatprep.mubr.bf16.mxu0 %v8269
        %9492 = vmatmul.mubr.bf16.gmra.mrb[0].mxu0 %v8268
        %v9493 = vpop.f32.mrb[0].mxu0
        %v9494 = vadd.f32 %v9333, %v9493
        %v9495 = vpop.f32.mrb[0].mxu0
        %v9496 = vpop.f32.mrb[0].mxu0
        %v9497 = vadd.f32 %v9336, %v9496
        %v9498 = vpop.f32.mrb[0].mxu0
        %9499 = vmatprep.mubr.bf16.mxu0 %v8278
        %9500 = vmatmul.mubr.bf16.gmra.mrb[0].mxu0 %v8277
        %v9501 = vpop.f32.mrb[0].mxu0
        %v9502 = vadd.f32 %v9341, %v9501
        %v9503 = vpop.f32.mrb[0].mxu0
        %v9504 = vpop.f32.mrb[0].mxu0
        %v9505 = vadd.f32 %v9344, %v9504
        %v9506 = vpop.f32.mrb[0].mxu0
        %9507 = vmatprep.mubr.bf16.mxu0 %v8287
        %9508 = vmatmul.mubr.bf16.gmra.mrb[0].mxu0 %v8286
        %v9509 = vpop.f32.mrb[0].mxu0
        %v9510 = vadd.f32 %v9349, %v9509
        %v9511 = vpop.f32.mrb[0].mxu0
        %v9512 = vpop.f32.mrb[0].mxu0
        %v9513 = vadd.f32 %v9352, %v9512
        %v9514 = vpop.f32.mrb[0].mxu0
        %9515 = vdwg.mxu0
        %9516 = vmatprep.subr.bf16.mxu0 0
        %9517 = vmatpush1.bf16.msra.mxu0 %v8792
        %9518 = vmatprep.subr.bf16.mxu0 0
        %9519 = vmatpush1.bf16.msra.mxu0 %v8793
        %9520 = vmatprep.subr.bf16.mxu0 0
        %9521 = vmatpush1.bf16.msra.mxu0 %v8794
        %9522 = vmatprep.subr.bf16.mxu0 0
        %9523 = vmatpush1.bf16.msra.mxu0 %v8795
        %9524 = vmatprep.subr.bf16.mxu0 0
        %9525 = vmatpush1.bf16.msra.mxu0 %v8796
        %9526 = vmatprep.subr.bf16.mxu0 0
        %9527 = vmatpush1.bf16.msra.mxu0 %v8797
        %9528 = vmatprep.subr.bf16.mxu0 0
        %9529 = vmatpush1.bf16.msra.mxu0 %v8798
        %9530 = vmatprep.subr.bf16.mxu0 0
        %9531 = vmatpush1.bf16.msra.mxu0 %v8799
        %9532 = vmatprep.subr.bf16.mxu0 0
        %9533 = vmatpush1.bf16.msra.mxu0 0
        %9534 = vmatprep.subr.bf16.mxu0 0
        %9535 = vmatpush1.bf16.msra.mxu0 0
        %9536 = vmatprep.subr.bf16.mxu0 0
        %9537 = vmatpush1.bf16.msra.mxu0 0
        %9538 = vmatprep.subr.bf16.mxu0 0
        %9539 = vmatpush1.bf16.msra.mxu0 0
        %9540 = vmatprep.subr.bf16.mxu0 0
        %9541 = vmatpush1.bf16.msra.mxu0 0
        %9542 = vmatprep.subr.bf16.mxu0 0
        %9543 = vmatpush1.bf16.msra.mxu0 0
        %9544 = vmatprep.subr.bf16.mxu0 0
        %9545 = vmatpush1.bf16.msra.mxu0 0
        %9546 = vmatprep.subr.bf16.mxu0 0
        %9547 = vmatpush1.bf16.msra.mxu0 0
        %9548 = vmatprep.mubr.bf16.mxu0 0
        %9549 = vmatmul.mubr.bf16.gmra.mrb[0].mxu0 %v8153
        %v9550 = vpop.f32.mrb[0].mxu0
        %v9551 = vadd.f32 %v9390, %v9550
        %v9552 = vpop.f32.mrb[0].mxu0
        %v9553 = vpop.f32.mrb[0].mxu0
        %v9554 = vadd.f32 %v9393, %v9553
        %v9555 = vpop.f32.mrb[0].mxu0
        %9556 = vmatprep.mubr.bf16.mxu0 0
        %9557 = vmatmul.mubr.bf16.gmra.mrb[0].mxu0 %v8162
        %v9558 = vpop.f32.mrb[0].mxu0
        %v9559 = vadd.f32 %v9398, %v9558
        %v9560 = vpop.f32.mrb[0].mxu0
        %v9561 = vpop.f32.mrb[0].mxu0
        %v9562 = vadd.f32 %v9401, %v9561
        %v9563 = vpop.f32.mrb[0].mxu0
        %9564 = vmatprep.mubr.bf16.mxu0 0
        %9565 = vmatmul.mubr.bf16.gmra.mrb[0].mxu0 %v8171
        %v9566 = vpop.f32.mrb[0].mxu0
        %v9567 = vadd.f32 %v9406, %v9566
        %v9568 = vpop.f32.mrb[0].mxu0
        %v9569 = vpop.f32.mrb[0].mxu0
        %v9570 = vadd.f32 %v9409, %v9569
        %v9571 = vpop.f32.mrb[0].mxu0
        %9572 = vmatprep.mubr.bf16.mxu0 0
        %9573 = vmatmul.mubr.bf16.gmra.mrb[0].mxu0 %v8180
        %v9574 = vpop.f32.mrb[0].mxu0
        %v9575 = vadd.f32 %v9414, %v9574
        %v9576 = vpop.f32.mrb[0].mxu0
        %v9577 = vpop.f32.mrb[0].mxu0
        %v9578 = vadd.f32 %v9417, %v9577
        %v9579 = vpop.f32.mrb[0].mxu0
        %9580 = vmatprep.mubr.bf16.mxu0 0
        %9581 = vmatmul.mubr.bf16.gmra.mrb[0].mxu0 %v8189
        %v9582 = vpop.f32.mrb[0].mxu0
        %v9583 = vadd.f32 %v9422, %v9582
        %v9584 = vpop.f32.mrb[0].mxu0
        %v9585 = vpop.f32.mrb[0].mxu0
        %v9586 = vadd.f32 %v9425, %v9585
        %v9587 = vpop.f32.mrb[0].mxu0
        %9588 = vmatprep.mubr.bf16.mxu0 0
        %9589 = vmatmul.mubr.bf16.gmra.mrb[0].mxu0 %v8198
        %v9590 = vpop.f32.mrb[0].mxu0
        %v9591 = vadd.f32 %v9430, %v9590
        %v9592 = vpop.f32.mrb[0].mxu0
        %v9593 = vpop.f32.mrb[0].mxu0
        %v9594 = vadd.f32 %v9433, %v9593
        %v9595 = vpop.f32.mrb[0].mxu0
        %9596 = vmatprep.mubr.bf16.mxu0 0
        %9597 = vmatmul.mubr.bf16.gmra.mrb[0].mxu0 %v8207
        %v9598 = vpop.f32.mrb[0].mxu0
        %v9599 = vadd.f32 %v9438, %v9598
        %v9600 = vpop.f32.mrb[0].mxu0
        %v9601 = vpop.f32.mrb[0].mxu0
        %v9602 = vadd.f32 %v9441, %v9601
        %v9603 = vpop.f32.mrb[0].mxu0
        %9604 = vmatprep.mubr.bf16.mxu0 0
        %9605 = vmatmul.mubr.bf16.gmra.mrb[0].mxu0 %v8216
        %v9606 = vpop.f32.mrb[0].mxu0
        %v9607 = vadd.f32 %v9446, %v9606
        %v9608 = vpop.f32.mrb[0].mxu0
        %v9609 = vpop.f32.mrb[0].mxu0
        %v9610 = vadd.f32 %v9449, %v9609
        %v9611 = vpop.f32.mrb[0].mxu0
        %9612 = vmatprep.mubr.bf16.mxu0 0
        %9613 = vmatmul.mubr.bf16.gmra.mrb[0].mxu0 %v8225
        %v9614 = vpop.f32.mrb[0].mxu0
        %v9615 = vadd.f32 %v9454, %v9614
        %v9616 = vpop.f32.mrb[0].mxu0
        %v9617 = vpop.f32.mrb[0].mxu0
        %v9618 = vadd.f32 %v9457, %v9617
        %v9619 = vpop.f32.mrb[0].mxu0
        %9620 = vmatprep.mubr.bf16.mxu0 0
        %9621 = vmatmul.mubr.bf16.gmra.mrb[0].mxu0 %v8234
        %v9622 = vpop.f32.mrb[0].mxu0
        %v9623 = vadd.f32 %v9462, %v9622
        %v9624 = vpop.f32.mrb[0].mxu0
        %v9625 = vpop.f32.mrb[0].mxu0
        %v9626 = vadd.f32 %v9465, %v9625
        %v9627 = vpop.f32.mrb[0].mxu0
        %9628 = vmatprep.mubr.bf16.mxu0 0
        %9629 = vmatmul.mubr.bf16.gmra.mrb[0].mxu0 %v8243
        %v9630 = vpop.f32.mrb[0].mxu0
        %v9631 = vadd.f32 %v9470, %v9630
        %v9632 = vpop.f32.mrb[0].mxu0
        %v9633 = vpop.f32.mrb[0].mxu0
        %v9634 = vadd.f32 %v9473, %v9633
        %v9635 = vpop.f32.mrb[0].mxu0
        %9636 = vmatprep.mubr.bf16.mxu0 0
        %9637 = vmatmul.mubr.bf16.gmra.mrb[0].mxu0 %v8252
        %v9638 = vpop.f32.mrb[0].mxu0
        %v9639 = vadd.f32 %v9478, %v9638
        %v9640 = vpop.f32.mrb[0].mxu0
        %v9641 = vpop.f32.mrb[0].mxu0
        %v9642 = vadd.f32 %v9481, %v9641
        %v9643 = vpop.f32.mrb[0].mxu0
        %9644 = vmatprep.mubr.bf16.mxu0 0
        %9645 = vmatmul.mubr.bf16.gmra.mrb[0].mxu0 %v8261
        %v9646 = vpop.f32.mrb[0].mxu0
        %v9647 = vadd.f32 %v9486, %v9646
        %v9648 = vpop.f32.mrb[0].mxu0
        %v9649 = vpop.f32.mrb[0].mxu0
        %v9650 = vadd.f32 %v9489, %v9649
        %v9651 = vpop.f32.mrb[0].mxu0
        %9652 = vmatprep.mubr.bf16.mxu0 0
        %9653 = vmatmul.mubr.bf16.gmra.mrb[0].mxu0 %v8270
        %v9654 = vpop.f32.mrb[0].mxu0
        %v9655 = vadd.f32 %v9494, %v9654
        %v9656 = vpop.f32.mrb[0].mxu0
        %v9657 = vpop.f32.mrb[0].mxu0
        %v9658 = vadd.f32 %v9497, %v9657
        %v9659 = vpop.f32.mrb[0].mxu0
        %9660 = vmatprep.mubr.bf16.mxu0 0
        %9661 = vmatmul.mubr.bf16.gmra.mrb[0].mxu0 %v8279
        %v9662 = vpop.f32.mrb[0].mxu0
        %v9663 = vadd.f32 %v9502, %v9662
        %v9664 = vpop.f32.mrb[0].mxu0
        %v9665 = vpop.f32.mrb[0].mxu0
        %v9666 = vadd.f32 %v9505, %v9665
        %v9667 = vpop.f32.mrb[0].mxu0
        %9668 = vmatprep.mubr.bf16.mxu0 0
        %9669 = vmatmul.mubr.bf16.gmra.mrb[0].mxu0 %v8288
        %v9670 = vpop.f32.mrb[0].mxu0
        %v9671 = vadd.f32 %v9510, %v9670
        %v9672 = vpop.f32.mrb[0].mxu0
        %v9673 = vpop.f32.mrb[0].mxu0
        %v9674 = vadd.f32 %v9513, %v9673
        %v9675 = vpop.f32.mrb[0].mxu0
        %9676 = vdwg.mxu0
        %v9677 = vunpack.c.l.bf16 %v3079
        %v9678 = vunpack.c.h.bf16 %v3079
        %v9679 = vunpack.c.l.bf16 %v3080
        %v9680 = vunpack.c.h.bf16 %v3080
        %v9681 = vunpack.c.l.bf16 %v3081
        %v9682 = vunpack.c.h.bf16 %v3081
        %v9683 = vunpack.c.l.bf16 %v3082
        %v9684 = vunpack.c.h.bf16 %v3082
        %v9685 = vunpack.c.l.bf16 %v3083
        %v9686 = vunpack.c.h.bf16 %v3083
        %v9687 = vunpack.c.l.bf16 %v3084
        %v9688 = vunpack.c.h.bf16 %v3084
        %v9689 = vunpack.c.l.bf16 %v3085
        %v9690 = vunpack.c.h.bf16 %v3085
        %v9691 = vunpack.c.l.bf16 %v3086
        %v9692 = vunpack.c.h.bf16 %v3086
        %v9693 = vunpack.c.l.bf16 %v3087
        %v9694 = vunpack.c.h.bf16 %v3087
        %v9695 = vunpack.c.l.bf16 %v3088
        %v9696 = vunpack.c.h.bf16 %v3088
        %v9697 = vunpack.c.l.bf16 %v3089
        %v9698 = vunpack.c.h.bf16 %v3089
        %v9699 = vunpack.c.l.bf16 %v3090
        %v9700 = vunpack.c.h.bf16 %v3090
        %v9701 = vunpack.c.l.bf16 %v3091
        %v9702 = vunpack.c.h.bf16 %v3091
        %v9703 = vunpack.c.l.bf16 %v3092
        %v9704 = vunpack.c.h.bf16 %v3092
        %v9705 = vunpack.c.l.bf16 %v3093
        %v9706 = vunpack.c.h.bf16 %v3093
        %v9707 = vunpack.c.l.bf16 %v3094
        %v9708 = vunpack.c.h.bf16 %v3094
        %v9709 = vadd.f32 %v9551, %v9677
        %v9710 = vadd.f32 %v9554, %v9678
        %v9711 = vadd.f32 %v9559, %v9679
        %v9712 = vadd.f32 %v9562, %v9680
        %v9713 = vadd.f32 %v9567, %v9681
        %v9714 = vadd.f32 %v9570, %v9682
        %v9715 = vadd.f32 %v9575, %v9683
        %v9716 = vadd.f32 %v9578, %v9684
        %v9717 = vadd.f32 %v9583, %v9685
        %v9718 = vadd.f32 %v9586, %v9686
        %v9719 = vadd.f32 %v9591, %v9687
        %v9720 = vadd.f32 %v9594, %v9688
        %v9721 = vadd.f32 %v9599, %v9689
        %v9722 = vadd.f32 %v9602, %v9690
        %v9723 = vadd.f32 %v9607, %v9691
        %v9724 = vadd.f32 %v9610, %v9692
        %v9725 = vadd.f32 %v9615, %v9693
        %v9726 = vadd.f32 %v9618, %v9694
        %v9727 = vadd.f32 %v9623, %v9695
        %v9728 = vadd.f32 %v9626, %v9696
        %v9729 = vadd.f32 %v9631, %v9697
        %v9730 = vadd.f32 %v9634, %v9698
        %v9731 = vadd.f32 %v9639, %v9699
        %v9732 = vadd.f32 %v9642, %v9700
        %v9733 = vadd.f32 %v9647, %v9701
        %v9734 = vadd.f32 %v9650, %v9702
        %v9735 = vadd.f32 %v9655, %v9703
        %v9736 = vadd.f32 %v9658, %v9704
        %v9737 = vadd.f32 %v9663, %v9705
        %v9738 = vadd.f32 %v9666, %v9706
        %v9739 = vadd.f32 %v9671, %v9707
        %v9740 = vadd.f32 %v9674, %v9708
        %v9741 = vmax.f32 %v9709, 0.0
        %v9742 = vmax.f32 %v9710, 0.0
        %v9743 = vmax.f32 %v9711, 0.0
        %v9744 = vmax.f32 %v9712, 0.0
        %v9745 = vmax.f32 %v9713, 0.0
        %v9746 = vmax.f32 %v9714, 0.0
        %v9747 = vmax.f32 %v9715, 0.0
        %v9748 = vmax.f32 %v9716, 0.0
        %v9749 = vmax.f32 %v9717, 0.0
        %v9750 = vmax.f32 %v9718, 0.0
        %v9751 = vmax.f32 %v9719, 0.0
        %v9752 = vmax.f32 %v9720, 0.0
        %v9753 = vmax.f32 %v9721, 0.0
        %v9754 = vmax.f32 %v9722, 0.0
        %v9755 = vmax.f32 %v9723, 0.0
        %v9756 = vmax.f32 %v9724, 0.0
        %v9757 = vmax.f32 %v9725, 0.0
        %v9758 = vmax.f32 %v9726, 0.0
        %v9759 = vmax.f32 %v9727, 0.0
        %v9760 = vmax.f32 %v9728, 0.0
        %v9761 = vmax.f32 %v9729, 0.0
        %v9762 = vmax.f32 %v9730, 0.0
        %v9763 = vmax.f32 %v9731, 0.0
        %v9764 = vmax.f32 %v9732, 0.0
        %v9765 = vmax.f32 %v9733, 0.0
        %v9766 = vmax.f32 %v9734, 0.0
        %v9767 = vmax.f32 %v9735, 0.0
        %v9768 = vmax.f32 %v9736, 0.0
        %v9769 = vmax.f32 %v9737, 0.0
        %v9770 = vmax.f32 %v9738, 0.0
        %v9771 = vmax.f32 %v9739, 0.0
        %v9772 = vmax.f32 %v9740, 0.0
        %9773 = vst [vmem:[%s232] sm:$0xff] %v9741
        %9774 = vst [vmem:[%s232 + $0x8] sm:$0xff] %v9742
        %9775 = vst [vmem:[%s232 + $0x10] sm:$0xff] %v9743
        %9776 = vst [vmem:[%s232 + $0x18] sm:$0xff] %v9744
        %9777 = vst [vmem:[%s232 + $0x20] sm:$0xff] %v9745
        %9778 = vst [vmem:[%s232 + $0x28] sm:$0xff] %v9746
        %9779 = vst [vmem:[%s232 + $0x30] sm:$0xff] %v9747
        %9780 = vst [vmem:[%s232 + $0x38] sm:$0xff] %v9748
        %9781 = vst [vmem:[%s232 + $0x40] sm:$0xff] %v9749
        %9782 = vst [vmem:[%s232 + $0x48] sm:$0xff] %v9750
        %9783 = vst [vmem:[%s232 + $0x50] sm:$0xff] %v9751
        %9784 = vst [vmem:[%s232 + $0x58] sm:$0xff] %v9752
        %9785 = vst [vmem:[%s232 + $0x60] sm:$0xff] %v9753
        %9786 = vst [vmem:[%s232 + $0x68] sm:$0xff] %v9754
        %9787 = vst [vmem:[%s232 + $0x70] sm:$0xff] %v9755
        %9788 = vst [vmem:[%s232 + $0x78] sm:$0xff] %v9756
        %9789 = vst [vmem:[%s232 + $0x80] sm:$0xff] %v9757
        %9790 = vst [vmem:[%s232 + $0x88] sm:$0xff] %v9758
        %9791 = vst [vmem:[%s232 + $0x90] sm:$0xff] %v9759
        %9792 = vst [vmem:[%s232 + $0x98] sm:$0xff] %v9760
        %9793 = vst [vmem:[%s232 + $0xa0] sm:$0xff] %v9761
        %9794 = vst [vmem:[%s232 + $0xa8] sm:$0xff] %v9762
        %9795 = vst [vmem:[%s232 + $0xb0] sm:$0xff] %v9763
        %9796 = vst [vmem:[%s232 + $0xb8] sm:$0xff] %v9764
        %9797 = vst [vmem:[%s232 + $0xc0] sm:$0xff] %v9765
        %9798 = vst [vmem:[%s232 + $0xc8] sm:$0xff] %v9766
        %9799 = vst [vmem:[%s232 + $0xd0] sm:$0xff] %v9767
        %9800 = vst [vmem:[%s232 + $0xd8] sm:$0xff] %v9768
        %9801 = vst [vmem:[%s232 + $0xe0] sm:$0xff] %v9769
        %9802 = vst [vmem:[%s232 + $0xe8] sm:$0xff] %v9770
        %9803 = vst [vmem:[%s232 + $0xf0] sm:$0xff] %v9771
        %9804 = vst [vmem:[%s232 + $0xf8] sm:$0xff] %v9772
        %s9805 = sand.u32 %s138, 1
        %s9806 = scalar_lea.sflag [#allocation6], %s9805
        %s9807 = sand.u32 %s138, 1
        %s9808 = smul.addr %s9807, 256
        %s9809 = scalar_lea.vmem [#allocation7], %s9808
        // Predicated region
        $region45: #{tpu_custom_call.1} parent=39 // pred_check
          %p9810 = pneg %p148
        $region46: #{tpu_custom_call.1} parent=39 // pred_check_branch
          %9812 = sbr.rel (%p9810) target = $region48
        $region47: #{tpu_custom_call.1} parent=39 // pred_region
          %s9814 = ssub.s32 4096, 4096
          %9815 = vsyncadd %s9806, %s9814
          %s9816 = smul.addr %s20, 32
          %s9817 = smul.addr %s9816, 128
          %s9818 = scalar_lea.hbm %s5, %s9817
          %s9819 = sshll.u32 %s9809, 4
          %s9820 = int_to_ptr.vmem [resolvable:$true] %s9819
          %9825 = dma.vmem_to_hbm [thread:$0]  %s9820, 4096, %s9818, %s9806, 128, 128, 8
        $region48: #{tpu_custom_call.1} parent=39 // pred_fallthru
          _
      $region40: #{tpu_custom_call.1} parent=5 // pred_fallthru
        _
      %p9826 = scmp.le.s32.totalorder 2, %s15
      // Predicated region
      $region49: #{tpu_custom_call.1} parent=5 // pred_check
        %p9827 = pneg %p9826
      $region50: #{tpu_custom_call.1} parent=5 // pred_check_branch
        %9829 = sbr.rel (%p9827) target = $region52
      $region51: #{tpu_custom_call.1} parent=5 // pred_region
        %s9830 = ssub.s32 %s15, 2
        // Predicated region
        $region53: #{tpu_custom_call.1} parent=51 // pred_check
          %p9831 = pneg %p154
        $region54: #{tpu_custom_call.1} parent=51 // pred_check_branch
          %9833 = sbr.rel (%p9831) target = $region56
        $region55: #{tpu_custom_call.1} parent=51 // pred_region
          %s9834 = sand.u32 %s139, 1
          %s9835 = scalar_lea.sflag [#allocation6], %s9834
          %s9836 = sand.u32 %s139, 1
          %s9837 = smul.addr %s9836, 256
          %s9838 = scalar_lea.vmem [#allocation7], %s9837
          %9839 = dma.done %s9835, 4096
        $region56: #{tpu_custom_call.1} parent=51 // pred_fallthru
          _
      $region52: #{tpu_custom_call.1} parent=5 // pred_fallthru
        _
    $region6: #{tpu_custom_call.1} parent=1 // loop_footer
      %s19 = sadd.s32 1, %s15
    $region7: #{tpu_custom_call.1} parent=1 // loop_footer_branch
      %14 = sbr.rel target = $region3
    $region8: #{tpu_custom_call.1} parent=1 // loop_exit
      _
    %9840 = vsyncpa [#allocation5], 1
    %s9841 = scalar_lea.sflag [#allocation5], 1
    %9842 = vsyncpa %s9841, 1
    %9843 = vsyncpa [#allocation6], 1
    %s9844 = scalar_lea.sflag [#allocation6], 1
    %9845 = vsyncpa %s9844, 1

</llo_original>
